<compile_context>
chip_gen: v5e
topology: v5e:2x2
jax: 0.10.0
libtpu: 0.0.40
codegen_flags: <defaults>
</compile_context>

<pallas_src>
import functools

import jax
import jax.numpy as jnp
from jax.experimental import pallas as pl
from jax.experimental.pallas import tpu as pltpu

IMAGE_CHANNEL = 3
BN_EPS = 1e-5
LEAKY_SLOPE = 0.2
VMEM_LIMIT = 32 * 1024 * 1024  # explicit scoped-VMEM budget; tiles are tiny, fits v5e/v6e/v7x

# (Cin, Cout, kernel, stride, pad, has_bn)
_LAYER_CFG = [
    (IMAGE_CHANNEL, 64,     5, 3, 1, False),
    (64,            64 * 2, 4, 2, 1, True),
    (64 * 2,        64 * 4, 4, 2, 1, True),
    (64 * 4,        64 * 8, 4, 2, 1, True),
    (64 * 8,        1,      4, 1, 0, False),
]


def _round_up(x, m):
    return (x + m - 1) // m * m


def _pick_tiles(M, K, N):
    """Per-layer tiles that divide the true dims exactly (no output padding)."""
    tm = 256 if M % 256 == 0 else M
    tk = 512 if K % 512 == 0 else K
    if M // tm >= 2:
        tn = 256 if N % 256 == 0 else (128 if N % 128 == 0 else N)
    else:
        # give the N axis >= 2 blocks when M has only one (keeps v7x megacore busy)
        tn = 128 if N % 128 == 0 else N
    assert M % tm == 0 and K % tk == 0 and N % tn == 0, (M, K, N, tm, tk, tn)
    return tm, tk, tn


def _pad_operands(a, b):
    """Zero-pad only the genuinely ragged dims (M -> 8k rows, K -> 128k)."""
    M, K = a.shape
    Kb, N = b.shape
    assert K == Kb, (a.shape, b.shape)
    Mp, Kp = _round_up(M, 8), _round_up(K, 128)
    if (Mp, Kp) != (M, K):
        a = jnp.pad(a, ((0, Mp - M), (0, Kp - K)))
    if Kp != K:
        b = jnp.pad(b, ((0, Kp - K), (0, 0)))
    return a, b, M


# ----------------------------- Pallas kernels -----------------------------

def _mm_act_kernel(a_ref, b_ref, o_ref, acc_ref, *, act):
    """Tiled bf16 matmul, f32 accumulator, fused activation epilogue."""
    @pl.when(pl.program_id(2) == 0)
    def _():
        acc_ref[...] = jnp.zeros_like(acc_ref)

    acc_ref[...] += jnp.dot(a_ref[...], b_ref[...],
                            preferred_element_type=jnp.float32)

    @pl.when(pl.program_id(2) == pl.num_programs(2) - 1)
    def _():
        y = acc_ref[...]
        if act == "leaky_relu":
            y = jnp.maximum(y, LEAKY_SLOPE * y)
        elif act == "sigmoid":
            y = 1.0 / (1.0 + jnp.exp(-y))
        o_ref[...] = y.astype(o_ref.dtype)


def _mm_bn_stats_kernel(a_ref, b_ref, o_ref, sum_ref, ssq_ref, acc_ref):
    """Matmul + fused per-column partial sum / sum-of-squares (BatchNorm stats)."""
    @pl.when(pl.program_id(2) == 0)
    def _():
        acc_ref[...] = jnp.zeros_like(acc_ref)

    acc_ref[...] += jnp.dot(a_ref[...], b_ref[...],
                            preferred_element_type=jnp.float32)

    @pl.when(pl.program_id(2) == pl.num_programs(2) - 1)
    def _():
        acc = acc_ref[...]
        o_ref[...] = acc.astype(o_ref.dtype)
        # one partial per (m-block, column); replicated across 8 sublanes so the
        # stats output block stays (8, tn)-aligned.
        col_sum = jnp.sum(acc, axis=0, keepdims=True)
        col_ssq = jnp.sum(acc * acc, axis=0, keepdims=True)
        sum_ref[...] = jnp.broadcast_to(col_sum, sum_ref.shape)
        ssq_ref[...] = jnp.broadcast_to(col_ssq, ssq_ref.shape)


def _bn_lrelu_kernel(x_ref, scale_ref, shift_ref, o_ref):
    y = x_ref[...] * scale_ref[...] + shift_ref[...]
    o_ref[...] = jnp.maximum(y, LEAKY_SLOPE * y).astype(o_ref.dtype)


# ----------------------------- kernel wrappers -----------------------------

def pallas_matmul_act(a, b, *, act=None, out_dtype=jnp.bfloat16):
    a, b, m_true = _pad_operands(a, b)
    M, K = a.shape
    _, N = b.shape
    tm, tk, tn = _pick_tiles(M, K, N)
    out = pl.pallas_call(
        functools.partial(_mm_act_kernel, act=act),
        out_shape=jax.ShapeDtypeStruct((M, N), out_dtype),
        grid_spec=pltpu.PrefetchScalarGridSpec(
            num_scalar_prefetch=0,
            grid=(M // tm, N // tn, K // tk),
            in_specs=[pl.BlockSpec((tm, tk), lambda i, j, k: (i, k)),
                      pl.BlockSpec((tk, tn), lambda i, j, k: (k, j))],
            out_specs=pl.BlockSpec((tm, tn), lambda i, j, k: (i, j)),
            scratch_shapes=[pltpu.VMEM((tm, tn), jnp.float32)]),
        compiler_params=pltpu.CompilerParams(
            dimension_semantics=("parallel", "parallel", "arbitrary"),
            vmem_limit_bytes=VMEM_LIMIT),
    )(a, b)
    return out[:m_true] if m_true != M else out


def pallas_matmul_bn_stats(a, b):
    """Raw conv output (f32) plus fused per-column sum / sum-of-squares partials."""
    m_true = a.shape[0]
    a, b, _ = _pad_operands(a, b)  # no-op for the BN layers' shapes
    M, K = a.shape
    _, N = b.shape
    tm, tk, tn = _pick_tiles(M, K, N)
    n_mb = M // tm
    out, psum, pssq = pl.pallas_call(
        _mm_bn_stats_kernel,
        out_shape=(jax.ShapeDtypeStruct((M, N), jnp.float32),
                   jax.ShapeDtypeStruct((n_mb * 8, N), jnp.float32),
                   jax.ShapeDtypeStruct((n_mb * 8, N), jnp.float32)),
        grid_spec=pltpu.PrefetchScalarGridSpec(
            num_scalar_prefetch=0,
            grid=(M // tm, N // tn, K // tk),
            in_specs=[pl.BlockSpec((tm, tk), lambda i, j, k: (i, k)),
                      pl.BlockSpec((tk, tn), lambda i, j, k: (k, j))],
            out_specs=[pl.BlockSpec((tm, tn), lambda i, j, k: (i, j)),
                       pl.BlockSpec((8, tn), lambda i, j, k: (i, j)),
                       pl.BlockSpec((8, tn), lambda i, j, k: (i, j))],
            scratch_shapes=[pltpu.VMEM((tm, tn), jnp.float32)]),
        compiler_params=pltpu.CompilerParams(
            dimension_semantics=("parallel", "parallel", "arbitrary"),
            vmem_limit_bytes=VMEM_LIMIT),
    )(a, b)
    col_sum = jnp.sum(psum[::8], axis=0)   # rows within a block are replicas
    col_ssq = jnp.sum(pssq[::8], axis=0)
    return out[:m_true], col_sum, col_ssq


def pallas_bn_leakyrelu(x, scale, shift, *, out_dtype=jnp.bfloat16):
    """Fused BatchNorm affine (precomputed scale/shift) + LeakyReLU(0.2)."""
    M, C = x.shape
    tm = min(M, 1024)
    assert M % tm == 0 and C % 128 == 0
    return pl.pallas_call(
        _bn_lrelu_kernel,
        out_shape=jax.ShapeDtypeStruct((M, C), out_dtype),
        grid=(M // tm,),
        in_specs=[pl.BlockSpec((tm, C), lambda i: (i, 0)),
                  pl.BlockSpec((1, C), lambda i: (0, 0)),
                  pl.BlockSpec((1, C), lambda i: (0, 0))],
        out_specs=pl.BlockSpec((tm, C), lambda i: (i, 0)),
        compiler_params=pltpu.CompilerParams(
            dimension_semantics=("parallel",),
            vmem_limit_bytes=VMEM_LIMIT),
    )(x, scale.reshape(1, C).astype(jnp.float32),
      shift.reshape(1, C).astype(jnp.float32))


# ------------------------------ conv plumbing ------------------------------

def im2col(x_nhwc, k, stride, pad, dtype=jnp.bfloat16):
    """Channels-last im2col for a strided forward conv; columns ordered (di, dj, cin).

    # TODO(synk): the patch tensor is still materialized in HBM by XLA; the fully
    # fused version would fold the (di, dj) taps into the matmul's K grid axis and
    # load shifted windows straight into VMEM.
    """
    N, H, W, C = x_nhwc.shape
    Hout = (H + 2 * pad - k) // stride + 1
    Wout = (W + 2 * pad - k) // stride + 1
    x_pad = jnp.pad(x_nhwc.astype(dtype),
                    ((0, 0), (pad, pad), (pad, pad), (0, 0)))
    taps = []
    for di in range(k):
        for dj in range(k):
            taps.append(x_pad[:, di:di + (Hout - 1) * stride + 1:stride,
                              dj:dj + (Wout - 1) * stride + 1:stride, :])
    patches = jnp.stack(taps, axis=3)                       # (N, Ho, Wo, k*k, C)
    return patches.reshape(N * Hout * Wout, k * k * C), (N, Hout, Wout)


def init_params(key):
    """weight_init(): conv W ~ N(0, .02); BN gamma ~ N(1, .02), beta = 0."""
    params = {"w_raw": [], "wmat": [], "gamma": [], "beta": []}
    for (cin, cout, k, _, _, has_bn) in _LAYER_CFG:
        key, kw, kg = jax.random.split(key, 3)
        w = 0.02 * jax.random.normal(kw, (cout, cin, k, k), jnp.float32)  # torch OIHW
        params["w_raw"].append(w)
        # (di, dj, cin) x cout matmul layout, prepped once (pre-transpose + bf16 cast)
        wmat = jnp.transpose(w, (2, 3, 1, 0)).reshape(k * k * cin, cout)
        if cout == 1:
            # final layer: lane-pad the single logit column once at init so stores
            # stay 128-lane dense; extra columns are sliced off after the matmul.
            wmat = jnp.pad(wmat, ((0, 0), (0, 127)))
        params["wmat"].append(wmat.astype(jnp.bfloat16))
        if has_bn:
            params["gamma"].append(
                1.0 + 0.02 * jax.random.normal(kg, (cout,), jnp.float32))
            params["beta"].append(jnp.zeros((cout,), jnp.float32))
        else:
            params["gamma"].append(None)
            params["beta"].append(None)
    return params


# ------------------------------- forward pass -------------------------------

def discriminator_forward(x_nchw, params):
    # NCHW at the boundary; channels-last (lane-dense) internally.
    x = jnp.transpose(x_nchw, (0, 2, 3, 1)).astype(jnp.float32)

    for i, (_, cout, k, s, p, has_bn) in enumerate(_LAYER_CFG[:-1]):
        a, (N, Ho, Wo) = im2col(x, k, s, p)
        if has_bn:
            raw, col_sum, col_ssq = pallas_matmul_bn_stats(a, params["wmat"][i])
            m = a.shape[0]
            mean = col_sum / m
            var = jnp.maximum(col_ssq / m - mean * mean, 0.0)  # biased batch var
            scale = params["gamma"][i] * jax.lax.rsqrt(var + BN_EPS)
            shift = params["beta"][i] - mean * scale
            y = pallas_bn_leakyrelu(raw, scale, shift)
        else:
            y = pallas_matmul_act(a, params["wmat"][i], act="leaky_relu",
                                  out_dtype=jnp.bfloat16)
        x = y.reshape(N, Ho, Wo, cout)

    # conv5: 4x4 kernel / stride 1 / pad 0 over a 4x4 map == dense matmul over the
    # flattened (h, w, c) features; sigmoid fused into the matmul epilogue.
    n = x.shape[0]
    a5 = x.reshape(n, -1)
    probs = pallas_matmul_act(a5, params["wmat"][-1], act="sigmoid",
                              out_dtype=jnp.float32)[:, 0]
    return jnp.mean(probs).reshape(1)   # output.mean(0).view(1)


def reference_forward(x_nchw, params):
    """Pure-JAX f32 reference of the same forward pass (for validation)."""
    x = jnp.transpose(x_nchw, (0, 2, 3, 1)).astype(jnp.float32)
    for i, (_, _, k, s, p, has_bn) in enumerate(_LAYER_CFG):
        w_hwio = jnp.transpose(params["w_raw"][i], (2, 3, 1, 0))
        y = jax.lax.conv_general_dilated(
            x, w_hwio, window_strides=(s, s), padding=((p, p), (p, p)),
            dimension_numbers=("NHWC", "HWIO", "NHWC"))
        if has_bn:
            mean = jnp.mean(y, axis=(0, 1, 2))
            var = jnp.mean(jnp.square(y - mean), axis=(0, 1, 2))
            y = (y - mean) * jax.lax.rsqrt(var + BN_EPS)
            y = y * params["gamma"][i] + params["beta"][i]
        if i < len(_LAYER_CFG) - 1:
            y = jnp.maximum(y, LEAKY_SLOPE * y)
        else:
            y = 1.0 / (1.0 + jnp.exp(-y))
        x = y
    return jnp.mean(x).reshape(1)


if __name__ == "__main__":
    key = jax.random.PRNGKey(0)
    kp, kx = jax.random.split(key)
    params = init_params(kp)

    batch = 2  # forward implies 96x96 input (conv5 needs a 4x4 feature map)
    x = jax.random.normal(kx, (batch, IMAGE_CHANNEL, 96, 96), jnp.float32)

    out = jax.jit(discriminator_forward)(x, params)
    out = jax.block_until_ready(out)

    assert out.shape == (1,), out.shape
    assert bool(jnp.all(jnp.isfinite(out)))
    assert 0.0 <= float(out[0]) <= 1.0  # sigmoid -> mean stays in (0, 1)

    # end-to-end check vs a pure-JAX f32 reference (loose tol: bf16 MXU operands)
    ref = jax.jit(reference_forward)(x, params)
    assert float(jnp.max(jnp.abs(out - ref))) < 0.1, (out, ref)

    print("KERNEL_OK")
</pallas_src>

<mosaic_0001>
module attributes {stable_mosaic.version = 11 : i64} {
  func.func @_mm_act_kernel(%arg0: i32, %arg1: i32, %arg2: i32, %arg3: memref<256x128xbf16, #tpu.memory_space<vmem>>, %arg4: memref<128x64xbf16, #tpu.memory_space<vmem>>, %arg5: memref<256x64xbf16, #tpu.memory_space<vmem>>, %arg6: memref<256x64xf32, #tpu.memory_space<vmem>>) attributes {dimension_semantics = [#tpu.dimension_semantics<parallel>, #tpu.dimension_semantics<parallel>, #tpu.dimension_semantics<arbitrary>], iteration_bounds = array<i64: 8, 1, 1>, scalar_prefetch = 0 : i64, scratch_operands = 1 : i64, tpu.core_type = #tpu.core_type<tc>, window_params = [{transform_indices = @transform_0, window_bounds = array<i64: 256, 128>}, {transform_indices = @transform_1, window_bounds = array<i64: 128, 64>}, {transform_indices = @transform_2, window_bounds = array<i64: 256, 64>}]} {
    %c0_i32 = arith.constant 0 : i32
    %0 = arith.cmpi eq, %arg2, %c0_i32 : i32
    %1 = arith.extui %0 : i1 to i32
    %c0_i32_0 = arith.constant 0 : i32
    %2 = arith.cmpi ne, %1, %c0_i32_0 : i32
    scf.if %2 {
      %cst_10 = arith.constant 0.000000e+00 : f32
      %12 = vector.broadcast %cst_10 : f32 to vector<256x64xf32>
      %c0_11 = arith.constant 0 : index
      %c0_12 = arith.constant 0 : index
      %13 = vector.load %arg6[%c0_11, %c0_12] : memref<256x64xf32, #tpu.memory_space<vmem>>, vector<256x64xf32>
      tpu.vector_store %arg6[%c0_11, %c0_12], %12 {strides = array<i32>} : memref<256x64xf32, #tpu.memory_space<vmem>>, vector<256x64xf32>,
    } else {
    }
    %c0 = arith.constant 0 : index
    %c0_1 = arith.constant 0 : index
    %3 = vector.load %arg6[%c0, %c0_1] : memref<256x64xf32, #tpu.memory_space<vmem>>, vector<256x64xf32>
    %c0_2 = arith.constant 0 : index
    %c0_3 = arith.constant 0 : index
    %4 = vector.load %arg3[%c0_2, %c0_3] : memref<256x128xbf16, #tpu.memory_space<vmem>>, vector<256x128xbf16>
    %c0_4 = arith.constant 0 : index
    %c0_5 = arith.constant 0 : index
    %5 = vector.load %arg4[%c0_4, %c0_5] : memref<128x64xbf16, #tpu.memory_space<vmem>>, vector<128x64xbf16>
    %cst = arith.constant dense<0.000000e+00> : vector<256x64xf32>
    %6 = tpu.matmul %4, %5, %cst {dimension_numbers = #tpu.dot_dimension_numbers<[1], [0], [0], [1], [0, 0, 1, 1], [], []>} : vector<256x128xbf16>, vector<128x64xbf16>, vector<256x64xf32> -> vector<256x64xf32>
    %7 = arith.addf %3, %6 : vector<256x64xf32>
    %c0_6 = arith.constant 0 : index
    %c0_7 = arith.constant 0 : index
    %8 = vector.load %arg6[%c0_6, %c0_7] : memref<256x64xf32, #tpu.memory_space<vmem>>, vector<256x64xf32>
    tpu.vector_store %arg6[%c0_6, %c0_7], %7 {strides = array<i32>} : memref<256x64xf32, #tpu.memory_space<vmem>>, vector<256x64xf32>,
    %c0_i32_8 = arith.constant 0 : i32
    %9 = arith.cmpi eq, %arg2, %c0_i32_8 : i32
    %10 = arith.extui %9 : i1 to i32
    %c0_i32_9 = arith.constant 0 : i32
    %11 = arith.cmpi ne, %10, %c0_i32_9 : i32
    scf.if %11 {
      %c0_10 = arith.constant 0 : index
      %c0_11 = arith.constant 0 : index
      %12 = vector.load %arg6[%c0_10, %c0_11] : memref<256x64xf32, #tpu.memory_space<vmem>>, vector<256x64xf32>
      %cst_12 = arith.constant 2.000000e-01 : f32
      %13 = vector.broadcast %cst_12 : f32 to vector<256x64xf32>
      %14 = arith.mulf %13, %12 : vector<256x64xf32>
      %15 = arith.maximumf %12, %14 : vector<256x64xf32>
      %16 = arith.truncf %15 : vector<256x64xf32> to vector<256x64xbf16>
      %c0_13 = arith.constant 0 : index
      %c0_14 = arith.constant 0 : index
      %17 = vector.load %arg5[%c0_13, %c0_14] : memref<256x64xbf16, #tpu.memory_space<vmem>>, vector<256x64xbf16>
      tpu.vector_store %arg5[%c0_13, %c0_14], %16 {strides = array<i32>} : memref<256x64xbf16, #tpu.memory_space<vmem>>, vector<256x64xbf16>,
    } else {
    }
    return
  }
  func.func @transform_0(%arg0: i32, %arg1: i32, %arg2: i32) -> (i32, i32) {
    %c0_i32 = arith.constant 0 : i32
    return %arg0, %arg2 : i32, i32
  }
  func.func @transform_1(%arg0: i32, %arg1: i32, %arg2: i32) -> (i32, i32) {
    %c0_i32 = arith.constant 0 : i32
    return %arg2, %arg1 : i32, i32
  }
  func.func @transform_2(%arg0: i32, %arg1: i32, %arg2: i32) -> (i32, i32) {
    %c0_i32 = arith.constant 0 : i32
    return %arg0, %arg1 : i32, i32
  }
}

module attributes {stable_mosaic.version = 11 : i64} {
  func.func @_mm_bn_stats_kernel(%arg0: i32, %arg1: i32, %arg2: i32, %arg3: memref<256x512xbf16, #tpu.memory_space<vmem>>, %arg4: memref<512x128xbf16, #tpu.memory_space<vmem>>, %arg5: memref<256x128xf32, #tpu.memory_space<vmem>>, %arg6: memref<8x128xf32, #tpu.memory_space<vmem>>, %arg7: memref<8x128xf32, #tpu.memory_space<vmem>>, %arg8: memref<256x128xf32, #tpu.memory_space<vmem>>) attributes {dimension_semantics = [#tpu.dimension_semantics<parallel>, #tpu.dimension_semantics<parallel>, #tpu.dimension_semantics<arbitrary>], iteration_bounds = array<i64: 2, 1, 2>, scalar_prefetch = 0 : i64, scratch_operands = 1 : i64, tpu.core_type = #tpu.core_type<tc>, window_params = [{transform_indices = @transform_0, window_bounds = array<i64: 256, 512>}, {transform_indices = @transform_1, window_bounds = array<i64: 512, 128>}, {transform_indices = @transform_2, window_bounds = array<i64: 256, 128>}, {transform_indices = @transform_3, window_bounds = array<i64: 8, 128>}, {transform_indices = @transform_4, window_bounds = array<i64: 8, 128>}]} {
    %c0_i32 = arith.constant 0 : i32
    %0 = arith.cmpi eq, %arg2, %c0_i32 : i32
    %1 = arith.extui %0 : i1 to i32
    %c0_i32_0 = arith.constant 0 : i32
    %2 = arith.cmpi ne, %1, %c0_i32_0 : i32
    scf.if %2 {
      %cst_9 = arith.constant 0.000000e+00 : f32
      %12 = vector.broadcast %cst_9 : f32 to vector<256x128xf32>
      %c0_10 = arith.constant 0 : index
      %c0_11 = arith.constant 0 : index
      %13 = vector.load %arg8[%c0_10, %c0_11] : memref<256x128xf32, #tpu.memory_space<vmem>>, vector<256x128xf32>
      tpu.vector_store %arg8[%c0_10, %c0_11], %12 {strides = array<i32>} : memref<256x128xf32, #tpu.memory_space<vmem>>, vector<256x128xf32>,
    } else {
    }
    %c0 = arith.constant 0 : index
    %c0_1 = arith.constant 0 : index
    %3 = vector.load %arg8[%c0, %c0_1] : memref<256x128xf32, #tpu.memory_space<vmem>>, vector<256x128xf32>
    %c0_2 = arith.constant 0 : index
    %c0_3 = arith.constant 0 : index
    %4 = vector.load %arg3[%c0_2, %c0_3] : memref<256x512xbf16, #tpu.memory_space<vmem>>, vector<256x512xbf16>
    %c0_4 = arith.constant 0 : index
    %c0_5 = arith.constant 0 : index
    %5 = vector.load %arg4[%c0_4, %c0_5] : memref<512x128xbf16, #tpu.memory_space<vmem>>, vector<512x128xbf16>
    %cst = arith.constant dense<0.000000e+00> : vector<256x128xf32>
    %6 = tpu.matmul %4, %5, %cst {dimension_numbers = #tpu.dot_dimension_numbers<[1], [0], [0], [1], [0, 0, 1, 1], [], []>} : vector<256x512xbf16>, vector<512x128xbf16>, vector<256x128xf32> -> vector<256x128xf32>
    %7 = arith.addf %3, %6 : vector<256x128xf32>
    %c0_6 = arith.constant 0 : index
    %c0_7 = arith.constant 0 : index
    %8 = vector.load %arg8[%c0_6, %c0_7] : memref<256x128xf32, #tpu.memory_space<vmem>>, vector<256x128xf32>
    tpu.vector_store %arg8[%c0_6, %c0_7], %7 {strides = array<i32>} : memref<256x128xf32, #tpu.memory_space<vmem>>, vector<256x128xf32>,
    %c1_i32 = arith.constant 1 : i32
    %9 = arith.cmpi eq, %arg2, %c1_i32 : i32
    %10 = arith.extui %9 : i1 to i32
    %c0_i32_8 = arith.constant 0 : i32
    %11 = arith.cmpi ne, %10, %c0_i32_8 : i32
    scf.if %11 {
      %c0_9 = arith.constant 0 : index
      %c0_10 = arith.constant 0 : index
      %12 = vector.load %arg8[%c0_9, %c0_10] : memref<256x128xf32, #tpu.memory_space<vmem>>, vector<256x128xf32>
      %c0_11 = arith.constant 0 : index
      %c0_12 = arith.constant 0 : index
      %13 = vector.load %arg5[%c0_11, %c0_12] : memref<256x128xf32, #tpu.memory_space<vmem>>, vector<256x128xf32>
      tpu.vector_store %arg5[%c0_11, %c0_12], %12 {strides = array<i32>} : memref<256x128xf32, #tpu.memory_space<vmem>>, vector<256x128xf32>,
      %cst_13 = arith.constant dense<0.000000e+00> : vector<128xf32>
      %14 = vector.multi_reduction <add>, %12, %cst_13 [0] : vector<256x128xf32> to vector<128xf32>
      %15 = vector.shape_cast %14 : vector<128xf32> to vector<1x128xf32>
      %16 = arith.mulf %12, %12 : vector<256x128xf32>
      %cst_14 = arith.constant dense<0.000000e+00> : vector<128xf32>
      %17 = vector.multi_reduction <add>, %16, %cst_14 [0] : vector<256x128xf32> to vector<128xf32>
      %18 = vector.shape_cast %17 : vector<128xf32> to vector<1x128xf32>
      %19 = vector.shape_cast %15 : vector<1x128xf32> to vector<1x128xf32>
      %20 = vector.broadcast %19 : vector<1x128xf32> to vector<8x128xf32>
      %c0_15 = arith.constant 0 : index
      %c0_16 = arith.constant 0 : index
      %21 = vector.load %arg6[%c0_15, %c0_16] : memref<8x128xf32, #tpu.memory_space<vmem>>, vector<8x128xf32>
      tpu.vector_store %arg6[%c0_15, %c0_16], %20 {strides = array<i32>} : memref<8x128xf32, #tpu.memory_space<vmem>>, vector<8x128xf32>,
      %22 = vector.shape_cast %18 : vector<1x128xf32> to vector<1x128xf32>
      %23 = vector.broadcast %22 : vector<1x128xf32> to vector<8x128xf32>
      %c0_17 = arith.constant 0 : index
      %c0_18 = arith.constant 0 : index
      %24 = vector.load %arg7[%c0_17, %c0_18] : memref<8x128xf32, #tpu.memory_space<vmem>>, vector<8x128xf32>
      tpu.vector_store %arg7[%c0_17, %c0_18], %23 {strides = array<i32>} : memref<8x128xf32, #tpu.memory_space<vmem>>, vector<8x128xf32>,
    } else {
    }
    return
  }
  func.func @transform_0(%arg0: i32, %arg1: i32, %arg2: i32) -> (i32, i32) {
    %c0_i32 = arith.constant 0 : i32
    return %arg0, %arg2 : i32, i32
  }
  func.func @transform_1(%arg0: i32, %arg1: i32, %arg2: i32) -> (i32, i32) {
    %c0_i32 = arith.constant 0 : i32
    return %arg2, %arg1 : i32, i32
  }
  func.func @transform_2(%arg0: i32, %arg1: i32, %arg2: i32) -> (i32, i32) {
    %c0_i32 = arith.constant 0 : i32
    return %arg0, %arg1 : i32, i32
  }
  func.func @transform_3(%arg0: i32, %arg1: i32, %arg2: i32) -> (i32, i32) {
    %c0_i32 = arith.constant 0 : i32
    return %arg0, %arg1 : i32, i32
  }
  func.func @transform_4(%arg0: i32, %arg1: i32, %arg2: i32) -> (i32, i32) {
    %c0_i32 = arith.constant 0 : i32
    return %arg0, %arg1 : i32, i32
  }
}

module attributes {stable_mosaic.version = 11 : i64} {
  func.func @_bn_lrelu_kernel(%arg0: i32, %arg1: memref<512x128xf32, #tpu.memory_space<vmem>>, %arg2: memref<1x128xf32, #tpu.memory_space<vmem>>, %arg3: memref<1x128xf32, #tpu.memory_space<vmem>>, %arg4: memref<512x128xbf16, #tpu.memory_space<vmem>>) attributes {dimension_semantics = [#tpu.dimension_semantics<parallel>], iteration_bounds = array<i64: 1>, scalar_prefetch = 0 : i64, scratch_operands = 0 : i64, tpu.core_type = #tpu.core_type<tc>, window_params = [{transform_indices = @transform_0, window_bounds = array<i64: 512, 128>}, {pipeline_mode = #tpu.pipeline_mode<synchronous>, transform_indices = @transform_1, window_bounds = array<i64: 1, 128>}, {pipeline_mode = #tpu.pipeline_mode<synchronous>, transform_indices = @transform_2, window_bounds = array<i64: 1, 128>}, {transform_indices = @transform_3, window_bounds = array<i64: 512, 128>}]} {
    %c0 = arith.constant 0 : index
    %c0_0 = arith.constant 0 : index
    %0 = vector.load %arg1[%c0, %c0_0] : memref<512x128xf32, #tpu.memory_space<vmem>>, vector<512x128xf32>
    %c0_1 = arith.constant 0 : index
    %c0_2 = arith.constant 0 : index
    %1 = vector.load %arg2[%c0_1, %c0_2] : memref<1x128xf32, #tpu.memory_space<vmem>>, vector<1x128xf32>
    %2 = vector.broadcast %1 : vector<1x128xf32> to vector<512x128xf32>
    %3 = arith.mulf %0, %2 : vector<512x128xf32>
    %c0_3 = arith.constant 0 : index
    %c0_4 = arith.constant 0 : index
    %4 = vector.load %arg3[%c0_3, %c0_4] : memref<1x128xf32, #tpu.memory_space<vmem>>, vector<1x128xf32>
    %5 = vector.broadcast %4 : vector<1x128xf32> to vector<512x128xf32>
    %6 = arith.addf %3, %5 : vector<512x128xf32>
    %cst = arith.constant 2.000000e-01 : f32
    %7 = vector.broadcast %cst : f32 to vector<512x128xf32>
    %8 = arith.mulf %7, %6 : vector<512x128xf32>
    %9 = arith.maximumf %6, %8 : vector<512x128xf32>
    %10 = arith.truncf %9 : vector<512x128xf32> to vector<512x128xbf16>
    %c0_5 = arith.constant 0 : index
    %c0_6 = arith.constant 0 : index
    %11 = vector.load %arg4[%c0_5, %c0_6] : memref<512x128xbf16, #tpu.memory_space<vmem>>, vector<512x128xbf16>
    tpu.vector_store %arg4[%c0_5, %c0_6], %10 {strides = array<i32>} : memref<512x128xbf16, #tpu.memory_space<vmem>>, vector<512x128xbf16>,
    return
  }
  func.func @transform_0(%arg0: i32) -> (i32, i32) {
    %c0_i32 = arith.constant 0 : i32
    %c0_i32_0 = arith.constant 0 : i32
    return %arg0, %c0_i32 : i32, i32
  }
  func.func @transform_1(%arg0: i32) -> (i32, i32) {
    %c0_i32 = arith.constant 0 : i32
    %c0_i32_0 = arith.constant 0 : i32
    %c0_i32_1 = arith.constant 0 : i32
    return %c0_i32, %c0_i32_0 : i32, i32
  }
  func.func @transform_2(%arg0: i32) -> (i32, i32) {
    %c0_i32 = arith.constant 0 : i32
    %c0_i32_0 = arith.constant 0 : i32
    %c0_i32_1 = arith.constant 0 : i32
    return %c0_i32, %c0_i32_0 : i32, i32
  }
  func.func @transform_3(%arg0: i32) -> (i32, i32) {
    %c0_i32 = arith.constant 0 : i32
    %c0_i32_0 = arith.constant 0 : i32
    return %arg0, %c0_i32 : i32, i32
  }
}

module attributes {stable_mosaic.version = 11 : i64} {
  func.func @_mm_bn_stats_kernel(%arg0: i32, %arg1: i32, %arg2: i32, %arg3: memref<128x512xbf16, #tpu.memory_space<vmem>>, %arg4: memref<512x128xbf16, #tpu.memory_space<vmem>>, %arg5: memref<128x128xf32, #tpu.memory_space<vmem>>, %arg6: memref<8x128xf32, #tpu.memory_space<vmem>>, %arg7: memref<8x128xf32, #tpu.memory_space<vmem>>, %arg8: memref<128x128xf32, #tpu.memory_space<vmem>>) attributes {dimension_semantics = [#tpu.dimension_semantics<parallel>, #tpu.dimension_semantics<parallel>, #tpu.dimension_semantics<arbitrary>], iteration_bounds = array<i64: 1, 2, 4>, scalar_prefetch = 0 : i64, scratch_operands = 1 : i64, tpu.core_type = #tpu.core_type<tc>, window_params = [{transform_indices = @transform_0, window_bounds = array<i64: 128, 512>}, {transform_indices = @transform_1, window_bounds = array<i64: 512, 128>}, {transform_indices = @transform_2, window_bounds = array<i64: 128, 128>}, {transform_indices = @transform_3, window_bounds = array<i64: 8, 128>}, {transform_indices = @transform_4, window_bounds = array<i64: 8, 128>}]} {
    %c0_i32 = arith.constant 0 : i32
    %0 = arith.cmpi eq, %arg2, %c0_i32 : i32
    %1 = arith.extui %0 : i1 to i32
    %c0_i32_0 = arith.constant 0 : i32
    %2 = arith.cmpi ne, %1, %c0_i32_0 : i32
    scf.if %2 {
      %cst_9 = arith.constant 0.000000e+00 : f32
      %12 = vector.broadcast %cst_9 : f32 to vector<128x128xf32>
      %c0_10 = arith.constant 0 : index
      %c0_11 = arith.constant 0 : index
      %13 = vector.load %arg8[%c0_10, %c0_11] : memref<128x128xf32, #tpu.memory_space<vmem>>, vector<128x128xf32>
      tpu.vector_store %arg8[%c0_10, %c0_11], %12 {strides = array<i32>} : memref<128x128xf32, #tpu.memory_space<vmem>>, vector<128x128xf32>,
    } else {
    }
    %c0 = arith.constant 0 : index
    %c0_1 = arith.constant 0 : index
    %3 = vector.load %arg8[%c0, %c0_1] : memref<128x128xf32, #tpu.memory_space<vmem>>, vector<128x128xf32>
    %c0_2 = arith.constant 0 : index
    %c0_3 = arith.constant 0 : index
    %4 = vector.load %arg3[%c0_2, %c0_3] : memref<128x512xbf16, #tpu.memory_space<vmem>>, vector<128x512xbf16>
    %c0_4 = arith.constant 0 : index
    %c0_5 = arith.constant 0 : index
    %5 = vector.load %arg4[%c0_4, %c0_5] : memref<512x128xbf16, #tpu.memory_space<vmem>>, vector<512x128xbf16>
    %cst = arith.constant dense<0.000000e+00> : vector<128x128xf32>
    %6 = tpu.matmul %4, %5, %cst {dimension_numbers = #tpu.dot_dimension_numbers<[1], [0], [0], [1], [0, 0, 1, 1], [], []>} : vector<128x512xbf16>, vector<512x128xbf16>, vector<128x128xf32> -> vector<128x128xf32>
    %7 = arith.addf %3, %6 : vector<128x128xf32>
    %c0_6 = arith.constant 0 : index
    %c0_7 = arith.constant 0 : index
    %8 = vector.load %arg8[%c0_6, %c0_7] : memref<128x128xf32, #tpu.memory_space<vmem>>, vector<128x128xf32>
    tpu.vector_store %arg8[%c0_6, %c0_7], %7 {strides = array<i32>} : memref<128x128xf32, #tpu.memory_space<vmem>>, vector<128x128xf32>,
    %c3_i32 = arith.constant 3 : i32
    %9 = arith.cmpi eq, %arg2, %c3_i32 : i32
    %10 = arith.extui %9 : i1 to i32
    %c0_i32_8 = arith.constant 0 : i32
    %11 = arith.cmpi ne, %10, %c0_i32_8 : i32
    scf.if %11 {
      %c0_9 = arith.constant 0 : index
      %c0_10 = arith.constant 0 : index
      %12 = vector.load %arg8[%c0_9, %c0_10] : memref<128x128xf32, #tpu.memory_space<vmem>>, vector<128x128xf32>
      %c0_11 = arith.constant 0 : index
      %c0_12 = arith.constant 0 : index
      %13 = vector.load %arg5[%c0_11, %c0_12] : memref<128x128xf32, #tpu.memory_space<vmem>>, vector<128x128xf32>
      tpu.vector_store %arg5[%c0_11, %c0_12], %12 {strides = array<i32>} : memref<128x128xf32, #tpu.memory_space<vmem>>, vector<128x128xf32>,
      %cst_13 = arith.constant dense<0.000000e+00> : vector<128xf32>
      %14 = vector.multi_reduction <add>, %12, %cst_13 [0] : vector<128x128xf32> to vector<128xf32>
      %15 = vector.shape_cast %14 : vector<128xf32> to vector<1x128xf32>
      %16 = arith.mulf %12, %12 : vector<128x128xf32>
      %cst_14 = arith.constant dense<0.000000e+00> : vector<128xf32>
      %17 = vector.multi_reduction <add>, %16, %cst_14 [0] : vector<128x128xf32> to vector<128xf32>
      %18 = vector.shape_cast %17 : vector<128xf32> to vector<1x128xf32>
      %19 = vector.shape_cast %15 : vector<1x128xf32> to vector<1x128xf32>
      %20 = vector.broadcast %19 : vector<1x128xf32> to vector<8x128xf32>
      %c0_15 = arith.constant 0 : index
      %c0_16 = arith.constant 0 : index
      %21 = vector.load %arg6[%c0_15, %c0_16] : memref<8x128xf32, #tpu.memory_space<vmem>>, vector<8x128xf32>
      tpu.vector_store %arg6[%c0_15, %c0_16], %20 {strides = array<i32>} : memref<8x128xf32, #tpu.memory_space<vmem>>, vector<8x128xf32>,
      %22 = vector.shape_cast %18 : vector<1x128xf32> to vector<1x128xf32>
      %23 = vector.broadcast %22 : vector<1x128xf32> to vector<8x128xf32>
      %c0_17 = arith.constant 0 : index
      %c0_18 = arith.constant 0 : index
      %24 = vector.load %arg7[%c0_17, %c0_18] : memref<8x128xf32, #tpu.memory_space<vmem>>, vector<8x128xf32>
      tpu.vector_store %arg7[%c0_17, %c0_18], %23 {strides = array<i32>} : memref<8x128xf32, #tpu.memory_space<vmem>>, vector<8x128xf32>,
    } else {
    }
    return
  }
  func.func @transform_0(%arg0: i32, %arg1: i32, %arg2: i32) -> (i32, i32) {
    %c0_i32 = arith.constant 0 : i32
    return %arg0, %arg2 : i32, i32
  }
  func.func @transform_1(%arg0: i32, %arg1: i32, %arg2: i32) -> (i32, i32) {
    %c0_i32 = arith.constant 0 : i32
    return %arg2, %arg1 : i32, i32
  }
  func.func @transform_2(%arg0: i32, %arg1: i32, %arg2: i32) -> (i32, i32) {
    %c0_i32 = arith.constant 0 : i32
    return %arg0, %arg1 : i32, i32
  }
  func.func @transform_3(%arg0: i32, %arg1: i32, %arg2: i32) -> (i32, i32) {
    %c0_i32 = arith.constant 0 : i32
    return %arg0, %arg1 : i32, i32
  }
  func.func @transform_4(%arg0: i32, %arg1: i32, %arg2: i32) -> (i32, i32) {
    %c0_i32 = arith.constant 0 : i32
    return %arg0, %arg1 : i32, i32
  }
}

module attributes {stable_mosaic.version = 11 : i64} {
  func.func @_bn_lrelu_kernel(%arg0: i32, %arg1: memref<128x256xf32, #tpu.memory_space<vmem>>, %arg2: memref<1x256xf32, #tpu.memory_space<vmem>>, %arg3: memref<1x256xf32, #tpu.memory_space<vmem>>, %arg4: memref<128x256xbf16, #tpu.memory_space<vmem>>) attributes {dimension_semantics = [#tpu.dimension_semantics<parallel>], iteration_bounds = array<i64: 1>, scalar_prefetch = 0 : i64, scratch_operands = 0 : i64, tpu.core_type = #tpu.core_type<tc>, window_params = [{transform_indices = @transform_0, window_bounds = array<i64: 128, 256>}, {pipeline_mode = #tpu.pipeline_mode<synchronous>, transform_indices = @transform_1, window_bounds = array<i64: 1, 256>}, {pipeline_mode = #tpu.pipeline_mode<synchronous>, transform_indices = @transform_2, window_bounds = array<i64: 1, 256>}, {transform_indices = @transform_3, window_bounds = array<i64: 128, 256>}]} {
    %c0 = arith.constant 0 : index
    %c0_0 = arith.constant 0 : index
    %0 = vector.load %arg1[%c0, %c0_0] : memref<128x256xf32, #tpu.memory_space<vmem>>, vector<128x256xf32>
    %c0_1 = arith.constant 0 : index
    %c0_2 = arith.constant 0 : index
    %1 = vector.load %arg2[%c0_1, %c0_2] : memref<1x256xf32, #tpu.memory_space<vmem>>, vector<1x256xf32>
    %2 = vector.broadcast %1 : vector<1x256xf32> to vector<128x256xf32>
    %3 = arith.mulf %0, %2 : vector<128x256xf32>
    %c0_3 = arith.constant 0 : index
    %c0_4 = arith.constant 0 : index
    %4 = vector.load %arg3[%c0_3, %c0_4] : memref<1x256xf32, #tpu.memory_space<vmem>>, vector<1x256xf32>
    %5 = vector.broadcast %4 : vector<1x256xf32> to vector<128x256xf32>
    %6 = arith.addf %3, %5 : vector<128x256xf32>
    %cst = arith.constant 2.000000e-01 : f32
    %7 = vector.broadcast %cst : f32 to vector<128x256xf32>
    %8 = arith.mulf %7, %6 : vector<128x256xf32>
    %9 = arith.maximumf %6, %8 : vector<128x256xf32>
    %10 = arith.truncf %9 : vector<128x256xf32> to vector<128x256xbf16>
    %c0_5 = arith.constant 0 : index
    %c0_6 = arith.constant 0 : index
    %11 = vector.load %arg4[%c0_5, %c0_6] : memref<128x256xbf16, #tpu.memory_space<vmem>>, vector<128x256xbf16>
    tpu.vector_store %arg4[%c0_5, %c0_6], %10 {strides = array<i32>} : memref<128x256xbf16, #tpu.memory_space<vmem>>, vector<128x256xbf16>,
    return
  }
  func.func @transform_0(%arg0: i32) -> (i32, i32) {
    %c0_i32 = arith.constant 0 : i32
    %c0_i32_0 = arith.constant 0 : i32
    return %arg0, %c0_i32 : i32, i32
  }
  func.func @transform_1(%arg0: i32) -> (i32, i32) {
    %c0_i32 = arith.constant 0 : i32
    %c0_i32_0 = arith.constant 0 : i32
    %c0_i32_1 = arith.constant 0 : i32
    return %c0_i32, %c0_i32_0 : i32, i32
  }
  func.func @transform_2(%arg0: i32) -> (i32, i32) {
    %c0_i32 = arith.constant 0 : i32
    %c0_i32_0 = arith.constant 0 : i32
    %c0_i32_1 = arith.constant 0 : i32
    return %c0_i32, %c0_i32_0 : i32, i32
  }
  func.func @transform_3(%arg0: i32) -> (i32, i32) {
    %c0_i32 = arith.constant 0 : i32
    %c0_i32_0 = arith.constant 0 : i32
    return %arg0, %c0_i32 : i32, i32
  }
}

module attributes {stable_mosaic.version = 11 : i64} {
  func.func @_mm_bn_stats_kernel(%arg0: i32, %arg1: i32, %arg2: i32, %arg3: memref<32x512xbf16, #tpu.memory_space<vmem>>, %arg4: memref<512x128xbf16, #tpu.memory_space<vmem>>, %arg5: memref<32x128xf32, #tpu.memory_space<vmem>>, %arg6: memref<8x128xf32, #tpu.memory_space<vmem>>, %arg7: memref<8x128xf32, #tpu.memory_space<vmem>>, %arg8: memref<32x128xf32, #tpu.memory_space<vmem>>) attributes {dimension_semantics = [#tpu.dimension_semantics<parallel>, #tpu.dimension_semantics<parallel>, #tpu.dimension_semantics<arbitrary>], iteration_bounds = array<i64: 1, 4, 8>, scalar_prefetch = 0 : i64, scratch_operands = 1 : i64, tpu.core_type = #tpu.core_type<tc>, window_params = [{transform_indices = @transform_0, window_bounds = array<i64: 32, 512>}, {transform_indices = @transform_1, window_bounds = array<i64: 512, 128>}, {transform_indices = @transform_2, window_bounds = array<i64: 32, 128>}, {transform_indices = @transform_3, window_bounds = array<i64: 8, 128>}, {transform_indices = @transform_4, window_bounds = array<i64: 8, 128>}]} {
    %c0_i32 = arith.constant 0 : i32
    %0 = arith.cmpi eq, %arg2, %c0_i32 : i32
    %1 = arith.extui %0 : i1 to i32
    %c0_i32_0 = arith.constant 0 : i32
    %2 = arith.cmpi ne, %1, %c0_i32_0 : i32
    scf.if %2 {
      %cst_9 = arith.constant 0.000000e+00 : f32
      %12 = vector.broadcast %cst_9 : f32 to vector<32x128xf32>
      %c0_10 = arith.constant 0 : index
      %c0_11 = arith.constant 0 : index
      %13 = vector.load %arg8[%c0_10, %c0_11] : memref<32x128xf32, #tpu.memory_space<vmem>>, vector<32x128xf32>
      tpu.vector_store %arg8[%c0_10, %c0_11], %12 {strides = array<i32>} : memref<32x128xf32, #tpu.memory_space<vmem>>, vector<32x128xf32>,
    } else {
    }
    %c0 = arith.constant 0 : index
    %c0_1 = arith.constant 0 : index
    %3 = vector.load %arg8[%c0, %c0_1] : memref<32x128xf32, #tpu.memory_space<vmem>>, vector<32x128xf32>
    %c0_2 = arith.constant 0 : index
    %c0_3 = arith.constant 0 : index
    %4 = vector.load %arg3[%c0_2, %c0_3] : memref<32x512xbf16, #tpu.memory_space<vmem>>, vector<32x512xbf16>
    %c0_4 = arith.constant 0 : index
    %c0_5 = arith.constant 0 : index
    %5 = vector.load %arg4[%c0_4, %c0_5] : memref<512x128xbf16, #tpu.memory_space<vmem>>, vector<512x128xbf16>
    %cst = arith.constant dense<0.000000e+00> : vector<32x128xf32>
    %6 = tpu.matmul %4, %5, %cst {dimension_numbers = #tpu.dot_dimension_numbers<[1], [0], [0], [1], [0, 0, 1, 1], [], []>} : vector<32x512xbf16>, vector<512x128xbf16>, vector<32x128xf32> -> vector<32x128xf32>
    %7 = arith.addf %3, %6 : vector<32x128xf32>
    %c0_6 = arith.constant 0 : index
    %c0_7 = arith.constant 0 : index
    %8 = vector.load %arg8[%c0_6, %c0_7] : memref<32x128xf32, #tpu.memory_space<vmem>>, vector<32x128xf32>
    tpu.vector_store %arg8[%c0_6, %c0_7], %7 {strides = array<i32>} : memref<32x128xf32, #tpu.memory_space<vmem>>, vector<32x128xf32>,
    %c7_i32 = arith.constant 7 : i32
    %9 = arith.cmpi eq, %arg2, %c7_i32 : i32
    %10 = arith.extui %9 : i1 to i32
    %c0_i32_8 = arith.constant 0 : i32
    %11 = arith.cmpi ne, %10, %c0_i32_8 : i32
    scf.if %11 {
      %c0_9 = arith.constant 0 : index
      %c0_10 = arith.constant 0 : index
      %12 = vector.load %arg8[%c0_9, %c0_10] : memref<32x128xf32, #tpu.memory_space<vmem>>, vector<32x128xf32>
      %c0_11 = arith.constant 0 : index
      %c0_12 = arith.constant 0 : index
      %13 = vector.load %arg5[%c0_11, %c0_12] : memref<32x128xf32, #tpu.memory_space<vmem>>, vector<32x128xf32>
      tpu.vector_store %arg5[%c0_11, %c0_12], %12 {strides = array<i32>} : memref<32x128xf32, #tpu.memory_space<vmem>>, vector<32x128xf32>,
      %cst_13 = arith.constant dense<0.000000e+00> : vector<128xf32>
      %14 = vector.multi_reduction <add>, %12, %cst_13 [0] : vector<32x128xf32> to vector<128xf32>
      %15 = vector.shape_cast %14 : vector<128xf32> to vector<1x128xf32>
      %16 = arith.mulf %12, %12 : vector<32x128xf32>
      %cst_14 = arith.constant dense<0.000000e+00> : vector<128xf32>
      %17 = vector.multi_reduction <add>, %16, %cst_14 [0] : vector<32x128xf32> to vector<128xf32>
      %18 = vector.shape_cast %17 : vector<128xf32> to vector<1x128xf32>
      %19 = vector.shape_cast %15 : vector<1x128xf32> to vector<1x128xf32>
      %20 = vector.broadcast %19 : vector<1x128xf32> to vector<8x128xf32>
      %c0_15 = arith.constant 0 : index
      %c0_16 = arith.constant 0 : index
      %21 = vector.load %arg6[%c0_15, %c0_16] : memref<8x128xf32, #tpu.memory_space<vmem>>, vector<8x128xf32>
      tpu.vector_store %arg6[%c0_15, %c0_16], %20 {strides = array<i32>} : memref<8x128xf32, #tpu.memory_space<vmem>>, vector<8x128xf32>,
      %22 = vector.shape_cast %18 : vector<1x128xf32> to vector<1x128xf32>
      %23 = vector.broadcast %22 : vector<1x128xf32> to vector<8x128xf32>
      %c0_17 = arith.constant 0 : index
      %c0_18 = arith.constant 0 : index
      %24 = vector.load %arg7[%c0_17, %c0_18] : memref<8x128xf32, #tpu.memory_space<vmem>>, vector<8x128xf32>
      tpu.vector_store %arg7[%c0_17, %c0_18], %23 {strides = array<i32>} : memref<8x128xf32, #tpu.memory_space<vmem>>, vector<8x128xf32>,
    } else {
    }
    return
  }
  func.func @transform_0(%arg0: i32, %arg1: i32, %arg2: i32) -> (i32, i32) {
    %c0_i32 = arith.constant 0 : i32
    return %arg0, %arg2 : i32, i32
  }
  func.func @transform_1(%arg0: i32, %arg1: i32, %arg2: i32) -> (i32, i32) {
    %c0_i32 = arith.constant 0 : i32
    return %arg2, %arg1 : i32, i32
  }
  func.func @transform_2(%arg0: i32, %arg1: i32, %arg2: i32) -> (i32, i32) {
    %c0_i32 = arith.constant 0 : i32
    return %arg0, %arg1 : i32, i32
  }
  func.func @transform_3(%arg0: i32, %arg1: i32, %arg2: i32) -> (i32, i32) {
    %c0_i32 = arith.constant 0 : i32
    return %arg0, %arg1 : i32, i32
  }
  func.func @transform_4(%arg0: i32, %arg1: i32, %arg2: i32) -> (i32, i32) {
    %c0_i32 = arith.constant 0 : i32
    return %arg0, %arg1 : i32, i32
  }
}

module attributes {stable_mosaic.version = 11 : i64} {
  func.func @_bn_lrelu_kernel(%arg0: i32, %arg1: memref<32x512xf32, #tpu.memory_space<vmem>>, %arg2: memref<1x512xf32, #tpu.memory_space<vmem>>, %arg3: memref<1x512xf32, #tpu.memory_space<vmem>>, %arg4: memref<32x512xbf16, #tpu.memory_space<vmem>>) attributes {dimension_semantics = [#tpu.dimension_semantics<parallel>], iteration_bounds = array<i64: 1>, scalar_prefetch = 0 : i64, scratch_operands = 0 : i64, tpu.core_type = #tpu.core_type<tc>, window_params = [{transform_indices = @transform_0, window_bounds = array<i64: 32, 512>}, {pipeline_mode = #tpu.pipeline_mode<synchronous>, transform_indices = @transform_1, window_bounds = array<i64: 1, 512>}, {pipeline_mode = #tpu.pipeline_mode<synchronous>, transform_indices = @transform_2, window_bounds = array<i64: 1, 512>}, {transform_indices = @transform_3, window_bounds = array<i64: 32, 512>}]} {
    %c0 = arith.constant 0 : index
    %c0_0 = arith.constant 0 : index
    %0 = vector.load %arg1[%c0, %c0_0] : memref<32x512xf32, #tpu.memory_space<vmem>>, vector<32x512xf32>
    %c0_1 = arith.constant 0 : index
    %c0_2 = arith.constant 0 : index
    %1 = vector.load %arg2[%c0_1, %c0_2] : memref<1x512xf32, #tpu.memory_space<vmem>>, vector<1x512xf32>
    %2 = vector.broadcast %1 : vector<1x512xf32> to vector<32x512xf32>
    %3 = arith.mulf %0, %2 : vector<32x512xf32>
    %c0_3 = arith.constant 0 : index
    %c0_4 = arith.constant 0 : index
    %4 = vector.load %arg3[%c0_3, %c0_4] : memref<1x512xf32, #tpu.memory_space<vmem>>, vector<1x512xf32>
    %5 = vector.broadcast %4 : vector<1x512xf32> to vector<32x512xf32>
    %6 = arith.addf %3, %5 : vector<32x512xf32>
    %cst = arith.constant 2.000000e-01 : f32
    %7 = vector.broadcast %cst : f32 to vector<32x512xf32>
    %8 = arith.mulf %7, %6 : vector<32x512xf32>
    %9 = arith.maximumf %6, %8 : vector<32x512xf32>
    %10 = arith.truncf %9 : vector<32x512xf32> to vector<32x512xbf16>
    %c0_5 = arith.constant 0 : index
    %c0_6 = arith.constant 0 : index
    %11 = vector.load %arg4[%c0_5, %c0_6] : memref<32x512xbf16, #tpu.memory_space<vmem>>, vector<32x512xbf16>
    tpu.vector_store %arg4[%c0_5, %c0_6], %10 {strides = array<i32>} : memref<32x512xbf16, #tpu.memory_space<vmem>>, vector<32x512xbf16>,
    return
  }
  func.func @transform_0(%arg0: i32) -> (i32, i32) {
    %c0_i32 = arith.constant 0 : i32
    %c0_i32_0 = arith.constant 0 : i32
    return %arg0, %c0_i32 : i32, i32
  }
  func.func @transform_1(%arg0: i32) -> (i32, i32) {
    %c0_i32 = arith.constant 0 : i32
    %c0_i32_0 = arith.constant 0 : i32
    %c0_i32_1 = arith.constant 0 : i32
    return %c0_i32, %c0_i32_0 : i32, i32
  }
  func.func @transform_2(%arg0: i32) -> (i32, i32) {
    %c0_i32 = arith.constant 0 : i32
    %c0_i32_0 = arith.constant 0 : i32
    %c0_i32_1 = arith.constant 0 : i32
    return %c0_i32, %c0_i32_0 : i32, i32
  }
  func.func @transform_3(%arg0: i32) -> (i32, i32) {
    %c0_i32 = arith.constant 0 : i32
    %c0_i32_0 = arith.constant 0 : i32
    return %arg0, %c0_i32 : i32, i32
  }
}

module attributes {stable_mosaic.version = 11 : i64} {
  func.func @_mm_act_kernel(%arg0: i32, %arg1: i32, %arg2: i32, %arg3: memref<8x512xbf16, #tpu.memory_space<vmem>>, %arg4: memref<512x128xbf16, #tpu.memory_space<vmem>>, %arg5: memref<8x128xf32, #tpu.memory_space<vmem>>, %arg6: memref<8x128xf32, #tpu.memory_space<vmem>>) attributes {dimension_semantics = [#tpu.dimension_semantics<parallel>, #tpu.dimension_semantics<parallel>, #tpu.dimension_semantics<arbitrary>], iteration_bounds = array<i64: 1, 1, 16>, scalar_prefetch = 0 : i64, scratch_operands = 1 : i64, tpu.core_type = #tpu.core_type<tc>, window_params = [{transform_indices = @transform_0, window_bounds = array<i64: 8, 512>}, {transform_indices = @transform_1, window_bounds = array<i64: 512, 128>}, {transform_indices = @transform_2, window_bounds = array<i64: 8, 128>}]} {
    %c0_i32 = arith.constant 0 : i32
    %0 = arith.cmpi eq, %arg2, %c0_i32 : i32
    %1 = arith.extui %0 : i1 to i32
    %c0_i32_0 = arith.constant 0 : i32
    %2 = arith.cmpi ne, %1, %c0_i32_0 : i32
    scf.if %2 {
      %cst_9 = arith.constant 0.000000e+00 : f32
      %12 = vector.broadcast %cst_9 : f32 to vector<8x128xf32>
      %c0_10 = arith.constant 0 : index
      %c0_11 = arith.constant 0 : index
      %13 = vector.load %arg6[%c0_10, %c0_11] : memref<8x128xf32, #tpu.memory_space<vmem>>, vector<8x128xf32>
      tpu.vector_store %arg6[%c0_10, %c0_11], %12 {strides = array<i32>} : memref<8x128xf32, #tpu.memory_space<vmem>>, vector<8x128xf32>,
    } else {
    }
    %c0 = arith.constant 0 : index
    %c0_1 = arith.constant 0 : index
    %3 = vector.load %arg6[%c0, %c0_1] : memref<8x128xf32, #tpu.memory_space<vmem>>, vector<8x128xf32>
    %c0_2 = arith.constant 0 : index
    %c0_3 = arith.constant 0 : index
    %4 = vector.load %arg3[%c0_2, %c0_3] : memref<8x512xbf16, #tpu.memory_space<vmem>>, vector<8x512xbf16>
    %c0_4 = arith.constant 0 : index
    %c0_5 = arith.constant 0 : index
    %5 = vector.load %arg4[%c0_4, %c0_5] : memref<512x128xbf16, #tpu.memory_space<vmem>>, vector<512x128xbf16>
    %cst = arith.constant dense<0.000000e+00> : vector<8x128xf32>
    %6 = tpu.matmul %4, %5, %cst {dimension_numbers = #tpu.dot_dimension_numbers<[1], [0], [0], [1], [0, 0, 1, 1], [], []>} : vector<8x512xbf16>, vector<512x128xbf16>, vector<8x128xf32> -> vector<8x128xf32>
    %7 = arith.addf %3, %6 : vector<8x128xf32>
    %c0_6 = arith.constant 0 : index
    %c0_7 = arith.constant 0 : index
    %8 = vector.load %arg6[%c0_6, %c0_7] : memref<8x128xf32, #tpu.memory_space<vmem>>, vector<8x128xf32>
    tpu.vector_store %arg6[%c0_6, %c0_7], %7 {strides = array<i32>} : memref<8x128xf32, #tpu.memory_space<vmem>>, vector<8x128xf32>,
    %c15_i32 = arith.constant 15 : i32
    %9 = arith.cmpi eq, %arg2, %c15_i32 : i32
    %10 = arith.extui %9 : i1 to i32
    %c0_i32_8 = arith.constant 0 : i32
    %11 = arith.cmpi ne, %10, %c0_i32_8 : i32
    scf.if %11 {
      %c0_9 = arith.constant 0 : index
      %c0_10 = arith.constant 0 : index
      %12 = vector.load %arg6[%c0_9, %c0_10] : memref<8x128xf32, #tpu.memory_space<vmem>>, vector<8x128xf32>
      %cst_11 = arith.constant 0.000000e+00 : f32
      %13 = vector.broadcast %cst_11 : f32 to vector<8x128xf32>
      %14 = arith.subf %13, %12 : vector<8x128xf32>
      %15 = math.exp %14 : vector<8x128xf32>
      %cst_12 = arith.constant 1.000000e+00 : f32
      %16 = vector.broadcast %cst_12 : f32 to vector<8x128xf32>
      %17 = arith.addf %16, %15 : vector<8x128xf32>
      %cst_13 = arith.constant 1.000000e+00 : f32
      %18 = vector.broadcast %cst_13 : f32 to vector<8x128xf32>
      %19 = arith.divf %18, %17 : vector<8x128xf32>
      %c0_14 = arith.constant 0 : index
      %c0_15 = arith.constant 0 : index
      %20 = vector.load %arg5[%c0_14, %c0_15] : memref<8x128xf32, #tpu.memory_space<vmem>>, vector<8x128xf32>
      tpu.vector_store %arg5[%c0_14, %c0_15], %19 {strides = array<i32>} : memref<8x128xf32, #tpu.memory_space<vmem>>, vector<8x128xf32>,
    } else {
    }
    return
  }
  func.func @transform_0(%arg0: i32, %arg1: i32, %arg2: i32) -> (i32, i32) {
    %c0_i32 = arith.constant 0 : i32
    return %arg0, %arg2 : i32, i32
  }
  func.func @transform_1(%arg0: i32, %arg1: i32, %arg2: i32) -> (i32, i32) {
    %c0_i32 = arith.constant 0 : i32
    return %arg2, %arg1 : i32, i32
  }
  func.func @transform_2(%arg0: i32, %arg1: i32, %arg2: i32) -> (i32, i32) {
    %c0_i32 = arith.constant 0 : i32
    return %arg0, %arg1 : i32, i32
  }
}

</mosaic_0001>

<llo_original>
// kernel: discriminator_forward.8
$region0: #{discriminator_forward.8}
  #allocation0 [shape = 'u32[]', space=smem, size = 0x4, offset = 0x4, fixed_abs, tag = 'smem constant byte address 0x4 - core index']
  #allocation1 [shape = 'u32[72,128]{1,0:T(1,128)}', space=vmem, size = 0x9000, scoped, tag = 'internal scratch']
  #allocation2 [shape = 'f32[256,64]{1,0:T(8,128)}', space=vmem, size = 0x20000, scoped, tag = 'scratch operand']
  %s0 = inlined_call_operand.vmem [shape: bf16[2048,128], index: 0, kind: input, shape index: {}]
  %s1 = inlined_call_operand.vmem [shape: bf16[128,64], index: 1, kind: input, shape index: {}]
  %s2 = inlined_call_operand.vmem [shape: bf16[2048,64], index: 2, kind: output, shape index: {}]
  %s3 = sld [smem:[#allocation0]]
  $region49: #{discriminator_forward.8} parent=0
    _
  %s5 = ssub.s32 1, %s3
  %s6 = scalar_select 0, %s5, %s3
  loop: start=0, step=1, limit=10
  $region2: #{discriminator_forward.8} parent=0 // loop_pre_header
    _
  $region3: #{discriminator_forward.8} parent=0 // loop_header
    %s8 = sphi 0, %s12
    %p9 = scmp.ge.s32.totalorder %s8, 10
    %s15 = sphi 0, %s34
    %s16 = sphi 0, %s30
    %s17 = sphi 0, %s26
    %s18 = sphi 0, %s15
    %s19 = sphi 0, %s16
    %s20 = sphi 0, %s17
    %s21 = sphi 0, %s18
    %s22 = sphi 0, %s19
    %s23 = sphi 0, %s20
    %s39 = sphi 0, %s41
    %s42 = sphi 0, %s39
    %s43 = sphi 0, %s42
    %s59 = sphi 0, %s43
    %s67 = sphi 0, %s69
    %s70 = sphi 0, %s67
    %s71 = sphi 0, %s70
    %s87 = sphi 0, %s71
    %s95 = sphi 0, %s97
    %s98 = sphi 0, %s95
    %s99 = sphi 0, %s98
    %s115 = sphi 0, %s99
  $region4: #{discriminator_forward.8} parent=0 // loop_header_branch
    %11 = sbr.rel (%p9) target = $region8
  $region5: #{discriminator_forward.8} parent=0 // loop_body
    %s13 = ssub.s32 %s8, 1
    %s14 = ssub.s32 %s8, 2
    %s24 = sadd.s32 1, %s17
    %p25 = scmp.ge.s32.totalorder %s24, 1
    %s26 = scalar_select %p25, 0, %s24
    %s27 = sadd.s32 1, %s16
    %s28 = scalar_select %p25, %s27, %s16
    %p29 = scmp.ge.s32.totalorder %s28, 1
    %s30 = scalar_select %p29, 0, %s28
    %s31 = sadd.s32 1, %s15
    %s32 = scalar_select %p29, %s31, %s15
    %p33 = scmp.ge.s32.totalorder %s32, 8
    %s34 = scalar_select %p33, 0, %s32
    %s35 = ssub.s32 %s15, %s34
    %s36 = ssub.s32 %s17, %s26
    %s37 = sor.u32 %s35, %s36
    %p38 = scmp.eq.s32.totalorder %s37, 0
    %s40 = sadd.s32 %s39, 1
    %s41 = scalar_select %p38, %s39, %s40
    %p44 = pneg %p38
    %p45 = scmp.eq.s32.totalorder %s8, 7
    %p46 = por %p44, %p45
    %p47 = scmp.ne.s32.totalorder %s39, %s42
    %p48 = scmp.eq.s32.totalorder %s8, 0
    %p49 = por %p47, %p48
    %p50 = scmp.ne.s32.totalorder %s39, %s42
    %p51 = scmp.eq.s32.totalorder %s13, 7
    %p52 = por %p50, %p51
    %p53 = scmp.ne.s32.totalorder %s42, %s43
    %p54 = scmp.eq.s32.totalorder %s13, 0
    %p55 = por %p53, %p54
    %p56 = scmp.ne.s32.totalorder %s42, %s43
    %p57 = scmp.eq.s32.totalorder %s14, 7
    %p58 = por %p56, %p57
    %p60 = scmp.ne.s32.totalorder %s43, %s59
    %p61 = scmp.eq.s32.totalorder %s14, 0
    %p62 = por %p60, %p61
    %s63 = ssub.s32 %s17, %s26
    %s64 = ssub.s32 %s16, %s30
    %s65 = sor.u32 %s63, %s64
    %p66 = scmp.eq.s32.totalorder %s65, 0
    %s68 = sadd.s32 %s67, 1
    %s69 = scalar_select %p66, %s67, %s68
    %p72 = pneg %p66
    %p73 = scmp.eq.s32.totalorder %s8, 7
    %p74 = por %p72, %p73
    %p75 = scmp.ne.s32.totalorder %s67, %s70
    %p76 = scmp.eq.s32.totalorder %s8, 0
    %p77 = por %p75, %p76
    %p78 = scmp.ne.s32.totalorder %s67, %s70
    %p79 = scmp.eq.s32.totalorder %s13, 7
    %p80 = por %p78, %p79
    %p81 = scmp.ne.s32.totalorder %s70, %s71
    %p82 = scmp.eq.s32.totalorder %s13, 0
    %p83 = por %p81, %p82
    %p84 = scmp.ne.s32.totalorder %s70, %s71
    %p85 = scmp.eq.s32.totalorder %s14, 7
    %p86 = por %p84, %p85
    %p88 = scmp.ne.s32.totalorder %s71, %s87
    %p89 = scmp.eq.s32.totalorder %s14, 0
    %p90 = por %p88, %p89
    %s91 = ssub.s32 %s15, %s34
    %s92 = ssub.s32 %s16, %s30
    %s93 = sor.u32 %s91, %s92
    %p94 = scmp.eq.s32.totalorder %s93, 0
    %s96 = sadd.s32 %s95, 1
    %s97 = scalar_select %p94, %s95, %s96
    %p100 = pneg %p94
    %p101 = scmp.eq.s32.totalorder %s8, 7
    %p102 = por %p100, %p101
    %p103 = scmp.ne.s32.totalorder %s95, %s98
    %p104 = scmp.eq.s32.totalorder %s8, 0
    %p105 = por %p103, %p104
    %p106 = scmp.ne.s32.totalorder %s95, %s98
    %p107 = scmp.eq.s32.totalorder %s13, 7
    %p108 = por %p106, %p107
    %p109 = scmp.ne.s32.totalorder %s98, %s99
    %p110 = scmp.eq.s32.totalorder %s13, 0
    %p111 = por %p109, %p110
    %p112 = scmp.ne.s32.totalorder %s98, %s99
    %p113 = scmp.eq.s32.totalorder %s14, 7
    %p114 = por %p112, %p113
    %p116 = scmp.ne.s32.totalorder %s99, %s115
    %p117 = scmp.eq.s32.totalorder %s14, 0
    %p118 = por %p116, %p117
    %p119 = scmp.le.s32.totalorder 1, %s8
    %p120 = scmp.lt.s32.totalorder %s8, 9
    %p121 = pnand %p119, %p120
    %p122 = pneg %p121
    // Predicated region
    $region9: #{discriminator_forward.8} parent=5 // pred_check
      _
    $region10: #{discriminator_forward.8} parent=5 // pred_check_branch
      %124 = sbr.rel (%p121) target = $region12
    $region11: #{discriminator_forward.8} parent=5 // pred_region
      %s125 = ssub.s32 %s8, 1
      // Predicated region
      $region13: #{discriminator_forward.8} parent=11 // pred_check
        %p126 = pneg %p83
      $region14: #{discriminator_forward.8} parent=11 // pred_check_branch
        %128 = sbr.rel (%p126) target = $region16
      $region15: #{discriminator_forward.8} parent=11 // pred_region
        %s129 = smul.u32 16, %s20
        %p130 = scmp.lt.s32.totalorder %s129, 15
        %s131 = scalar_select %p130, %s129, 15
        %p132 = scmp.lt.s32.totalorder %s19, 0
        %s133 = scalar_select %p132, %s19, 0
        %s134 = sadd.s32 %s133, %s131
        %s135 = smul.addr %s134, 4
        %s136 = scalar_lea.vmem %s1, %s135
        %s137 = smul.u32 16, %s20
      $region16: #{discriminator_forward.8} parent=11 // pred_fallthru
        _
    $region12: #{discriminator_forward.8} parent=5 // pred_fallthru
      _
    %p138 = scmp.lt.s32.totalorder %s8, 8
    // Predicated region
    $region17: #{discriminator_forward.8} parent=5 // pred_check
      %p139 = pneg %p138
    $region18: #{discriminator_forward.8} parent=5 // pred_check_branch
      %141 = sbr.rel (%p139) target = $region20
    $region19: #{discriminator_forward.8} parent=5 // pred_region
      // Predicated region
      $region21: #{discriminator_forward.8} parent=19 // pred_check
        %p142 = pneg %p49
      $region22: #{discriminator_forward.8} parent=19 // pred_check_branch
        %144 = sbr.rel (%p142) target = $region24
      $region23: #{discriminator_forward.8} parent=19 // pred_region
        %s145 = smul.u32 32, %s15
        %p146 = scmp.lt.s32.totalorder %s145, 255
        %s147 = scalar_select %p146, %s145, 255
        %p148 = scmp.lt.s32.totalorder %s17, 0
        %s149 = scalar_select %p148, %s17, 0
        %s150 = sadd.s32 %s149, %s147
        %s151 = smul.addr %s150, 4
        %s152 = scalar_lea.vmem %s0, %s151
        %s153 = smul.u32 32, %s15
      $region24: #{discriminator_forward.8} parent=19 // pred_fallthru
        _
    $region20: #{discriminator_forward.8} parent=5 // pred_fallthru
      _
    %p154 = scmp.le.s32.totalorder 1, %s8
    %p155 = scmp.lt.s32.totalorder %s8, 9
    %p156 = pnand %p154, %p155
    %p157 = pneg %p156
    // Predicated region
    $region25: #{discriminator_forward.8} parent=5 // pred_check
      _
    $region26: #{discriminator_forward.8} parent=5 // pred_check_branch
      %159 = sbr.rel (%p156) target = $region28
    $region27: #{discriminator_forward.8} parent=5 // pred_region
      %s160 = ssub.s32 %s8, 1
      %s161 = smul.u32 32, %s18
      %p162 = scmp.lt.s32.totalorder %s161, 255
      %s163 = scalar_select %p162, %s161, 255
      %p164 = scmp.lt.s32.totalorder %s20, 0
      %s165 = scalar_select %p164, %s20, 0
      %s166 = sadd.s32 %s165, %s163
      %s167 = smul.addr %s166, 4
      %s168 = scalar_lea.vmem %s0, %s167
      %p169 = pneg %p55
      %p170 = pneg %p52
      %s171 = smul.u32 16, %s20
      %p172 = scmp.lt.s32.totalorder %s171, 15
      %s173 = scalar_select %p172, %s171, 15
      %p174 = scmp.lt.s32.totalorder %s19, 0
      %s175 = scalar_select %p174, %s19, 0
      %s176 = sadd.s32 %s175, %s173
      %s177 = smul.addr %s176, 4
      %s178 = scalar_lea.vmem %s1, %s177
      %p179 = pneg %p83
      %p180 = pneg %p80
      %p181 = pneg %p111
      %p182 = pneg %p108
      %s183 = smul.u32 32, %s18
      %p184 = scmp.lt.s32.totalorder %s183, 255
      %s185 = scalar_select %p184, %s183, 255
      %p186 = scmp.lt.s32.totalorder %s19, 0
      %s187 = scalar_select %p186, %s19, 0
      %s188 = sadd.s32 %s187, %s185
      %s189 = smul.addr %s188, 4
      %s190 = scalar_lea.vmem %s2, %s189
      %s191 = smul.u32 32, %s18
      %p192 = scmp.lt.s32.totalorder %s191, 255
      %s193 = scalar_select %p192, %s191, 255
      %p194 = scmp.lt.s32.totalorder %s20, 0
      %s195 = scalar_select %p194, %s20, 0
      %s196 = sadd.s32 %s195, %s193
      %s197 = smul.addr %s196, 4
      %s198 = scalar_lea.vmem %s0, %s197
      %s199 = smul.u32 32, %s18
      %s200 = smul.u32 16, %s20
      %p201 = scmp.lt.s32.totalorder %s200, 15
      %s202 = scalar_select %p201, %s200, 15
      %p203 = scmp.lt.s32.totalorder %s19, 0
      %s204 = scalar_select %p203, %s19, 0
      %s205 = sadd.s32 %s204, %s202
      %s206 = smul.addr %s205, 4
      %s207 = scalar_lea.vmem %s1, %s206
      %s208 = smul.u32 16, %s20
      %s209 = smul.u32 32, %s18
      %p210 = scmp.lt.s32.totalorder %s209, 255
      %s211 = scalar_select %p210, %s209, 255
      %p212 = scmp.lt.s32.totalorder %s19, 0
      %s213 = scalar_select %p212, %s19, 0
      %s214 = sadd.s32 %s213, %s211
      %s215 = smul.addr %s214, 4
      %s216 = scalar_lea.vmem %s2, %s215
      %s217 = smul.u32 32, %s18
      %p218 = scmp.eq.s32.totalorder %s20, 0
      // Predicated region
      $region29: #{discriminator_forward.8} parent=27 // pred_check
        %p219 = pneg %p218
      $region30: #{discriminator_forward.8} parent=27 // pred_check_branch
        %221 = sbr.rel (%p219) target = $region32
      $region31: #{discriminator_forward.8} parent=27 // pred_region
        %vm222 = vcmask 523264
        %223 = vst.msk [vmem:[#allocation2] sm:$0xff] %vm222, 0.0
        %224 = vst.msk [vmem:[#allocation2 + $0x8] sm:$0xff] %vm222, 0.0
        %225 = vst.msk [vmem:[#allocation2 + $0x10] sm:$0xff] %vm222, 0.0
        %226 = vst.msk [vmem:[#allocation2 + $0x18] sm:$0xff] %vm222, 0.0
        %227 = vst.msk [vmem:[#allocation2 + $0x20] sm:$0xff] %vm222, 0.0
        %228 = vst.msk [vmem:[#allocation2 + $0x28] sm:$0xff] %vm222, 0.0
        %229 = vst.msk [vmem:[#allocation2 + $0x30] sm:$0xff] %vm222, 0.0
        %230 = vst.msk [vmem:[#allocation2 + $0x38] sm:$0xff] %vm222, 0.0
        %231 = vst.msk [vmem:[#allocation2 + $0x40] sm:$0xff] %vm222, 0.0
        %232 = vst.msk [vmem:[#allocation2 + $0x48] sm:$0xff] %vm222, 0.0
        %233 = vst.msk [vmem:[#allocation2 + $0x50] sm:$0xff] %vm222, 0.0
        %234 = vst.msk [vmem:[#allocation2 + $0x58] sm:$0xff] %vm222, 0.0
        %235 = vst.msk [vmem:[#allocation2 + $0x60] sm:$0xff] %vm222, 0.0
        %236 = vst.msk [vmem:[#allocation2 + $0x68] sm:$0xff] %vm222, 0.0
        %237 = vst.msk [vmem:[#allocation2 + $0x70] sm:$0xff] %vm222, 0.0
        %238 = vst.msk [vmem:[#allocation2 + $0x78] sm:$0xff] %vm222, 0.0
        %239 = vst.msk [vmem:[#allocation2 + $0x80] sm:$0xff] %vm222, 0.0
        %240 = vst.msk [vmem:[#allocation2 + $0x88] sm:$0xff] %vm222, 0.0
        %241 = vst.msk [vmem:[#allocation2 + $0x90] sm:$0xff] %vm222, 0.0
        %242 = vst.msk [vmem:[#allocation2 + $0x98] sm:$0xff] %vm222, 0.0
        %243 = vst.msk [vmem:[#allocation2 + $0xa0] sm:$0xff] %vm222, 0.0
        %244 = vst.msk [vmem:[#allocation2 + $0xa8] sm:$0xff] %vm222, 0.0
        %245 = vst.msk [vmem:[#allocation2 + $0xb0] sm:$0xff] %vm222, 0.0
        %246 = vst.msk [vmem:[#allocation2 + $0xb8] sm:$0xff] %vm222, 0.0
        %247 = vst.msk [vmem:[#allocation2 + $0xc0] sm:$0xff] %vm222, 0.0
        %248 = vst.msk [vmem:[#allocation2 + $0xc8] sm:$0xff] %vm222, 0.0
        %249 = vst.msk [vmem:[#allocation2 + $0xd0] sm:$0xff] %vm222, 0.0
        %250 = vst.msk [vmem:[#allocation2 + $0xd8] sm:$0xff] %vm222, 0.0
        %251 = vst.msk [vmem:[#allocation2 + $0xe0] sm:$0xff] %vm222, 0.0
        %252 = vst.msk [vmem:[#allocation2 + $0xe8] sm:$0xff] %vm222, 0.0
        %253 = vst.msk [vmem:[#allocation2 + $0xf0] sm:$0xff] %vm222, 0.0
        %254 = vst.msk [vmem:[#allocation2 + $0xf8] sm:$0xff] %vm222, 0.0
      $region32: #{discriminator_forward.8} parent=27 // pred_fallthru
        _
      %v255 = vld [vmem:[#allocation2] sm:$0xff]
      %v256 = vld [vmem:[#allocation2 + $0x8] sm:$0xff]
      %v257 = vld [vmem:[#allocation2 + $0x10] sm:$0xff]
      %v258 = vld [vmem:[#allocation2 + $0x18] sm:$0xff]
      %v259 = vld [vmem:[#allocation2 + $0x20] sm:$0xff]
      %v260 = vld [vmem:[#allocation2 + $0x28] sm:$0xff]
      %v261 = vld [vmem:[#allocation2 + $0x30] sm:$0xff]
      %v262 = vld [vmem:[#allocation2 + $0x38] sm:$0xff]
      %v263 = vld [vmem:[#allocation2 + $0x40] sm:$0xff]
      %v264 = vld [vmem:[#allocation2 + $0x48] sm:$0xff]
      %v265 = vld [vmem:[#allocation2 + $0x50] sm:$0xff]
      %v266 = vld [vmem:[#allocation2 + $0x58] sm:$0xff]
      %v267 = vld [vmem:[#allocation2 + $0x60] sm:$0xff]
      %v268 = vld [vmem:[#allocation2 + $0x68] sm:$0xff]
      %v269 = vld [vmem:[#allocation2 + $0x70] sm:$0xff]
      %v270 = vld [vmem:[#allocation2 + $0x78] sm:$0xff]
      %v271 = vld [vmem:[#allocation2 + $0x80] sm:$0xff]
      %v272 = vld [vmem:[#allocation2 + $0x88] sm:$0xff]
      %v273 = vld [vmem:[#allocation2 + $0x90] sm:$0xff]
      %v274 = vld [vmem:[#allocation2 + $0x98] sm:$0xff]
      %v275 = vld [vmem:[#allocation2 + $0xa0] sm:$0xff]
      %v276 = vld [vmem:[#allocation2 + $0xa8] sm:$0xff]
      %v277 = vld [vmem:[#allocation2 + $0xb0] sm:$0xff]
      %v278 = vld [vmem:[#allocation2 + $0xb8] sm:$0xff]
      %v279 = vld [vmem:[#allocation2 + $0xc0] sm:$0xff]
      %v280 = vld [vmem:[#allocation2 + $0xc8] sm:$0xff]
      %v281 = vld [vmem:[#allocation2 + $0xd0] sm:$0xff]
      %v282 = vld [vmem:[#allocation2 + $0xd8] sm:$0xff]
      %v283 = vld [vmem:[#allocation2 + $0xe0] sm:$0xff]
      %v284 = vld [vmem:[#allocation2 + $0xe8] sm:$0xff]
      %v285 = vld [vmem:[#allocation2 + $0xf0] sm:$0xff]
      %v286 = vld [vmem:[#allocation2 + $0xf8] sm:$0xff]
      %v287 = vld [vmem:[%s198] sm:$0xf]
      %v288 = vld [vmem:[%s198 + $0x4] sm:$0xf]
      %v289 = vld [vmem:[%s198 + $0x8] sm:$0xf]
      %v290 = vld [vmem:[%s198 + $0xc] sm:$0xf]
      %v291 = vld [vmem:[%s198 + $0x10] sm:$0xf]
      %v292 = vld [vmem:[%s198 + $0x14] sm:$0xf]
      %v293 = vld [vmem:[%s198 + $0x18] sm:$0xf]
      %v294 = vld [vmem:[%s198 + $0x1c] sm:$0xf]
      %v295 = vld [vmem:[%s198 + $0x20] sm:$0xf]
      %v296 = vld [vmem:[%s198 + $0x24] sm:$0xf]
      %v297 = vld [vmem:[%s198 + $0x28] sm:$0xf]
      %v298 = vld [vmem:[%s198 + $0x2c] sm:$0xf]
      %v299 = vld [vmem:[%s198 + $0x30] sm:$0xf]
      %v300 = vld [vmem:[%s198 + $0x34] sm:$0xf]
      %v301 = vld [vmem:[%s198 + $0x38] sm:$0xf]
      %v302 = vld [vmem:[%s198 + $0x3c] sm:$0xf]
      %v303 = vld [vmem:[%s198 + $0x40] sm:$0xf]
      %v304 = vld [vmem:[%s198 + $0x44] sm:$0xf]
      %v305 = vld [vmem:[%s198 + $0x48] sm:$0xf]
      %v306 = vld [vmem:[%s198 + $0x4c] sm:$0xf]
      %v307 = vld [vmem:[%s198 + $0x50] sm:$0xf]
      %v308 = vld [vmem:[%s198 + $0x54] sm:$0xf]
      %v309 = vld [vmem:[%s198 + $0x58] sm:$0xf]
      %v310 = vld [vmem:[%s198 + $0x5c] sm:$0xf]
      %v311 = vld [vmem:[%s198 + $0x60] sm:$0xf]
      %v312 = vld [vmem:[%s198 + $0x64] sm:$0xf]
      %v313 = vld [vmem:[%s198 + $0x68] sm:$0xf]
      %v314 = vld [vmem:[%s198 + $0x6c] sm:$0xf]
      %v315 = vld [vmem:[%s198 + $0x70] sm:$0xf]
      %v316 = vld [vmem:[%s198 + $0x74] sm:$0xf]
      %v317 = vld [vmem:[%s198 + $0x78] sm:$0xf]
      %v318 = vld [vmem:[%s198 + $0x7c] sm:$0xf]
      %v319 = vld [vmem:[%s207] sm:$0xf]
      %v320 = vld [vmem:[%s207 + $0x4] sm:$0xf]
      %v321 = vld [vmem:[%s207 + $0x8] sm:$0xf]
      %v322 = vld [vmem:[%s207 + $0xc] sm:$0xf]
      %v323 = vld [vmem:[%s207 + $0x10] sm:$0xf]
      %v324 = vld [vmem:[%s207 + $0x14] sm:$0xf]
      %v325 = vld [vmem:[%s207 + $0x18] sm:$0xf]
      %v326 = vld [vmem:[%s207 + $0x1c] sm:$0xf]
      %v327 = vld [vmem:[%s207 + $0x20] sm:$0xf]
      %v328 = vld [vmem:[%s207 + $0x24] sm:$0xf]
      %v329 = vld [vmem:[%s207 + $0x28] sm:$0xf]
      %v330 = vld [vmem:[%s207 + $0x2c] sm:$0xf]
      %v331 = vld [vmem:[%s207 + $0x30] sm:$0xf]
      %v332 = vld [vmem:[%s207 + $0x34] sm:$0xf]
      %v333 = vld [vmem:[%s207 + $0x38] sm:$0xf]
      %v334 = vld [vmem:[%s207 + $0x3c] sm:$0xf]
      %v367 = vunpack.c.l.b16 %v287
      %v368 = vunpack.c.l.b16 %v288
      %v369 = vunpack.c.l.b16 %v289
      %v370 = vunpack.c.l.b16 %v290
      %v371 = vunpack.c.l.b16 %v291
      %v372 = vunpack.c.l.b16 %v292
      %v373 = vunpack.c.l.b16 %v293
      %v374 = vunpack.c.l.b16 %v294
      %v375 = vunpack.c.l.b16 %v295
      %v376 = vunpack.c.l.b16 %v296
      %v377 = vunpack.c.l.b16 %v297
      %v378 = vunpack.c.l.b16 %v298
      %v379 = vunpack.c.l.b16 %v299
      %v380 = vunpack.c.l.b16 %v300
      %v381 = vunpack.c.l.b16 %v301
      %v382 = vunpack.c.l.b16 %v302
      %v383 = vunpack.c.l.b16 %v303
      %v384 = vunpack.c.l.b16 %v304
      %v385 = vunpack.c.l.b16 %v305
      %v386 = vunpack.c.l.b16 %v306
      %v387 = vunpack.c.l.b16 %v307
      %v388 = vunpack.c.l.b16 %v308
      %v389 = vunpack.c.l.b16 %v309
      %v390 = vunpack.c.l.b16 %v310
      %v391 = vunpack.c.l.b16 %v311
      %v392 = vunpack.c.l.b16 %v312
      %v393 = vunpack.c.l.b16 %v313
      %v394 = vunpack.c.l.b16 %v314
      %v395 = vunpack.c.l.b16 %v315
      %v396 = vunpack.c.l.b16 %v316
      %v397 = vunpack.c.l.b16 %v317
      %v398 = vunpack.c.l.b16 %v318
      %v399 = vpack.c.b16 %v368, %v367
      %v400 = vpack.c.b16 %v370, %v369
      %v401 = vpack.c.b16 %v372, %v371
      %v402 = vpack.c.b16 %v374, %v373
      %v403 = vpack.c.b16 %v376, %v375
      %v404 = vpack.c.b16 %v378, %v377
      %v405 = vpack.c.b16 %v380, %v379
      %v406 = vpack.c.b16 %v382, %v381
      %v407 = vpack.c.b16 %v384, %v383
      %v408 = vpack.c.b16 %v386, %v385
      %v409 = vpack.c.b16 %v388, %v387
      %v410 = vpack.c.b16 %v390, %v389
      %v411 = vpack.c.b16 %v392, %v391
      %v412 = vpack.c.b16 %v394, %v393
      %v413 = vpack.c.b16 %v396, %v395
      %v414 = vpack.c.b16 %v398, %v397
      %v447 = vunpack.c.l.b16 %v319
      %v448 = vunpack.c.l.b16 %v320
      %v449 = vunpack.c.l.b16 %v321
      %v450 = vunpack.c.l.b16 %v322
      %v451 = vunpack.c.l.b16 %v323
      %v452 = vunpack.c.l.b16 %v324
      %v453 = vunpack.c.l.b16 %v325
      %v454 = vunpack.c.l.b16 %v326
      %v455 = vunpack.c.l.b16 %v327
      %v456 = vunpack.c.l.b16 %v328
      %v457 = vunpack.c.l.b16 %v329
      %v458 = vunpack.c.l.b16 %v330
      %v459 = vunpack.c.l.b16 %v331
      %v460 = vunpack.c.l.b16 %v332
      %v461 = vunpack.c.l.b16 %v333
      %v462 = vunpack.c.l.b16 %v334
      %v463 = vpack.c.b16 %v448, %v447
      %v464 = vpack.c.b16 %v450, %v449
      %v465 = vpack.c.b16 %v452, %v451
      %v466 = vpack.c.b16 %v454, %v453
      %v467 = vpack.c.b16 %v456, %v455
      %v468 = vpack.c.b16 %v458, %v457
      %v469 = vpack.c.b16 %v460, %v459
      %v470 = vpack.c.b16 %v462, %v461
      %479 = vmatpush.bf16.msra.mxu0 %v470
      %480 = vmatpush.bf16.msra.mxu0 %v469
      %481 = vmatpush.bf16.msra.mxu0 %v468
      %482 = vmatpush.bf16.msra.mxu0 %v467
      %483 = vmatpush.bf16.msra.mxu0 %v466
      %484 = vmatpush.bf16.msra.mxu0 %v465
      %485 = vmatpush.bf16.msra.mxu0 %v464
      %486 = vmatpush.bf16.msra.mxu0 %v463
      %487 = vmatmul.bf16.gmra.mxu0 %v399
      %v488 = vpop.f32.mrf.mxu0
      %v489 = vadd.f32 0.0, %v488
      %v490 = vpop.f32.mrf.mxu0
      %v491 = vadd.f32 0.0, %v490
      %492 = vmatmul.bf16.gmra.mxu0 %v400
      %v493 = vpop.f32.mrf.mxu0
      %v494 = vadd.f32 0.0, %v493
      %v495 = vpop.f32.mrf.mxu0
      %v496 = vadd.f32 0.0, %v495
      %497 = vmatmul.bf16.gmra.mxu0 %v401
      %v498 = vpop.f32.mrf.mxu0
      %v499 = vadd.f32 0.0, %v498
      %v500 = vpop.f32.mrf.mxu0
      %v501 = vadd.f32 0.0, %v500
      %502 = vmatmul.bf16.gmra.mxu0 %v402
      %v503 = vpop.f32.mrf.mxu0
      %v504 = vadd.f32 0.0, %v503
      %v505 = vpop.f32.mrf.mxu0
      %v506 = vadd.f32 0.0, %v505
      %507 = vmatmul.bf16.gmra.mxu0 %v403
      %v508 = vpop.f32.mrf.mxu0
      %v509 = vadd.f32 0.0, %v508
      %v510 = vpop.f32.mrf.mxu0
      %v511 = vadd.f32 0.0, %v510
      %512 = vmatmul.bf16.gmra.mxu0 %v404
      %v513 = vpop.f32.mrf.mxu0
      %v514 = vadd.f32 0.0, %v513
      %v515 = vpop.f32.mrf.mxu0
      %v516 = vadd.f32 0.0, %v515
      %517 = vmatmul.bf16.gmra.mxu0 %v405
      %v518 = vpop.f32.mrf.mxu0
      %v519 = vadd.f32 0.0, %v518
      %v520 = vpop.f32.mrf.mxu0
      %v521 = vadd.f32 0.0, %v520
      %522 = vmatmul.bf16.gmra.mxu0 %v406
      %v523 = vpop.f32.mrf.mxu0
      %v524 = vadd.f32 0.0, %v523
      %v525 = vpop.f32.mrf.mxu0
      %v526 = vadd.f32 0.0, %v525
      %527 = vmatmul.bf16.gmra.mxu0 %v407
      %v528 = vpop.f32.mrf.mxu0
      %v529 = vadd.f32 0.0, %v528
      %v530 = vpop.f32.mrf.mxu0
      %v531 = vadd.f32 0.0, %v530
      %532 = vmatmul.bf16.gmra.mxu0 %v408
      %v533 = vpop.f32.mrf.mxu0
      %v534 = vadd.f32 0.0, %v533
      %v535 = vpop.f32.mrf.mxu0
      %v536 = vadd.f32 0.0, %v535
      %537 = vmatmul.bf16.gmra.mxu0 %v409
      %v538 = vpop.f32.mrf.mxu0
      %v539 = vadd.f32 0.0, %v538
      %v540 = vpop.f32.mrf.mxu0
      %v541 = vadd.f32 0.0, %v540
      %542 = vmatmul.bf16.gmra.mxu0 %v410
      %v543 = vpop.f32.mrf.mxu0
      %v544 = vadd.f32 0.0, %v543
      %v545 = vpop.f32.mrf.mxu0
      %v546 = vadd.f32 0.0, %v545
      %547 = vmatmul.bf16.gmra.mxu0 %v411
      %v548 = vpop.f32.mrf.mxu0
      %v549 = vadd.f32 0.0, %v548
      %v550 = vpop.f32.mrf.mxu0
      %v551 = vadd.f32 0.0, %v550
      %552 = vmatmul.bf16.gmra.mxu0 %v412
      %v553 = vpop.f32.mrf.mxu0
      %v554 = vadd.f32 0.0, %v553
      %v555 = vpop.f32.mrf.mxu0
      %v556 = vadd.f32 0.0, %v555
      %557 = vmatmul.bf16.gmra.mxu0 %v413
      %v558 = vpop.f32.mrf.mxu0
      %v559 = vadd.f32 0.0, %v558
      %v560 = vpop.f32.mrf.mxu0
      %v561 = vadd.f32 0.0, %v560
      %562 = vmatmul.bf16.gmra.mxu0 %v414
      %v563 = vpop.f32.mrf.mxu0
      %v564 = vadd.f32 0.0, %v563
      %v565 = vpop.f32.mrf.mxu0
      %v566 = vadd.f32 0.0, %v565
      %567 = vdwg.mxu0
      %v568 = vadd.f32 %v255, %v489
      %v569 = vadd.f32 %v256, %v491
      %v570 = vadd.f32 %v257, %v494
      %v571 = vadd.f32 %v258, %v496
      %v572 = vadd.f32 %v259, %v499
      %v573 = vadd.f32 %v260, %v501
      %v574 = vadd.f32 %v261, %v504
      %v575 = vadd.f32 %v262, %v506
      %v576 = vadd.f32 %v263, %v509
      %v577 = vadd.f32 %v264, %v511
      %v578 = vadd.f32 %v265, %v514
      %v579 = vadd.f32 %v266, %v516
      %v580 = vadd.f32 %v267, %v519
      %v581 = vadd.f32 %v268, %v521
      %v582 = vadd.f32 %v269, %v524
      %v583 = vadd.f32 %v270, %v526
      %v584 = vadd.f32 %v271, %v529
      %v585 = vadd.f32 %v272, %v531
      %v586 = vadd.f32 %v273, %v534
      %v587 = vadd.f32 %v274, %v536
      %v588 = vadd.f32 %v275, %v539
      %v589 = vadd.f32 %v276, %v541
      %v590 = vadd.f32 %v277, %v544
      %v591 = vadd.f32 %v278, %v546
      %v592 = vadd.f32 %v279, %v549
      %v593 = vadd.f32 %v280, %v551
      %v594 = vadd.f32 %v281, %v554
      %v595 = vadd.f32 %v282, %v556
      %v596 = vadd.f32 %v283, %v559
      %v597 = vadd.f32 %v284, %v561
      %v598 = vadd.f32 %v285, %v564
      %v599 = vadd.f32 %v286, %v566
      %vm600 = vcmask 523264
      %601 = vst.msk [vmem:[#allocation2] sm:$0xff] %vm600, %v568
      %602 = vst.msk [vmem:[#allocation2 + $0x8] sm:$0xff] %vm600, %v569
      %603 = vst.msk [vmem:[#allocation2 + $0x10] sm:$0xff] %vm600, %v570
      %604 = vst.msk [vmem:[#allocation2 + $0x18] sm:$0xff] %vm600, %v571
      %605 = vst.msk [vmem:[#allocation2 + $0x20] sm:$0xff] %vm600, %v572
      %606 = vst.msk [vmem:[#allocation2 + $0x28] sm:$0xff] %vm600, %v573
      %607 = vst.msk [vmem:[#allocation2 + $0x30] sm:$0xff] %vm600, %v574
      %608 = vst.msk [vmem:[#allocation2 + $0x38] sm:$0xff] %vm600, %v575
      %609 = vst.msk [vmem:[#allocation2 + $0x40] sm:$0xff] %vm600, %v576
      %610 = vst.msk [vmem:[#allocation2 + $0x48] sm:$0xff] %vm600, %v577
      %611 = vst.msk [vmem:[#allocation2 + $0x50] sm:$0xff] %vm600, %v578
      %612 = vst.msk [vmem:[#allocation2 + $0x58] sm:$0xff] %vm600, %v579
      %613 = vst.msk [vmem:[#allocation2 + $0x60] sm:$0xff] %vm600, %v580
      %614 = vst.msk [vmem:[#allocation2 + $0x68] sm:$0xff] %vm600, %v581
      %615 = vst.msk [vmem:[#allocation2 + $0x70] sm:$0xff] %vm600, %v582
      %616 = vst.msk [vmem:[#allocation2 + $0x78] sm:$0xff] %vm600, %v583
      %617 = vst.msk [vmem:[#allocation2 + $0x80] sm:$0xff] %vm600, %v584
      %618 = vst.msk [vmem:[#allocation2 + $0x88] sm:$0xff] %vm600, %v585
      %619 = vst.msk [vmem:[#allocation2 + $0x90] sm:$0xff] %vm600, %v586
      %620 = vst.msk [vmem:[#allocation2 + $0x98] sm:$0xff] %vm600, %v587
      %621 = vst.msk [vmem:[#allocation2 + $0xa0] sm:$0xff] %vm600, %v588
      %622 = vst.msk [vmem:[#allocation2 + $0xa8] sm:$0xff] %vm600, %v589
      %623 = vst.msk [vmem:[#allocation2 + $0xb0] sm:$0xff] %vm600, %v590
      %624 = vst.msk [vmem:[#allocation2 + $0xb8] sm:$0xff] %vm600, %v591
      %625 = vst.msk [vmem:[#allocation2 + $0xc0] sm:$0xff] %vm600, %v592
      %626 = vst.msk [vmem:[#allocation2 + $0xc8] sm:$0xff] %vm600, %v593
      %627 = vst.msk [vmem:[#allocation2 + $0xd0] sm:$0xff] %vm600, %v594
      %628 = vst.msk [vmem:[#allocation2 + $0xd8] sm:$0xff] %vm600, %v595
      %629 = vst.msk [vmem:[#allocation2 + $0xe0] sm:$0xff] %vm600, %v596
      %630 = vst.msk [vmem:[#allocation2 + $0xe8] sm:$0xff] %vm600, %v597
      %631 = vst.msk [vmem:[#allocation2 + $0xf0] sm:$0xff] %vm600, %v598
      %632 = vst.msk [vmem:[#allocation2 + $0xf8] sm:$0xff] %vm600, %v599
      // Predicated region
      $region33: #{discriminator_forward.8} parent=27 // pred_check
        %p633 = pneg %p218
      $region34: #{discriminator_forward.8} parent=27 // pred_check_branch
        %635 = sbr.rel (%p633) target = $region36
      $region35: #{discriminator_forward.8} parent=27 // pred_region
        %v636 = vld [vmem:[#allocation2] sm:$0xff]
        %v637 = vld [vmem:[#allocation2 + $0x8] sm:$0xff]
        %v638 = vld [vmem:[#allocation2 + $0x10] sm:$0xff]
        %v639 = vld [vmem:[#allocation2 + $0x18] sm:$0xff]
        %v640 = vld [vmem:[#allocation2 + $0x20] sm:$0xff]
        %v641 = vld [vmem:[#allocation2 + $0x28] sm:$0xff]
        %v642 = vld [vmem:[#allocation2 + $0x30] sm:$0xff]
        %v643 = vld [vmem:[#allocation2 + $0x38] sm:$0xff]
        %v644 = vld [vmem:[#allocation2 + $0x40] sm:$0xff]
        %v645 = vld [vmem:[#allocation2 + $0x48] sm:$0xff]
        %v646 = vld [vmem:[#allocation2 + $0x50] sm:$0xff]
        %v647 = vld [vmem:[#allocation2 + $0x58] sm:$0xff]
        %v648 = vld [vmem:[#allocation2 + $0x60] sm:$0xff]
        %v649 = vld [vmem:[#allocation2 + $0x68] sm:$0xff]
        %v650 = vld [vmem:[#allocation2 + $0x70] sm:$0xff]
        %v651 = vld [vmem:[#allocation2 + $0x78] sm:$0xff]
        %v652 = vld [vmem:[#allocation2 + $0x80] sm:$0xff]
        %v653 = vld [vmem:[#allocation2 + $0x88] sm:$0xff]
        %v654 = vld [vmem:[#allocation2 + $0x90] sm:$0xff]
        %v655 = vld [vmem:[#allocation2 + $0x98] sm:$0xff]
        %v656 = vld [vmem:[#allocation2 + $0xa0] sm:$0xff]
        %v657 = vld [vmem:[#allocation2 + $0xa8] sm:$0xff]
        %v658 = vld [vmem:[#allocation2 + $0xb0] sm:$0xff]
        %v659 = vld [vmem:[#allocation2 + $0xb8] sm:$0xff]
        %v660 = vld [vmem:[#allocation2 + $0xc0] sm:$0xff]
        %v661 = vld [vmem:[#allocation2 + $0xc8] sm:$0xff]
        %v662 = vld [vmem:[#allocation2 + $0xd0] sm:$0xff]
        %v663 = vld [vmem:[#allocation2 + $0xd8] sm:$0xff]
        %v664 = vld [vmem:[#allocation2 + $0xe0] sm:$0xff]
        %v665 = vld [vmem:[#allocation2 + $0xe8] sm:$0xff]
        %v666 = vld [vmem:[#allocation2 + $0xf0] sm:$0xff]
        %v667 = vld [vmem:[#allocation2 + $0xf8] sm:$0xff]
        %v668 = vmul.f32 %v636, 0.2
        %v669 = vmul.f32 %v637, 0.2
        %v670 = vmul.f32 %v638, 0.2
        %v671 = vmul.f32 %v639, 0.2
        %v672 = vmul.f32 %v640, 0.2
        %v673 = vmul.f32 %v641, 0.2
        %v674 = vmul.f32 %v642, 0.2
        %v675 = vmul.f32 %v643, 0.2
        %v676 = vmul.f32 %v644, 0.2
        %v677 = vmul.f32 %v645, 0.2
        %v678 = vmul.f32 %v646, 0.2
        %v679 = vmul.f32 %v647, 0.2
        %v680 = vmul.f32 %v648, 0.2
        %v681 = vmul.f32 %v649, 0.2
        %v682 = vmul.f32 %v650, 0.2
        %v683 = vmul.f32 %v651, 0.2
        %v684 = vmul.f32 %v652, 0.2
        %v685 = vmul.f32 %v653, 0.2
        %v686 = vmul.f32 %v654, 0.2
        %v687 = vmul.f32 %v655, 0.2
        %v688 = vmul.f32 %v656, 0.2
        %v689 = vmul.f32 %v657, 0.2
        %v690 = vmul.f32 %v658, 0.2
        %v691 = vmul.f32 %v659, 0.2
        %v692 = vmul.f32 %v660, 0.2
        %v693 = vmul.f32 %v661, 0.2
        %v694 = vmul.f32 %v662, 0.2
        %v695 = vmul.f32 %v663, 0.2
        %v696 = vmul.f32 %v664, 0.2
        %v697 = vmul.f32 %v665, 0.2
        %v698 = vmul.f32 %v666, 0.2
        %v699 = vmul.f32 %v667, 0.2
        %v700 = vmax.f32 %v636, %v668
        %v701 = vmax.f32 %v637, %v669
        %v702 = vmax.f32 %v638, %v670
        %v703 = vmax.f32 %v639, %v671
        %v704 = vmax.f32 %v640, %v672
        %v705 = vmax.f32 %v641, %v673
        %v706 = vmax.f32 %v642, %v674
        %v707 = vmax.f32 %v643, %v675
        %v708 = vmax.f32 %v644, %v676
        %v709 = vmax.f32 %v645, %v677
        %v710 = vmax.f32 %v646, %v678
        %v711 = vmax.f32 %v647, %v679
        %v712 = vmax.f32 %v648, %v680
        %v713 = vmax.f32 %v649, %v681
        %v714 = vmax.f32 %v650, %v682
        %v715 = vmax.f32 %v651, %v683
        %v716 = vmax.f32 %v652, %v684
        %v717 = vmax.f32 %v653, %v685
        %v718 = vmax.f32 %v654, %v686
        %v719 = vmax.f32 %v655, %v687
        %v720 = vmax.f32 %v656, %v688
        %v721 = vmax.f32 %v657, %v689
        %v722 = vmax.f32 %v658, %v690
        %v723 = vmax.f32 %v659, %v691
        %v724 = vmax.f32 %v660, %v692
        %v725 = vmax.f32 %v661, %v693
        %v726 = vmax.f32 %v662, %v694
        %v727 = vmax.f32 %v663, %v695
        %v728 = vmax.f32 %v664, %v696
        %v729 = vmax.f32 %v665, %v697
        %v730 = vmax.f32 %v666, %v698
        %v731 = vmax.f32 %v667, %v699
        %v732 = vpack.c.bf16 %v700, %v700
        %v733 = vpack.c.bf16 %v701, %v701
        %v734 = vpack.c.bf16 %v702, %v702
        %v735 = vpack.c.bf16 %v703, %v703
        %v736 = vpack.c.bf16 %v704, %v704
        %v737 = vpack.c.bf16 %v705, %v705
        %v738 = vpack.c.bf16 %v706, %v706
        %v739 = vpack.c.bf16 %v707, %v707
        %v740 = vpack.c.bf16 %v708, %v708
        %v741 = vpack.c.bf16 %v709, %v709
        %v742 = vpack.c.bf16 %v710, %v710
        %v743 = vpack.c.bf16 %v711, %v711
        %v744 = vpack.c.bf16 %v712, %v712
        %v745 = vpack.c.bf16 %v713, %v713
        %v746 = vpack.c.bf16 %v714, %v714
        %v747 = vpack.c.bf16 %v715, %v715
        %v748 = vpack.c.bf16 %v716, %v716
        %v749 = vpack.c.bf16 %v717, %v717
        %v750 = vpack.c.bf16 %v718, %v718
        %v751 = vpack.c.bf16 %v719, %v719
        %v752 = vpack.c.bf16 %v720, %v720
        %v753 = vpack.c.bf16 %v721, %v721
        %v754 = vpack.c.bf16 %v722, %v722
        %v755 = vpack.c.bf16 %v723, %v723
        %v756 = vpack.c.bf16 %v724, %v724
        %v757 = vpack.c.bf16 %v725, %v725
        %v758 = vpack.c.bf16 %v726, %v726
        %v759 = vpack.c.bf16 %v727, %v727
        %v760 = vpack.c.bf16 %v728, %v728
        %v761 = vpack.c.bf16 %v729, %v729
        %v762 = vpack.c.bf16 %v730, %v730
        %v763 = vpack.c.bf16 %v731, %v731
        %vm764 = vcmask 519168
        %765 = vst.msk [vmem:[%s216] sm:$0xf] %vm764, %v732
        %766 = vst.msk [vmem:[%s216 + $0x4] sm:$0xf] %vm764, %v733
        %767 = vst.msk [vmem:[%s216 + $0x8] sm:$0xf] %vm764, %v734
        %768 = vst.msk [vmem:[%s216 + $0xc] sm:$0xf] %vm764, %v735
        %769 = vst.msk [vmem:[%s216 + $0x10] sm:$0xf] %vm764, %v736
        %770 = vst.msk [vmem:[%s216 + $0x14] sm:$0xf] %vm764, %v737
        %771 = vst.msk [vmem:[%s216 + $0x18] sm:$0xf] %vm764, %v738
        %772 = vst.msk [vmem:[%s216 + $0x1c] sm:$0xf] %vm764, %v739
        %773 = vst.msk [vmem:[%s216 + $0x20] sm:$0xf] %vm764, %v740
        %774 = vst.msk [vmem:[%s216 + $0x24] sm:$0xf] %vm764, %v741
        %775 = vst.msk [vmem:[%s216 + $0x28] sm:$0xf] %vm764, %v742
        %776 = vst.msk [vmem:[%s216 + $0x2c] sm:$0xf] %vm764, %v743
        %777 = vst.msk [vmem:[%s216 + $0x30] sm:$0xf] %vm764, %v744
        %778 = vst.msk [vmem:[%s216 + $0x34] sm:$0xf] %vm764, %v745
        %779 = vst.msk [vmem:[%s216 + $0x38] sm:$0xf] %vm764, %v746
        %780 = vst.msk [vmem:[%s216 + $0x3c] sm:$0xf] %vm764, %v747
        %781 = vst.msk [vmem:[%s216 + $0x40] sm:$0xf] %vm764, %v748
        %782 = vst.msk [vmem:[%s216 + $0x44] sm:$0xf] %vm764, %v749
        %783 = vst.msk [vmem:[%s216 + $0x48] sm:$0xf] %vm764, %v750
        %784 = vst.msk [vmem:[%s216 + $0x4c] sm:$0xf] %vm764, %v751
        %785 = vst.msk [vmem:[%s216 + $0x50] sm:$0xf] %vm764, %v752
        %786 = vst.msk [vmem:[%s216 + $0x54] sm:$0xf] %vm764, %v753
        %787 = vst.msk [vmem:[%s216 + $0x58] sm:$0xf] %vm764, %v754
        %788 = vst.msk [vmem:[%s216 + $0x5c] sm:$0xf] %vm764, %v755
        %789 = vst.msk [vmem:[%s216 + $0x60] sm:$0xf] %vm764, %v756
        %790 = vst.msk [vmem:[%s216 + $0x64] sm:$0xf] %vm764, %v757
        %791 = vst.msk [vmem:[%s216 + $0x68] sm:$0xf] %vm764, %v758
        %792 = vst.msk [vmem:[%s216 + $0x6c] sm:$0xf] %vm764, %v759
        %793 = vst.msk [vmem:[%s216 + $0x70] sm:$0xf] %vm764, %v760
        %794 = vst.msk [vmem:[%s216 + $0x74] sm:$0xf] %vm764, %v761
        %795 = vst.msk [vmem:[%s216 + $0x78] sm:$0xf] %vm764, %v762
        %796 = vst.msk [vmem:[%s216 + $0x7c] sm:$0xf] %vm764, %v763
      $region36: #{discriminator_forward.8} parent=27 // pred_fallthru
        _
      %s797 = smul.u32 32, %s18
      %p798 = scmp.lt.s32.totalorder %s797, 255
      %s799 = scalar_select %p798, %s797, 255
      %p800 = scmp.lt.s32.totalorder %s19, 0
      %s801 = scalar_select %p800, %s19, 0
      %s802 = sadd.s32 %s801, %s799
      %s803 = smul.addr %s802, 4
      %s804 = scalar_lea.vmem %s2, %s803
      // Predicated region
      $region37: #{discriminator_forward.8} parent=27 // pred_check
        %p805 = pneg %p108
      $region38: #{discriminator_forward.8} parent=27 // pred_check_branch
        %807 = sbr.rel (%p805) target = $region40
      $region39: #{discriminator_forward.8} parent=27 // pred_region
        %s808 = smul.u32 32, %s18
      $region40: #{discriminator_forward.8} parent=27 // pred_fallthru
        _
    $region28: #{discriminator_forward.8} parent=5 // pred_fallthru
      _
    %p809 = scmp.le.s32.totalorder 2, %s8
    // Predicated region
    $region41: #{discriminator_forward.8} parent=5 // pred_check
      %p810 = pneg %p809
    $region42: #{discriminator_forward.8} parent=5 // pred_check_branch
      %812 = sbr.rel (%p810) target = $region44
    $region43: #{discriminator_forward.8} parent=5 // pred_region
      %s813 = ssub.s32 %s8, 2
      // Predicated region
      $region45: #{discriminator_forward.8} parent=43 // pred_check
        %p814 = pneg %p114
      $region46: #{discriminator_forward.8} parent=43 // pred_check_branch
        %816 = sbr.rel (%p814) target = $region48
      $region47: #{discriminator_forward.8} parent=43 // pred_region
        %s817 = smul.u32 32, %s21
        %p818 = scmp.lt.s32.totalorder %s817, 255
        %s819 = scalar_select %p818, %s817, 255
        %p820 = scmp.lt.s32.totalorder %s22, 0
        %s821 = scalar_select %p820, %s22, 0
        %s822 = sadd.s32 %s821, %s819
        %s823 = smul.addr %s822, 4
        %s824 = scalar_lea.vmem %s2, %s823
      $region48: #{discriminator_forward.8} parent=43 // pred_fallthru
        _
    $region44: #{discriminator_forward.8} parent=5 // pred_fallthru
      _
  $region6: #{discriminator_forward.8} parent=0 // loop_footer
    %s12 = sadd.s32 1, %s8
  $region7: #{discriminator_forward.8} parent=0 // loop_footer_branch
    %7 = sbr.rel target = $region3
  $region8: #{discriminator_forward.8} parent=0 // loop_exit
    _

// kernel: discriminator_forward.9
$region0: #{discriminator_forward.9}
  #allocation0 [shape = 'u32[]', space=smem, size = 0x4, offset = 0x4, fixed_abs, tag = 'smem constant byte address 0x4 - core index']
  #allocation1 [shape = 'u32[72,128]{1,0:T(1,128)}', space=vmem, size = 0x9000, scoped, tag = 'internal scratch']
  #allocation2 [shape = 'f32[256,128]{1,0:T(8,128)}', space=vmem, size = 0x20000, scoped, tag = 'scratch operand']
  %s0 = inlined_call_operand.vmem [shape: bf16[512,1024], index: 0, kind: input, shape index: {}]
  %s1 = inlined_call_operand.vmem [shape: bf16[1024,128], index: 1, kind: input, shape index: {}]
  %s2 = inlined_call_operand.vmem [shape: f32[512,128], index: 2, kind: output, shape index: {0}]
  %s3 = inlined_call_operand.vmem [shape: f32[16,128], index: 3, kind: output, shape index: {1}]
  %s4 = inlined_call_operand.vmem [shape: f32[16,128], index: 4, kind: output, shape index: {2}]
  %5 = xla_tuple %s2, %s3, %s4
  %s6 = sld [smem:[#allocation0]]
  $region88: #{discriminator_forward.9} parent=0
    _
  %s8 = ssub.s32 1, %s6
  %s9 = scalar_select 0, %s8, %s6
  $region1: #{discriminator_forward.9} parent=0
    #allocation3 [shape = 'u8[524288]{0}', space=vmem, size = 0x80000, scoped, tag = 'input window, operand 0']
    loop: start=0, step=1, limit=6
    $region2: #{discriminator_forward.9} parent=1 // loop_pre_header
      _
    $region3: #{discriminator_forward.9} parent=1 // loop_header
      %s11 = sphi 0, %s15
      %p12 = scmp.ge.s32.totalorder %s11, 6
      %s18 = sphi 0, %s37
      %s19 = sphi 0, %s33
      %s20 = sphi 0, %s29
      %s21 = sphi 0, %s18
      %s22 = sphi 0, %s19
      %s23 = sphi 0, %s20
      %s24 = sphi 0, %s21
      %s25 = sphi 0, %s22
      %s26 = sphi 0, %s23
      %s42 = sphi 0, %s44
      %s45 = sphi 0, %s42
      %s46 = sphi 0, %s45
      %s62 = sphi 0, %s46
      %s70 = sphi 0, %s72
      %s73 = sphi 0, %s70
      %s74 = sphi 0, %s73
      %s90 = sphi 0, %s74
      %s98 = sphi 0, %s100
      %s101 = sphi 0, %s98
      %s102 = sphi 0, %s101
      %s118 = sphi 0, %s102
      %s126 = sphi 0, %s128
      %s129 = sphi 0, %s126
      %s130 = sphi 0, %s129
      %s146 = sphi 0, %s130
      %s154 = sphi 0, %s156
      %s157 = sphi 0, %s154
      %s158 = sphi 0, %s157
      %s174 = sphi 0, %s158
    $region4: #{discriminator_forward.9} parent=1 // loop_header_branch
      %14 = sbr.rel (%p12) target = $region8
    $region5: #{discriminator_forward.9} parent=1 // loop_body
      %s16 = ssub.s32 %s11, 1
      %s17 = ssub.s32 %s11, 2
      %s27 = sadd.s32 1, %s20
      %p28 = scmp.ge.s32.totalorder %s27, 2
      %s29 = scalar_select %p28, 0, %s27
      %s30 = sadd.s32 1, %s19
      %s31 = scalar_select %p28, %s30, %s19
      %p32 = scmp.ge.s32.totalorder %s31, 1
      %s33 = scalar_select %p32, 0, %s31
      %s34 = sadd.s32 1, %s18
      %s35 = scalar_select %p32, %s34, %s18
      %p36 = scmp.ge.s32.totalorder %s35, 2
      %s37 = scalar_select %p36, 0, %s35
      %s38 = ssub.s32 %s18, %s37
      %s39 = ssub.s32 %s20, %s29
      %s40 = sor.u32 %s38, %s39
      %p41 = scmp.eq.s32.totalorder %s40, 0
      %s43 = sadd.s32 %s42, 1
      %s44 = scalar_select %p41, %s42, %s43
      %p47 = pneg %p41
      %p48 = scmp.eq.s32.totalorder %s11, 3
      %p49 = por %p47, %p48
      %p50 = scmp.ne.s32.totalorder %s42, %s45
      %p51 = scmp.eq.s32.totalorder %s11, 0
      %p52 = por %p50, %p51
      %p53 = scmp.ne.s32.totalorder %s42, %s45
      %p54 = scmp.eq.s32.totalorder %s16, 3
      %p55 = por %p53, %p54
      %p56 = scmp.ne.s32.totalorder %s45, %s46
      %p57 = scmp.eq.s32.totalorder %s16, 0
      %p58 = por %p56, %p57
      %p59 = scmp.ne.s32.totalorder %s45, %s46
      %p60 = scmp.eq.s32.totalorder %s17, 3
      %p61 = por %p59, %p60
      %p63 = scmp.ne.s32.totalorder %s46, %s62
      %p64 = scmp.eq.s32.totalorder %s17, 0
      %p65 = por %p63, %p64
      %s66 = ssub.s32 %s20, %s29
      %s67 = ssub.s32 %s19, %s33
      %s68 = sor.u32 %s66, %s67
      %p69 = scmp.eq.s32.totalorder %s68, 0
      %s71 = sadd.s32 %s70, 1
      %s72 = scalar_select %p69, %s70, %s71
      %p75 = pneg %p69
      %p76 = scmp.eq.s32.totalorder %s11, 3
      %p77 = por %p75, %p76
      %p78 = scmp.ne.s32.totalorder %s70, %s73
      %p79 = scmp.eq.s32.totalorder %s11, 0
      %p80 = por %p78, %p79
      %p81 = scmp.ne.s32.totalorder %s70, %s73
      %p82 = scmp.eq.s32.totalorder %s16, 3
      %p83 = por %p81, %p82
      %p84 = scmp.ne.s32.totalorder %s73, %s74
      %p85 = scmp.eq.s32.totalorder %s16, 0
      %p86 = por %p84, %p85
      %p87 = scmp.ne.s32.totalorder %s73, %s74
      %p88 = scmp.eq.s32.totalorder %s17, 3
      %p89 = por %p87, %p88
      %p91 = scmp.ne.s32.totalorder %s74, %s90
      %p92 = scmp.eq.s32.totalorder %s17, 0
      %p93 = por %p91, %p92
      %s94 = ssub.s32 %s18, %s37
      %s95 = ssub.s32 %s19, %s33
      %s96 = sor.u32 %s94, %s95
      %p97 = scmp.eq.s32.totalorder %s96, 0
      %s99 = sadd.s32 %s98, 1
      %s100 = scalar_select %p97, %s98, %s99
      %p103 = pneg %p97
      %p104 = scmp.eq.s32.totalorder %s11, 3
      %p105 = por %p103, %p104
      %p106 = scmp.ne.s32.totalorder %s98, %s101
      %p107 = scmp.eq.s32.totalorder %s11, 0
      %p108 = por %p106, %p107
      %p109 = scmp.ne.s32.totalorder %s98, %s101
      %p110 = scmp.eq.s32.totalorder %s16, 3
      %p111 = por %p109, %p110
      %p112 = scmp.ne.s32.totalorder %s101, %s102
      %p113 = scmp.eq.s32.totalorder %s16, 0
      %p114 = por %p112, %p113
      %p115 = scmp.ne.s32.totalorder %s101, %s102
      %p116 = scmp.eq.s32.totalorder %s17, 3
      %p117 = por %p115, %p116
      %p119 = scmp.ne.s32.totalorder %s102, %s118
      %p120 = scmp.eq.s32.totalorder %s17, 0
      %p121 = por %p119, %p120
      %s122 = ssub.s32 %s18, %s37
      %s123 = ssub.s32 %s19, %s33
      %s124 = sor.u32 %s122, %s123
      %p125 = scmp.eq.s32.totalorder %s124, 0
      %s127 = sadd.s32 %s126, 1
      %s128 = scalar_select %p125, %s126, %s127
      %p131 = pneg %p125
      %p132 = scmp.eq.s32.totalorder %s11, 3
      %p133 = por %p131, %p132
      %p134 = scmp.ne.s32.totalorder %s126, %s129
      %p135 = scmp.eq.s32.totalorder %s11, 0
      %p136 = por %p134, %p135
      %p137 = scmp.ne.s32.totalorder %s126, %s129
      %p138 = scmp.eq.s32.totalorder %s16, 3
      %p139 = por %p137, %p138
      %p140 = scmp.ne.s32.totalorder %s129, %s130
      %p141 = scmp.eq.s32.totalorder %s16, 0
      %p142 = por %p140, %p141
      %p143 = scmp.ne.s32.totalorder %s129, %s130
      %p144 = scmp.eq.s32.totalorder %s17, 3
      %p145 = por %p143, %p144
      %p147 = scmp.ne.s32.totalorder %s130, %s146
      %p148 = scmp.eq.s32.totalorder %s17, 0
      %p149 = por %p147, %p148
      %s150 = ssub.s32 %s18, %s37
      %s151 = ssub.s32 %s19, %s33
      %s152 = sor.u32 %s150, %s151
      %p153 = scmp.eq.s32.totalorder %s152, 0
      %s155 = sadd.s32 %s154, 1
      %s156 = scalar_select %p153, %s154, %s155
      %p159 = pneg %p153
      %p160 = scmp.eq.s32.totalorder %s11, 3
      %p161 = por %p159, %p160
      %p162 = scmp.ne.s32.totalorder %s154, %s157
      %p163 = scmp.eq.s32.totalorder %s11, 0
      %p164 = por %p162, %p163
      %p165 = scmp.ne.s32.totalorder %s154, %s157
      %p166 = scmp.eq.s32.totalorder %s16, 3
      %p167 = por %p165, %p166
      %p168 = scmp.ne.s32.totalorder %s157, %s158
      %p169 = scmp.eq.s32.totalorder %s16, 0
      %p170 = por %p168, %p169
      %p171 = scmp.ne.s32.totalorder %s157, %s158
      %p172 = scmp.eq.s32.totalorder %s17, 3
      %p173 = por %p171, %p172
      %p175 = scmp.ne.s32.totalorder %s158, %s174
      %p176 = scmp.eq.s32.totalorder %s17, 0
      %p177 = por %p175, %p176
      %p178 = scmp.le.s32.totalorder 1, %s11
      %p179 = scmp.lt.s32.totalorder %s11, 5
      %p180 = pnand %p178, %p179
      %p181 = pneg %p180
      // Predicated region
      $region9: #{discriminator_forward.9} parent=5 // pred_check
        _
      $region10: #{discriminator_forward.9} parent=5 // pred_check_branch
        %183 = sbr.rel (%p180) target = $region12
      $region11: #{discriminator_forward.9} parent=5 // pred_region
        %s184 = ssub.s32 %s11, 1
      $region12: #{discriminator_forward.9} parent=5 // pred_fallthru
        _
      %p185 = scmp.lt.s32.totalorder %s11, 4
      // Predicated region
      $region13: #{discriminator_forward.9} parent=5 // pred_check
        %p186 = pneg %p185
      $region14: #{discriminator_forward.9} parent=5 // pred_check_branch
        %188 = sbr.rel (%p186) target = $region16
      $region15: #{discriminator_forward.9} parent=5 // pred_region
        // Predicated region
        $region17: #{discriminator_forward.9} parent=15 // pred_check
          %p189 = pneg %p52
        $region18: #{discriminator_forward.9} parent=15 // pred_check_branch
          %191 = sbr.rel (%p189) target = $region20
        $region19: #{discriminator_forward.9} parent=15 // pred_region
          %s192 = sand.u32 %s42, 1
          %s193 = sand.u32 %s42, 1
          %s194 = smul.addr %s193, 512
          %s195 = scalar_lea.vmem [#allocation3], %s194
          %s196 = smul.u32 32, %s18
          %s197 = smul.u32 4, %s20
          %s198 = smul.addr %s196, 8
          %s199 = sadd.s32 %s197, %s198
          %s200 = smul.addr %s199, 4
          %s201 = scalar_lea.vmem %s0, %s200
          // Predicated region
          $region21: #{discriminator_forward.9} parent=19 // pred_check
            _
          $region22: #{discriminator_forward.9} parent=19 // pred_check_branch
            %203 = sbr.rel (0) target = $region24
          $region23: #{discriminator_forward.9} parent=19 // pred_region
            // Predicated region
            $region25: #{discriminator_forward.9} parent=23 // pred_check
              _
            $region26: #{discriminator_forward.9} parent=23 // pred_check_branch
              %205 = sbr.rel (0) target = $region28
            $region27: #{discriminator_forward.9} parent=23 // pred_region
              loop: start=0, step=1, limit=1
              $region29: #{discriminator_forward.9} parent=27 // loop_pre_header
                _
              $region30: #{discriminator_forward.9} parent=27 // loop_header
                %s207 = sphi 0, %s211
                %p208 = scmp.ge.s32.totalorder %s207, 1
                %s212 = sphi %s201, %s201
                %s213 = sphi %s195, %s195
              $region31: #{discriminator_forward.9} parent=27 // loop_header_branch
                %210 = sbr.rel (%p208) target = $region35
              $region32: #{discriminator_forward.9} parent=27 // loop_body
                %v214 = vld [vmem:[%s212] sm:$0xff]
                %215 = vst [vmem:[%s213] sm:$0xff] %v214
                %v216 = vld [vmem:[%s212 + $0x8] sm:$0xff]
                %217 = vst [vmem:[%s213 + $0x8] sm:$0xff] %v216
                %v218 = vld [vmem:[%s212 + $0x20] sm:$0xff]
                %219 = vst [vmem:[%s213 + $0x10] sm:$0xff] %v218
                %v220 = vld [vmem:[%s212 + $0x28] sm:$0xff]
                %221 = vst [vmem:[%s213 + $0x18] sm:$0xff] %v220
                %v222 = vld [vmem:[%s212 + $0x40] sm:$0xff]
                %223 = vst [vmem:[%s213 + $0x20] sm:$0xff] %v222
                %v224 = vld [vmem:[%s212 + $0x48] sm:$0xff]
                %225 = vst [vmem:[%s213 + $0x28] sm:$0xff] %v224
                %v226 = vld [vmem:[%s212 + $0x60] sm:$0xff]
                %227 = vst [vmem:[%s213 + $0x30] sm:$0xff] %v226
                %v228 = vld [vmem:[%s212 + $0x68] sm:$0xff]
                %229 = vst [vmem:[%s213 + $0x38] sm:$0xff] %v228
                %v230 = vld [vmem:[%s212 + $0x80] sm:$0xff]
                %231 = vst [vmem:[%s213 + $0x40] sm:$0xff] %v230
                %v232 = vld [vmem:[%s212 + $0x88] sm:$0xff]
                %233 = vst [vmem:[%s213 + $0x48] sm:$0xff] %v232
                %v234 = vld [vmem:[%s212 + $0xa0] sm:$0xff]
                %235 = vst [vmem:[%s213 + $0x50] sm:$0xff] %v234
                %v236 = vld [vmem:[%s212 + $0xa8] sm:$0xff]
                %237 = vst [vmem:[%s213 + $0x58] sm:$0xff] %v236
                %v238 = vld [vmem:[%s212 + $0xc0] sm:$0xff]
                %239 = vst [vmem:[%s213 + $0x60] sm:$0xff] %v238
                %v240 = vld [vmem:[%s212 + $0xc8] sm:$0xff]
                %241 = vst [vmem:[%s213 + $0x68] sm:$0xff] %v240
                %v242 = vld [vmem:[%s212 + $0xe0] sm:$0xff]
                %243 = vst [vmem:[%s213 + $0x70] sm:$0xff] %v242
                %v244 = vld [vmem:[%s212 + $0xe8] sm:$0xff]
                %245 = vst [vmem:[%s213 + $0x78] sm:$0xff] %v244
                %v246 = vld [vmem:[%s212 + $0x100] sm:$0xff]
                %247 = vst [vmem:[%s213 + $0x80] sm:$0xff] %v246
                %v248 = vld [vmem:[%s212 + $0x108] sm:$0xff]
                %249 = vst [vmem:[%s213 + $0x88] sm:$0xff] %v248
                %v250 = vld [vmem:[%s212 + $0x120] sm:$0xff]
                %251 = vst [vmem:[%s213 + $0x90] sm:$0xff] %v250
                %v252 = vld [vmem:[%s212 + $0x128] sm:$0xff]
                %253 = vst [vmem:[%s213 + $0x98] sm:$0xff] %v252
                %v254 = vld [vmem:[%s212 + $0x140] sm:$0xff]
                %255 = vst [vmem:[%s213 + $0xa0] sm:$0xff] %v254
                %v256 = vld [vmem:[%s212 + $0x148] sm:$0xff]
                %257 = vst [vmem:[%s213 + $0xa8] sm:$0xff] %v256
                %v258 = vld [vmem:[%s212 + $0x160] sm:$0xff]
                %259 = vst [vmem:[%s213 + $0xb0] sm:$0xff] %v258
                %v260 = vld [vmem:[%s212 + $0x168] sm:$0xff]
                %261 = vst [vmem:[%s213 + $0xb8] sm:$0xff] %v260
                %v262 = vld [vmem:[%s212 + $0x180] sm:$0xff]
                %263 = vst [vmem:[%s213 + $0xc0] sm:$0xff] %v262
                %v264 = vld [vmem:[%s212 + $0x188] sm:$0xff]
                %265 = vst [vmem:[%s213 + $0xc8] sm:$0xff] %v264
                %v266 = vld [vmem:[%s212 + $0x1a0] sm:$0xff]
                %267 = vst [vmem:[%s213 + $0xd0] sm:$0xff] %v266
                %v268 = vld [vmem:[%s212 + $0x1a8] sm:$0xff]
                %269 = vst [vmem:[%s213 + $0xd8] sm:$0xff] %v268
                %v270 = vld [vmem:[%s212 + $0x1c0] sm:$0xff]
                %271 = vst [vmem:[%s213 + $0xe0] sm:$0xff] %v270
                %v272 = vld [vmem:[%s212 + $0x1c8] sm:$0xff]
                %273 = vst [vmem:[%s213 + $0xe8] sm:$0xff] %v272
                %v274 = vld [vmem:[%s212 + $0x1e0] sm:$0xff]
                %275 = vst [vmem:[%s213 + $0xf0] sm:$0xff] %v274
                %v276 = vld [vmem:[%s212 + $0x1e8] sm:$0xff]
                %277 = vst [vmem:[%s213 + $0xf8] sm:$0xff] %v276
                %v278 = vld [vmem:[%s212 + $0x200] sm:$0xff]
                %279 = vst [vmem:[%s213 + $0x100] sm:$0xff] %v278
                %v280 = vld [vmem:[%s212 + $0x208] sm:$0xff]
                %281 = vst [vmem:[%s213 + $0x108] sm:$0xff] %v280
                %v282 = vld [vmem:[%s212 + $0x220] sm:$0xff]
                %283 = vst [vmem:[%s213 + $0x110] sm:$0xff] %v282
                %v284 = vld [vmem:[%s212 + $0x228] sm:$0xff]
                %285 = vst [vmem:[%s213 + $0x118] sm:$0xff] %v284
                %v286 = vld [vmem:[%s212 + $0x240] sm:$0xff]
                %287 = vst [vmem:[%s213 + $0x120] sm:$0xff] %v286
                %v288 = vld [vmem:[%s212 + $0x248] sm:$0xff]
                %289 = vst [vmem:[%s213 + $0x128] sm:$0xff] %v288
                %v290 = vld [vmem:[%s212 + $0x260] sm:$0xff]
                %291 = vst [vmem:[%s213 + $0x130] sm:$0xff] %v290
                %v292 = vld [vmem:[%s212 + $0x268] sm:$0xff]
                %293 = vst [vmem:[%s213 + $0x138] sm:$0xff] %v292
                %v294 = vld [vmem:[%s212 + $0x280] sm:$0xff]
                %295 = vst [vmem:[%s213 + $0x140] sm:$0xff] %v294
                %v296 = vld [vmem:[%s212 + $0x288] sm:$0xff]
                %297 = vst [vmem:[%s213 + $0x148] sm:$0xff] %v296
                %v298 = vld [vmem:[%s212 + $0x2a0] sm:$0xff]
                %299 = vst [vmem:[%s213 + $0x150] sm:$0xff] %v298
                %v300 = vld [vmem:[%s212 + $0x2a8] sm:$0xff]
                %301 = vst [vmem:[%s213 + $0x158] sm:$0xff] %v300
                %v302 = vld [vmem:[%s212 + $0x2c0] sm:$0xff]
                %303 = vst [vmem:[%s213 + $0x160] sm:$0xff] %v302
                %v304 = vld [vmem:[%s212 + $0x2c8] sm:$0xff]
                %305 = vst [vmem:[%s213 + $0x168] sm:$0xff] %v304
                %v306 = vld [vmem:[%s212 + $0x2e0] sm:$0xff]
                %307 = vst [vmem:[%s213 + $0x170] sm:$0xff] %v306
                %v308 = vld [vmem:[%s212 + $0x2e8] sm:$0xff]
                %309 = vst [vmem:[%s213 + $0x178] sm:$0xff] %v308
                %v310 = vld [vmem:[%s212 + $0x300] sm:$0xff]
                %311 = vst [vmem:[%s213 + $0x180] sm:$0xff] %v310
                %v312 = vld [vmem:[%s212 + $0x308] sm:$0xff]
                %313 = vst [vmem:[%s213 + $0x188] sm:$0xff] %v312
                %v314 = vld [vmem:[%s212 + $0x320] sm:$0xff]
                %315 = vst [vmem:[%s213 + $0x190] sm:$0xff] %v314
                %v316 = vld [vmem:[%s212 + $0x328] sm:$0xff]
                %317 = vst [vmem:[%s213 + $0x198] sm:$0xff] %v316
                %v318 = vld [vmem:[%s212 + $0x340] sm:$0xff]
                %319 = vst [vmem:[%s213 + $0x1a0] sm:$0xff] %v318
                %v320 = vld [vmem:[%s212 + $0x348] sm:$0xff]
                %321 = vst [vmem:[%s213 + $0x1a8] sm:$0xff] %v320
                %v322 = vld [vmem:[%s212 + $0x360] sm:$0xff]
                %323 = vst [vmem:[%s213 + $0x1b0] sm:$0xff] %v322
                %v324 = vld [vmem:[%s212 + $0x368] sm:$0xff]
                %325 = vst [vmem:[%s213 + $0x1b8] sm:$0xff] %v324
                %v326 = vld [vmem:[%s212 + $0x380] sm:$0xff]
                %327 = vst [vmem:[%s213 + $0x1c0] sm:$0xff] %v326
                %v328 = vld [vmem:[%s212 + $0x388] sm:$0xff]
                %329 = vst [vmem:[%s213 + $0x1c8] sm:$0xff] %v328
                %v330 = vld [vmem:[%s212 + $0x3a0] sm:$0xff]
                %331 = vst [vmem:[%s213 + $0x1d0] sm:$0xff] %v330
                %v332 = vld [vmem:[%s212 + $0x3a8] sm:$0xff]
                %333 = vst [vmem:[%s213 + $0x1d8] sm:$0xff] %v332
                %v334 = vld [vmem:[%s212 + $0x3c0] sm:$0xff]
                %335 = vst [vmem:[%s213 + $0x1e0] sm:$0xff] %v334
                %v336 = vld [vmem:[%s212 + $0x3c8] sm:$0xff]
                %337 = vst [vmem:[%s213 + $0x1e8] sm:$0xff] %v336
                %v338 = vld [vmem:[%s212 + $0x3e0] sm:$0xff]
                %339 = vst [vmem:[%s213 + $0x1f0] sm:$0xff] %v338
                %v340 = vld [vmem:[%s212 + $0x3e8] sm:$0xff]
                %341 = vst [vmem:[%s213 + $0x1f8] sm:$0xff] %v340
              $region33: #{discriminator_forward.9} parent=27 // loop_footer
                %s211 = sadd.s32 1, %s207
              $region34: #{discriminator_forward.9} parent=27 // loop_footer_branch
                %206 = sbr.rel target = $region30
              $region35: #{discriminator_forward.9} parent=27 // loop_exit
                _
            $region28: #{discriminator_forward.9} parent=23 // pred_fallthru
              _
            // Predicated region
            $region36: #{discriminator_forward.9} parent=23 // pred_check
              _
            $region37: #{discriminator_forward.9} parent=23 // pred_check_branch
              %343 = sbr.rel target = $region39
            $region38: #{discriminator_forward.9} parent=23 // pred_region
              _
            $region39: #{discriminator_forward.9} parent=23 // pred_fallthru
              _
          $region24: #{discriminator_forward.9} parent=19 // pred_fallthru
            _
          %344 = vnop
        $region20: #{discriminator_forward.9} parent=15 // pred_fallthru
          _
        // Predicated region
        $region40: #{discriminator_forward.9} parent=15 // pred_check
          %p345 = pneg %p80
        $region41: #{discriminator_forward.9} parent=15 // pred_check_branch
          %347 = sbr.rel (%p345) target = $region43
        $region42: #{discriminator_forward.9} parent=15 // pred_region
          %s348 = smul.u32 64, %s20
          %p349 = scmp.lt.s32.totalorder %s348, 127
          %s350 = scalar_select %p349, %s348, 127
          %p351 = scmp.lt.s32.totalorder %s19, 0
          %s352 = scalar_select %p351, %s19, 0
          %s353 = sadd.s32 %s352, %s350
          %s354 = smul.addr %s353, 4
          %s355 = scalar_lea.vmem %s1, %s354
          %s356 = smul.u32 64, %s20
        $region43: #{discriminator_forward.9} parent=15 // pred_fallthru
          _
      $region16: #{discriminator_forward.9} parent=5 // pred_fallthru
        _
      %p357 = scmp.le.s32.totalorder 1, %s11
      %p358 = scmp.lt.s32.totalorder %s11, 5
      %p359 = pnand %p357, %p358
      %p360 = pneg %p359
      // Predicated region
      $region44: #{discriminator_forward.9} parent=5 // pred_check
        _
      $region45: #{discriminator_forward.9} parent=5 // pred_check_branch
        %362 = sbr.rel (%p359) target = $region47
      $region46: #{discriminator_forward.9} parent=5 // pred_region
        %s363 = ssub.s32 %s11, 1
        %s364 = sand.u32 %s45, 1
        %s365 = sand.u32 %s45, 1
        %s366 = smul.addr %s365, 512
        %s367 = scalar_lea.vmem [#allocation3], %s366
        // Predicated region
        $region48: #{discriminator_forward.9} parent=46 // pred_check
          %p368 = pneg %p58
        $region49: #{discriminator_forward.9} parent=46 // pred_check_branch
          %370 = sbr.rel (%p368) target = $region51
        $region50: #{discriminator_forward.9} parent=46 // pred_region
          _
        $region51: #{discriminator_forward.9} parent=46 // pred_fallthru
          _
        %s371 = sand.u32 %s45, 1
        %s372 = sand.u32 %s45, 1
        %s373 = smul.addr %s372, 512
        %s374 = scalar_lea.vmem [#allocation3], %s373
        %p375 = pneg %p58
        %p376 = pneg %p55
        %s377 = smul.u32 64, %s23
        %p378 = scmp.lt.s32.totalorder %s377, 127
        %s379 = scalar_select %p378, %s377, 127
        %p380 = scmp.lt.s32.totalorder %s22, 0
        %s381 = scalar_select %p380, %s22, 0
        %s382 = sadd.s32 %s381, %s379
        %s383 = smul.addr %s382, 4
        %s384 = scalar_lea.vmem %s1, %s383
        %p385 = pneg %p86
        %p386 = pneg %p83
        %p387 = pneg %p114
        %p388 = pneg %p111
        %s389 = smul.u32 32, %s21
        %p390 = scmp.lt.s32.totalorder %s389, 63
        %s391 = scalar_select %p390, %s389, 63
        %p392 = scmp.lt.s32.totalorder %s22, 0
        %s393 = scalar_select %p392, %s22, 0
        %s394 = sadd.s32 %s393, %s391
        %s395 = smul.addr %s394, 8
        %s396 = scalar_lea.vmem %s2, %s395
        %p397 = pneg %p142
        %p398 = pneg %p139
        %p399 = scmp.lt.s32.totalorder %s21, 1
        %s400 = scalar_select %p399, %s21, 1
        %p401 = scmp.lt.s32.totalorder %s22, 0
        %s402 = scalar_select %p401, %s22, 0
        %s403 = sadd.s32 %s402, %s400
        %s404 = smul.addr %s403, 8
        %s405 = scalar_lea.vmem %s3, %s404
        %p406 = pneg %p170
        %p407 = pneg %p167
        %p408 = scmp.lt.s32.totalorder %s21, 1
        %s409 = scalar_select %p408, %s21, 1
        %p410 = scmp.lt.s32.totalorder %s22, 0
        %s411 = scalar_select %p410, %s22, 0
        %s412 = sadd.s32 %s411, %s409
        %s413 = smul.addr %s412, 8
        %s414 = scalar_lea.vmem %s4, %s413
        %s415 = smul.u32 32, %s21
        %s416 = smul.u32 4, %s23
        %s417 = smul.u32 64, %s23
        %p418 = scmp.lt.s32.totalorder %s417, 127
        %s419 = scalar_select %p418, %s417, 127
        %p420 = scmp.lt.s32.totalorder %s22, 0
        %s421 = scalar_select %p420, %s22, 0
        %s422 = sadd.s32 %s421, %s419
        %s423 = smul.addr %s422, 4
        %s424 = scalar_lea.vmem %s1, %s423
        %s425 = smul.u32 64, %s23
        %s426 = smul.u32 32, %s21
        %p427 = scmp.lt.s32.totalorder %s426, 63
        %s428 = scalar_select %p427, %s426, 63
        %p429 = scmp.lt.s32.totalorder %s22, 0
        %s430 = scalar_select %p429, %s22, 0
        %s431 = sadd.s32 %s430, %s428
        %s432 = smul.addr %s431, 8
        %s433 = scalar_lea.vmem %s2, %s432
        %s434 = smul.u32 32, %s21
        %p435 = scmp.lt.s32.totalorder %s21, 1
        %s436 = scalar_select %p435, %s21, 1
        %p437 = scmp.lt.s32.totalorder %s22, 0
        %s438 = scalar_select %p437, %s22, 0
        %s439 = sadd.s32 %s438, %s436
        %s440 = smul.addr %s439, 8
        %s441 = scalar_lea.vmem %s3, %s440
        %p442 = scmp.lt.s32.totalorder %s21, 1
        %s443 = scalar_select %p442, %s21, 1
        %p444 = scmp.lt.s32.totalorder %s22, 0
        %s445 = scalar_select %p444, %s22, 0
        %s446 = sadd.s32 %s445, %s443
        %s447 = smul.addr %s446, 8
        %s448 = scalar_lea.vmem %s4, %s447
        %p449 = scmp.eq.s32.totalorder %s23, 0
        // Predicated region
        $region52: #{discriminator_forward.9} parent=46 // pred_check
          %p450 = pneg %p449
        $region53: #{discriminator_forward.9} parent=46 // pred_check_branch
          %452 = sbr.rel (%p450) target = $region55
        $region54: #{discriminator_forward.9} parent=46 // pred_region
          %453 = vst [vmem:[#allocation2] sm:$0xff] 0.0
          %454 = vst [vmem:[#allocation2 + $0x8] sm:$0xff] 0.0
          %455 = vst [vmem:[#allocation2 + $0x10] sm:$0xff] 0.0
          %456 = vst [vmem:[#allocation2 + $0x18] sm:$0xff] 0.0
          %457 = vst [vmem:[#allocation2 + $0x20] sm:$0xff] 0.0
          %458 = vst [vmem:[#allocation2 + $0x28] sm:$0xff] 0.0
          %459 = vst [vmem:[#allocation2 + $0x30] sm:$0xff] 0.0
          %460 = vst [vmem:[#allocation2 + $0x38] sm:$0xff] 0.0
          %461 = vst [vmem:[#allocation2 + $0x40] sm:$0xff] 0.0
          %462 = vst [vmem:[#allocation2 + $0x48] sm:$0xff] 0.0
          %463 = vst [vmem:[#allocation2 + $0x50] sm:$0xff] 0.0
          %464 = vst [vmem:[#allocation2 + $0x58] sm:$0xff] 0.0
          %465 = vst [vmem:[#allocation2 + $0x60] sm:$0xff] 0.0
          %466 = vst [vmem:[#allocation2 + $0x68] sm:$0xff] 0.0
          %467 = vst [vmem:[#allocation2 + $0x70] sm:$0xff] 0.0
          %468 = vst [vmem:[#allocation2 + $0x78] sm:$0xff] 0.0
          %469 = vst [vmem:[#allocation2 + $0x80] sm:$0xff] 0.0
          %470 = vst [vmem:[#allocation2 + $0x88] sm:$0xff] 0.0
          %471 = vst [vmem:[#allocation2 + $0x90] sm:$0xff] 0.0
          %472 = vst [vmem:[#allocation2 + $0x98] sm:$0xff] 0.0
          %473 = vst [vmem:[#allocation2 + $0xa0] sm:$0xff] 0.0
          %474 = vst [vmem:[#allocation2 + $0xa8] sm:$0xff] 0.0
          %475 = vst [vmem:[#allocation2 + $0xb0] sm:$0xff] 0.0
          %476 = vst [vmem:[#allocation2 + $0xb8] sm:$0xff] 0.0
          %477 = vst [vmem:[#allocation2 + $0xc0] sm:$0xff] 0.0
          %478 = vst [vmem:[#allocation2 + $0xc8] sm:$0xff] 0.0
          %479 = vst [vmem:[#allocation2 + $0xd0] sm:$0xff] 0.0
          %480 = vst [vmem:[#allocation2 + $0xd8] sm:$0xff] 0.0
          %481 = vst [vmem:[#allocation2 + $0xe0] sm:$0xff] 0.0
          %482 = vst [vmem:[#allocation2 + $0xe8] sm:$0xff] 0.0
          %483 = vst [vmem:[#allocation2 + $0xf0] sm:$0xff] 0.0
          %484 = vst [vmem:[#allocation2 + $0xf8] sm:$0xff] 0.0
        $region55: #{discriminator_forward.9} parent=46 // pred_fallthru
          _
        %v485 = vld [vmem:[#allocation2] sm:$0xff]
        %v486 = vld [vmem:[#allocation2 + $0x8] sm:$0xff]
        %v487 = vld [vmem:[#allocation2 + $0x10] sm:$0xff]
        %v488 = vld [vmem:[#allocation2 + $0x18] sm:$0xff]
        %v489 = vld [vmem:[#allocation2 + $0x20] sm:$0xff]
        %v490 = vld [vmem:[#allocation2 + $0x28] sm:$0xff]
        %v491 = vld [vmem:[#allocation2 + $0x30] sm:$0xff]
        %v492 = vld [vmem:[#allocation2 + $0x38] sm:$0xff]
        %v493 = vld [vmem:[#allocation2 + $0x40] sm:$0xff]
        %v494 = vld [vmem:[#allocation2 + $0x48] sm:$0xff]
        %v495 = vld [vmem:[#allocation2 + $0x50] sm:$0xff]
        %v496 = vld [vmem:[#allocation2 + $0x58] sm:$0xff]
        %v497 = vld [vmem:[#allocation2 + $0x60] sm:$0xff]
        %v498 = vld [vmem:[#allocation2 + $0x68] sm:$0xff]
        %v499 = vld [vmem:[#allocation2 + $0x70] sm:$0xff]
        %v500 = vld [vmem:[#allocation2 + $0x78] sm:$0xff]
        %v501 = vld [vmem:[#allocation2 + $0x80] sm:$0xff]
        %v502 = vld [vmem:[#allocation2 + $0x88] sm:$0xff]
        %v503 = vld [vmem:[#allocation2 + $0x90] sm:$0xff]
        %v504 = vld [vmem:[#allocation2 + $0x98] sm:$0xff]
        %v505 = vld [vmem:[#allocation2 + $0xa0] sm:$0xff]
        %v506 = vld [vmem:[#allocation2 + $0xa8] sm:$0xff]
        %v507 = vld [vmem:[#allocation2 + $0xb0] sm:$0xff]
        %v508 = vld [vmem:[#allocation2 + $0xb8] sm:$0xff]
        %v509 = vld [vmem:[#allocation2 + $0xc0] sm:$0xff]
        %v510 = vld [vmem:[#allocation2 + $0xc8] sm:$0xff]
        %v511 = vld [vmem:[#allocation2 + $0xd0] sm:$0xff]
        %v512 = vld [vmem:[#allocation2 + $0xd8] sm:$0xff]
        %v513 = vld [vmem:[#allocation2 + $0xe0] sm:$0xff]
        %v514 = vld [vmem:[#allocation2 + $0xe8] sm:$0xff]
        %v515 = vld [vmem:[#allocation2 + $0xf0] sm:$0xff]
        %v516 = vld [vmem:[#allocation2 + $0xf8] sm:$0xff]
        %v517 = vld [vmem:[%s367] sm:$0xff]
        %v518 = vld [vmem:[%s367 + $0x8] sm:$0xff]
        %v519 = vld [vmem:[%s367 + $0x10] sm:$0xff]
        %v520 = vld [vmem:[%s367 + $0x18] sm:$0xff]
        %v521 = vld [vmem:[%s367 + $0x20] sm:$0xff]
        %v522 = vld [vmem:[%s367 + $0x28] sm:$0xff]
        %v523 = vld [vmem:[%s367 + $0x30] sm:$0xff]
        %v524 = vld [vmem:[%s367 + $0x38] sm:$0xff]
        %v525 = vld [vmem:[%s367 + $0x40] sm:$0xff]
        %v526 = vld [vmem:[%s367 + $0x48] sm:$0xff]
        %v527 = vld [vmem:[%s367 + $0x50] sm:$0xff]
        %v528 = vld [vmem:[%s367 + $0x58] sm:$0xff]
        %v529 = vld [vmem:[%s367 + $0x60] sm:$0xff]
        %v530 = vld [vmem:[%s367 + $0x68] sm:$0xff]
        %v531 = vld [vmem:[%s367 + $0x70] sm:$0xff]
        %v532 = vld [vmem:[%s367 + $0x78] sm:$0xff]
        %v533 = vld [vmem:[%s367 + $0x80] sm:$0xff]
        %v534 = vld [vmem:[%s367 + $0x88] sm:$0xff]
        %v535 = vld [vmem:[%s367 + $0x90] sm:$0xff]
        %v536 = vld [vmem:[%s367 + $0x98] sm:$0xff]
        %v537 = vld [vmem:[%s367 + $0xa0] sm:$0xff]
        %v538 = vld [vmem:[%s367 + $0xa8] sm:$0xff]
        %v539 = vld [vmem:[%s367 + $0xb0] sm:$0xff]
        %v540 = vld [vmem:[%s367 + $0xb8] sm:$0xff]
        %v541 = vld [vmem:[%s367 + $0xc0] sm:$0xff]
        %v542 = vld [vmem:[%s367 + $0xc8] sm:$0xff]
        %v543 = vld [vmem:[%s367 + $0xd0] sm:$0xff]
        %v544 = vld [vmem:[%s367 + $0xd8] sm:$0xff]
        %v545 = vld [vmem:[%s367 + $0xe0] sm:$0xff]
        %v546 = vld [vmem:[%s367 + $0xe8] sm:$0xff]
        %v547 = vld [vmem:[%s367 + $0xf0] sm:$0xff]
        %v548 = vld [vmem:[%s367 + $0xf8] sm:$0xff]
        %v549 = vld [vmem:[%s367 + $0x100] sm:$0xff]
        %v550 = vld [vmem:[%s367 + $0x108] sm:$0xff]
        %v551 = vld [vmem:[%s367 + $0x110] sm:$0xff]
        %v552 = vld [vmem:[%s367 + $0x118] sm:$0xff]
        %v553 = vld [vmem:[%s367 + $0x120] sm:$0xff]
        %v554 = vld [vmem:[%s367 + $0x128] sm:$0xff]
        %v555 = vld [vmem:[%s367 + $0x130] sm:$0xff]
        %v556 = vld [vmem:[%s367 + $0x138] sm:$0xff]
        %v557 = vld [vmem:[%s367 + $0x140] sm:$0xff]
        %v558 = vld [vmem:[%s367 + $0x148] sm:$0xff]
        %v559 = vld [vmem:[%s367 + $0x150] sm:$0xff]
        %v560 = vld [vmem:[%s367 + $0x158] sm:$0xff]
        %v561 = vld [vmem:[%s367 + $0x160] sm:$0xff]
        %v562 = vld [vmem:[%s367 + $0x168] sm:$0xff]
        %v563 = vld [vmem:[%s367 + $0x170] sm:$0xff]
        %v564 = vld [vmem:[%s367 + $0x178] sm:$0xff]
        %v565 = vld [vmem:[%s367 + $0x180] sm:$0xff]
        %v566 = vld [vmem:[%s367 + $0x188] sm:$0xff]
        %v567 = vld [vmem:[%s367 + $0x190] sm:$0xff]
        %v568 = vld [vmem:[%s367 + $0x198] sm:$0xff]
        %v569 = vld [vmem:[%s367 + $0x1a0] sm:$0xff]
        %v570 = vld [vmem:[%s367 + $0x1a8] sm:$0xff]
        %v571 = vld [vmem:[%s367 + $0x1b0] sm:$0xff]
        %v572 = vld [vmem:[%s367 + $0x1b8] sm:$0xff]
        %v573 = vld [vmem:[%s367 + $0x1c0] sm:$0xff]
        %v574 = vld [vmem:[%s367 + $0x1c8] sm:$0xff]
        %v575 = vld [vmem:[%s367 + $0x1d0] sm:$0xff]
        %v576 = vld [vmem:[%s367 + $0x1d8] sm:$0xff]
        %v577 = vld [vmem:[%s367 + $0x1e0] sm:$0xff]
        %v578 = vld [vmem:[%s367 + $0x1e8] sm:$0xff]
        %v579 = vld [vmem:[%s367 + $0x1f0] sm:$0xff]
        %v580 = vld [vmem:[%s367 + $0x1f8] sm:$0xff]
        %v581 = vld [vmem:[%s424] sm:$0xf]
        %v582 = vld [vmem:[%s424 + $0x4] sm:$0xf]
        %v583 = vld [vmem:[%s424 + $0x8] sm:$0xf]
        %v584 = vld [vmem:[%s424 + $0xc] sm:$0xf]
        %v585 = vld [vmem:[%s424 + $0x10] sm:$0xf]
        %v586 = vld [vmem:[%s424 + $0x14] sm:$0xf]
        %v587 = vld [vmem:[%s424 + $0x18] sm:$0xf]
        %v588 = vld [vmem:[%s424 + $0x1c] sm:$0xf]
        %v589 = vld [vmem:[%s424 + $0x20] sm:$0xf]
        %v590 = vld [vmem:[%s424 + $0x24] sm:$0xf]
        %v591 = vld [vmem:[%s424 + $0x28] sm:$0xf]
        %v592 = vld [vmem:[%s424 + $0x2c] sm:$0xf]
        %v593 = vld [vmem:[%s424 + $0x30] sm:$0xf]
        %v594 = vld [vmem:[%s424 + $0x34] sm:$0xf]
        %v595 = vld [vmem:[%s424 + $0x38] sm:$0xf]
        %v596 = vld [vmem:[%s424 + $0x3c] sm:$0xf]
        %v597 = vld [vmem:[%s424 + $0x40] sm:$0xf]
        %v598 = vld [vmem:[%s424 + $0x44] sm:$0xf]
        %v599 = vld [vmem:[%s424 + $0x48] sm:$0xf]
        %v600 = vld [vmem:[%s424 + $0x4c] sm:$0xf]
        %v601 = vld [vmem:[%s424 + $0x50] sm:$0xf]
        %v602 = vld [vmem:[%s424 + $0x54] sm:$0xf]
        %v603 = vld [vmem:[%s424 + $0x58] sm:$0xf]
        %v604 = vld [vmem:[%s424 + $0x5c] sm:$0xf]
        %v605 = vld [vmem:[%s424 + $0x60] sm:$0xf]
        %v606 = vld [vmem:[%s424 + $0x64] sm:$0xf]
        %v607 = vld [vmem:[%s424 + $0x68] sm:$0xf]
        %v608 = vld [vmem:[%s424 + $0x6c] sm:$0xf]
        %v609 = vld [vmem:[%s424 + $0x70] sm:$0xf]
        %v610 = vld [vmem:[%s424 + $0x74] sm:$0xf]
        %v611 = vld [vmem:[%s424 + $0x78] sm:$0xf]
        %v612 = vld [vmem:[%s424 + $0x7c] sm:$0xf]
        %v613 = vld [vmem:[%s424 + $0x80] sm:$0xf]
        %v614 = vld [vmem:[%s424 + $0x84] sm:$0xf]
        %v615 = vld [vmem:[%s424 + $0x88] sm:$0xf]
        %v616 = vld [vmem:[%s424 + $0x8c] sm:$0xf]
        %v617 = vld [vmem:[%s424 + $0x90] sm:$0xf]
        %v618 = vld [vmem:[%s424 + $0x94] sm:$0xf]
        %v619 = vld [vmem:[%s424 + $0x98] sm:$0xf]
        %v620 = vld [vmem:[%s424 + $0x9c] sm:$0xf]
        %v621 = vld [vmem:[%s424 + $0xa0] sm:$0xf]
        %v622 = vld [vmem:[%s424 + $0xa4] sm:$0xf]
        %v623 = vld [vmem:[%s424 + $0xa8] sm:$0xf]
        %v624 = vld [vmem:[%s424 + $0xac] sm:$0xf]
        %v625 = vld [vmem:[%s424 + $0xb0] sm:$0xf]
        %v626 = vld [vmem:[%s424 + $0xb4] sm:$0xf]
        %v627 = vld [vmem:[%s424 + $0xb8] sm:$0xf]
        %v628 = vld [vmem:[%s424 + $0xbc] sm:$0xf]
        %v629 = vld [vmem:[%s424 + $0xc0] sm:$0xf]
        %v630 = vld [vmem:[%s424 + $0xc4] sm:$0xf]
        %v631 = vld [vmem:[%s424 + $0xc8] sm:$0xf]
        %v632 = vld [vmem:[%s424 + $0xcc] sm:$0xf]
        %v633 = vld [vmem:[%s424 + $0xd0] sm:$0xf]
        %v634 = vld [vmem:[%s424 + $0xd4] sm:$0xf]
        %v635 = vld [vmem:[%s424 + $0xd8] sm:$0xf]
        %v636 = vld [vmem:[%s424 + $0xdc] sm:$0xf]
        %v637 = vld [vmem:[%s424 + $0xe0] sm:$0xf]
        %v638 = vld [vmem:[%s424 + $0xe4] sm:$0xf]
        %v639 = vld [vmem:[%s424 + $0xe8] sm:$0xf]
        %v640 = vld [vmem:[%s424 + $0xec] sm:$0xf]
        %v641 = vld [vmem:[%s424 + $0xf0] sm:$0xf]
        %v642 = vld [vmem:[%s424 + $0xf4] sm:$0xf]
        %v643 = vld [vmem:[%s424 + $0xf8] sm:$0xf]
        %v644 = vld [vmem:[%s424 + $0xfc] sm:$0xf]
        %v709 = vunpack.c.l.b16 %v517
        %v710 = vunpack.c.h.b16 %v517
        %v711 = vunpack.c.l.b16 %v518
        %v712 = vunpack.c.h.b16 %v518
        %v713 = vunpack.c.l.b16 %v519
        %v714 = vunpack.c.h.b16 %v519
        %v715 = vunpack.c.l.b16 %v520
        %v716 = vunpack.c.h.b16 %v520
        %v717 = vunpack.c.l.b16 %v521
        %v718 = vunpack.c.h.b16 %v521
        %v719 = vunpack.c.l.b16 %v522
        %v720 = vunpack.c.h.b16 %v522
        %v721 = vunpack.c.l.b16 %v523
        %v722 = vunpack.c.h.b16 %v523
        %v723 = vunpack.c.l.b16 %v524
        %v724 = vunpack.c.h.b16 %v524
        %v725 = vunpack.c.l.b16 %v525
        %v726 = vunpack.c.h.b16 %v525
        %v727 = vunpack.c.l.b16 %v526
        %v728 = vunpack.c.h.b16 %v526
        %v729 = vunpack.c.l.b16 %v527
        %v730 = vunpack.c.h.b16 %v527
        %v731 = vunpack.c.l.b16 %v528
        %v732 = vunpack.c.h.b16 %v528
        %v733 = vunpack.c.l.b16 %v529
        %v734 = vunpack.c.h.b16 %v529
        %v735 = vunpack.c.l.b16 %v530
        %v736 = vunpack.c.h.b16 %v530
        %v737 = vunpack.c.l.b16 %v531
        %v738 = vunpack.c.h.b16 %v531
        %v739 = vunpack.c.l.b16 %v532
        %v740 = vunpack.c.h.b16 %v532
        %v741 = vunpack.c.l.b16 %v533
        %v742 = vunpack.c.h.b16 %v533
        %v743 = vunpack.c.l.b16 %v534
        %v744 = vunpack.c.h.b16 %v534
        %v745 = vunpack.c.l.b16 %v535
        %v746 = vunpack.c.h.b16 %v535
        %v747 = vunpack.c.l.b16 %v536
        %v748 = vunpack.c.h.b16 %v536
        %v749 = vunpack.c.l.b16 %v537
        %v750 = vunpack.c.h.b16 %v537
        %v751 = vunpack.c.l.b16 %v538
        %v752 = vunpack.c.h.b16 %v538
        %v753 = vunpack.c.l.b16 %v539
        %v754 = vunpack.c.h.b16 %v539
        %v755 = vunpack.c.l.b16 %v540
        %v756 = vunpack.c.h.b16 %v540
        %v757 = vunpack.c.l.b16 %v541
        %v758 = vunpack.c.h.b16 %v541
        %v759 = vunpack.c.l.b16 %v542
        %v760 = vunpack.c.h.b16 %v542
        %v761 = vunpack.c.l.b16 %v543
        %v762 = vunpack.c.h.b16 %v543
        %v763 = vunpack.c.l.b16 %v544
        %v764 = vunpack.c.h.b16 %v544
        %v765 = vunpack.c.l.b16 %v545
        %v766 = vunpack.c.h.b16 %v545
        %v767 = vunpack.c.l.b16 %v546
        %v768 = vunpack.c.h.b16 %v546
        %v769 = vunpack.c.l.b16 %v547
        %v770 = vunpack.c.h.b16 %v547
        %v771 = vunpack.c.l.b16 %v548
        %v772 = vunpack.c.h.b16 %v548
        %v773 = vunpack.c.l.b16 %v549
        %v774 = vunpack.c.h.b16 %v549
        %v775 = vunpack.c.l.b16 %v550
        %v776 = vunpack.c.h.b16 %v550
        %v777 = vunpack.c.l.b16 %v551
        %v778 = vunpack.c.h.b16 %v551
        %v779 = vunpack.c.l.b16 %v552
        %v780 = vunpack.c.h.b16 %v552
        %v781 = vunpack.c.l.b16 %v553
        %v782 = vunpack.c.h.b16 %v553
        %v783 = vunpack.c.l.b16 %v554
        %v784 = vunpack.c.h.b16 %v554
        %v785 = vunpack.c.l.b16 %v555
        %v786 = vunpack.c.h.b16 %v555
        %v787 = vunpack.c.l.b16 %v556
        %v788 = vunpack.c.h.b16 %v556
        %v789 = vunpack.c.l.b16 %v557
        %v790 = vunpack.c.h.b16 %v557
        %v791 = vunpack.c.l.b16 %v558
        %v792 = vunpack.c.h.b16 %v558
        %v793 = vunpack.c.l.b16 %v559
        %v794 = vunpack.c.h.b16 %v559
        %v795 = vunpack.c.l.b16 %v560
        %v796 = vunpack.c.h.b16 %v560
        %v797 = vunpack.c.l.b16 %v561
        %v798 = vunpack.c.h.b16 %v561
        %v799 = vunpack.c.l.b16 %v562
        %v800 = vunpack.c.h.b16 %v562
        %v801 = vunpack.c.l.b16 %v563
        %v802 = vunpack.c.h.b16 %v563
        %v803 = vunpack.c.l.b16 %v564
        %v804 = vunpack.c.h.b16 %v564
        %v805 = vunpack.c.l.b16 %v565
        %v806 = vunpack.c.h.b16 %v565
        %v807 = vunpack.c.l.b16 %v566
        %v808 = vunpack.c.h.b16 %v566
        %v809 = vunpack.c.l.b16 %v567
        %v810 = vunpack.c.h.b16 %v567
        %v811 = vunpack.c.l.b16 %v568
        %v812 = vunpack.c.h.b16 %v568
        %v813 = vunpack.c.l.b16 %v569
        %v814 = vunpack.c.h.b16 %v569
        %v815 = vunpack.c.l.b16 %v570
        %v816 = vunpack.c.h.b16 %v570
        %v817 = vunpack.c.l.b16 %v571
        %v818 = vunpack.c.h.b16 %v571
        %v819 = vunpack.c.l.b16 %v572
        %v820 = vunpack.c.h.b16 %v572
        %v821 = vunpack.c.l.b16 %v573
        %v822 = vunpack.c.h.b16 %v573
        %v823 = vunpack.c.l.b16 %v574
        %v824 = vunpack.c.h.b16 %v574
        %v825 = vunpack.c.l.b16 %v575
        %v826 = vunpack.c.h.b16 %v575
        %v827 = vunpack.c.l.b16 %v576
        %v828 = vunpack.c.h.b16 %v576
        %v829 = vunpack.c.l.b16 %v577
        %v830 = vunpack.c.h.b16 %v577
        %v831 = vunpack.c.l.b16 %v578
        %v832 = vunpack.c.h.b16 %v578
        %v833 = vunpack.c.l.b16 %v579
        %v834 = vunpack.c.h.b16 %v579
        %v835 = vunpack.c.l.b16 %v580
        %v836 = vunpack.c.h.b16 %v580
        %v837 = vpack.c.b16 %v713, %v709
        %v838 = vpack.c.b16 %v714, %v710
        %v839 = vpack.c.b16 %v715, %v711
        %v840 = vpack.c.b16 %v716, %v712
        %v841 = vpack.c.b16 %v721, %v717
        %v842 = vpack.c.b16 %v722, %v718
        %v843 = vpack.c.b16 %v723, %v719
        %v844 = vpack.c.b16 %v724, %v720
        %v845 = vpack.c.b16 %v729, %v725
        %v846 = vpack.c.b16 %v730, %v726
        %v847 = vpack.c.b16 %v731, %v727
        %v848 = vpack.c.b16 %v732, %v728
        %v849 = vpack.c.b16 %v737, %v733
        %v850 = vpack.c.b16 %v738, %v734
        %v851 = vpack.c.b16 %v739, %v735
        %v852 = vpack.c.b16 %v740, %v736
        %v853 = vpack.c.b16 %v745, %v741
        %v854 = vpack.c.b16 %v746, %v742
        %v855 = vpack.c.b16 %v747, %v743
        %v856 = vpack.c.b16 %v748, %v744
        %v857 = vpack.c.b16 %v753, %v749
        %v858 = vpack.c.b16 %v754, %v750
        %v859 = vpack.c.b16 %v755, %v751
        %v860 = vpack.c.b16 %v756, %v752
        %v861 = vpack.c.b16 %v761, %v757
        %v862 = vpack.c.b16 %v762, %v758
        %v863 = vpack.c.b16 %v763, %v759
        %v864 = vpack.c.b16 %v764, %v760
        %v865 = vpack.c.b16 %v769, %v765
        %v866 = vpack.c.b16 %v770, %v766
        %v867 = vpack.c.b16 %v771, %v767
        %v868 = vpack.c.b16 %v772, %v768
        %v869 = vpack.c.b16 %v777, %v773
        %v870 = vpack.c.b16 %v778, %v774
        %v871 = vpack.c.b16 %v779, %v775
        %v872 = vpack.c.b16 %v780, %v776
        %v873 = vpack.c.b16 %v785, %v781
        %v874 = vpack.c.b16 %v786, %v782
        %v875 = vpack.c.b16 %v787, %v783
        %v876 = vpack.c.b16 %v788, %v784
        %v877 = vpack.c.b16 %v793, %v789
        %v878 = vpack.c.b16 %v794, %v790
        %v879 = vpack.c.b16 %v795, %v791
        %v880 = vpack.c.b16 %v796, %v792
        %v881 = vpack.c.b16 %v801, %v797
        %v882 = vpack.c.b16 %v802, %v798
        %v883 = vpack.c.b16 %v803, %v799
        %v884 = vpack.c.b16 %v804, %v800
        %v885 = vpack.c.b16 %v809, %v805
        %v886 = vpack.c.b16 %v810, %v806
        %v887 = vpack.c.b16 %v811, %v807
        %v888 = vpack.c.b16 %v812, %v808
        %v889 = vpack.c.b16 %v817, %v813
        %v890 = vpack.c.b16 %v818, %v814
        %v891 = vpack.c.b16 %v819, %v815
        %v892 = vpack.c.b16 %v820, %v816
        %v893 = vpack.c.b16 %v825, %v821
        %v894 = vpack.c.b16 %v826, %v822
        %v895 = vpack.c.b16 %v827, %v823
        %v896 = vpack.c.b16 %v828, %v824
        %v897 = vpack.c.b16 %v833, %v829
        %v898 = vpack.c.b16 %v834, %v830
        %v899 = vpack.c.b16 %v835, %v831
        %v900 = vpack.c.b16 %v836, %v832
        %v1029 = vunpack.c.l.b16 %v581
        %v1030 = vunpack.c.l.b16 %v582
        %v1031 = vunpack.c.l.b16 %v583
        %v1032 = vunpack.c.l.b16 %v584
        %v1033 = vunpack.c.l.b16 %v585
        %v1034 = vunpack.c.l.b16 %v586
        %v1035 = vunpack.c.l.b16 %v587
        %v1036 = vunpack.c.l.b16 %v588
        %v1037 = vunpack.c.l.b16 %v589
        %v1038 = vunpack.c.l.b16 %v590
        %v1039 = vunpack.c.l.b16 %v591
        %v1040 = vunpack.c.l.b16 %v592
        %v1041 = vunpack.c.l.b16 %v593
        %v1042 = vunpack.c.l.b16 %v594
        %v1043 = vunpack.c.l.b16 %v595
        %v1044 = vunpack.c.l.b16 %v596
        %v1045 = vunpack.c.l.b16 %v597
        %v1046 = vunpack.c.l.b16 %v598
        %v1047 = vunpack.c.l.b16 %v599
        %v1048 = vunpack.c.l.b16 %v600
        %v1049 = vunpack.c.l.b16 %v601
        %v1050 = vunpack.c.l.b16 %v602
        %v1051 = vunpack.c.l.b16 %v603
        %v1052 = vunpack.c.l.b16 %v604
        %v1053 = vunpack.c.l.b16 %v605
        %v1054 = vunpack.c.l.b16 %v606
        %v1055 = vunpack.c.l.b16 %v607
        %v1056 = vunpack.c.l.b16 %v608
        %v1057 = vunpack.c.l.b16 %v609
        %v1058 = vunpack.c.l.b16 %v610
        %v1059 = vunpack.c.l.b16 %v611
        %v1060 = vunpack.c.l.b16 %v612
        %v1061 = vunpack.c.l.b16 %v613
        %v1062 = vunpack.c.l.b16 %v614
        %v1063 = vunpack.c.l.b16 %v615
        %v1064 = vunpack.c.l.b16 %v616
        %v1065 = vunpack.c.l.b16 %v617
        %v1066 = vunpack.c.l.b16 %v618
        %v1067 = vunpack.c.l.b16 %v619
        %v1068 = vunpack.c.l.b16 %v620
        %v1069 = vunpack.c.l.b16 %v621
        %v1070 = vunpack.c.l.b16 %v622
        %v1071 = vunpack.c.l.b16 %v623
        %v1072 = vunpack.c.l.b16 %v624
        %v1073 = vunpack.c.l.b16 %v625
        %v1074 = vunpack.c.l.b16 %v626
        %v1075 = vunpack.c.l.b16 %v627
        %v1076 = vunpack.c.l.b16 %v628
        %v1077 = vunpack.c.l.b16 %v629
        %v1078 = vunpack.c.l.b16 %v630
        %v1079 = vunpack.c.l.b16 %v631
        %v1080 = vunpack.c.l.b16 %v632
        %v1081 = vunpack.c.l.b16 %v633
        %v1082 = vunpack.c.l.b16 %v634
        %v1083 = vunpack.c.l.b16 %v635
        %v1084 = vunpack.c.l.b16 %v636
        %v1085 = vunpack.c.l.b16 %v637
        %v1086 = vunpack.c.l.b16 %v638
        %v1087 = vunpack.c.l.b16 %v639
        %v1088 = vunpack.c.l.b16 %v640
        %v1089 = vunpack.c.l.b16 %v641
        %v1090 = vunpack.c.l.b16 %v642
        %v1091 = vunpack.c.l.b16 %v643
        %v1092 = vunpack.c.l.b16 %v644
        %v1093 = vpack.c.b16 %v1030, %v1029
        %v1094 = vpack.c.b16 %v1032, %v1031
        %v1095 = vpack.c.b16 %v1034, %v1033
        %v1096 = vpack.c.b16 %v1036, %v1035
        %v1097 = vpack.c.b16 %v1038, %v1037
        %v1098 = vpack.c.b16 %v1040, %v1039
        %v1099 = vpack.c.b16 %v1042, %v1041
        %v1100 = vpack.c.b16 %v1044, %v1043
        %v1101 = vpack.c.b16 %v1046, %v1045
        %v1102 = vpack.c.b16 %v1048, %v1047
        %v1103 = vpack.c.b16 %v1050, %v1049
        %v1104 = vpack.c.b16 %v1052, %v1051
        %v1105 = vpack.c.b16 %v1054, %v1053
        %v1106 = vpack.c.b16 %v1056, %v1055
        %v1107 = vpack.c.b16 %v1058, %v1057
        %v1108 = vpack.c.b16 %v1060, %v1059
        %v1109 = vpack.c.b16 %v1062, %v1061
        %v1110 = vpack.c.b16 %v1064, %v1063
        %v1111 = vpack.c.b16 %v1066, %v1065
        %v1112 = vpack.c.b16 %v1068, %v1067
        %v1113 = vpack.c.b16 %v1070, %v1069
        %v1114 = vpack.c.b16 %v1072, %v1071
        %v1115 = vpack.c.b16 %v1074, %v1073
        %v1116 = vpack.c.b16 %v1076, %v1075
        %v1117 = vpack.c.b16 %v1078, %v1077
        %v1118 = vpack.c.b16 %v1080, %v1079
        %v1119 = vpack.c.b16 %v1082, %v1081
        %v1120 = vpack.c.b16 %v1084, %v1083
        %v1121 = vpack.c.b16 %v1086, %v1085
        %v1122 = vpack.c.b16 %v1088, %v1087
        %v1123 = vpack.c.b16 %v1090, %v1089
        %v1124 = vpack.c.b16 %v1092, %v1091
        %1157 = vmatpush.bf16.msra.mxu0 %v1100
        %1158 = vmatpush.bf16.msra.mxu0 %v1099
        %1159 = vmatpush.bf16.msra.mxu0 %v1098
        %1160 = vmatpush.bf16.msra.mxu0 %v1097
        %1161 = vmatpush.bf16.msra.mxu0 %v1096
        %1162 = vmatpush.bf16.msra.mxu0 %v1095
        %1163 = vmatpush.bf16.msra.mxu0 %v1094
        %1164 = vmatpush.bf16.msra.mxu0 %v1093
        %1165 = vmatmul.bf16.gmra.mxu0 %v837
        %v1166 = vpop.f32.mrf.mxu0
        %v1167 = vadd.f32 0.0, %v1166
        %v1168 = vpop.f32.mrf.mxu0
        %v1169 = vadd.f32 0.0, %v1168
        %1170 = vmatmul.bf16.gmra.mxu0 %v841
        %v1171 = vpop.f32.mrf.mxu0
        %v1172 = vadd.f32 0.0, %v1171
        %v1173 = vpop.f32.mrf.mxu0
        %v1174 = vadd.f32 0.0, %v1173
        %1175 = vmatmul.bf16.gmra.mxu0 %v845
        %v1176 = vpop.f32.mrf.mxu0
        %v1177 = vadd.f32 0.0, %v1176
        %v1178 = vpop.f32.mrf.mxu0
        %v1179 = vadd.f32 0.0, %v1178
        %1180 = vmatmul.bf16.gmra.mxu0 %v849
        %v1181 = vpop.f32.mrf.mxu0
        %v1182 = vadd.f32 0.0, %v1181
        %v1183 = vpop.f32.mrf.mxu0
        %v1184 = vadd.f32 0.0, %v1183
        %1185 = vmatmul.bf16.gmra.mxu0 %v853
        %v1186 = vpop.f32.mrf.mxu0
        %v1187 = vadd.f32 0.0, %v1186
        %v1188 = vpop.f32.mrf.mxu0
        %v1189 = vadd.f32 0.0, %v1188
        %1190 = vmatmul.bf16.gmra.mxu0 %v857
        %v1191 = vpop.f32.mrf.mxu0
        %v1192 = vadd.f32 0.0, %v1191
        %v1193 = vpop.f32.mrf.mxu0
        %v1194 = vadd.f32 0.0, %v1193
        %1195 = vmatmul.bf16.gmra.mxu0 %v861
        %v1196 = vpop.f32.mrf.mxu0
        %v1197 = vadd.f32 0.0, %v1196
        %v1198 = vpop.f32.mrf.mxu0
        %v1199 = vadd.f32 0.0, %v1198
        %1200 = vmatmul.bf16.gmra.mxu0 %v865
        %v1201 = vpop.f32.mrf.mxu0
        %v1202 = vadd.f32 0.0, %v1201
        %v1203 = vpop.f32.mrf.mxu0
        %v1204 = vadd.f32 0.0, %v1203
        %1205 = vmatmul.bf16.gmra.mxu0 %v869
        %v1206 = vpop.f32.mrf.mxu0
        %v1207 = vadd.f32 0.0, %v1206
        %v1208 = vpop.f32.mrf.mxu0
        %v1209 = vadd.f32 0.0, %v1208
        %1210 = vmatmul.bf16.gmra.mxu0 %v873
        %v1211 = vpop.f32.mrf.mxu0
        %v1212 = vadd.f32 0.0, %v1211
        %v1213 = vpop.f32.mrf.mxu0
        %v1214 = vadd.f32 0.0, %v1213
        %1215 = vmatmul.bf16.gmra.mxu0 %v877
        %v1216 = vpop.f32.mrf.mxu0
        %v1217 = vadd.f32 0.0, %v1216
        %v1218 = vpop.f32.mrf.mxu0
        %v1219 = vadd.f32 0.0, %v1218
        %1220 = vmatmul.bf16.gmra.mxu0 %v881
        %v1221 = vpop.f32.mrf.mxu0
        %v1222 = vadd.f32 0.0, %v1221
        %v1223 = vpop.f32.mrf.mxu0
        %v1224 = vadd.f32 0.0, %v1223
        %1225 = vmatmul.bf16.gmra.mxu0 %v885
        %v1226 = vpop.f32.mrf.mxu0
        %v1227 = vadd.f32 0.0, %v1226
        %v1228 = vpop.f32.mrf.mxu0
        %v1229 = vadd.f32 0.0, %v1228
        %1230 = vmatmul.bf16.gmra.mxu0 %v889
        %v1231 = vpop.f32.mrf.mxu0
        %v1232 = vadd.f32 0.0, %v1231
        %v1233 = vpop.f32.mrf.mxu0
        %v1234 = vadd.f32 0.0, %v1233
        %1235 = vmatmul.bf16.gmra.mxu0 %v893
        %v1236 = vpop.f32.mrf.mxu0
        %v1237 = vadd.f32 0.0, %v1236
        %v1238 = vpop.f32.mrf.mxu0
        %v1239 = vadd.f32 0.0, %v1238
        %1240 = vmatmul.bf16.gmra.mxu0 %v897
        %v1241 = vpop.f32.mrf.mxu0
        %v1242 = vadd.f32 0.0, %v1241
        %v1243 = vpop.f32.mrf.mxu0
        %v1244 = vadd.f32 0.0, %v1243
        %1245 = vdwg.mxu0
        %1246 = vmatpush.bf16.msra.mxu0 %v1108
        %1247 = vmatpush.bf16.msra.mxu0 %v1107
        %1248 = vmatpush.bf16.msra.mxu0 %v1106
        %1249 = vmatpush.bf16.msra.mxu0 %v1105
        %1250 = vmatpush.bf16.msra.mxu0 %v1104
        %1251 = vmatpush.bf16.msra.mxu0 %v1103
        %1252 = vmatpush.bf16.msra.mxu0 %v1102
        %1253 = vmatpush.bf16.msra.mxu0 %v1101
        %1254 = vmatmul.bf16.gmra.mxu0 %v838
        %v1255 = vpop.f32.mrf.mxu0
        %v1256 = vadd.f32 %v1167, %v1255
        %v1257 = vpop.f32.mrf.mxu0
        %v1258 = vadd.f32 %v1169, %v1257
        %1259 = vmatmul.bf16.gmra.mxu0 %v842
        %v1260 = vpop.f32.mrf.mxu0
        %v1261 = vadd.f32 %v1172, %v1260
        %v1262 = vpop.f32.mrf.mxu0
        %v1263 = vadd.f32 %v1174, %v1262
        %1264 = vmatmul.bf16.gmra.mxu0 %v846
        %v1265 = vpop.f32.mrf.mxu0
        %v1266 = vadd.f32 %v1177, %v1265
        %v1267 = vpop.f32.mrf.mxu0
        %v1268 = vadd.f32 %v1179, %v1267
        %1269 = vmatmul.bf16.gmra.mxu0 %v850
        %v1270 = vpop.f32.mrf.mxu0
        %v1271 = vadd.f32 %v1182, %v1270
        %v1272 = vpop.f32.mrf.mxu0
        %v1273 = vadd.f32 %v1184, %v1272
        %1274 = vmatmul.bf16.gmra.mxu0 %v854
        %v1275 = vpop.f32.mrf.mxu0
        %v1276 = vadd.f32 %v1187, %v1275
        %v1277 = vpop.f32.mrf.mxu0
        %v1278 = vadd.f32 %v1189, %v1277
        %1279 = vmatmul.bf16.gmra.mxu0 %v858
        %v1280 = vpop.f32.mrf.mxu0
        %v1281 = vadd.f32 %v1192, %v1280
        %v1282 = vpop.f32.mrf.mxu0
        %v1283 = vadd.f32 %v1194, %v1282
        %1284 = vmatmul.bf16.gmra.mxu0 %v862
        %v1285 = vpop.f32.mrf.mxu0
        %v1286 = vadd.f32 %v1197, %v1285
        %v1287 = vpop.f32.mrf.mxu0
        %v1288 = vadd.f32 %v1199, %v1287
        %1289 = vmatmul.bf16.gmra.mxu0 %v866
        %v1290 = vpop.f32.mrf.mxu0
        %v1291 = vadd.f32 %v1202, %v1290
        %v1292 = vpop.f32.mrf.mxu0
        %v1293 = vadd.f32 %v1204, %v1292
        %1294 = vmatmul.bf16.gmra.mxu0 %v870
        %v1295 = vpop.f32.mrf.mxu0
        %v1296 = vadd.f32 %v1207, %v1295
        %v1297 = vpop.f32.mrf.mxu0
        %v1298 = vadd.f32 %v1209, %v1297
        %1299 = vmatmul.bf16.gmra.mxu0 %v874
        %v1300 = vpop.f32.mrf.mxu0
        %v1301 = vadd.f32 %v1212, %v1300
        %v1302 = vpop.f32.mrf.mxu0
        %v1303 = vadd.f32 %v1214, %v1302
        %1304 = vmatmul.bf16.gmra.mxu0 %v878
        %v1305 = vpop.f32.mrf.mxu0
        %v1306 = vadd.f32 %v1217, %v1305
        %v1307 = vpop.f32.mrf.mxu0
        %v1308 = vadd.f32 %v1219, %v1307
        %1309 = vmatmul.bf16.gmra.mxu0 %v882
        %v1310 = vpop.f32.mrf.mxu0
        %v1311 = vadd.f32 %v1222, %v1310
        %v1312 = vpop.f32.mrf.mxu0
        %v1313 = vadd.f32 %v1224, %v1312
        %1314 = vmatmul.bf16.gmra.mxu0 %v886
        %v1315 = vpop.f32.mrf.mxu0
        %v1316 = vadd.f32 %v1227, %v1315
        %v1317 = vpop.f32.mrf.mxu0
        %v1318 = vadd.f32 %v1229, %v1317
        %1319 = vmatmul.bf16.gmra.mxu0 %v890
        %v1320 = vpop.f32.mrf.mxu0
        %v1321 = vadd.f32 %v1232, %v1320
        %v1322 = vpop.f32.mrf.mxu0
        %v1323 = vadd.f32 %v1234, %v1322
        %1324 = vmatmul.bf16.gmra.mxu0 %v894
        %v1325 = vpop.f32.mrf.mxu0
        %v1326 = vadd.f32 %v1237, %v1325
        %v1327 = vpop.f32.mrf.mxu0
        %v1328 = vadd.f32 %v1239, %v1327
        %1329 = vmatmul.bf16.gmra.mxu0 %v898
        %v1330 = vpop.f32.mrf.mxu0
        %v1331 = vadd.f32 %v1242, %v1330
        %v1332 = vpop.f32.mrf.mxu0
        %v1333 = vadd.f32 %v1244, %v1332
        %1334 = vdwg.mxu0
        %1335 = vmatpush.bf16.msra.mxu0 %v1116
        %1336 = vmatpush.bf16.msra.mxu0 %v1115
        %1337 = vmatpush.bf16.msra.mxu0 %v1114
        %1338 = vmatpush.bf16.msra.mxu0 %v1113
        %1339 = vmatpush.bf16.msra.mxu0 %v1112
        %1340 = vmatpush.bf16.msra.mxu0 %v1111
        %1341 = vmatpush.bf16.msra.mxu0 %v1110
        %1342 = vmatpush.bf16.msra.mxu0 %v1109
        %1343 = vmatmul.bf16.gmra.mxu0 %v839
        %v1344 = vpop.f32.mrf.mxu0
        %v1345 = vadd.f32 %v1256, %v1344
        %v1346 = vpop.f32.mrf.mxu0
        %v1347 = vadd.f32 %v1258, %v1346
        %1348 = vmatmul.bf16.gmra.mxu0 %v843
        %v1349 = vpop.f32.mrf.mxu0
        %v1350 = vadd.f32 %v1261, %v1349
        %v1351 = vpop.f32.mrf.mxu0
        %v1352 = vadd.f32 %v1263, %v1351
        %1353 = vmatmul.bf16.gmra.mxu0 %v847
        %v1354 = vpop.f32.mrf.mxu0
        %v1355 = vadd.f32 %v1266, %v1354
        %v1356 = vpop.f32.mrf.mxu0
        %v1357 = vadd.f32 %v1268, %v1356
        %1358 = vmatmul.bf16.gmra.mxu0 %v851
        %v1359 = vpop.f32.mrf.mxu0
        %v1360 = vadd.f32 %v1271, %v1359
        %v1361 = vpop.f32.mrf.mxu0
        %v1362 = vadd.f32 %v1273, %v1361
        %1363 = vmatmul.bf16.gmra.mxu0 %v855
        %v1364 = vpop.f32.mrf.mxu0
        %v1365 = vadd.f32 %v1276, %v1364
        %v1366 = vpop.f32.mrf.mxu0
        %v1367 = vadd.f32 %v1278, %v1366
        %1368 = vmatmul.bf16.gmra.mxu0 %v859
        %v1369 = vpop.f32.mrf.mxu0
        %v1370 = vadd.f32 %v1281, %v1369
        %v1371 = vpop.f32.mrf.mxu0
        %v1372 = vadd.f32 %v1283, %v1371
        %1373 = vmatmul.bf16.gmra.mxu0 %v863
        %v1374 = vpop.f32.mrf.mxu0
        %v1375 = vadd.f32 %v1286, %v1374
        %v1376 = vpop.f32.mrf.mxu0
        %v1377 = vadd.f32 %v1288, %v1376
        %1378 = vmatmul.bf16.gmra.mxu0 %v867
        %v1379 = vpop.f32.mrf.mxu0
        %v1380 = vadd.f32 %v1291, %v1379
        %v1381 = vpop.f32.mrf.mxu0
        %v1382 = vadd.f32 %v1293, %v1381
        %1383 = vmatmul.bf16.gmra.mxu0 %v871
        %v1384 = vpop.f32.mrf.mxu0
        %v1385 = vadd.f32 %v1296, %v1384
        %v1386 = vpop.f32.mrf.mxu0
        %v1387 = vadd.f32 %v1298, %v1386
        %1388 = vmatmul.bf16.gmra.mxu0 %v875
        %v1389 = vpop.f32.mrf.mxu0
        %v1390 = vadd.f32 %v1301, %v1389
        %v1391 = vpop.f32.mrf.mxu0
        %v1392 = vadd.f32 %v1303, %v1391
        %1393 = vmatmul.bf16.gmra.mxu0 %v879
        %v1394 = vpop.f32.mrf.mxu0
        %v1395 = vadd.f32 %v1306, %v1394
        %v1396 = vpop.f32.mrf.mxu0
        %v1397 = vadd.f32 %v1308, %v1396
        %1398 = vmatmul.bf16.gmra.mxu0 %v883
        %v1399 = vpop.f32.mrf.mxu0
        %v1400 = vadd.f32 %v1311, %v1399
        %v1401 = vpop.f32.mrf.mxu0
        %v1402 = vadd.f32 %v1313, %v1401
        %1403 = vmatmul.bf16.gmra.mxu0 %v887
        %v1404 = vpop.f32.mrf.mxu0
        %v1405 = vadd.f32 %v1316, %v1404
        %v1406 = vpop.f32.mrf.mxu0
        %v1407 = vadd.f32 %v1318, %v1406
        %1408 = vmatmul.bf16.gmra.mxu0 %v891
        %v1409 = vpop.f32.mrf.mxu0
        %v1410 = vadd.f32 %v1321, %v1409
        %v1411 = vpop.f32.mrf.mxu0
        %v1412 = vadd.f32 %v1323, %v1411
        %1413 = vmatmul.bf16.gmra.mxu0 %v895
        %v1414 = vpop.f32.mrf.mxu0
        %v1415 = vadd.f32 %v1326, %v1414
        %v1416 = vpop.f32.mrf.mxu0
        %v1417 = vadd.f32 %v1328, %v1416
        %1418 = vmatmul.bf16.gmra.mxu0 %v899
        %v1419 = vpop.f32.mrf.mxu0
        %v1420 = vadd.f32 %v1331, %v1419
        %v1421 = vpop.f32.mrf.mxu0
        %v1422 = vadd.f32 %v1333, %v1421
        %1423 = vdwg.mxu0
        %1424 = vmatpush.bf16.msra.mxu0 %v1124
        %1425 = vmatpush.bf16.msra.mxu0 %v1123
        %1426 = vmatpush.bf16.msra.mxu0 %v1122
        %1427 = vmatpush.bf16.msra.mxu0 %v1121
        %1428 = vmatpush.bf16.msra.mxu0 %v1120
        %1429 = vmatpush.bf16.msra.mxu0 %v1119
        %1430 = vmatpush.bf16.msra.mxu0 %v1118
        %1431 = vmatpush.bf16.msra.mxu0 %v1117
        %1432 = vmatmul.bf16.gmra.mxu0 %v840
        %v1433 = vpop.f32.mrf.mxu0
        %v1434 = vadd.f32 %v1345, %v1433
        %v1435 = vpop.f32.mrf.mxu0
        %v1436 = vadd.f32 %v1347, %v1435
        %1437 = vmatmul.bf16.gmra.mxu0 %v844
        %v1438 = vpop.f32.mrf.mxu0
        %v1439 = vadd.f32 %v1350, %v1438
        %v1440 = vpop.f32.mrf.mxu0
        %v1441 = vadd.f32 %v1352, %v1440
        %1442 = vmatmul.bf16.gmra.mxu0 %v848
        %v1443 = vpop.f32.mrf.mxu0
        %v1444 = vadd.f32 %v1355, %v1443
        %v1445 = vpop.f32.mrf.mxu0
        %v1446 = vadd.f32 %v1357, %v1445
        %1447 = vmatmul.bf16.gmra.mxu0 %v852
        %v1448 = vpop.f32.mrf.mxu0
        %v1449 = vadd.f32 %v1360, %v1448
        %v1450 = vpop.f32.mrf.mxu0
        %v1451 = vadd.f32 %v1362, %v1450
        %1452 = vmatmul.bf16.gmra.mxu0 %v856
        %v1453 = vpop.f32.mrf.mxu0
        %v1454 = vadd.f32 %v1365, %v1453
        %v1455 = vpop.f32.mrf.mxu0
        %v1456 = vadd.f32 %v1367, %v1455
        %1457 = vmatmul.bf16.gmra.mxu0 %v860
        %v1458 = vpop.f32.mrf.mxu0
        %v1459 = vadd.f32 %v1370, %v1458
        %v1460 = vpop.f32.mrf.mxu0
        %v1461 = vadd.f32 %v1372, %v1460
        %1462 = vmatmul.bf16.gmra.mxu0 %v864
        %v1463 = vpop.f32.mrf.mxu0
        %v1464 = vadd.f32 %v1375, %v1463
        %v1465 = vpop.f32.mrf.mxu0
        %v1466 = vadd.f32 %v1377, %v1465
        %1467 = vmatmul.bf16.gmra.mxu0 %v868
        %v1468 = vpop.f32.mrf.mxu0
        %v1469 = vadd.f32 %v1380, %v1468
        %v1470 = vpop.f32.mrf.mxu0
        %v1471 = vadd.f32 %v1382, %v1470
        %1472 = vmatmul.bf16.gmra.mxu0 %v872
        %v1473 = vpop.f32.mrf.mxu0
        %v1474 = vadd.f32 %v1385, %v1473
        %v1475 = vpop.f32.mrf.mxu0
        %v1476 = vadd.f32 %v1387, %v1475
        %1477 = vmatmul.bf16.gmra.mxu0 %v876
        %v1478 = vpop.f32.mrf.mxu0
        %v1479 = vadd.f32 %v1390, %v1478
        %v1480 = vpop.f32.mrf.mxu0
        %v1481 = vadd.f32 %v1392, %v1480
        %1482 = vmatmul.bf16.gmra.mxu0 %v880
        %v1483 = vpop.f32.mrf.mxu0
        %v1484 = vadd.f32 %v1395, %v1483
        %v1485 = vpop.f32.mrf.mxu0
        %v1486 = vadd.f32 %v1397, %v1485
        %1487 = vmatmul.bf16.gmra.mxu0 %v884
        %v1488 = vpop.f32.mrf.mxu0
        %v1489 = vadd.f32 %v1400, %v1488
        %v1490 = vpop.f32.mrf.mxu0
        %v1491 = vadd.f32 %v1402, %v1490
        %1492 = vmatmul.bf16.gmra.mxu0 %v888
        %v1493 = vpop.f32.mrf.mxu0
        %v1494 = vadd.f32 %v1405, %v1493
        %v1495 = vpop.f32.mrf.mxu0
        %v1496 = vadd.f32 %v1407, %v1495
        %1497 = vmatmul.bf16.gmra.mxu0 %v892
        %v1498 = vpop.f32.mrf.mxu0
        %v1499 = vadd.f32 %v1410, %v1498
        %v1500 = vpop.f32.mrf.mxu0
        %v1501 = vadd.f32 %v1412, %v1500
        %1502 = vmatmul.bf16.gmra.mxu0 %v896
        %v1503 = vpop.f32.mrf.mxu0
        %v1504 = vadd.f32 %v1415, %v1503
        %v1505 = vpop.f32.mrf.mxu0
        %v1506 = vadd.f32 %v1417, %v1505
        %1507 = vmatmul.bf16.gmra.mxu0 %v900
        %v1508 = vpop.f32.mrf.mxu0
        %v1509 = vadd.f32 %v1420, %v1508
        %v1510 = vpop.f32.mrf.mxu0
        %v1511 = vadd.f32 %v1422, %v1510
        %1512 = vdwg.mxu0
        %v1513 = vadd.f32 %v485, %v1434
        %v1514 = vadd.f32 %v486, %v1436
        %v1515 = vadd.f32 %v487, %v1439
        %v1516 = vadd.f32 %v488, %v1441
        %v1517 = vadd.f32 %v489, %v1444
        %v1518 = vadd.f32 %v490, %v1446
        %v1519 = vadd.f32 %v491, %v1449
        %v1520 = vadd.f32 %v492, %v1451
        %v1521 = vadd.f32 %v493, %v1454
        %v1522 = vadd.f32 %v494, %v1456
        %v1523 = vadd.f32 %v495, %v1459
        %v1524 = vadd.f32 %v496, %v1461
        %v1525 = vadd.f32 %v497, %v1464
        %v1526 = vadd.f32 %v498, %v1466
        %v1527 = vadd.f32 %v499, %v1469
        %v1528 = vadd.f32 %v500, %v1471
        %v1529 = vadd.f32 %v501, %v1474
        %v1530 = vadd.f32 %v502, %v1476
        %v1531 = vadd.f32 %v503, %v1479
        %v1532 = vadd.f32 %v504, %v1481
        %v1533 = vadd.f32 %v505, %v1484
        %v1534 = vadd.f32 %v506, %v1486
        %v1535 = vadd.f32 %v507, %v1489
        %v1536 = vadd.f32 %v508, %v1491
        %v1537 = vadd.f32 %v509, %v1494
        %v1538 = vadd.f32 %v510, %v1496
        %v1539 = vadd.f32 %v511, %v1499
        %v1540 = vadd.f32 %v512, %v1501
        %v1541 = vadd.f32 %v513, %v1504
        %v1542 = vadd.f32 %v514, %v1506
        %v1543 = vadd.f32 %v515, %v1509
        %v1544 = vadd.f32 %v516, %v1511
        %1545 = vst [vmem:[#allocation2] sm:$0xff] %v1513
        %1546 = vst [vmem:[#allocation2 + $0x8] sm:$0xff] %v1514
        %1547 = vst [vmem:[#allocation2 + $0x10] sm:$0xff] %v1515
        %1548 = vst [vmem:[#allocation2 + $0x18] sm:$0xff] %v1516
        %1549 = vst [vmem:[#allocation2 + $0x20] sm:$0xff] %v1517
        %1550 = vst [vmem:[#allocation2 + $0x28] sm:$0xff] %v1518
        %1551 = vst [vmem:[#allocation2 + $0x30] sm:$0xff] %v1519
        %1552 = vst [vmem:[#allocation2 + $0x38] sm:$0xff] %v1520
        %1553 = vst [vmem:[#allocation2 + $0x40] sm:$0xff] %v1521
        %1554 = vst [vmem:[#allocation2 + $0x48] sm:$0xff] %v1522
        %1555 = vst [vmem:[#allocation2 + $0x50] sm:$0xff] %v1523
        %1556 = vst [vmem:[#allocation2 + $0x58] sm:$0xff] %v1524
        %1557 = vst [vmem:[#allocation2 + $0x60] sm:$0xff] %v1525
        %1558 = vst [vmem:[#allocation2 + $0x68] sm:$0xff] %v1526
        %1559 = vst [vmem:[#allocation2 + $0x70] sm:$0xff] %v1527
        %1560 = vst [vmem:[#allocation2 + $0x78] sm:$0xff] %v1528
        %1561 = vst [vmem:[#allocation2 + $0x80] sm:$0xff] %v1529
        %1562 = vst [vmem:[#allocation2 + $0x88] sm:$0xff] %v1530
        %1563 = vst [vmem:[#allocation2 + $0x90] sm:$0xff] %v1531
        %1564 = vst [vmem:[#allocation2 + $0x98] sm:$0xff] %v1532
        %1565 = vst [vmem:[#allocation2 + $0xa0] sm:$0xff] %v1533
        %1566 = vst [vmem:[#allocation2 + $0xa8] sm:$0xff] %v1534
        %1567 = vst [vmem:[#allocation2 + $0xb0] sm:$0xff] %v1535
        %1568 = vst [vmem:[#allocation2 + $0xb8] sm:$0xff] %v1536
        %1569 = vst [vmem:[#allocation2 + $0xc0] sm:$0xff] %v1537
        %1570 = vst [vmem:[#allocation2 + $0xc8] sm:$0xff] %v1538
        %1571 = vst [vmem:[#allocation2 + $0xd0] sm:$0xff] %v1539
        %1572 = vst [vmem:[#allocation2 + $0xd8] sm:$0xff] %v1540
        %1573 = vst [vmem:[#allocation2 + $0xe0] sm:$0xff] %v1541
        %1574 = vst [vmem:[#allocation2 + $0xe8] sm:$0xff] %v1542
        %1575 = vst [vmem:[#allocation2 + $0xf0] sm:$0xff] %v1543
        %1576 = vst [vmem:[#allocation2 + $0xf8] sm:$0xff] %v1544
        %p1577 = scmp.eq.s32.totalorder %s23, 1
        // Predicated region
        $region56: #{discriminator_forward.9} parent=46 // pred_check
          %p1578 = pneg %p1577
        $region57: #{discriminator_forward.9} parent=46 // pred_check_branch
          %1580 = sbr.rel (%p1578) target = $region59
        $region58: #{discriminator_forward.9} parent=46 // pred_region
          %v1581 = vld [vmem:[#allocation2] sm:$0xff]
          %v1582 = vld [vmem:[#allocation2 + $0x8] sm:$0xff]
          %v1583 = vld [vmem:[#allocation2 + $0x10] sm:$0xff]
          %v1584 = vld [vmem:[#allocation2 + $0x18] sm:$0xff]
          %v1585 = vld [vmem:[#allocation2 + $0x20] sm:$0xff]
          %v1586 = vld [vmem:[#allocation2 + $0x28] sm:$0xff]
          %v1587 = vld [vmem:[#allocation2 + $0x30] sm:$0xff]
          %v1588 = vld [vmem:[#allocation2 + $0x38] sm:$0xff]
          %v1589 = vld [vmem:[#allocation2 + $0x40] sm:$0xff]
          %v1590 = vld [vmem:[#allocation2 + $0x48] sm:$0xff]
          %v1591 = vld [vmem:[#allocation2 + $0x50] sm:$0xff]
          %v1592 = vld [vmem:[#allocation2 + $0x58] sm:$0xff]
          %v1593 = vld [vmem:[#allocation2 + $0x60] sm:$0xff]
          %v1594 = vld [vmem:[#allocation2 + $0x68] sm:$0xff]
          %v1595 = vld [vmem:[#allocation2 + $0x70] sm:$0xff]
          %v1596 = vld [vmem:[#allocation2 + $0x78] sm:$0xff]
          %v1597 = vld [vmem:[#allocation2 + $0x80] sm:$0xff]
          %v1598 = vld [vmem:[#allocation2 + $0x88] sm:$0xff]
          %v1599 = vld [vmem:[#allocation2 + $0x90] sm:$0xff]
          %v1600 = vld [vmem:[#allocation2 + $0x98] sm:$0xff]
          %v1601 = vld [vmem:[#allocation2 + $0xa0] sm:$0xff]
          %v1602 = vld [vmem:[#allocation2 + $0xa8] sm:$0xff]
          %v1603 = vld [vmem:[#allocation2 + $0xb0] sm:$0xff]
          %v1604 = vld [vmem:[#allocation2 + $0xb8] sm:$0xff]
          %v1605 = vld [vmem:[#allocation2 + $0xc0] sm:$0xff]
          %v1606 = vld [vmem:[#allocation2 + $0xc8] sm:$0xff]
          %v1607 = vld [vmem:[#allocation2 + $0xd0] sm:$0xff]
          %v1608 = vld [vmem:[#allocation2 + $0xd8] sm:$0xff]
          %v1609 = vld [vmem:[#allocation2 + $0xe0] sm:$0xff]
          %v1610 = vld [vmem:[#allocation2 + $0xe8] sm:$0xff]
          %v1611 = vld [vmem:[#allocation2 + $0xf0] sm:$0xff]
          %v1612 = vld [vmem:[#allocation2 + $0xf8] sm:$0xff]
          %1613 = vst [vmem:[%s433] sm:$0xff] %v1581
          %1614 = vst [vmem:[%s433 + $0x8] sm:$0xff] %v1582
          %1615 = vst [vmem:[%s433 + $0x10] sm:$0xff] %v1583
          %1616 = vst [vmem:[%s433 + $0x18] sm:$0xff] %v1584
          %1617 = vst [vmem:[%s433 + $0x20] sm:$0xff] %v1585
          %1618 = vst [vmem:[%s433 + $0x28] sm:$0xff] %v1586
          %1619 = vst [vmem:[%s433 + $0x30] sm:$0xff] %v1587
          %1620 = vst [vmem:[%s433 + $0x38] sm:$0xff] %v1588
          %1621 = vst [vmem:[%s433 + $0x40] sm:$0xff] %v1589
          %1622 = vst [vmem:[%s433 + $0x48] sm:$0xff] %v1590
          %1623 = vst [vmem:[%s433 + $0x50] sm:$0xff] %v1591
          %1624 = vst [vmem:[%s433 + $0x58] sm:$0xff] %v1592
          %1625 = vst [vmem:[%s433 + $0x60] sm:$0xff] %v1593
          %1626 = vst [vmem:[%s433 + $0x68] sm:$0xff] %v1594
          %1627 = vst [vmem:[%s433 + $0x70] sm:$0xff] %v1595
          %1628 = vst [vmem:[%s433 + $0x78] sm:$0xff] %v1596
          %1629 = vst [vmem:[%s433 + $0x80] sm:$0xff] %v1597
          %1630 = vst [vmem:[%s433 + $0x88] sm:$0xff] %v1598
          %1631 = vst [vmem:[%s433 + $0x90] sm:$0xff] %v1599
          %1632 = vst [vmem:[%s433 + $0x98] sm:$0xff] %v1600
          %1633 = vst [vmem:[%s433 + $0xa0] sm:$0xff] %v1601
          %1634 = vst [vmem:[%s433 + $0xa8] sm:$0xff] %v1602
          %1635 = vst [vmem:[%s433 + $0xb0] sm:$0xff] %v1603
          %1636 = vst [vmem:[%s433 + $0xb8] sm:$0xff] %v1604
          %1637 = vst [vmem:[%s433 + $0xc0] sm:$0xff] %v1605
          %1638 = vst [vmem:[%s433 + $0xc8] sm:$0xff] %v1606
          %1639 = vst [vmem:[%s433 + $0xd0] sm:$0xff] %v1607
          %1640 = vst [vmem:[%s433 + $0xd8] sm:$0xff] %v1608
          %1641 = vst [vmem:[%s433 + $0xe0] sm:$0xff] %v1609
          %1642 = vst [vmem:[%s433 + $0xe8] sm:$0xff] %v1610
          %1643 = vst [vmem:[%s433 + $0xf0] sm:$0xff] %v1611
          %1644 = vst [vmem:[%s433 + $0xf8] sm:$0xff] %v1612
          %v1645 = vadd.f32 %v1581, %v1582
          %v1646 = vadd.f32 %v1645, %v1583
          %v1647 = vadd.f32 %v1646, %v1584
          %v1648 = vadd.f32 %v1647, %v1585
          %v1649 = vadd.f32 %v1648, %v1586
          %v1650 = vadd.f32 %v1649, %v1587
          %v1651 = vadd.f32 %v1650, %v1588
          %v1652 = vadd.f32 %v1651, %v1589
          %v1653 = vadd.f32 %v1652, %v1590
          %v1654 = vadd.f32 %v1653, %v1591
          %v1655 = vadd.f32 %v1654, %v1592
          %v1656 = vadd.f32 %v1655, %v1593
          %v1657 = vadd.f32 %v1656, %v1594
          %v1658 = vadd.f32 %v1657, %v1595
          %v1659 = vadd.f32 %v1658, %v1596
          %v1660 = vadd.f32 %v1659, %v1597
          %v1661 = vadd.f32 %v1660, %v1598
          %v1662 = vadd.f32 %v1661, %v1599
          %v1663 = vadd.f32 %v1662, %v1600
          %v1664 = vadd.f32 %v1663, %v1601
          %v1665 = vadd.f32 %v1664, %v1602
          %v1666 = vadd.f32 %v1665, %v1603
          %v1667 = vadd.f32 %v1666, %v1604
          %v1668 = vadd.f32 %v1667, %v1605
          %v1669 = vadd.f32 %v1668, %v1606
          %v1670 = vadd.f32 %v1669, %v1607
          %v1671 = vadd.f32 %v1670, %v1608
          %v1672 = vadd.f32 %v1671, %v1609
          %v1673 = vadd.f32 %v1672, %v1610
          %v1674 = vadd.f32 %v1673, %v1611
          %v1675 = vadd.f32 %v1674, %v1612
          %v1676 = vrot.slane %v1675, 4
          %v1677 = vadd.f32 %v1675, %v1676
          %v1678 = vrot.slane %v1677, 2
          %v1679 = vadd.f32 %v1677, %v1678
          %v1680 = vrot.slane %v1679, 1
          %v1681 = vadd.f32 %v1679, %v1680
          %v1682 = vmul.f32 %v1581, %v1581
          %v1683 = vmul.f32 %v1582, %v1582
          %v1684 = vmul.f32 %v1583, %v1583
          %v1685 = vmul.f32 %v1584, %v1584
          %v1686 = vmul.f32 %v1585, %v1585
          %v1687 = vmul.f32 %v1586, %v1586
          %v1688 = vmul.f32 %v1587, %v1587
          %v1689 = vmul.f32 %v1588, %v1588
          %v1690 = vmul.f32 %v1589, %v1589
          %v1691 = vmul.f32 %v1590, %v1590
          %v1692 = vmul.f32 %v1591, %v1591
          %v1693 = vmul.f32 %v1592, %v1592
          %v1694 = vmul.f32 %v1593, %v1593
          %v1695 = vmul.f32 %v1594, %v1594
          %v1696 = vmul.f32 %v1595, %v1595
          %v1697 = vmul.f32 %v1596, %v1596
          %v1698 = vmul.f32 %v1597, %v1597
          %v1699 = vmul.f32 %v1598, %v1598
          %v1700 = vmul.f32 %v1599, %v1599
          %v1701 = vmul.f32 %v1600, %v1600
          %v1702 = vmul.f32 %v1601, %v1601
          %v1703 = vmul.f32 %v1602, %v1602
          %v1704 = vmul.f32 %v1603, %v1603
          %v1705 = vmul.f32 %v1604, %v1604
          %v1706 = vmul.f32 %v1605, %v1605
          %v1707 = vmul.f32 %v1606, %v1606
          %v1708 = vmul.f32 %v1607, %v1607
          %v1709 = vmul.f32 %v1608, %v1608
          %v1710 = vmul.f32 %v1609, %v1609
          %v1711 = vmul.f32 %v1610, %v1610
          %v1712 = vmul.f32 %v1611, %v1611
          %v1713 = vmul.f32 %v1612, %v1612
          %v1714 = vadd.f32 %v1682, %v1683
          %v1715 = vadd.f32 %v1714, %v1684
          %v1716 = vadd.f32 %v1715, %v1685
          %v1717 = vadd.f32 %v1716, %v1686
          %v1718 = vadd.f32 %v1717, %v1687
          %v1719 = vadd.f32 %v1718, %v1688
          %v1720 = vadd.f32 %v1719, %v1689
          %v1721 = vadd.f32 %v1720, %v1690
          %v1722 = vadd.f32 %v1721, %v1691
          %v1723 = vadd.f32 %v1722, %v1692
          %v1724 = vadd.f32 %v1723, %v1693
          %v1725 = vadd.f32 %v1724, %v1694
          %v1726 = vadd.f32 %v1725, %v1695
          %v1727 = vadd.f32 %v1726, %v1696
          %v1728 = vadd.f32 %v1727, %v1697
          %v1729 = vadd.f32 %v1728, %v1698
          %v1730 = vadd.f32 %v1729, %v1699
          %v1731 = vadd.f32 %v1730, %v1700
          %v1732 = vadd.f32 %v1731, %v1701
          %v1733 = vadd.f32 %v1732, %v1702
          %v1734 = vadd.f32 %v1733, %v1703
          %v1735 = vadd.f32 %v1734, %v1704
          %v1736 = vadd.f32 %v1735, %v1705
          %v1737 = vadd.f32 %v1736, %v1706
          %v1738 = vadd.f32 %v1737, %v1707
          %v1739 = vadd.f32 %v1738, %v1708
          %v1740 = vadd.f32 %v1739, %v1709
          %v1741 = vadd.f32 %v1740, %v1710
          %v1742 = vadd.f32 %v1741, %v1711
          %v1743 = vadd.f32 %v1742, %v1712
          %v1744 = vadd.f32 %v1743, %v1713
          %v1745 = vrot.slane %v1744, 4
          %v1746 = vadd.f32 %v1744, %v1745
          %v1747 = vrot.slane %v1746, 2
          %v1748 = vadd.f32 %v1746, %v1747
          %v1749 = vrot.slane %v1748, 1
          %v1750 = vadd.f32 %v1748, %v1749
          %1751 = vst [vmem:[%s441] sm:$0xff] %v1681
          %1752 = vst [vmem:[%s448] sm:$0xff] %v1750
        $region59: #{discriminator_forward.9} parent=46 // pred_fallthru
          _
        %s1753 = smul.u32 32, %s21
        %p1754 = scmp.lt.s32.totalorder %s1753, 63
        %s1755 = scalar_select %p1754, %s1753, 63
        %p1756 = scmp.lt.s32.totalorder %s22, 0
        %s1757 = scalar_select %p1756, %s22, 0
        %s1758 = sadd.s32 %s1757, %s1755
        %s1759 = smul.addr %s1758, 8
        %s1760 = scalar_lea.vmem %s2, %s1759
        %p1761 = scmp.lt.s32.totalorder %s21, 1
        %s1762 = scalar_select %p1761, %s21, 1
        %p1763 = scmp.lt.s32.totalorder %s22, 0
        %s1764 = scalar_select %p1763, %s22, 0
        %s1765 = sadd.s32 %s1764, %s1762
        %s1766 = smul.addr %s1765, 8
        %s1767 = scalar_lea.vmem %s3, %s1766
        %p1768 = scmp.lt.s32.totalorder %s21, 1
        %s1769 = scalar_select %p1768, %s21, 1
        %p1770 = scmp.lt.s32.totalorder %s22, 0
        %s1771 = scalar_select %p1770, %s22, 0
        %s1772 = sadd.s32 %s1771, %s1769
        %s1773 = smul.addr %s1772, 8
        %s1774 = scalar_lea.vmem %s4, %s1773
        // Predicated region
        $region60: #{discriminator_forward.9} parent=46 // pred_check
          %p1775 = pneg %p111
        $region61: #{discriminator_forward.9} parent=46 // pred_check_branch
          %1777 = sbr.rel (%p1775) target = $region63
        $region62: #{discriminator_forward.9} parent=46 // pred_region
          %s1778 = smul.u32 32, %s21
        $region63: #{discriminator_forward.9} parent=46 // pred_fallthru
          _
        // Predicated region
        $region64: #{discriminator_forward.9} parent=46 // pred_check
          %p1779 = pneg %p139
        $region65: #{discriminator_forward.9} parent=46 // pred_check_branch
          %1781 = sbr.rel (%p1779) target = $region67
        $region66: #{discriminator_forward.9} parent=46 // pred_region
          _
        $region67: #{discriminator_forward.9} parent=46 // pred_fallthru
          _
        // Predicated region
        $region68: #{discriminator_forward.9} parent=46 // pred_check
          %p1782 = pneg %p167
        $region69: #{discriminator_forward.9} parent=46 // pred_check_branch
          %1784 = sbr.rel (%p1782) target = $region71
        $region70: #{discriminator_forward.9} parent=46 // pred_region
          _
        $region71: #{discriminator_forward.9} parent=46 // pred_fallthru
          _
      $region47: #{discriminator_forward.9} parent=5 // pred_fallthru
        _
      %p1785 = scmp.le.s32.totalorder 2, %s11
      // Predicated region
      $region72: #{discriminator_forward.9} parent=5 // pred_check
        %p1786 = pneg %p1785
      $region73: #{discriminator_forward.9} parent=5 // pred_check_branch
        %1788 = sbr.rel (%p1786) target = $region75
      $region74: #{discriminator_forward.9} parent=5 // pred_region
        %s1789 = ssub.s32 %s11, 2
        // Predicated region
        $region76: #{discriminator_forward.9} parent=74 // pred_check
          %p1790 = pneg %p117
        $region77: #{discriminator_forward.9} parent=74 // pred_check_branch
          %1792 = sbr.rel (%p1790) target = $region79
        $region78: #{discriminator_forward.9} parent=74 // pred_region
          %s1793 = smul.u32 32, %s24
          %p1794 = scmp.lt.s32.totalorder %s1793, 63
          %s1795 = scalar_select %p1794, %s1793, 63
          %p1796 = scmp.lt.s32.totalorder %s25, 0
          %s1797 = scalar_select %p1796, %s25, 0
          %s1798 = sadd.s32 %s1797, %s1795
          %s1799 = smul.addr %s1798, 8
          %s1800 = scalar_lea.vmem %s2, %s1799
        $region79: #{discriminator_forward.9} parent=74 // pred_fallthru
          _
        // Predicated region
        $region80: #{discriminator_forward.9} parent=74 // pred_check
          %p1801 = pneg %p145
        $region81: #{discriminator_forward.9} parent=74 // pred_check_branch
          %1803 = sbr.rel (%p1801) target = $region83
        $region82: #{discriminator_forward.9} parent=74 // pred_region
          %p1804 = scmp.lt.s32.totalorder %s24, 1
          %s1805 = scalar_select %p1804, %s24, 1
          %p1806 = scmp.lt.s32.totalorder %s25, 0
          %s1807 = scalar_select %p1806, %s25, 0
          %s1808 = sadd.s32 %s1807, %s1805
          %s1809 = smul.addr %s1808, 8
          %s1810 = scalar_lea.vmem %s3, %s1809
        $region83: #{discriminator_forward.9} parent=74 // pred_fallthru
          _
        // Predicated region
        $region84: #{discriminator_forward.9} parent=74 // pred_check
          %p1811 = pneg %p173
        $region85: #{discriminator_forward.9} parent=74 // pred_check_branch
          %1813 = sbr.rel (%p1811) target = $region87
        $region86: #{discriminator_forward.9} parent=74 // pred_region
          %p1814 = scmp.lt.s32.totalorder %s24, 1
          %s1815 = scalar_select %p1814, %s24, 1
          %p1816 = scmp.lt.s32.totalorder %s25, 0
          %s1817 = scalar_select %p1816, %s25, 0
          %s1818 = sadd.s32 %s1817, %s1815
          %s1819 = smul.addr %s1818, 8
          %s1820 = scalar_lea.vmem %s4, %s1819
        $region87: #{discriminator_forward.9} parent=74 // pred_fallthru
          _
      $region75: #{discriminator_forward.9} parent=5 // pred_fallthru
        _
    $region6: #{discriminator_forward.9} parent=1 // loop_footer
      %s15 = sadd.s32 1, %s11
    $region7: #{discriminator_forward.9} parent=1 // loop_footer_branch
      %10 = sbr.rel target = $region3
    $region8: #{discriminator_forward.9} parent=1 // loop_exit
      _

// kernel: discriminator_forward.10
$region0: #{discriminator_forward.10}
  #allocation0 [shape = 'u32[]', space=smem, size = 0x4, offset = 0x4, fixed_abs, tag = 'smem constant byte address 0x4 - core index']
  #allocation1 [shape = 'u32[72,128]{1,0:T(1,128)}', space=vmem, size = 0x9000, scoped, tag = 'internal scratch']
  %s0 = inlined_call_operand.vmem [shape: f32[512,128], index: 0, kind: input, shape index: {}]
  %s1 = inlined_call_operand.vmem [shape: f32[1,128], index: 1, kind: input, shape index: {}]
  %s2 = inlined_call_operand.vmem [shape: f32[1,128], index: 2, kind: input, shape index: {}]
  %s3 = inlined_call_operand.vmem [shape: bf16[512,128], index: 3, kind: output, shape index: {}]
  %s4 = sld [smem:[#allocation0]]
  $region22: #{discriminator_forward.10} parent=0
    _
  %s6 = ssub.s32 1, %s4
  %s7 = scalar_select 0, %s6, %s4
  // Predicated region
  $region2: #{discriminator_forward.10} parent=0 // pred_check
    _
  $region3: #{discriminator_forward.10} parent=0 // pred_check_branch
    %9 = sbr.rel (0) target = $region5
  $region4: #{discriminator_forward.10} parent=0 // pred_region
    _
  $region5: #{discriminator_forward.10} parent=0 // pred_fallthru
    _
  // Predicated region
  $region6: #{discriminator_forward.10} parent=0 // pred_check
    _
  $region7: #{discriminator_forward.10} parent=0 // pred_check_branch
    %11 = sbr.rel (0) target = $region9
  $region8: #{discriminator_forward.10} parent=0 // pred_region
    _
  $region9: #{discriminator_forward.10} parent=0 // pred_fallthru
    _
  // Predicated region
  $region10: #{discriminator_forward.10} parent=0 // pred_check
    _
  $region11: #{discriminator_forward.10} parent=0 // pred_check_branch
    %13 = sbr.rel (0) target = $region13
  $region12: #{discriminator_forward.10} parent=0 // pred_region
    _
  $region13: #{discriminator_forward.10} parent=0 // pred_fallthru
    _
  %v14 = vld [vmem:[%s0] sm:$0xff]
  %v15 = vld [vmem:[%s0 + $0x8] sm:$0xff]
  %v16 = vld [vmem:[%s0 + $0x10] sm:$0xff]
  %v17 = vld [vmem:[%s0 + $0x18] sm:$0xff]
  %v18 = vld [vmem:[%s0 + $0x20] sm:$0xff]
  %v19 = vld [vmem:[%s0 + $0x28] sm:$0xff]
  %v20 = vld [vmem:[%s0 + $0x30] sm:$0xff]
  %v21 = vld [vmem:[%s0 + $0x38] sm:$0xff]
  %v22 = vld [vmem:[%s0 + $0x40] sm:$0xff]
  %v23 = vld [vmem:[%s0 + $0x48] sm:$0xff]
  %v24 = vld [vmem:[%s0 + $0x50] sm:$0xff]
  %v25 = vld [vmem:[%s0 + $0x58] sm:$0xff]
  %v26 = vld [vmem:[%s0 + $0x60] sm:$0xff]
  %v27 = vld [vmem:[%s0 + $0x68] sm:$0xff]
  %v28 = vld [vmem:[%s0 + $0x70] sm:$0xff]
  %v29 = vld [vmem:[%s0 + $0x78] sm:$0xff]
  %v30 = vld [vmem:[%s0 + $0x80] sm:$0xff]
  %v31 = vld [vmem:[%s0 + $0x88] sm:$0xff]
  %v32 = vld [vmem:[%s0 + $0x90] sm:$0xff]
  %v33 = vld [vmem:[%s0 + $0x98] sm:$0xff]
  %v34 = vld [vmem:[%s0 + $0xa0] sm:$0xff]
  %v35 = vld [vmem:[%s0 + $0xa8] sm:$0xff]
  %v36 = vld [vmem:[%s0 + $0xb0] sm:$0xff]
  %v37 = vld [vmem:[%s0 + $0xb8] sm:$0xff]
  %v38 = vld [vmem:[%s0 + $0xc0] sm:$0xff]
  %v39 = vld [vmem:[%s0 + $0xc8] sm:$0xff]
  %v40 = vld [vmem:[%s0 + $0xd0] sm:$0xff]
  %v41 = vld [vmem:[%s0 + $0xd8] sm:$0xff]
  %v42 = vld [vmem:[%s0 + $0xe0] sm:$0xff]
  %v43 = vld [vmem:[%s0 + $0xe8] sm:$0xff]
  %v44 = vld [vmem:[%s0 + $0xf0] sm:$0xff]
  %v45 = vld [vmem:[%s0 + $0xf8] sm:$0xff]
  %v46 = vld [vmem:[%s0 + $0x100] sm:$0xff]
  %v47 = vld [vmem:[%s0 + $0x108] sm:$0xff]
  %v48 = vld [vmem:[%s0 + $0x110] sm:$0xff]
  %v49 = vld [vmem:[%s0 + $0x118] sm:$0xff]
  %v50 = vld [vmem:[%s0 + $0x120] sm:$0xff]
  %v51 = vld [vmem:[%s0 + $0x128] sm:$0xff]
  %v52 = vld [vmem:[%s0 + $0x130] sm:$0xff]
  %v53 = vld [vmem:[%s0 + $0x138] sm:$0xff]
  %v54 = vld [vmem:[%s0 + $0x140] sm:$0xff]
  %v55 = vld [vmem:[%s0 + $0x148] sm:$0xff]
  %v56 = vld [vmem:[%s0 + $0x150] sm:$0xff]
  %v57 = vld [vmem:[%s0 + $0x158] sm:$0xff]
  %v58 = vld [vmem:[%s0 + $0x160] sm:$0xff]
  %v59 = vld [vmem:[%s0 + $0x168] sm:$0xff]
  %v60 = vld [vmem:[%s0 + $0x170] sm:$0xff]
  %v61 = vld [vmem:[%s0 + $0x178] sm:$0xff]
  %v62 = vld [vmem:[%s0 + $0x180] sm:$0xff]
  %v63 = vld [vmem:[%s0 + $0x188] sm:$0xff]
  %v64 = vld [vmem:[%s0 + $0x190] sm:$0xff]
  %v65 = vld [vmem:[%s0 + $0x198] sm:$0xff]
  %v66 = vld [vmem:[%s0 + $0x1a0] sm:$0xff]
  %v67 = vld [vmem:[%s0 + $0x1a8] sm:$0xff]
  %v68 = vld [vmem:[%s0 + $0x1b0] sm:$0xff]
  %v69 = vld [vmem:[%s0 + $0x1b8] sm:$0xff]
  %v70 = vld [vmem:[%s0 + $0x1c0] sm:$0xff]
  %v71 = vld [vmem:[%s0 + $0x1c8] sm:$0xff]
  %v72 = vld [vmem:[%s0 + $0x1d0] sm:$0xff]
  %v73 = vld [vmem:[%s0 + $0x1d8] sm:$0xff]
  %v74 = vld [vmem:[%s0 + $0x1e0] sm:$0xff]
  %v75 = vld [vmem:[%s0 + $0x1e8] sm:$0xff]
  %v76 = vld [vmem:[%s0 + $0x1f0] sm:$0xff]
  %v77 = vld [vmem:[%s0 + $0x1f8] sm:$0xff]
  %v78 = vld [vmem:[%s1] sm:$0x1]
  %v80 = vperm.slane %v78, 0
  %v82 = vmul.f32 %v14, %v80
  %v83 = vmul.f32 %v15, %v80
  %v84 = vmul.f32 %v16, %v80
  %v85 = vmul.f32 %v17, %v80
  %v86 = vmul.f32 %v18, %v80
  %v87 = vmul.f32 %v19, %v80
  %v88 = vmul.f32 %v20, %v80
  %v89 = vmul.f32 %v21, %v80
  %v90 = vmul.f32 %v22, %v80
  %v91 = vmul.f32 %v23, %v80
  %v92 = vmul.f32 %v24, %v80
  %v93 = vmul.f32 %v25, %v80
  %v94 = vmul.f32 %v26, %v80
  %v95 = vmul.f32 %v27, %v80
  %v96 = vmul.f32 %v28, %v80
  %v97 = vmul.f32 %v29, %v80
  %v98 = vmul.f32 %v30, %v80
  %v99 = vmul.f32 %v31, %v80
  %v100 = vmul.f32 %v32, %v80
  %v101 = vmul.f32 %v33, %v80
  %v102 = vmul.f32 %v34, %v80
  %v103 = vmul.f32 %v35, %v80
  %v104 = vmul.f32 %v36, %v80
  %v105 = vmul.f32 %v37, %v80
  %v106 = vmul.f32 %v38, %v80
  %v107 = vmul.f32 %v39, %v80
  %v108 = vmul.f32 %v40, %v80
  %v109 = vmul.f32 %v41, %v80
  %v110 = vmul.f32 %v42, %v80
  %v111 = vmul.f32 %v43, %v80
  %v112 = vmul.f32 %v44, %v80
  %v113 = vmul.f32 %v45, %v80
  %v114 = vmul.f32 %v46, %v80
  %v115 = vmul.f32 %v47, %v80
  %v116 = vmul.f32 %v48, %v80
  %v117 = vmul.f32 %v49, %v80
  %v118 = vmul.f32 %v50, %v80
  %v119 = vmul.f32 %v51, %v80
  %v120 = vmul.f32 %v52, %v80
  %v121 = vmul.f32 %v53, %v80
  %v122 = vmul.f32 %v54, %v80
  %v123 = vmul.f32 %v55, %v80
  %v124 = vmul.f32 %v56, %v80
  %v125 = vmul.f32 %v57, %v80
  %v126 = vmul.f32 %v58, %v80
  %v127 = vmul.f32 %v59, %v80
  %v128 = vmul.f32 %v60, %v80
  %v129 = vmul.f32 %v61, %v80
  %v130 = vmul.f32 %v62, %v80
  %v131 = vmul.f32 %v63, %v80
  %v132 = vmul.f32 %v64, %v80
  %v133 = vmul.f32 %v65, %v80
  %v134 = vmul.f32 %v66, %v80
  %v135 = vmul.f32 %v67, %v80
  %v136 = vmul.f32 %v68, %v80
  %v137 = vmul.f32 %v69, %v80
  %v138 = vmul.f32 %v70, %v80
  %v139 = vmul.f32 %v71, %v80
  %v140 = vmul.f32 %v72, %v80
  %v141 = vmul.f32 %v73, %v80
  %v142 = vmul.f32 %v74, %v80
  %v143 = vmul.f32 %v75, %v80
  %v144 = vmul.f32 %v76, %v80
  %v145 = vmul.f32 %v77, %v80
  %v146 = vld [vmem:[%s2] sm:$0x1]
  %v148 = vperm.slane %v146, 0
  %v150 = vadd.f32 %v82, %v148
  %v151 = vadd.f32 %v83, %v148
  %v152 = vadd.f32 %v84, %v148
  %v153 = vadd.f32 %v85, %v148
  %v154 = vadd.f32 %v86, %v148
  %v155 = vadd.f32 %v87, %v148
  %v156 = vadd.f32 %v88, %v148
  %v157 = vadd.f32 %v89, %v148
  %v158 = vadd.f32 %v90, %v148
  %v159 = vadd.f32 %v91, %v148
  %v160 = vadd.f32 %v92, %v148
  %v161 = vadd.f32 %v93, %v148
  %v162 = vadd.f32 %v94, %v148
  %v163 = vadd.f32 %v95, %v148
  %v164 = vadd.f32 %v96, %v148
  %v165 = vadd.f32 %v97, %v148
  %v166 = vadd.f32 %v98, %v148
  %v167 = vadd.f32 %v99, %v148
  %v168 = vadd.f32 %v100, %v148
  %v169 = vadd.f32 %v101, %v148
  %v170 = vadd.f32 %v102, %v148
  %v171 = vadd.f32 %v103, %v148
  %v172 = vadd.f32 %v104, %v148
  %v173 = vadd.f32 %v105, %v148
  %v174 = vadd.f32 %v106, %v148
  %v175 = vadd.f32 %v107, %v148
  %v176 = vadd.f32 %v108, %v148
  %v177 = vadd.f32 %v109, %v148
  %v178 = vadd.f32 %v110, %v148
  %v179 = vadd.f32 %v111, %v148
  %v180 = vadd.f32 %v112, %v148
  %v181 = vadd.f32 %v113, %v148
  %v182 = vadd.f32 %v114, %v148
  %v183 = vadd.f32 %v115, %v148
  %v184 = vadd.f32 %v116, %v148
  %v185 = vadd.f32 %v117, %v148
  %v186 = vadd.f32 %v118, %v148
  %v187 = vadd.f32 %v119, %v148
  %v188 = vadd.f32 %v120, %v148
  %v189 = vadd.f32 %v121, %v148
  %v190 = vadd.f32 %v122, %v148
  %v191 = vadd.f32 %v123, %v148
  %v192 = vadd.f32 %v124, %v148
  %v193 = vadd.f32 %v125, %v148
  %v194 = vadd.f32 %v126, %v148
  %v195 = vadd.f32 %v127, %v148
  %v196 = vadd.f32 %v128, %v148
  %v197 = vadd.f32 %v129, %v148
  %v198 = vadd.f32 %v130, %v148
  %v199 = vadd.f32 %v131, %v148
  %v200 = vadd.f32 %v132, %v148
  %v201 = vadd.f32 %v133, %v148
  %v202 = vadd.f32 %v134, %v148
  %v203 = vadd.f32 %v135, %v148
  %v204 = vadd.f32 %v136, %v148
  %v205 = vadd.f32 %v137, %v148
  %v206 = vadd.f32 %v138, %v148
  %v207 = vadd.f32 %v139, %v148
  %v208 = vadd.f32 %v140, %v148
  %v209 = vadd.f32 %v141, %v148
  %v210 = vadd.f32 %v142, %v148
  %v211 = vadd.f32 %v143, %v148
  %v212 = vadd.f32 %v144, %v148
  %v213 = vadd.f32 %v145, %v148
  %v214 = vmul.f32 %v150, 0.2
  %v215 = vmul.f32 %v151, 0.2
  %v216 = vmul.f32 %v152, 0.2
  %v217 = vmul.f32 %v153, 0.2
  %v218 = vmul.f32 %v154, 0.2
  %v219 = vmul.f32 %v155, 0.2
  %v220 = vmul.f32 %v156, 0.2
  %v221 = vmul.f32 %v157, 0.2
  %v222 = vmul.f32 %v158, 0.2
  %v223 = vmul.f32 %v159, 0.2
  %v224 = vmul.f32 %v160, 0.2
  %v225 = vmul.f32 %v161, 0.2
  %v226 = vmul.f32 %v162, 0.2
  %v227 = vmul.f32 %v163, 0.2
  %v228 = vmul.f32 %v164, 0.2
  %v229 = vmul.f32 %v165, 0.2
  %v230 = vmul.f32 %v166, 0.2
  %v231 = vmul.f32 %v167, 0.2
  %v232 = vmul.f32 %v168, 0.2
  %v233 = vmul.f32 %v169, 0.2
  %v234 = vmul.f32 %v170, 0.2
  %v235 = vmul.f32 %v171, 0.2
  %v236 = vmul.f32 %v172, 0.2
  %v237 = vmul.f32 %v173, 0.2
  %v238 = vmul.f32 %v174, 0.2
  %v239 = vmul.f32 %v175, 0.2
  %v240 = vmul.f32 %v176, 0.2
  %v241 = vmul.f32 %v177, 0.2
  %v242 = vmul.f32 %v178, 0.2
  %v243 = vmul.f32 %v179, 0.2
  %v244 = vmul.f32 %v180, 0.2
  %v245 = vmul.f32 %v181, 0.2
  %v246 = vmul.f32 %v182, 0.2
  %v247 = vmul.f32 %v183, 0.2
  %v248 = vmul.f32 %v184, 0.2
  %v249 = vmul.f32 %v185, 0.2
  %v250 = vmul.f32 %v186, 0.2
  %v251 = vmul.f32 %v187, 0.2
  %v252 = vmul.f32 %v188, 0.2
  %v253 = vmul.f32 %v189, 0.2
  %v254 = vmul.f32 %v190, 0.2
  %v255 = vmul.f32 %v191, 0.2
  %v256 = vmul.f32 %v192, 0.2
  %v257 = vmul.f32 %v193, 0.2
  %v258 = vmul.f32 %v194, 0.2
  %v259 = vmul.f32 %v195, 0.2
  %v260 = vmul.f32 %v196, 0.2
  %v261 = vmul.f32 %v197, 0.2
  %v262 = vmul.f32 %v198, 0.2
  %v263 = vmul.f32 %v199, 0.2
  %v264 = vmul.f32 %v200, 0.2
  %v265 = vmul.f32 %v201, 0.2
  %v266 = vmul.f32 %v202, 0.2
  %v267 = vmul.f32 %v203, 0.2
  %v268 = vmul.f32 %v204, 0.2
  %v269 = vmul.f32 %v205, 0.2
  %v270 = vmul.f32 %v206, 0.2
  %v271 = vmul.f32 %v207, 0.2
  %v272 = vmul.f32 %v208, 0.2
  %v273 = vmul.f32 %v209, 0.2
  %v274 = vmul.f32 %v210, 0.2
  %v275 = vmul.f32 %v211, 0.2
  %v276 = vmul.f32 %v212, 0.2
  %v277 = vmul.f32 %v213, 0.2
  %v278 = vmax.f32 %v150, %v214
  %v279 = vmax.f32 %v151, %v215
  %v280 = vmax.f32 %v152, %v216
  %v281 = vmax.f32 %v153, %v217
  %v282 = vmax.f32 %v154, %v218
  %v283 = vmax.f32 %v155, %v219
  %v284 = vmax.f32 %v156, %v220
  %v285 = vmax.f32 %v157, %v221
  %v286 = vmax.f32 %v158, %v222
  %v287 = vmax.f32 %v159, %v223
  %v288 = vmax.f32 %v160, %v224
  %v289 = vmax.f32 %v161, %v225
  %v290 = vmax.f32 %v162, %v226
  %v291 = vmax.f32 %v163, %v227
  %v292 = vmax.f32 %v164, %v228
  %v293 = vmax.f32 %v165, %v229
  %v294 = vmax.f32 %v166, %v230
  %v295 = vmax.f32 %v167, %v231
  %v296 = vmax.f32 %v168, %v232
  %v297 = vmax.f32 %v169, %v233
  %v298 = vmax.f32 %v170, %v234
  %v299 = vmax.f32 %v171, %v235
  %v300 = vmax.f32 %v172, %v236
  %v301 = vmax.f32 %v173, %v237
  %v302 = vmax.f32 %v174, %v238
  %v303 = vmax.f32 %v175, %v239
  %v304 = vmax.f32 %v176, %v240
  %v305 = vmax.f32 %v177, %v241
  %v306 = vmax.f32 %v178, %v242
  %v307 = vmax.f32 %v179, %v243
  %v308 = vmax.f32 %v180, %v244
  %v309 = vmax.f32 %v181, %v245
  %v310 = vmax.f32 %v182, %v246
  %v311 = vmax.f32 %v183, %v247
  %v312 = vmax.f32 %v184, %v248
  %v313 = vmax.f32 %v185, %v249
  %v314 = vmax.f32 %v186, %v250
  %v315 = vmax.f32 %v187, %v251
  %v316 = vmax.f32 %v188, %v252
  %v317 = vmax.f32 %v189, %v253
  %v318 = vmax.f32 %v190, %v254
  %v319 = vmax.f32 %v191, %v255
  %v320 = vmax.f32 %v192, %v256
  %v321 = vmax.f32 %v193, %v257
  %v322 = vmax.f32 %v194, %v258
  %v323 = vmax.f32 %v195, %v259
  %v324 = vmax.f32 %v196, %v260
  %v325 = vmax.f32 %v197, %v261
  %v326 = vmax.f32 %v198, %v262
  %v327 = vmax.f32 %v199, %v263
  %v328 = vmax.f32 %v200, %v264
  %v329 = vmax.f32 %v201, %v265
  %v330 = vmax.f32 %v202, %v266
  %v331 = vmax.f32 %v203, %v267
  %v332 = vmax.f32 %v204, %v268
  %v333 = vmax.f32 %v205, %v269
  %v334 = vmax.f32 %v206, %v270
  %v335 = vmax.f32 %v207, %v271
  %v336 = vmax.f32 %v208, %v272
  %v337 = vmax.f32 %v209, %v273
  %v338 = vmax.f32 %v210, %v274
  %v339 = vmax.f32 %v211, %v275
  %v340 = vmax.f32 %v212, %v276
  %v341 = vmax.f32 %v213, %v277
  %v342 = vpack.c.bf16 %v278, %v278
  %v343 = vpack.c.bf16 %v279, %v279
  %v344 = vpack.c.bf16 %v280, %v280
  %v345 = vpack.c.bf16 %v281, %v281
  %v346 = vpack.c.bf16 %v282, %v282
  %v347 = vpack.c.bf16 %v283, %v283
  %v348 = vpack.c.bf16 %v284, %v284
  %v349 = vpack.c.bf16 %v285, %v285
  %v350 = vpack.c.bf16 %v286, %v286
  %v351 = vpack.c.bf16 %v287, %v287
  %v352 = vpack.c.bf16 %v288, %v288
  %v353 = vpack.c.bf16 %v289, %v289
  %v354 = vpack.c.bf16 %v290, %v290
  %v355 = vpack.c.bf16 %v291, %v291
  %v356 = vpack.c.bf16 %v292, %v292
  %v357 = vpack.c.bf16 %v293, %v293
  %v358 = vpack.c.bf16 %v294, %v294
  %v359 = vpack.c.bf16 %v295, %v295
  %v360 = vpack.c.bf16 %v296, %v296
  %v361 = vpack.c.bf16 %v297, %v297
  %v362 = vpack.c.bf16 %v298, %v298
  %v363 = vpack.c.bf16 %v299, %v299
  %v364 = vpack.c.bf16 %v300, %v300
  %v365 = vpack.c.bf16 %v301, %v301
  %v366 = vpack.c.bf16 %v302, %v302
  %v367 = vpack.c.bf16 %v303, %v303
  %v368 = vpack.c.bf16 %v304, %v304
  %v369 = vpack.c.bf16 %v305, %v305
  %v370 = vpack.c.bf16 %v306, %v306
  %v371 = vpack.c.bf16 %v307, %v307
  %v372 = vpack.c.bf16 %v308, %v308
  %v373 = vpack.c.bf16 %v309, %v309
  %v374 = vpack.c.bf16 %v310, %v310
  %v375 = vpack.c.bf16 %v311, %v311
  %v376 = vpack.c.bf16 %v312, %v312
  %v377 = vpack.c.bf16 %v313, %v313
  %v378 = vpack.c.bf16 %v314, %v314
  %v379 = vpack.c.bf16 %v315, %v315
  %v380 = vpack.c.bf16 %v316, %v316
  %v381 = vpack.c.bf16 %v317, %v317
  %v382 = vpack.c.bf16 %v318, %v318
  %v383 = vpack.c.bf16 %v319, %v319
  %v384 = vpack.c.bf16 %v320, %v320
  %v385 = vpack.c.bf16 %v321, %v321
  %v386 = vpack.c.bf16 %v322, %v322
  %v387 = vpack.c.bf16 %v323, %v323
  %v388 = vpack.c.bf16 %v324, %v324
  %v389 = vpack.c.bf16 %v325, %v325
  %v390 = vpack.c.bf16 %v326, %v326
  %v391 = vpack.c.bf16 %v327, %v327
  %v392 = vpack.c.bf16 %v328, %v328
  %v393 = vpack.c.bf16 %v329, %v329
  %v394 = vpack.c.bf16 %v330, %v330
  %v395 = vpack.c.bf16 %v331, %v331
  %v396 = vpack.c.bf16 %v332, %v332
  %v397 = vpack.c.bf16 %v333, %v333
  %v398 = vpack.c.bf16 %v334, %v334
  %v399 = vpack.c.bf16 %v335, %v335
  %v400 = vpack.c.bf16 %v336, %v336
  %v401 = vpack.c.bf16 %v337, %v337
  %v402 = vpack.c.bf16 %v338, %v338
  %v403 = vpack.c.bf16 %v339, %v339
  %v404 = vpack.c.bf16 %v340, %v340
  %v405 = vpack.c.bf16 %v341, %v341
  %406 = vst [vmem:[%s3] sm:$0xf] %v342
  %407 = vst [vmem:[%s3 + $0x4] sm:$0xf] %v343
  %408 = vst [vmem:[%s3 + $0x8] sm:$0xf] %v344
  %409 = vst [vmem:[%s3 + $0xc] sm:$0xf] %v345
  %410 = vst [vmem:[%s3 + $0x10] sm:$0xf] %v346
  %411 = vst [vmem:[%s3 + $0x14] sm:$0xf] %v347
  %412 = vst [vmem:[%s3 + $0x18] sm:$0xf] %v348
  %413 = vst [vmem:[%s3 + $0x1c] sm:$0xf] %v349
  %414 = vst [vmem:[%s3 + $0x20] sm:$0xf] %v350
  %415 = vst [vmem:[%s3 + $0x24] sm:$0xf] %v351
  %416 = vst [vmem:[%s3 + $0x28] sm:$0xf] %v352
  %417 = vst [vmem:[%s3 + $0x2c] sm:$0xf] %v353
  %418 = vst [vmem:[%s3 + $0x30] sm:$0xf] %v354
  %419 = vst [vmem:[%s3 + $0x34] sm:$0xf] %v355
  %420 = vst [vmem:[%s3 + $0x38] sm:$0xf] %v356
  %421 = vst [vmem:[%s3 + $0x3c] sm:$0xf] %v357
  %422 = vst [vmem:[%s3 + $0x40] sm:$0xf] %v358
  %423 = vst [vmem:[%s3 + $0x44] sm:$0xf] %v359
  %424 = vst [vmem:[%s3 + $0x48] sm:$0xf] %v360
  %425 = vst [vmem:[%s3 + $0x4c] sm:$0xf] %v361
  %426 = vst [vmem:[%s3 + $0x50] sm:$0xf] %v362
  %427 = vst [vmem:[%s3 + $0x54] sm:$0xf] %v363
  %428 = vst [vmem:[%s3 + $0x58] sm:$0xf] %v364
  %429 = vst [vmem:[%s3 + $0x5c] sm:$0xf] %v365
  %430 = vst [vmem:[%s3 + $0x60] sm:$0xf] %v366
  %431 = vst [vmem:[%s3 + $0x64] sm:$0xf] %v367
  %432 = vst [vmem:[%s3 + $0x68] sm:$0xf] %v368
  %433 = vst [vmem:[%s3 + $0x6c] sm:$0xf] %v369
  %434 = vst [vmem:[%s3 + $0x70] sm:$0xf] %v370
  %435 = vst [vmem:[%s3 + $0x74] sm:$0xf] %v371
  %436 = vst [vmem:[%s3 + $0x78] sm:$0xf] %v372
  %437 = vst [vmem:[%s3 + $0x7c] sm:$0xf] %v373
  %438 = vst [vmem:[%s3 + $0x80] sm:$0xf] %v374
  %439 = vst [vmem:[%s3 + $0x84] sm:$0xf] %v375
  %440 = vst [vmem:[%s3 + $0x88] sm:$0xf] %v376
  %441 = vst [vmem:[%s3 + $0x8c] sm:$0xf] %v377
  %442 = vst [vmem:[%s3 + $0x90] sm:$0xf] %v378
  %443 = vst [vmem:[%s3 + $0x94] sm:$0xf] %v379
  %444 = vst [vmem:[%s3 + $0x98] sm:$0xf] %v380
  %445 = vst [vmem:[%s3 + $0x9c] sm:$0xf] %v381
  %446 = vst [vmem:[%s3 + $0xa0] sm:$0xf] %v382
  %447 = vst [vmem:[%s3 + $0xa4] sm:$0xf] %v383
  %448 = vst [vmem:[%s3 + $0xa8] sm:$0xf] %v384
  %449 = vst [vmem:[%s3 + $0xac] sm:$0xf] %v385
  %450 = vst [vmem:[%s3 + $0xb0] sm:$0xf] %v386
  %451 = vst [vmem:[%s3 + $0xb4] sm:$0xf] %v387
  %452 = vst [vmem:[%s3 + $0xb8] sm:$0xf] %v388
  %453 = vst [vmem:[%s3 + $0xbc] sm:$0xf] %v389
  %454 = vst [vmem:[%s3 + $0xc0] sm:$0xf] %v390
  %455 = vst [vmem:[%s3 + $0xc4] sm:$0xf] %v391
  %456 = vst [vmem:[%s3 + $0xc8] sm:$0xf] %v392
  %457 = vst [vmem:[%s3 + $0xcc] sm:$0xf] %v393
  %458 = vst [vmem:[%s3 + $0xd0] sm:$0xf] %v394
  %459 = vst [vmem:[%s3 + $0xd4] sm:$0xf] %v395
  %460 = vst [vmem:[%s3 + $0xd8] sm:$0xf] %v396
  %461 = vst [vmem:[%s3 + $0xdc] sm:$0xf] %v397
  %462 = vst [vmem:[%s3 + $0xe0] sm:$0xf] %v398
  %463 = vst [vmem:[%s3 + $0xe4] sm:$0xf] %v399
  %464 = vst [vmem:[%s3 + $0xe8] sm:$0xf] %v400
  %465 = vst [vmem:[%s3 + $0xec] sm:$0xf] %v401
  %466 = vst [vmem:[%s3 + $0xf0] sm:$0xf] %v402
  %467 = vst [vmem:[%s3 + $0xf4] sm:$0xf] %v403
  %468 = vst [vmem:[%s3 + $0xf8] sm:$0xf] %v404
  %469 = vst [vmem:[%s3 + $0xfc] sm:$0xf] %v405
  // Predicated region
  $region14: #{discriminator_forward.10} parent=0 // pred_check
    _
  $region15: #{discriminator_forward.10} parent=0 // pred_check_branch
    %471 = sbr.rel (0) target = $region17
  $region16: #{discriminator_forward.10} parent=0 // pred_region
    _
  $region17: #{discriminator_forward.10} parent=0 // pred_fallthru
    _
  // Predicated region
  $region18: #{discriminator_forward.10} parent=0 // pred_check
    _
  $region19: #{discriminator_forward.10} parent=0 // pred_check_branch
    %473 = sbr.rel (0) target = $region21
  $region20: #{discriminator_forward.10} parent=0 // pred_region
    _
  $region21: #{discriminator_forward.10} parent=0 // pred_fallthru
    _

// kernel: discriminator_forward.11
$region0: #{discriminator_forward.11}
  #allocation0 [shape = 'u32[]', space=smem, size = 0x4, offset = 0x4, fixed_abs, tag = 'smem constant byte address 0x4 - core index']
  #allocation1 [shape = 'u32[72,128]{1,0:T(1,128)}', space=vmem, size = 0x9000, scoped, tag = 'internal scratch']
  #allocation2 [shape = 'f32[128,128]{1,0:T(8,128)}', space=vmem, size = 0x10000, scoped, tag = 'scratch operand']
  %s0 = inlined_call_operand.vmem [shape: bf16[128,2048], index: 0, kind: input, shape index: {}]
  %s1 = inlined_call_operand.vmem [shape: bf16[2048,256], index: 1, kind: input, shape index: {}]
  %s2 = inlined_call_operand.vmem [shape: f32[128,256], index: 2, kind: output, shape index: {0}]
  %s3 = inlined_call_operand.vmem [shape: f32[8,256], index: 3, kind: output, shape index: {1}]
  %s4 = inlined_call_operand.vmem [shape: f32[8,256], index: 4, kind: output, shape index: {2}]
  %5 = xla_tuple %s2, %s3, %s4
  %s6 = sld [smem:[#allocation0]]
  $region163: #{discriminator_forward.11} parent=0
    _
  %s8 = ssub.s32 1, %s6
  %s9 = scalar_select 0, %s8, %s6
  $region1: #{discriminator_forward.11} parent=0
    #allocation3 [shape = 'u8[262144]{0}', space=vmem, size = 0x40000, scoped, tag = 'input window, operand 0']
    #allocation4 [shape = 'u8[262144]{0}', space=vmem, size = 0x40000, scoped, tag = 'input window, operand 1']
    #allocation5 [shape = 'u8[131072]{0}', space=vmem, size = 0x20000, scoped, tag = 'output window, operand 0']
    loop: start=0, step=1, limit=10
    $region2: #{discriminator_forward.11} parent=1 // loop_pre_header
      _
    $region3: #{discriminator_forward.11} parent=1 // loop_header
      %s11 = sphi 0, %s15
      %p12 = scmp.ge.s32.totalorder %s11, 10
      %s18 = sphi 0, %s37
      %s19 = sphi 0, %s33
      %s20 = sphi 0, %s29
      %s21 = sphi 0, %s18
      %s22 = sphi 0, %s19
      %s23 = sphi 0, %s20
      %s24 = sphi 0, %s21
      %s25 = sphi 0, %s22
      %s26 = sphi 0, %s23
      %s42 = sphi 0, %s44
      %s45 = sphi 0, %s42
      %s46 = sphi 0, %s45
      %s62 = sphi 0, %s46
      %s70 = sphi 0, %s72
      %s73 = sphi 0, %s70
      %s74 = sphi 0, %s73
      %s90 = sphi 0, %s74
      %s98 = sphi 0, %s100
      %s101 = sphi 0, %s98
      %s102 = sphi 0, %s101
      %s118 = sphi 0, %s102
      %s126 = sphi 0, %s128
      %s129 = sphi 0, %s126
      %s130 = sphi 0, %s129
      %s146 = sphi 0, %s130
      %s154 = sphi 0, %s156
      %s157 = sphi 0, %s154
      %s158 = sphi 0, %s157
      %s174 = sphi 0, %s158
    $region4: #{discriminator_forward.11} parent=1 // loop_header_branch
      %14 = sbr.rel (%p12) target = $region8
    $region5: #{discriminator_forward.11} parent=1 // loop_body
      %s16 = ssub.s32 %s11, 1
      %s17 = ssub.s32 %s11, 2
      %s27 = sadd.s32 1, %s20
      %p28 = scmp.ge.s32.totalorder %s27, 4
      %s29 = scalar_select %p28, 0, %s27
      %s30 = sadd.s32 1, %s19
      %s31 = scalar_select %p28, %s30, %s19
      %p32 = scmp.ge.s32.totalorder %s31, 2
      %s33 = scalar_select %p32, 0, %s31
      %s34 = sadd.s32 1, %s18
      %s35 = scalar_select %p32, %s34, %s18
      %p36 = scmp.ge.s32.totalorder %s35, 1
      %s37 = scalar_select %p36, 0, %s35
      %s38 = ssub.s32 %s18, %s37
      %s39 = ssub.s32 %s20, %s29
      %s40 = sor.u32 %s38, %s39
      %p41 = scmp.eq.s32.totalorder %s40, 0
      %s43 = sadd.s32 %s42, 1
      %s44 = scalar_select %p41, %s42, %s43
      %p47 = pneg %p41
      %p48 = scmp.eq.s32.totalorder %s11, 7
      %p49 = por %p47, %p48
      %p50 = scmp.ne.s32.totalorder %s42, %s45
      %p51 = scmp.eq.s32.totalorder %s11, 0
      %p52 = por %p50, %p51
      %p53 = scmp.ne.s32.totalorder %s42, %s45
      %p54 = scmp.eq.s32.totalorder %s16, 7
      %p55 = por %p53, %p54
      %p56 = scmp.ne.s32.totalorder %s45, %s46
      %p57 = scmp.eq.s32.totalorder %s16, 0
      %p58 = por %p56, %p57
      %p59 = scmp.ne.s32.totalorder %s45, %s46
      %p60 = scmp.eq.s32.totalorder %s17, 7
      %p61 = por %p59, %p60
      %p63 = scmp.ne.s32.totalorder %s46, %s62
      %p64 = scmp.eq.s32.totalorder %s17, 0
      %p65 = por %p63, %p64
      %s66 = ssub.s32 %s20, %s29
      %s67 = ssub.s32 %s19, %s33
      %s68 = sor.u32 %s66, %s67
      %p69 = scmp.eq.s32.totalorder %s68, 0
      %s71 = sadd.s32 %s70, 1
      %s72 = scalar_select %p69, %s70, %s71
      %p75 = pneg %p69
      %p76 = scmp.eq.s32.totalorder %s11, 7
      %p77 = por %p75, %p76
      %p78 = scmp.ne.s32.totalorder %s70, %s73
      %p79 = scmp.eq.s32.totalorder %s11, 0
      %p80 = por %p78, %p79
      %p81 = scmp.ne.s32.totalorder %s70, %s73
      %p82 = scmp.eq.s32.totalorder %s16, 7
      %p83 = por %p81, %p82
      %p84 = scmp.ne.s32.totalorder %s73, %s74
      %p85 = scmp.eq.s32.totalorder %s16, 0
      %p86 = por %p84, %p85
      %p87 = scmp.ne.s32.totalorder %s73, %s74
      %p88 = scmp.eq.s32.totalorder %s17, 7
      %p89 = por %p87, %p88
      %p91 = scmp.ne.s32.totalorder %s74, %s90
      %p92 = scmp.eq.s32.totalorder %s17, 0
      %p93 = por %p91, %p92
      %s94 = ssub.s32 %s18, %s37
      %s95 = ssub.s32 %s19, %s33
      %s96 = sor.u32 %s94, %s95
      %p97 = scmp.eq.s32.totalorder %s96, 0
      %s99 = sadd.s32 %s98, 1
      %s100 = scalar_select %p97, %s98, %s99
      %p103 = pneg %p97
      %p104 = scmp.eq.s32.totalorder %s11, 7
      %p105 = por %p103, %p104
      %p106 = scmp.ne.s32.totalorder %s98, %s101
      %p107 = scmp.eq.s32.totalorder %s11, 0
      %p108 = por %p106, %p107
      %p109 = scmp.ne.s32.totalorder %s98, %s101
      %p110 = scmp.eq.s32.totalorder %s16, 7
      %p111 = por %p109, %p110
      %p112 = scmp.ne.s32.totalorder %s101, %s102
      %p113 = scmp.eq.s32.totalorder %s16, 0
      %p114 = por %p112, %p113
      %p115 = scmp.ne.s32.totalorder %s101, %s102
      %p116 = scmp.eq.s32.totalorder %s17, 7
      %p117 = por %p115, %p116
      %p119 = scmp.ne.s32.totalorder %s102, %s118
      %p120 = scmp.eq.s32.totalorder %s17, 0
      %p121 = por %p119, %p120
      %s122 = ssub.s32 %s18, %s37
      %s123 = ssub.s32 %s19, %s33
      %s124 = sor.u32 %s122, %s123
      %p125 = scmp.eq.s32.totalorder %s124, 0
      %s127 = sadd.s32 %s126, 1
      %s128 = scalar_select %p125, %s126, %s127
      %p131 = pneg %p125
      %p132 = scmp.eq.s32.totalorder %s11, 7
      %p133 = por %p131, %p132
      %p134 = scmp.ne.s32.totalorder %s126, %s129
      %p135 = scmp.eq.s32.totalorder %s11, 0
      %p136 = por %p134, %p135
      %p137 = scmp.ne.s32.totalorder %s126, %s129
      %p138 = scmp.eq.s32.totalorder %s16, 7
      %p139 = por %p137, %p138
      %p140 = scmp.ne.s32.totalorder %s129, %s130
      %p141 = scmp.eq.s32.totalorder %s16, 0
      %p142 = por %p140, %p141
      %p143 = scmp.ne.s32.totalorder %s129, %s130
      %p144 = scmp.eq.s32.totalorder %s17, 7
      %p145 = por %p143, %p144
      %p147 = scmp.ne.s32.totalorder %s130, %s146
      %p148 = scmp.eq.s32.totalorder %s17, 0
      %p149 = por %p147, %p148
      %s150 = ssub.s32 %s18, %s37
      %s151 = ssub.s32 %s19, %s33
      %s152 = sor.u32 %s150, %s151
      %p153 = scmp.eq.s32.totalorder %s152, 0
      %s155 = sadd.s32 %s154, 1
      %s156 = scalar_select %p153, %s154, %s155
      %p159 = pneg %p153
      %p160 = scmp.eq.s32.totalorder %s11, 7
      %p161 = por %p159, %p160
      %p162 = scmp.ne.s32.totalorder %s154, %s157
      %p163 = scmp.eq.s32.totalorder %s11, 0
      %p164 = por %p162, %p163
      %p165 = scmp.ne.s32.totalorder %s154, %s157
      %p166 = scmp.eq.s32.totalorder %s16, 7
      %p167 = por %p165, %p166
      %p168 = scmp.ne.s32.totalorder %s157, %s158
      %p169 = scmp.eq.s32.totalorder %s16, 0
      %p170 = por %p168, %p169
      %p171 = scmp.ne.s32.totalorder %s157, %s158
      %p172 = scmp.eq.s32.totalorder %s17, 7
      %p173 = por %p171, %p172
      %p175 = scmp.ne.s32.totalorder %s158, %s174
      %p176 = scmp.eq.s32.totalorder %s17, 0
      %p177 = por %p175, %p176
      %p178 = scmp.le.s32.totalorder 1, %s11
      %p179 = scmp.lt.s32.totalorder %s11, 9
      %p180 = pnand %p178, %p179
      %p181 = pneg %p180
      // Predicated region
      $region9: #{discriminator_forward.11} parent=5 // pred_check
        _
      $region10: #{discriminator_forward.11} parent=5 // pred_check_branch
        %183 = sbr.rel (%p180) target = $region12
      $region11: #{discriminator_forward.11} parent=5 // pred_region
        %s184 = ssub.s32 %s11, 1
      $region12: #{discriminator_forward.11} parent=5 // pred_fallthru
        _
      %p185 = scmp.lt.s32.totalorder %s11, 8
      // Predicated region
      $region13: #{discriminator_forward.11} parent=5 // pred_check
        %p186 = pneg %p185
      $region14: #{discriminator_forward.11} parent=5 // pred_check_branch
        %188 = sbr.rel (%p186) target = $region16
      $region15: #{discriminator_forward.11} parent=5 // pred_region
        // Predicated region
        $region17: #{discriminator_forward.11} parent=15 // pred_check
          %p189 = pneg %p52
        $region18: #{discriminator_forward.11} parent=15 // pred_check_branch
          %191 = sbr.rel (%p189) target = $region20
        $region19: #{discriminator_forward.11} parent=15 // pred_region
          %s192 = sand.u32 %s42, 1
          %s193 = sand.u32 %s42, 1
          %s194 = smul.addr %s193, 256
          %s195 = scalar_lea.vmem [#allocation3], %s194
          %s196 = smul.u32 16, %s18
          %s197 = smul.u32 4, %s20
          %s198 = smul.addr %s196, 16
          %s199 = sadd.s32 %s197, %s198
          %s200 = smul.addr %s199, 4
          %s201 = scalar_lea.vmem %s0, %s200
          // Predicated region
          $region21: #{discriminator_forward.11} parent=19 // pred_check
            _
          $region22: #{discriminator_forward.11} parent=19 // pred_check_branch
            %203 = sbr.rel (0) target = $region24
          $region23: #{discriminator_forward.11} parent=19 // pred_region
            // Predicated region
            $region25: #{discriminator_forward.11} parent=23 // pred_check
              _
            $region26: #{discriminator_forward.11} parent=23 // pred_check_branch
              %205 = sbr.rel (0) target = $region28
            $region27: #{discriminator_forward.11} parent=23 // pred_region
              loop: start=0, step=1, limit=1
              $region29: #{discriminator_forward.11} parent=27 // loop_pre_header
                _
              $region30: #{discriminator_forward.11} parent=27 // loop_header
                %s207 = sphi 0, %s211
                %p208 = scmp.ge.s32.totalorder %s207, 1
                %s212 = sphi %s201, %s201
                %s213 = sphi %s195, %s195
              $region31: #{discriminator_forward.11} parent=27 // loop_header_branch
                %210 = sbr.rel (%p208) target = $region35
              $region32: #{discriminator_forward.11} parent=27 // loop_body
                %v214 = vld [vmem:[%s212] sm:$0xff]
                %215 = vst [vmem:[%s213] sm:$0xff] %v214
                %v216 = vld [vmem:[%s212 + $0x8] sm:$0xff]
                %217 = vst [vmem:[%s213 + $0x8] sm:$0xff] %v216
                %v218 = vld [vmem:[%s212 + $0x40] sm:$0xff]
                %219 = vst [vmem:[%s213 + $0x10] sm:$0xff] %v218
                %v220 = vld [vmem:[%s212 + $0x48] sm:$0xff]
                %221 = vst [vmem:[%s213 + $0x18] sm:$0xff] %v220
                %v222 = vld [vmem:[%s212 + $0x80] sm:$0xff]
                %223 = vst [vmem:[%s213 + $0x20] sm:$0xff] %v222
                %v224 = vld [vmem:[%s212 + $0x88] sm:$0xff]
                %225 = vst [vmem:[%s213 + $0x28] sm:$0xff] %v224
                %v226 = vld [vmem:[%s212 + $0xc0] sm:$0xff]
                %227 = vst [vmem:[%s213 + $0x30] sm:$0xff] %v226
                %v228 = vld [vmem:[%s212 + $0xc8] sm:$0xff]
                %229 = vst [vmem:[%s213 + $0x38] sm:$0xff] %v228
                %v230 = vld [vmem:[%s212 + $0x100] sm:$0xff]
                %231 = vst [vmem:[%s213 + $0x40] sm:$0xff] %v230
                %v232 = vld [vmem:[%s212 + $0x108] sm:$0xff]
                %233 = vst [vmem:[%s213 + $0x48] sm:$0xff] %v232
                %v234 = vld [vmem:[%s212 + $0x140] sm:$0xff]
                %235 = vst [vmem:[%s213 + $0x50] sm:$0xff] %v234
                %v236 = vld [vmem:[%s212 + $0x148] sm:$0xff]
                %237 = vst [vmem:[%s213 + $0x58] sm:$0xff] %v236
                %v238 = vld [vmem:[%s212 + $0x180] sm:$0xff]
                %239 = vst [vmem:[%s213 + $0x60] sm:$0xff] %v238
                %v240 = vld [vmem:[%s212 + $0x188] sm:$0xff]
                %241 = vst [vmem:[%s213 + $0x68] sm:$0xff] %v240
                %v242 = vld [vmem:[%s212 + $0x1c0] sm:$0xff]
                %243 = vst [vmem:[%s213 + $0x70] sm:$0xff] %v242
                %v244 = vld [vmem:[%s212 + $0x1c8] sm:$0xff]
                %245 = vst [vmem:[%s213 + $0x78] sm:$0xff] %v244
                %v246 = vld [vmem:[%s212 + $0x200] sm:$0xff]
                %247 = vst [vmem:[%s213 + $0x80] sm:$0xff] %v246
                %v248 = vld [vmem:[%s212 + $0x208] sm:$0xff]
                %249 = vst [vmem:[%s213 + $0x88] sm:$0xff] %v248
                %v250 = vld [vmem:[%s212 + $0x240] sm:$0xff]
                %251 = vst [vmem:[%s213 + $0x90] sm:$0xff] %v250
                %v252 = vld [vmem:[%s212 + $0x248] sm:$0xff]
                %253 = vst [vmem:[%s213 + $0x98] sm:$0xff] %v252
                %v254 = vld [vmem:[%s212 + $0x280] sm:$0xff]
                %255 = vst [vmem:[%s213 + $0xa0] sm:$0xff] %v254
                %v256 = vld [vmem:[%s212 + $0x288] sm:$0xff]
                %257 = vst [vmem:[%s213 + $0xa8] sm:$0xff] %v256
                %v258 = vld [vmem:[%s212 + $0x2c0] sm:$0xff]
                %259 = vst [vmem:[%s213 + $0xb0] sm:$0xff] %v258
                %v260 = vld [vmem:[%s212 + $0x2c8] sm:$0xff]
                %261 = vst [vmem:[%s213 + $0xb8] sm:$0xff] %v260
                %v262 = vld [vmem:[%s212 + $0x300] sm:$0xff]
                %263 = vst [vmem:[%s213 + $0xc0] sm:$0xff] %v262
                %v264 = vld [vmem:[%s212 + $0x308] sm:$0xff]
                %265 = vst [vmem:[%s213 + $0xc8] sm:$0xff] %v264
                %v266 = vld [vmem:[%s212 + $0x340] sm:$0xff]
                %267 = vst [vmem:[%s213 + $0xd0] sm:$0xff] %v266
                %v268 = vld [vmem:[%s212 + $0x348] sm:$0xff]
                %269 = vst [vmem:[%s213 + $0xd8] sm:$0xff] %v268
                %v270 = vld [vmem:[%s212 + $0x380] sm:$0xff]
                %271 = vst [vmem:[%s213 + $0xe0] sm:$0xff] %v270
                %v272 = vld [vmem:[%s212 + $0x388] sm:$0xff]
                %273 = vst [vmem:[%s213 + $0xe8] sm:$0xff] %v272
                %v274 = vld [vmem:[%s212 + $0x3c0] sm:$0xff]
                %275 = vst [vmem:[%s213 + $0xf0] sm:$0xff] %v274
                %v276 = vld [vmem:[%s212 + $0x3c8] sm:$0xff]
                %277 = vst [vmem:[%s213 + $0xf8] sm:$0xff] %v276
              $region33: #{discriminator_forward.11} parent=27 // loop_footer
                %s211 = sadd.s32 1, %s207
              $region34: #{discriminator_forward.11} parent=27 // loop_footer_branch
                %206 = sbr.rel target = $region30
              $region35: #{discriminator_forward.11} parent=27 // loop_exit
                _
            $region28: #{discriminator_forward.11} parent=23 // pred_fallthru
              _
            // Predicated region
            $region36: #{discriminator_forward.11} parent=23 // pred_check
              _
            $region37: #{discriminator_forward.11} parent=23 // pred_check_branch
              %279 = sbr.rel target = $region39
            $region38: #{discriminator_forward.11} parent=23 // pred_region
              _
            $region39: #{discriminator_forward.11} parent=23 // pred_fallthru
              _
          $region24: #{discriminator_forward.11} parent=19 // pred_fallthru
            _
          %280 = vnop
        $region20: #{discriminator_forward.11} parent=15 // pred_fallthru
          _
        // Predicated region
        $region40: #{discriminator_forward.11} parent=15 // pred_check
          %p281 = pneg %p80
        $region41: #{discriminator_forward.11} parent=15 // pred_check_branch
          %283 = sbr.rel (%p281) target = $region43
        $region42: #{discriminator_forward.11} parent=15 // pred_region
          %s284 = sand.u32 %s70, 1
          %s285 = sand.u32 %s70, 1
          %s286 = smul.addr %s285, 256
          %s287 = scalar_lea.vmem [#allocation4], %s286
          %s288 = smul.u32 64, %s20
          %s289 = smul.addr %s288, 2
          %s290 = sadd.s32 %s19, %s289
          %s291 = smul.addr %s290, 4
          %s292 = scalar_lea.vmem %s1, %s291
          // Predicated region
          $region44: #{discriminator_forward.11} parent=42 // pred_check
            _
          $region45: #{discriminator_forward.11} parent=42 // pred_check_branch
            %294 = sbr.rel (0) target = $region47
          $region46: #{discriminator_forward.11} parent=42 // pred_region
            // Predicated region
            $region48: #{discriminator_forward.11} parent=46 // pred_check
              _
            $region49: #{discriminator_forward.11} parent=46 // pred_check_branch
              %296 = sbr.rel target = $region51
            $region50: #{discriminator_forward.11} parent=46 // pred_region
              // Predicated region
              $region63: #{discriminator_forward.11} parent=50 // pred_check
                _
              $region64: #{discriminator_forward.11} parent=50 // pred_check_branch
                %438 = sbr.rel (0) target = $region66
              $region65: #{discriminator_forward.11} parent=50 // pred_region
                loop: start=0, step=1, limit=1
                $region67: #{discriminator_forward.11} parent=65 // loop_pre_header
                  _
                $region68: #{discriminator_forward.11} parent=65 // loop_header
                  %s440 = sphi 0, %s444
                  %p441 = scmp.ge.s32.totalorder %s440, 1
                  %s445 = sphi %s292, %s292
                  %s446 = sphi %s287, %s287
                $region69: #{discriminator_forward.11} parent=65 // loop_header_branch
                  %443 = sbr.rel (%p441) target = $region73
                $region70: #{discriminator_forward.11} parent=65 // loop_body
                  _
                $region71: #{discriminator_forward.11} parent=65 // loop_footer
                  %s444 = sadd.s32 1, %s440
                $region72: #{discriminator_forward.11} parent=65 // loop_footer_branch
                  %439 = sbr.rel target = $region68
                $region73: #{discriminator_forward.11} parent=65 // loop_exit
                  _
                %s448 = ssub.s32 16, 1
                loop: start=0, step=1, limit=1
                $region74: #{discriminator_forward.11} parent=65 // loop_pre_header
                  _
                $region75: #{discriminator_forward.11} parent=65 // loop_header
                  %s450 = sphi 0, %s454
                  %p451 = scmp.ge.s32.totalorder %s450, 1
                  %s455 = sphi %s292, %s292
                  %s456 = sphi %s287, %s287
                $region76: #{discriminator_forward.11} parent=65 // loop_header_branch
                  %453 = sbr.rel (%p451) target = $region80
                $region77: #{discriminator_forward.11} parent=65 // loop_body
                  %v457 = vld [vmem:[%s455] sm:%s448]
                  %458 = vst [vmem:[%s456] sm:%s448] %v457
                  %v459 = vld [vmem:[%s455 + $0x8] sm:%s448]
                  %460 = vst [vmem:[%s456 + $0x4] sm:%s448] %v459
                  %v461 = vld [vmem:[%s455 + $0x10] sm:%s448]
                  %462 = vst [vmem:[%s456 + $0x8] sm:%s448] %v461
                  %v463 = vld [vmem:[%s455 + $0x18] sm:%s448]
                  %464 = vst [vmem:[%s456 + $0xc] sm:%s448] %v463
                  %v465 = vld [vmem:[%s455 + $0x20] sm:%s448]
                  %466 = vst [vmem:[%s456 + $0x10] sm:%s448] %v465
                  %v467 = vld [vmem:[%s455 + $0x28] sm:%s448]
                  %468 = vst [vmem:[%s456 + $0x14] sm:%s448] %v467
                  %v469 = vld [vmem:[%s455 + $0x30] sm:%s448]
                  %470 = vst [vmem:[%s456 + $0x18] sm:%s448] %v469
                  %v471 = vld [vmem:[%s455 + $0x38] sm:%s448]
                  %472 = vst [vmem:[%s456 + $0x1c] sm:%s448] %v471
                  %v473 = vld [vmem:[%s455 + $0x40] sm:%s448]
                  %474 = vst [vmem:[%s456 + $0x20] sm:%s448] %v473
                  %v475 = vld [vmem:[%s455 + $0x48] sm:%s448]
                  %476 = vst [vmem:[%s456 + $0x24] sm:%s448] %v475
                  %v477 = vld [vmem:[%s455 + $0x50] sm:%s448]
                  %478 = vst [vmem:[%s456 + $0x28] sm:%s448] %v477
                  %v479 = vld [vmem:[%s455 + $0x58] sm:%s448]
                  %480 = vst [vmem:[%s456 + $0x2c] sm:%s448] %v479
                  %v481 = vld [vmem:[%s455 + $0x60] sm:%s448]
                  %482 = vst [vmem:[%s456 + $0x30] sm:%s448] %v481
                  %v483 = vld [vmem:[%s455 + $0x68] sm:%s448]
                  %484 = vst [vmem:[%s456 + $0x34] sm:%s448] %v483
                  %v485 = vld [vmem:[%s455 + $0x70] sm:%s448]
                  %486 = vst [vmem:[%s456 + $0x38] sm:%s448] %v485
                  %v487 = vld [vmem:[%s455 + $0x78] sm:%s448]
                  %488 = vst [vmem:[%s456 + $0x3c] sm:%s448] %v487
                  %v489 = vld [vmem:[%s455 + $0x80] sm:%s448]
                  %490 = vst [vmem:[%s456 + $0x40] sm:%s448] %v489
                  %v491 = vld [vmem:[%s455 + $0x88] sm:%s448]
                  %492 = vst [vmem:[%s456 + $0x44] sm:%s448] %v491
                  %v493 = vld [vmem:[%s455 + $0x90] sm:%s448]
                  %494 = vst [vmem:[%s456 + $0x48] sm:%s448] %v493
                  %v495 = vld [vmem:[%s455 + $0x98] sm:%s448]
                  %496 = vst [vmem:[%s456 + $0x4c] sm:%s448] %v495
                  %v497 = vld [vmem:[%s455 + $0xa0] sm:%s448]
                  %498 = vst [vmem:[%s456 + $0x50] sm:%s448] %v497
                  %v499 = vld [vmem:[%s455 + $0xa8] sm:%s448]
                  %500 = vst [vmem:[%s456 + $0x54] sm:%s448] %v499
                  %v501 = vld [vmem:[%s455 + $0xb0] sm:%s448]
                  %502 = vst [vmem:[%s456 + $0x58] sm:%s448] %v501
                  %v503 = vld [vmem:[%s455 + $0xb8] sm:%s448]
                  %504 = vst [vmem:[%s456 + $0x5c] sm:%s448] %v503
                  %v505 = vld [vmem:[%s455 + $0xc0] sm:%s448]
                  %506 = vst [vmem:[%s456 + $0x60] sm:%s448] %v505
                  %v507 = vld [vmem:[%s455 + $0xc8] sm:%s448]
                  %508 = vst [vmem:[%s456 + $0x64] sm:%s448] %v507
                  %v509 = vld [vmem:[%s455 + $0xd0] sm:%s448]
                  %510 = vst [vmem:[%s456 + $0x68] sm:%s448] %v509
                  %v511 = vld [vmem:[%s455 + $0xd8] sm:%s448]
                  %512 = vst [vmem:[%s456 + $0x6c] sm:%s448] %v511
                  %v513 = vld [vmem:[%s455 + $0xe0] sm:%s448]
                  %514 = vst [vmem:[%s456 + $0x70] sm:%s448] %v513
                  %v515 = vld [vmem:[%s455 + $0xe8] sm:%s448]
                  %516 = vst [vmem:[%s456 + $0x74] sm:%s448] %v515
                  %v517 = vld [vmem:[%s455 + $0xf0] sm:%s448]
                  %518 = vst [vmem:[%s456 + $0x78] sm:%s448] %v517
                  %v519 = vld [vmem:[%s455 + $0xf8] sm:%s448]
                  %520 = vst [vmem:[%s456 + $0x7c] sm:%s448] %v519
                  %v521 = vld [vmem:[%s455 + $0x100] sm:%s448]
                  %522 = vst [vmem:[%s456 + $0x80] sm:%s448] %v521
                  %v523 = vld [vmem:[%s455 + $0x108] sm:%s448]
                  %524 = vst [vmem:[%s456 + $0x84] sm:%s448] %v523
                  %v525 = vld [vmem:[%s455 + $0x110] sm:%s448]
                  %526 = vst [vmem:[%s456 + $0x88] sm:%s448] %v525
                  %v527 = vld [vmem:[%s455 + $0x118] sm:%s448]
                  %528 = vst [vmem:[%s456 + $0x8c] sm:%s448] %v527
                  %v529 = vld [vmem:[%s455 + $0x120] sm:%s448]
                  %530 = vst [vmem:[%s456 + $0x90] sm:%s448] %v529
                  %v531 = vld [vmem:[%s455 + $0x128] sm:%s448]
                  %532 = vst [vmem:[%s456 + $0x94] sm:%s448] %v531
                  %v533 = vld [vmem:[%s455 + $0x130] sm:%s448]
                  %534 = vst [vmem:[%s456 + $0x98] sm:%s448] %v533
                  %v535 = vld [vmem:[%s455 + $0x138] sm:%s448]
                  %536 = vst [vmem:[%s456 + $0x9c] sm:%s448] %v535
                  %v537 = vld [vmem:[%s455 + $0x140] sm:%s448]
                  %538 = vst [vmem:[%s456 + $0xa0] sm:%s448] %v537
                  %v539 = vld [vmem:[%s455 + $0x148] sm:%s448]
                  %540 = vst [vmem:[%s456 + $0xa4] sm:%s448] %v539
                  %v541 = vld [vmem:[%s455 + $0x150] sm:%s448]
                  %542 = vst [vmem:[%s456 + $0xa8] sm:%s448] %v541
                  %v543 = vld [vmem:[%s455 + $0x158] sm:%s448]
                  %544 = vst [vmem:[%s456 + $0xac] sm:%s448] %v543
                  %v545 = vld [vmem:[%s455 + $0x160] sm:%s448]
                  %546 = vst [vmem:[%s456 + $0xb0] sm:%s448] %v545
                  %v547 = vld [vmem:[%s455 + $0x168] sm:%s448]
                  %548 = vst [vmem:[%s456 + $0xb4] sm:%s448] %v547
                  %v549 = vld [vmem:[%s455 + $0x170] sm:%s448]
                  %550 = vst [vmem:[%s456 + $0xb8] sm:%s448] %v549
                  %v551 = vld [vmem:[%s455 + $0x178] sm:%s448]
                  %552 = vst [vmem:[%s456 + $0xbc] sm:%s448] %v551
                  %v553 = vld [vmem:[%s455 + $0x180] sm:%s448]
                  %554 = vst [vmem:[%s456 + $0xc0] sm:%s448] %v553
                  %v555 = vld [vmem:[%s455 + $0x188] sm:%s448]
                  %556 = vst [vmem:[%s456 + $0xc4] sm:%s448] %v555
                  %v557 = vld [vmem:[%s455 + $0x190] sm:%s448]
                  %558 = vst [vmem:[%s456 + $0xc8] sm:%s448] %v557
                  %v559 = vld [vmem:[%s455 + $0x198] sm:%s448]
                  %560 = vst [vmem:[%s456 + $0xcc] sm:%s448] %v559
                  %v561 = vld [vmem:[%s455 + $0x1a0] sm:%s448]
                  %562 = vst [vmem:[%s456 + $0xd0] sm:%s448] %v561
                  %v563 = vld [vmem:[%s455 + $0x1a8] sm:%s448]
                  %564 = vst [vmem:[%s456 + $0xd4] sm:%s448] %v563
                  %v565 = vld [vmem:[%s455 + $0x1b0] sm:%s448]
                  %566 = vst [vmem:[%s456 + $0xd8] sm:%s448] %v565
                  %v567 = vld [vmem:[%s455 + $0x1b8] sm:%s448]
                  %568 = vst [vmem:[%s456 + $0xdc] sm:%s448] %v567
                  %v569 = vld [vmem:[%s455 + $0x1c0] sm:%s448]
                  %570 = vst [vmem:[%s456 + $0xe0] sm:%s448] %v569
                  %v571 = vld [vmem:[%s455 + $0x1c8] sm:%s448]
                  %572 = vst [vmem:[%s456 + $0xe4] sm:%s448] %v571
                  %v573 = vld [vmem:[%s455 + $0x1d0] sm:%s448]
                  %574 = vst [vmem:[%s456 + $0xe8] sm:%s448] %v573
                  %v575 = vld [vmem:[%s455 + $0x1d8] sm:%s448]
                  %576 = vst [vmem:[%s456 + $0xec] sm:%s448] %v575
                  %v577 = vld [vmem:[%s455 + $0x1e0] sm:%s448]
                  %578 = vst [vmem:[%s456 + $0xf0] sm:%s448] %v577
                  %v579 = vld [vmem:[%s455 + $0x1e8] sm:%s448]
                  %580 = vst [vmem:[%s456 + $0xf4] sm:%s448] %v579
                  %v581 = vld [vmem:[%s455 + $0x1f0] sm:%s448]
                  %582 = vst [vmem:[%s456 + $0xf8] sm:%s448] %v581
                  %v583 = vld [vmem:[%s455 + $0x1f8] sm:%s448]
                  %584 = vst [vmem:[%s456 + $0xfc] sm:%s448] %v583
                $region78: #{discriminator_forward.11} parent=65 // loop_footer
                  %s454 = sadd.s32 1, %s450
                $region79: #{discriminator_forward.11} parent=65 // loop_footer_branch
                  %449 = sbr.rel target = $region75
                $region80: #{discriminator_forward.11} parent=65 // loop_exit
                  _
              $region66: #{discriminator_forward.11} parent=50 // pred_fallthru
                _
            $region51: #{discriminator_forward.11} parent=46 // pred_fallthru
              _
            // Predicated region
            $region52: #{discriminator_forward.11} parent=46 // pred_check
              _
            $region53: #{discriminator_forward.11} parent=46 // pred_check_branch
              %298 = sbr.rel (0) target = $region55
            $region54: #{discriminator_forward.11} parent=46 // pred_region
              %s300 = ssub.s32 16, 1
              loop: start=0, step=1, limit=1
              $region56: #{discriminator_forward.11} parent=54 // loop_pre_header
                _
              $region57: #{discriminator_forward.11} parent=54 // loop_header
                %s302 = sphi 0, %s306
                %p303 = scmp.ge.s32.totalorder %s302, 1
                %s307 = sphi %s292, %s292
                %s308 = sphi %s287, %s287
              $region58: #{discriminator_forward.11} parent=54 // loop_header_branch
                %305 = sbr.rel (%p303) target = $region62
              $region59: #{discriminator_forward.11} parent=54 // loop_body
                %v309 = vld [vmem:[%s307] sm:%s300]
                %310 = vst [vmem:[%s308] sm:%s300] %v309
                %v311 = vld [vmem:[%s307 + $0x8] sm:%s300]
                %312 = vst [vmem:[%s308 + $0x4] sm:%s300] %v311
                %v313 = vld [vmem:[%s307 + $0x10] sm:%s300]
                %314 = vst [vmem:[%s308 + $0x8] sm:%s300] %v313
                %v315 = vld [vmem:[%s307 + $0x18] sm:%s300]
                %316 = vst [vmem:[%s308 + $0xc] sm:%s300] %v315
                %v317 = vld [vmem:[%s307 + $0x20] sm:%s300]
                %318 = vst [vmem:[%s308 + $0x10] sm:%s300] %v317
                %v319 = vld [vmem:[%s307 + $0x28] sm:%s300]
                %320 = vst [vmem:[%s308 + $0x14] sm:%s300] %v319
                %v321 = vld [vmem:[%s307 + $0x30] sm:%s300]
                %322 = vst [vmem:[%s308 + $0x18] sm:%s300] %v321
                %v323 = vld [vmem:[%s307 + $0x38] sm:%s300]
                %324 = vst [vmem:[%s308 + $0x1c] sm:%s300] %v323
                %v325 = vld [vmem:[%s307 + $0x40] sm:%s300]
                %326 = vst [vmem:[%s308 + $0x20] sm:%s300] %v325
                %v327 = vld [vmem:[%s307 + $0x48] sm:%s300]
                %328 = vst [vmem:[%s308 + $0x24] sm:%s300] %v327
                %v329 = vld [vmem:[%s307 + $0x50] sm:%s300]
                %330 = vst [vmem:[%s308 + $0x28] sm:%s300] %v329
                %v331 = vld [vmem:[%s307 + $0x58] sm:%s300]
                %332 = vst [vmem:[%s308 + $0x2c] sm:%s300] %v331
                %v333 = vld [vmem:[%s307 + $0x60] sm:%s300]
                %334 = vst [vmem:[%s308 + $0x30] sm:%s300] %v333
                %v335 = vld [vmem:[%s307 + $0x68] sm:%s300]
                %336 = vst [vmem:[%s308 + $0x34] sm:%s300] %v335
                %v337 = vld [vmem:[%s307 + $0x70] sm:%s300]
                %338 = vst [vmem:[%s308 + $0x38] sm:%s300] %v337
                %v339 = vld [vmem:[%s307 + $0x78] sm:%s300]
                %340 = vst [vmem:[%s308 + $0x3c] sm:%s300] %v339
                %v341 = vld [vmem:[%s307 + $0x80] sm:%s300]
                %342 = vst [vmem:[%s308 + $0x40] sm:%s300] %v341
                %v343 = vld [vmem:[%s307 + $0x88] sm:%s300]
                %344 = vst [vmem:[%s308 + $0x44] sm:%s300] %v343
                %v345 = vld [vmem:[%s307 + $0x90] sm:%s300]
                %346 = vst [vmem:[%s308 + $0x48] sm:%s300] %v345
                %v347 = vld [vmem:[%s307 + $0x98] sm:%s300]
                %348 = vst [vmem:[%s308 + $0x4c] sm:%s300] %v347
                %v349 = vld [vmem:[%s307 + $0xa0] sm:%s300]
                %350 = vst [vmem:[%s308 + $0x50] sm:%s300] %v349
                %v351 = vld [vmem:[%s307 + $0xa8] sm:%s300]
                %352 = vst [vmem:[%s308 + $0x54] sm:%s300] %v351
                %v353 = vld [vmem:[%s307 + $0xb0] sm:%s300]
                %354 = vst [vmem:[%s308 + $0x58] sm:%s300] %v353
                %v355 = vld [vmem:[%s307 + $0xb8] sm:%s300]
                %356 = vst [vmem:[%s308 + $0x5c] sm:%s300] %v355
                %v357 = vld [vmem:[%s307 + $0xc0] sm:%s300]
                %358 = vst [vmem:[%s308 + $0x60] sm:%s300] %v357
                %v359 = vld [vmem:[%s307 + $0xc8] sm:%s300]
                %360 = vst [vmem:[%s308 + $0x64] sm:%s300] %v359
                %v361 = vld [vmem:[%s307 + $0xd0] sm:%s300]
                %362 = vst [vmem:[%s308 + $0x68] sm:%s300] %v361
                %v363 = vld [vmem:[%s307 + $0xd8] sm:%s300]
                %364 = vst [vmem:[%s308 + $0x6c] sm:%s300] %v363
                %v365 = vld [vmem:[%s307 + $0xe0] sm:%s300]
                %366 = vst [vmem:[%s308 + $0x70] sm:%s300] %v365
                %v367 = vld [vmem:[%s307 + $0xe8] sm:%s300]
                %368 = vst [vmem:[%s308 + $0x74] sm:%s300] %v367
                %v369 = vld [vmem:[%s307 + $0xf0] sm:%s300]
                %370 = vst [vmem:[%s308 + $0x78] sm:%s300] %v369
                %v371 = vld [vmem:[%s307 + $0xf8] sm:%s300]
                %372 = vst [vmem:[%s308 + $0x7c] sm:%s300] %v371
                %v373 = vld [vmem:[%s307 + $0x100] sm:%s300]
                %374 = vst [vmem:[%s308 + $0x80] sm:%s300] %v373
                %v375 = vld [vmem:[%s307 + $0x108] sm:%s300]
                %376 = vst [vmem:[%s308 + $0x84] sm:%s300] %v375
                %v377 = vld [vmem:[%s307 + $0x110] sm:%s300]
                %378 = vst [vmem:[%s308 + $0x88] sm:%s300] %v377
                %v379 = vld [vmem:[%s307 + $0x118] sm:%s300]
                %380 = vst [vmem:[%s308 + $0x8c] sm:%s300] %v379
                %v381 = vld [vmem:[%s307 + $0x120] sm:%s300]
                %382 = vst [vmem:[%s308 + $0x90] sm:%s300] %v381
                %v383 = vld [vmem:[%s307 + $0x128] sm:%s300]
                %384 = vst [vmem:[%s308 + $0x94] sm:%s300] %v383
                %v385 = vld [vmem:[%s307 + $0x130] sm:%s300]
                %386 = vst [vmem:[%s308 + $0x98] sm:%s300] %v385
                %v387 = vld [vmem:[%s307 + $0x138] sm:%s300]
                %388 = vst [vmem:[%s308 + $0x9c] sm:%s300] %v387
                %v389 = vld [vmem:[%s307 + $0x140] sm:%s300]
                %390 = vst [vmem:[%s308 + $0xa0] sm:%s300] %v389
                %v391 = vld [vmem:[%s307 + $0x148] sm:%s300]
                %392 = vst [vmem:[%s308 + $0xa4] sm:%s300] %v391
                %v393 = vld [vmem:[%s307 + $0x150] sm:%s300]
                %394 = vst [vmem:[%s308 + $0xa8] sm:%s300] %v393
                %v395 = vld [vmem:[%s307 + $0x158] sm:%s300]
                %396 = vst [vmem:[%s308 + $0xac] sm:%s300] %v395
                %v397 = vld [vmem:[%s307 + $0x160] sm:%s300]
                %398 = vst [vmem:[%s308 + $0xb0] sm:%s300] %v397
                %v399 = vld [vmem:[%s307 + $0x168] sm:%s300]
                %400 = vst [vmem:[%s308 + $0xb4] sm:%s300] %v399
                %v401 = vld [vmem:[%s307 + $0x170] sm:%s300]
                %402 = vst [vmem:[%s308 + $0xb8] sm:%s300] %v401
                %v403 = vld [vmem:[%s307 + $0x178] sm:%s300]
                %404 = vst [vmem:[%s308 + $0xbc] sm:%s300] %v403
                %v405 = vld [vmem:[%s307 + $0x180] sm:%s300]
                %406 = vst [vmem:[%s308 + $0xc0] sm:%s300] %v405
                %v407 = vld [vmem:[%s307 + $0x188] sm:%s300]
                %408 = vst [vmem:[%s308 + $0xc4] sm:%s300] %v407
                %v409 = vld [vmem:[%s307 + $0x190] sm:%s300]
                %410 = vst [vmem:[%s308 + $0xc8] sm:%s300] %v409
                %v411 = vld [vmem:[%s307 + $0x198] sm:%s300]
                %412 = vst [vmem:[%s308 + $0xcc] sm:%s300] %v411
                %v413 = vld [vmem:[%s307 + $0x1a0] sm:%s300]
                %414 = vst [vmem:[%s308 + $0xd0] sm:%s300] %v413
                %v415 = vld [vmem:[%s307 + $0x1a8] sm:%s300]
                %416 = vst [vmem:[%s308 + $0xd4] sm:%s300] %v415
                %v417 = vld [vmem:[%s307 + $0x1b0] sm:%s300]
                %418 = vst [vmem:[%s308 + $0xd8] sm:%s300] %v417
                %v419 = vld [vmem:[%s307 + $0x1b8] sm:%s300]
                %420 = vst [vmem:[%s308 + $0xdc] sm:%s300] %v419
                %v421 = vld [vmem:[%s307 + $0x1c0] sm:%s300]
                %422 = vst [vmem:[%s308 + $0xe0] sm:%s300] %v421
                %v423 = vld [vmem:[%s307 + $0x1c8] sm:%s300]
                %424 = vst [vmem:[%s308 + $0xe4] sm:%s300] %v423
                %v425 = vld [vmem:[%s307 + $0x1d0] sm:%s300]
                %426 = vst [vmem:[%s308 + $0xe8] sm:%s300] %v425
                %v427 = vld [vmem:[%s307 + $0x1d8] sm:%s300]
                %428 = vst [vmem:[%s308 + $0xec] sm:%s300] %v427
                %v429 = vld [vmem:[%s307 + $0x1e0] sm:%s300]
                %430 = vst [vmem:[%s308 + $0xf0] sm:%s300] %v429
                %v431 = vld [vmem:[%s307 + $0x1e8] sm:%s300]
                %432 = vst [vmem:[%s308 + $0xf4] sm:%s300] %v431
                %v433 = vld [vmem:[%s307 + $0x1f0] sm:%s300]
                %434 = vst [vmem:[%s308 + $0xf8] sm:%s300] %v433
                %v435 = vld [vmem:[%s307 + $0x1f8] sm:%s300]
                %436 = vst [vmem:[%s308 + $0xfc] sm:%s300] %v435
              $region60: #{discriminator_forward.11} parent=54 // loop_footer
                %s306 = sadd.s32 1, %s302
              $region61: #{discriminator_forward.11} parent=54 // loop_footer_branch
                %301 = sbr.rel target = $region57
              $region62: #{discriminator_forward.11} parent=54 // loop_exit
                _
            $region55: #{discriminator_forward.11} parent=46 // pred_fallthru
              _
          $region47: #{discriminator_forward.11} parent=42 // pred_fallthru
            _
          %585 = vnop
        $region43: #{discriminator_forward.11} parent=15 // pred_fallthru
          _
      $region16: #{discriminator_forward.11} parent=5 // pred_fallthru
        _
      %p586 = scmp.le.s32.totalorder 1, %s11
      %p587 = scmp.lt.s32.totalorder %s11, 9
      %p588 = pnand %p586, %p587
      %p589 = pneg %p588
      // Predicated region
      $region81: #{discriminator_forward.11} parent=5 // pred_check
        _
      $region82: #{discriminator_forward.11} parent=5 // pred_check_branch
        %591 = sbr.rel (%p588) target = $region84
      $region83: #{discriminator_forward.11} parent=5 // pred_region
        %s592 = ssub.s32 %s11, 1
        %s593 = sand.u32 %s45, 1
        %s594 = sand.u32 %s45, 1
        %s595 = smul.addr %s594, 256
        %s596 = scalar_lea.vmem [#allocation3], %s595
        // Predicated region
        $region85: #{discriminator_forward.11} parent=83 // pred_check
          %p597 = pneg %p58
        $region86: #{discriminator_forward.11} parent=83 // pred_check_branch
          %599 = sbr.rel (%p597) target = $region88
        $region87: #{discriminator_forward.11} parent=83 // pred_region
          _
        $region88: #{discriminator_forward.11} parent=83 // pred_fallthru
          _
        %s600 = sand.u32 %s73, 1
        %s601 = sand.u32 %s73, 1
        %s602 = smul.addr %s601, 256
        %s603 = scalar_lea.vmem [#allocation4], %s602
        // Predicated region
        $region89: #{discriminator_forward.11} parent=83 // pred_check
          %p604 = pneg %p86
        $region90: #{discriminator_forward.11} parent=83 // pred_check_branch
          %606 = sbr.rel (%p604) target = $region92
        $region91: #{discriminator_forward.11} parent=83 // pred_region
          _
        $region92: #{discriminator_forward.11} parent=83 // pred_fallthru
          _
        %s607 = sand.u32 %s45, 1
        %s608 = sand.u32 %s45, 1
        %s609 = smul.addr %s608, 256
        %s610 = scalar_lea.vmem [#allocation3], %s609
        %p611 = pneg %p58
        %p612 = pneg %p55
        %s613 = sand.u32 %s73, 1
        %s614 = sand.u32 %s73, 1
        %s615 = smul.addr %s614, 256
        %s616 = scalar_lea.vmem [#allocation4], %s615
        %p617 = pneg %p86
        %p618 = pneg %p83
        %p619 = pneg %p114
        %p620 = pneg %p111
        %s621 = sand.u32 %s101, 1
        %s622 = sand.u32 %s101, 1
        %s623 = smul.addr %s622, 128
        %s624 = scalar_lea.vmem [#allocation5], %s623
        %p625 = pneg %p142
        %p626 = pneg %p139
        %p627 = scmp.lt.s32.totalorder %s21, 0
        %s628 = scalar_select %p627, %s21, 0
        %p629 = scmp.lt.s32.totalorder %s22, 1
        %s630 = scalar_select %p629, %s22, 1
        %s631 = smul.addr %s628, 2
        %s632 = sadd.s32 %s630, %s631
        %s633 = smul.addr %s632, 8
        %s634 = scalar_lea.vmem %s3, %s633
        %p635 = pneg %p170
        %p636 = pneg %p167
        %p637 = scmp.lt.s32.totalorder %s21, 0
        %s638 = scalar_select %p637, %s21, 0
        %p639 = scmp.lt.s32.totalorder %s22, 1
        %s640 = scalar_select %p639, %s22, 1
        %s641 = smul.addr %s638, 2
        %s642 = sadd.s32 %s640, %s641
        %s643 = smul.addr %s642, 8
        %s644 = scalar_lea.vmem %s4, %s643
        %s645 = smul.u32 16, %s21
        %s646 = smul.u32 4, %s23
        %s647 = smul.u32 64, %s23
        %s648 = smul.u32 16, %s21
        %p649 = scmp.lt.s32.totalorder %s21, 0
        %s650 = scalar_select %p649, %s21, 0
        %p651 = scmp.lt.s32.totalorder %s22, 1
        %s652 = scalar_select %p651, %s22, 1
        %s653 = smul.addr %s650, 2
        %s654 = sadd.s32 %s652, %s653
        %s655 = smul.addr %s654, 8
        %s656 = scalar_lea.vmem %s3, %s655
        %p657 = scmp.lt.s32.totalorder %s21, 0
        %s658 = scalar_select %p657, %s21, 0
        %p659 = scmp.lt.s32.totalorder %s22, 1
        %s660 = scalar_select %p659, %s22, 1
        %s661 = smul.addr %s658, 2
        %s662 = sadd.s32 %s660, %s661
        %s663 = smul.addr %s662, 8
        %s664 = scalar_lea.vmem %s4, %s663
        %p665 = scmp.eq.s32.totalorder %s23, 0
        // Predicated region
        $region93: #{discriminator_forward.11} parent=83 // pred_check
          %p666 = pneg %p665
        $region94: #{discriminator_forward.11} parent=83 // pred_check_branch
          %668 = sbr.rel (%p666) target = $region96
        $region95: #{discriminator_forward.11} parent=83 // pred_region
          %669 = vst [vmem:[#allocation2] sm:$0xff] 0.0
          %670 = vst [vmem:[#allocation2 + $0x8] sm:$0xff] 0.0
          %671 = vst [vmem:[#allocation2 + $0x10] sm:$0xff] 0.0
          %672 = vst [vmem:[#allocation2 + $0x18] sm:$0xff] 0.0
          %673 = vst [vmem:[#allocation2 + $0x20] sm:$0xff] 0.0
          %674 = vst [vmem:[#allocation2 + $0x28] sm:$0xff] 0.0
          %675 = vst [vmem:[#allocation2 + $0x30] sm:$0xff] 0.0
          %676 = vst [vmem:[#allocation2 + $0x38] sm:$0xff] 0.0
          %677 = vst [vmem:[#allocation2 + $0x40] sm:$0xff] 0.0
          %678 = vst [vmem:[#allocation2 + $0x48] sm:$0xff] 0.0
          %679 = vst [vmem:[#allocation2 + $0x50] sm:$0xff] 0.0
          %680 = vst [vmem:[#allocation2 + $0x58] sm:$0xff] 0.0
          %681 = vst [vmem:[#allocation2 + $0x60] sm:$0xff] 0.0
          %682 = vst [vmem:[#allocation2 + $0x68] sm:$0xff] 0.0
          %683 = vst [vmem:[#allocation2 + $0x70] sm:$0xff] 0.0
          %684 = vst [vmem:[#allocation2 + $0x78] sm:$0xff] 0.0
        $region96: #{discriminator_forward.11} parent=83 // pred_fallthru
          _
        %v685 = vld [vmem:[#allocation2] sm:$0xff]
        %v686 = vld [vmem:[#allocation2 + $0x8] sm:$0xff]
        %v687 = vld [vmem:[#allocation2 + $0x10] sm:$0xff]
        %v688 = vld [vmem:[#allocation2 + $0x18] sm:$0xff]
        %v689 = vld [vmem:[#allocation2 + $0x20] sm:$0xff]
        %v690 = vld [vmem:[#allocation2 + $0x28] sm:$0xff]
        %v691 = vld [vmem:[#allocation2 + $0x30] sm:$0xff]
        %v692 = vld [vmem:[#allocation2 + $0x38] sm:$0xff]
        %v693 = vld [vmem:[#allocation2 + $0x40] sm:$0xff]
        %v694 = vld [vmem:[#allocation2 + $0x48] sm:$0xff]
        %v695 = vld [vmem:[#allocation2 + $0x50] sm:$0xff]
        %v696 = vld [vmem:[#allocation2 + $0x58] sm:$0xff]
        %v697 = vld [vmem:[#allocation2 + $0x60] sm:$0xff]
        %v698 = vld [vmem:[#allocation2 + $0x68] sm:$0xff]
        %v699 = vld [vmem:[#allocation2 + $0x70] sm:$0xff]
        %v700 = vld [vmem:[#allocation2 + $0x78] sm:$0xff]
        %v701 = vld [vmem:[%s596] sm:$0xff]
        %v702 = vld [vmem:[%s596 + $0x8] sm:$0xff]
        %v703 = vld [vmem:[%s596 + $0x10] sm:$0xff]
        %v704 = vld [vmem:[%s596 + $0x18] sm:$0xff]
        %v705 = vld [vmem:[%s596 + $0x20] sm:$0xff]
        %v706 = vld [vmem:[%s596 + $0x28] sm:$0xff]
        %v707 = vld [vmem:[%s596 + $0x30] sm:$0xff]
        %v708 = vld [vmem:[%s596 + $0x38] sm:$0xff]
        %v709 = vld [vmem:[%s596 + $0x40] sm:$0xff]
        %v710 = vld [vmem:[%s596 + $0x48] sm:$0xff]
        %v711 = vld [vmem:[%s596 + $0x50] sm:$0xff]
        %v712 = vld [vmem:[%s596 + $0x58] sm:$0xff]
        %v713 = vld [vmem:[%s596 + $0x60] sm:$0xff]
        %v714 = vld [vmem:[%s596 + $0x68] sm:$0xff]
        %v715 = vld [vmem:[%s596 + $0x70] sm:$0xff]
        %v716 = vld [vmem:[%s596 + $0x78] sm:$0xff]
        %v717 = vld [vmem:[%s596 + $0x80] sm:$0xff]
        %v718 = vld [vmem:[%s596 + $0x88] sm:$0xff]
        %v719 = vld [vmem:[%s596 + $0x90] sm:$0xff]
        %v720 = vld [vmem:[%s596 + $0x98] sm:$0xff]
        %v721 = vld [vmem:[%s596 + $0xa0] sm:$0xff]
        %v722 = vld [vmem:[%s596 + $0xa8] sm:$0xff]
        %v723 = vld [vmem:[%s596 + $0xb0] sm:$0xff]
        %v724 = vld [vmem:[%s596 + $0xb8] sm:$0xff]
        %v725 = vld [vmem:[%s596 + $0xc0] sm:$0xff]
        %v726 = vld [vmem:[%s596 + $0xc8] sm:$0xff]
        %v727 = vld [vmem:[%s596 + $0xd0] sm:$0xff]
        %v728 = vld [vmem:[%s596 + $0xd8] sm:$0xff]
        %v729 = vld [vmem:[%s596 + $0xe0] sm:$0xff]
        %v730 = vld [vmem:[%s596 + $0xe8] sm:$0xff]
        %v731 = vld [vmem:[%s596 + $0xf0] sm:$0xff]
        %v732 = vld [vmem:[%s596 + $0xf8] sm:$0xff]
        %v733 = vld [vmem:[%s603] sm:$0xf]
        %v734 = vld [vmem:[%s603 + $0x4] sm:$0xf]
        %v735 = vld [vmem:[%s603 + $0x8] sm:$0xf]
        %v736 = vld [vmem:[%s603 + $0xc] sm:$0xf]
        %v737 = vld [vmem:[%s603 + $0x10] sm:$0xf]
        %v738 = vld [vmem:[%s603 + $0x14] sm:$0xf]
        %v739 = vld [vmem:[%s603 + $0x18] sm:$0xf]
        %v740 = vld [vmem:[%s603 + $0x1c] sm:$0xf]
        %v741 = vld [vmem:[%s603 + $0x20] sm:$0xf]
        %v742 = vld [vmem:[%s603 + $0x24] sm:$0xf]
        %v743 = vld [vmem:[%s603 + $0x28] sm:$0xf]
        %v744 = vld [vmem:[%s603 + $0x2c] sm:$0xf]
        %v745 = vld [vmem:[%s603 + $0x30] sm:$0xf]
        %v746 = vld [vmem:[%s603 + $0x34] sm:$0xf]
        %v747 = vld [vmem:[%s603 + $0x38] sm:$0xf]
        %v748 = vld [vmem:[%s603 + $0x3c] sm:$0xf]
        %v749 = vld [vmem:[%s603 + $0x40] sm:$0xf]
        %v750 = vld [vmem:[%s603 + $0x44] sm:$0xf]
        %v751 = vld [vmem:[%s603 + $0x48] sm:$0xf]
        %v752 = vld [vmem:[%s603 + $0x4c] sm:$0xf]
        %v753 = vld [vmem:[%s603 + $0x50] sm:$0xf]
        %v754 = vld [vmem:[%s603 + $0x54] sm:$0xf]
        %v755 = vld [vmem:[%s603 + $0x58] sm:$0xf]
        %v756 = vld [vmem:[%s603 + $0x5c] sm:$0xf]
        %v757 = vld [vmem:[%s603 + $0x60] sm:$0xf]
        %v758 = vld [vmem:[%s603 + $0x64] sm:$0xf]
        %v759 = vld [vmem:[%s603 + $0x68] sm:$0xf]
        %v760 = vld [vmem:[%s603 + $0x6c] sm:$0xf]
        %v761 = vld [vmem:[%s603 + $0x70] sm:$0xf]
        %v762 = vld [vmem:[%s603 + $0x74] sm:$0xf]
        %v763 = vld [vmem:[%s603 + $0x78] sm:$0xf]
        %v764 = vld [vmem:[%s603 + $0x7c] sm:$0xf]
        %v765 = vld [vmem:[%s603 + $0x80] sm:$0xf]
        %v766 = vld [vmem:[%s603 + $0x84] sm:$0xf]
        %v767 = vld [vmem:[%s603 + $0x88] sm:$0xf]
        %v768 = vld [vmem:[%s603 + $0x8c] sm:$0xf]
        %v769 = vld [vmem:[%s603 + $0x90] sm:$0xf]
        %v770 = vld [vmem:[%s603 + $0x94] sm:$0xf]
        %v771 = vld [vmem:[%s603 + $0x98] sm:$0xf]
        %v772 = vld [vmem:[%s603 + $0x9c] sm:$0xf]
        %v773 = vld [vmem:[%s603 + $0xa0] sm:$0xf]
        %v774 = vld [vmem:[%s603 + $0xa4] sm:$0xf]
        %v775 = vld [vmem:[%s603 + $0xa8] sm:$0xf]
        %v776 = vld [vmem:[%s603 + $0xac] sm:$0xf]
        %v777 = vld [vmem:[%s603 + $0xb0] sm:$0xf]
        %v778 = vld [vmem:[%s603 + $0xb4] sm:$0xf]
        %v779 = vld [vmem:[%s603 + $0xb8] sm:$0xf]
        %v780 = vld [vmem:[%s603 + $0xbc] sm:$0xf]
        %v781 = vld [vmem:[%s603 + $0xc0] sm:$0xf]
        %v782 = vld [vmem:[%s603 + $0xc4] sm:$0xf]
        %v783 = vld [vmem:[%s603 + $0xc8] sm:$0xf]
        %v784 = vld [vmem:[%s603 + $0xcc] sm:$0xf]
        %v785 = vld [vmem:[%s603 + $0xd0] sm:$0xf]
        %v786 = vld [vmem:[%s603 + $0xd4] sm:$0xf]
        %v787 = vld [vmem:[%s603 + $0xd8] sm:$0xf]
        %v788 = vld [vmem:[%s603 + $0xdc] sm:$0xf]
        %v789 = vld [vmem:[%s603 + $0xe0] sm:$0xf]
        %v790 = vld [vmem:[%s603 + $0xe4] sm:$0xf]
        %v791 = vld [vmem:[%s603 + $0xe8] sm:$0xf]
        %v792 = vld [vmem:[%s603 + $0xec] sm:$0xf]
        %v793 = vld [vmem:[%s603 + $0xf0] sm:$0xf]
        %v794 = vld [vmem:[%s603 + $0xf4] sm:$0xf]
        %v795 = vld [vmem:[%s603 + $0xf8] sm:$0xf]
        %v796 = vld [vmem:[%s603 + $0xfc] sm:$0xf]
        %v829 = vunpack.c.l.b16 %v701
        %v830 = vunpack.c.h.b16 %v701
        %v831 = vunpack.c.l.b16 %v702
        %v832 = vunpack.c.h.b16 %v702
        %v833 = vunpack.c.l.b16 %v703
        %v834 = vunpack.c.h.b16 %v703
        %v835 = vunpack.c.l.b16 %v704
        %v836 = vunpack.c.h.b16 %v704
        %v837 = vunpack.c.l.b16 %v705
        %v838 = vunpack.c.h.b16 %v705
        %v839 = vunpack.c.l.b16 %v706
        %v840 = vunpack.c.h.b16 %v706
        %v841 = vunpack.c.l.b16 %v707
        %v842 = vunpack.c.h.b16 %v707
        %v843 = vunpack.c.l.b16 %v708
        %v844 = vunpack.c.h.b16 %v708
        %v845 = vunpack.c.l.b16 %v709
        %v846 = vunpack.c.h.b16 %v709
        %v847 = vunpack.c.l.b16 %v710
        %v848 = vunpack.c.h.b16 %v710
        %v849 = vunpack.c.l.b16 %v711
        %v850 = vunpack.c.h.b16 %v711
        %v851 = vunpack.c.l.b16 %v712
        %v852 = vunpack.c.h.b16 %v712
        %v853 = vunpack.c.l.b16 %v713
        %v854 = vunpack.c.h.b16 %v713
        %v855 = vunpack.c.l.b16 %v714
        %v856 = vunpack.c.h.b16 %v714
        %v857 = vunpack.c.l.b16 %v715
        %v858 = vunpack.c.h.b16 %v715
        %v859 = vunpack.c.l.b16 %v716
        %v860 = vunpack.c.h.b16 %v716
        %v861 = vunpack.c.l.b16 %v717
        %v862 = vunpack.c.h.b16 %v717
        %v863 = vunpack.c.l.b16 %v718
        %v864 = vunpack.c.h.b16 %v718
        %v865 = vunpack.c.l.b16 %v719
        %v866 = vunpack.c.h.b16 %v719
        %v867 = vunpack.c.l.b16 %v720
        %v868 = vunpack.c.h.b16 %v720
        %v869 = vunpack.c.l.b16 %v721
        %v870 = vunpack.c.h.b16 %v721
        %v871 = vunpack.c.l.b16 %v722
        %v872 = vunpack.c.h.b16 %v722
        %v873 = vunpack.c.l.b16 %v723
        %v874 = vunpack.c.h.b16 %v723
        %v875 = vunpack.c.l.b16 %v724
        %v876 = vunpack.c.h.b16 %v724
        %v877 = vunpack.c.l.b16 %v725
        %v878 = vunpack.c.h.b16 %v725
        %v879 = vunpack.c.l.b16 %v726
        %v880 = vunpack.c.h.b16 %v726
        %v881 = vunpack.c.l.b16 %v727
        %v882 = vunpack.c.h.b16 %v727
        %v883 = vunpack.c.l.b16 %v728
        %v884 = vunpack.c.h.b16 %v728
        %v885 = vunpack.c.l.b16 %v729
        %v886 = vunpack.c.h.b16 %v729
        %v887 = vunpack.c.l.b16 %v730
        %v888 = vunpack.c.h.b16 %v730
        %v889 = vunpack.c.l.b16 %v731
        %v890 = vunpack.c.h.b16 %v731
        %v891 = vunpack.c.l.b16 %v732
        %v892 = vunpack.c.h.b16 %v732
        %v893 = vpack.c.b16 %v833, %v829
        %v894 = vpack.c.b16 %v834, %v830
        %v895 = vpack.c.b16 %v835, %v831
        %v896 = vpack.c.b16 %v836, %v832
        %v897 = vpack.c.b16 %v841, %v837
        %v898 = vpack.c.b16 %v842, %v838
        %v899 = vpack.c.b16 %v843, %v839
        %v900 = vpack.c.b16 %v844, %v840
        %v901 = vpack.c.b16 %v849, %v845
        %v902 = vpack.c.b16 %v850, %v846
        %v903 = vpack.c.b16 %v851, %v847
        %v904 = vpack.c.b16 %v852, %v848
        %v905 = vpack.c.b16 %v857, %v853
        %v906 = vpack.c.b16 %v858, %v854
        %v907 = vpack.c.b16 %v859, %v855
        %v908 = vpack.c.b16 %v860, %v856
        %v909 = vpack.c.b16 %v865, %v861
        %v910 = vpack.c.b16 %v866, %v862
        %v911 = vpack.c.b16 %v867, %v863
        %v912 = vpack.c.b16 %v868, %v864
        %v913 = vpack.c.b16 %v873, %v869
        %v914 = vpack.c.b16 %v874, %v870
        %v915 = vpack.c.b16 %v875, %v871
        %v916 = vpack.c.b16 %v876, %v872
        %v917 = vpack.c.b16 %v881, %v877
        %v918 = vpack.c.b16 %v882, %v878
        %v919 = vpack.c.b16 %v883, %v879
        %v920 = vpack.c.b16 %v884, %v880
        %v921 = vpack.c.b16 %v889, %v885
        %v922 = vpack.c.b16 %v890, %v886
        %v923 = vpack.c.b16 %v891, %v887
        %v924 = vpack.c.b16 %v892, %v888
        %v1021 = vunpack.c.l.b16 %v733
        %v1022 = vunpack.c.l.b16 %v734
        %v1023 = vunpack.c.l.b16 %v735
        %v1024 = vunpack.c.l.b16 %v736
        %v1025 = vunpack.c.l.b16 %v737
        %v1026 = vunpack.c.l.b16 %v738
        %v1027 = vunpack.c.l.b16 %v739
        %v1028 = vunpack.c.l.b16 %v740
        %v1029 = vunpack.c.l.b16 %v741
        %v1030 = vunpack.c.l.b16 %v742
        %v1031 = vunpack.c.l.b16 %v743
        %v1032 = vunpack.c.l.b16 %v744
        %v1033 = vunpack.c.l.b16 %v745
        %v1034 = vunpack.c.l.b16 %v746
        %v1035 = vunpack.c.l.b16 %v747
        %v1036 = vunpack.c.l.b16 %v748
        %v1037 = vunpack.c.l.b16 %v749
        %v1038 = vunpack.c.l.b16 %v750
        %v1039 = vunpack.c.l.b16 %v751
        %v1040 = vunpack.c.l.b16 %v752
        %v1041 = vunpack.c.l.b16 %v753
        %v1042 = vunpack.c.l.b16 %v754
        %v1043 = vunpack.c.l.b16 %v755
        %v1044 = vunpack.c.l.b16 %v756
        %v1045 = vunpack.c.l.b16 %v757
        %v1046 = vunpack.c.l.b16 %v758
        %v1047 = vunpack.c.l.b16 %v759
        %v1048 = vunpack.c.l.b16 %v760
        %v1049 = vunpack.c.l.b16 %v761
        %v1050 = vunpack.c.l.b16 %v762
        %v1051 = vunpack.c.l.b16 %v763
        %v1052 = vunpack.c.l.b16 %v764
        %v1053 = vunpack.c.l.b16 %v765
        %v1054 = vunpack.c.l.b16 %v766
        %v1055 = vunpack.c.l.b16 %v767
        %v1056 = vunpack.c.l.b16 %v768
        %v1057 = vunpack.c.l.b16 %v769
        %v1058 = vunpack.c.l.b16 %v770
        %v1059 = vunpack.c.l.b16 %v771
        %v1060 = vunpack.c.l.b16 %v772
        %v1061 = vunpack.c.l.b16 %v773
        %v1062 = vunpack.c.l.b16 %v774
        %v1063 = vunpack.c.l.b16 %v775
        %v1064 = vunpack.c.l.b16 %v776
        %v1065 = vunpack.c.l.b16 %v777
        %v1066 = vunpack.c.l.b16 %v778
        %v1067 = vunpack.c.l.b16 %v779
        %v1068 = vunpack.c.l.b16 %v780
        %v1069 = vunpack.c.l.b16 %v781
        %v1070 = vunpack.c.l.b16 %v782
        %v1071 = vunpack.c.l.b16 %v783
        %v1072 = vunpack.c.l.b16 %v784
        %v1073 = vunpack.c.l.b16 %v785
        %v1074 = vunpack.c.l.b16 %v786
        %v1075 = vunpack.c.l.b16 %v787
        %v1076 = vunpack.c.l.b16 %v788
        %v1077 = vunpack.c.l.b16 %v789
        %v1078 = vunpack.c.l.b16 %v790
        %v1079 = vunpack.c.l.b16 %v791
        %v1080 = vunpack.c.l.b16 %v792
        %v1081 = vunpack.c.l.b16 %v793
        %v1082 = vunpack.c.l.b16 %v794
        %v1083 = vunpack.c.l.b16 %v795
        %v1084 = vunpack.c.l.b16 %v796
        %v1085 = vpack.c.b16 %v1022, %v1021
        %v1086 = vpack.c.b16 %v1024, %v1023
        %v1087 = vpack.c.b16 %v1026, %v1025
        %v1088 = vpack.c.b16 %v1028, %v1027
        %v1089 = vpack.c.b16 %v1030, %v1029
        %v1090 = vpack.c.b16 %v1032, %v1031
        %v1091 = vpack.c.b16 %v1034, %v1033
        %v1092 = vpack.c.b16 %v1036, %v1035
        %v1093 = vpack.c.b16 %v1038, %v1037
        %v1094 = vpack.c.b16 %v1040, %v1039
        %v1095 = vpack.c.b16 %v1042, %v1041
        %v1096 = vpack.c.b16 %v1044, %v1043
        %v1097 = vpack.c.b16 %v1046, %v1045
        %v1098 = vpack.c.b16 %v1048, %v1047
        %v1099 = vpack.c.b16 %v1050, %v1049
        %v1100 = vpack.c.b16 %v1052, %v1051
        %v1101 = vpack.c.b16 %v1054, %v1053
        %v1102 = vpack.c.b16 %v1056, %v1055
        %v1103 = vpack.c.b16 %v1058, %v1057
        %v1104 = vpack.c.b16 %v1060, %v1059
        %v1105 = vpack.c.b16 %v1062, %v1061
        %v1106 = vpack.c.b16 %v1064, %v1063
        %v1107 = vpack.c.b16 %v1066, %v1065
        %v1108 = vpack.c.b16 %v1068, %v1067
        %v1109 = vpack.c.b16 %v1070, %v1069
        %v1110 = vpack.c.b16 %v1072, %v1071
        %v1111 = vpack.c.b16 %v1074, %v1073
        %v1112 = vpack.c.b16 %v1076, %v1075
        %v1113 = vpack.c.b16 %v1078, %v1077
        %v1114 = vpack.c.b16 %v1080, %v1079
        %v1115 = vpack.c.b16 %v1082, %v1081
        %v1116 = vpack.c.b16 %v1084, %v1083
        %1149 = vmatpush.bf16.msra.mxu0 %v1092
        %1150 = vmatpush.bf16.msra.mxu0 %v1091
        %1151 = vmatpush.bf16.msra.mxu0 %v1090
        %1152 = vmatpush.bf16.msra.mxu0 %v1089
        %1153 = vmatpush.bf16.msra.mxu0 %v1088
        %1154 = vmatpush.bf16.msra.mxu0 %v1087
        %1155 = vmatpush.bf16.msra.mxu0 %v1086
        %1156 = vmatpush.bf16.msra.mxu0 %v1085
        %1157 = vmatmul.bf16.gmra.mxu0 %v893
        %v1158 = vpop.f32.mrf.mxu0
        %v1159 = vadd.f32 0.0, %v1158
        %v1160 = vpop.f32.mrf.mxu0
        %v1161 = vadd.f32 0.0, %v1160
        %1162 = vmatmul.bf16.gmra.mxu0 %v897
        %v1163 = vpop.f32.mrf.mxu0
        %v1164 = vadd.f32 0.0, %v1163
        %v1165 = vpop.f32.mrf.mxu0
        %v1166 = vadd.f32 0.0, %v1165
        %1167 = vmatmul.bf16.gmra.mxu0 %v901
        %v1168 = vpop.f32.mrf.mxu0
        %v1169 = vadd.f32 0.0, %v1168
        %v1170 = vpop.f32.mrf.mxu0
        %v1171 = vadd.f32 0.0, %v1170
        %1172 = vmatmul.bf16.gmra.mxu0 %v905
        %v1173 = vpop.f32.mrf.mxu0
        %v1174 = vadd.f32 0.0, %v1173
        %v1175 = vpop.f32.mrf.mxu0
        %v1176 = vadd.f32 0.0, %v1175
        %1177 = vmatmul.bf16.gmra.mxu0 %v909
        %v1178 = vpop.f32.mrf.mxu0
        %v1179 = vadd.f32 0.0, %v1178
        %v1180 = vpop.f32.mrf.mxu0
        %v1181 = vadd.f32 0.0, %v1180
        %1182 = vmatmul.bf16.gmra.mxu0 %v913
        %v1183 = vpop.f32.mrf.mxu0
        %v1184 = vadd.f32 0.0, %v1183
        %v1185 = vpop.f32.mrf.mxu0
        %v1186 = vadd.f32 0.0, %v1185
        %1187 = vmatmul.bf16.gmra.mxu0 %v917
        %v1188 = vpop.f32.mrf.mxu0
        %v1189 = vadd.f32 0.0, %v1188
        %v1190 = vpop.f32.mrf.mxu0
        %v1191 = vadd.f32 0.0, %v1190
        %1192 = vmatmul.bf16.gmra.mxu0 %v921
        %v1193 = vpop.f32.mrf.mxu0
        %v1194 = vadd.f32 0.0, %v1193
        %v1195 = vpop.f32.mrf.mxu0
        %v1196 = vadd.f32 0.0, %v1195
        %1197 = vdwg.mxu0
        %1198 = vmatpush.bf16.msra.mxu0 %v1100
        %1199 = vmatpush.bf16.msra.mxu0 %v1099
        %1200 = vmatpush.bf16.msra.mxu0 %v1098
        %1201 = vmatpush.bf16.msra.mxu0 %v1097
        %1202 = vmatpush.bf16.msra.mxu0 %v1096
        %1203 = vmatpush.bf16.msra.mxu0 %v1095
        %1204 = vmatpush.bf16.msra.mxu0 %v1094
        %1205 = vmatpush.bf16.msra.mxu0 %v1093
        %1206 = vmatmul.bf16.gmra.mxu0 %v894
        %v1207 = vpop.f32.mrf.mxu0
        %v1208 = vadd.f32 %v1159, %v1207
        %v1209 = vpop.f32.mrf.mxu0
        %v1210 = vadd.f32 %v1161, %v1209
        %1211 = vmatmul.bf16.gmra.mxu0 %v898
        %v1212 = vpop.f32.mrf.mxu0
        %v1213 = vadd.f32 %v1164, %v1212
        %v1214 = vpop.f32.mrf.mxu0
        %v1215 = vadd.f32 %v1166, %v1214
        %1216 = vmatmul.bf16.gmra.mxu0 %v902
        %v1217 = vpop.f32.mrf.mxu0
        %v1218 = vadd.f32 %v1169, %v1217
        %v1219 = vpop.f32.mrf.mxu0
        %v1220 = vadd.f32 %v1171, %v1219
        %1221 = vmatmul.bf16.gmra.mxu0 %v906
        %v1222 = vpop.f32.mrf.mxu0
        %v1223 = vadd.f32 %v1174, %v1222
        %v1224 = vpop.f32.mrf.mxu0
        %v1225 = vadd.f32 %v1176, %v1224
        %1226 = vmatmul.bf16.gmra.mxu0 %v910
        %v1227 = vpop.f32.mrf.mxu0
        %v1228 = vadd.f32 %v1179, %v1227
        %v1229 = vpop.f32.mrf.mxu0
        %v1230 = vadd.f32 %v1181, %v1229
        %1231 = vmatmul.bf16.gmra.mxu0 %v914
        %v1232 = vpop.f32.mrf.mxu0
        %v1233 = vadd.f32 %v1184, %v1232
        %v1234 = vpop.f32.mrf.mxu0
        %v1235 = vadd.f32 %v1186, %v1234
        %1236 = vmatmul.bf16.gmra.mxu0 %v918
        %v1237 = vpop.f32.mrf.mxu0
        %v1238 = vadd.f32 %v1189, %v1237
        %v1239 = vpop.f32.mrf.mxu0
        %v1240 = vadd.f32 %v1191, %v1239
        %1241 = vmatmul.bf16.gmra.mxu0 %v922
        %v1242 = vpop.f32.mrf.mxu0
        %v1243 = vadd.f32 %v1194, %v1242
        %v1244 = vpop.f32.mrf.mxu0
        %v1245 = vadd.f32 %v1196, %v1244
        %1246 = vdwg.mxu0
        %1247 = vmatpush.bf16.msra.mxu0 %v1108
        %1248 = vmatpush.bf16.msra.mxu0 %v1107
        %1249 = vmatpush.bf16.msra.mxu0 %v1106
        %1250 = vmatpush.bf16.msra.mxu0 %v1105
        %1251 = vmatpush.bf16.msra.mxu0 %v1104
        %1252 = vmatpush.bf16.msra.mxu0 %v1103
        %1253 = vmatpush.bf16.msra.mxu0 %v1102
        %1254 = vmatpush.bf16.msra.mxu0 %v1101
        %1255 = vmatmul.bf16.gmra.mxu0 %v895
        %v1256 = vpop.f32.mrf.mxu0
        %v1257 = vadd.f32 %v1208, %v1256
        %v1258 = vpop.f32.mrf.mxu0
        %v1259 = vadd.f32 %v1210, %v1258
        %1260 = vmatmul.bf16.gmra.mxu0 %v899
        %v1261 = vpop.f32.mrf.mxu0
        %v1262 = vadd.f32 %v1213, %v1261
        %v1263 = vpop.f32.mrf.mxu0
        %v1264 = vadd.f32 %v1215, %v1263
        %1265 = vmatmul.bf16.gmra.mxu0 %v903
        %v1266 = vpop.f32.mrf.mxu0
        %v1267 = vadd.f32 %v1218, %v1266
        %v1268 = vpop.f32.mrf.mxu0
        %v1269 = vadd.f32 %v1220, %v1268
        %1270 = vmatmul.bf16.gmra.mxu0 %v907
        %v1271 = vpop.f32.mrf.mxu0
        %v1272 = vadd.f32 %v1223, %v1271
        %v1273 = vpop.f32.mrf.mxu0
        %v1274 = vadd.f32 %v1225, %v1273
        %1275 = vmatmul.bf16.gmra.mxu0 %v911
        %v1276 = vpop.f32.mrf.mxu0
        %v1277 = vadd.f32 %v1228, %v1276
        %v1278 = vpop.f32.mrf.mxu0
        %v1279 = vadd.f32 %v1230, %v1278
        %1280 = vmatmul.bf16.gmra.mxu0 %v915
        %v1281 = vpop.f32.mrf.mxu0
        %v1282 = vadd.f32 %v1233, %v1281
        %v1283 = vpop.f32.mrf.mxu0
        %v1284 = vadd.f32 %v1235, %v1283
        %1285 = vmatmul.bf16.gmra.mxu0 %v919
        %v1286 = vpop.f32.mrf.mxu0
        %v1287 = vadd.f32 %v1238, %v1286
        %v1288 = vpop.f32.mrf.mxu0
        %v1289 = vadd.f32 %v1240, %v1288
        %1290 = vmatmul.bf16.gmra.mxu0 %v923
        %v1291 = vpop.f32.mrf.mxu0
        %v1292 = vadd.f32 %v1243, %v1291
        %v1293 = vpop.f32.mrf.mxu0
        %v1294 = vadd.f32 %v1245, %v1293
        %1295 = vdwg.mxu0
        %1296 = vmatpush.bf16.msra.mxu0 %v1116
        %1297 = vmatpush.bf16.msra.mxu0 %v1115
        %1298 = vmatpush.bf16.msra.mxu0 %v1114
        %1299 = vmatpush.bf16.msra.mxu0 %v1113
        %1300 = vmatpush.bf16.msra.mxu0 %v1112
        %1301 = vmatpush.bf16.msra.mxu0 %v1111
        %1302 = vmatpush.bf16.msra.mxu0 %v1110
        %1303 = vmatpush.bf16.msra.mxu0 %v1109
        %1304 = vmatmul.bf16.gmra.mxu0 %v896
        %v1305 = vpop.f32.mrf.mxu0
        %v1306 = vadd.f32 %v1257, %v1305
        %v1307 = vpop.f32.mrf.mxu0
        %v1308 = vadd.f32 %v1259, %v1307
        %1309 = vmatmul.bf16.gmra.mxu0 %v900
        %v1310 = vpop.f32.mrf.mxu0
        %v1311 = vadd.f32 %v1262, %v1310
        %v1312 = vpop.f32.mrf.mxu0
        %v1313 = vadd.f32 %v1264, %v1312
        %1314 = vmatmul.bf16.gmra.mxu0 %v904
        %v1315 = vpop.f32.mrf.mxu0
        %v1316 = vadd.f32 %v1267, %v1315
        %v1317 = vpop.f32.mrf.mxu0
        %v1318 = vadd.f32 %v1269, %v1317
        %1319 = vmatmul.bf16.gmra.mxu0 %v908
        %v1320 = vpop.f32.mrf.mxu0
        %v1321 = vadd.f32 %v1272, %v1320
        %v1322 = vpop.f32.mrf.mxu0
        %v1323 = vadd.f32 %v1274, %v1322
        %1324 = vmatmul.bf16.gmra.mxu0 %v912
        %v1325 = vpop.f32.mrf.mxu0
        %v1326 = vadd.f32 %v1277, %v1325
        %v1327 = vpop.f32.mrf.mxu0
        %v1328 = vadd.f32 %v1279, %v1327
        %1329 = vmatmul.bf16.gmra.mxu0 %v916
        %v1330 = vpop.f32.mrf.mxu0
        %v1331 = vadd.f32 %v1282, %v1330
        %v1332 = vpop.f32.mrf.mxu0
        %v1333 = vadd.f32 %v1284, %v1332
        %1334 = vmatmul.bf16.gmra.mxu0 %v920
        %v1335 = vpop.f32.mrf.mxu0
        %v1336 = vadd.f32 %v1287, %v1335
        %v1337 = vpop.f32.mrf.mxu0
        %v1338 = vadd.f32 %v1289, %v1337
        %1339 = vmatmul.bf16.gmra.mxu0 %v924
        %v1340 = vpop.f32.mrf.mxu0
        %v1341 = vadd.f32 %v1292, %v1340
        %v1342 = vpop.f32.mrf.mxu0
        %v1343 = vadd.f32 %v1294, %v1342
        %1344 = vdwg.mxu0
        %v1345 = vadd.f32 %v685, %v1306
        %v1346 = vadd.f32 %v686, %v1308
        %v1347 = vadd.f32 %v687, %v1311
        %v1348 = vadd.f32 %v688, %v1313
        %v1349 = vadd.f32 %v689, %v1316
        %v1350 = vadd.f32 %v690, %v1318
        %v1351 = vadd.f32 %v691, %v1321
        %v1352 = vadd.f32 %v692, %v1323
        %v1353 = vadd.f32 %v693, %v1326
        %v1354 = vadd.f32 %v694, %v1328
        %v1355 = vadd.f32 %v695, %v1331
        %v1356 = vadd.f32 %v696, %v1333
        %v1357 = vadd.f32 %v697, %v1336
        %v1358 = vadd.f32 %v698, %v1338
        %v1359 = vadd.f32 %v699, %v1341
        %v1360 = vadd.f32 %v700, %v1343
        %1361 = vst [vmem:[#allocation2] sm:$0xff] %v1345
        %1362 = vst [vmem:[#allocation2 + $0x8] sm:$0xff] %v1346
        %1363 = vst [vmem:[#allocation2 + $0x10] sm:$0xff] %v1347
        %1364 = vst [vmem:[#allocation2 + $0x18] sm:$0xff] %v1348
        %1365 = vst [vmem:[#allocation2 + $0x20] sm:$0xff] %v1349
        %1366 = vst [vmem:[#allocation2 + $0x28] sm:$0xff] %v1350
        %1367 = vst [vmem:[#allocation2 + $0x30] sm:$0xff] %v1351
        %1368 = vst [vmem:[#allocation2 + $0x38] sm:$0xff] %v1352
        %1369 = vst [vmem:[#allocation2 + $0x40] sm:$0xff] %v1353
        %1370 = vst [vmem:[#allocation2 + $0x48] sm:$0xff] %v1354
        %1371 = vst [vmem:[#allocation2 + $0x50] sm:$0xff] %v1355
        %1372 = vst [vmem:[#allocation2 + $0x58] sm:$0xff] %v1356
        %1373 = vst [vmem:[#allocation2 + $0x60] sm:$0xff] %v1357
        %1374 = vst [vmem:[#allocation2 + $0x68] sm:$0xff] %v1358
        %1375 = vst [vmem:[#allocation2 + $0x70] sm:$0xff] %v1359
        %1376 = vst [vmem:[#allocation2 + $0x78] sm:$0xff] %v1360
        %p1377 = scmp.eq.s32.totalorder %s23, 3
        // Predicated region
        $region97: #{discriminator_forward.11} parent=83 // pred_check
          %p1378 = pneg %p1377
        $region98: #{discriminator_forward.11} parent=83 // pred_check_branch
          %1380 = sbr.rel (%p1378) target = $region100
        $region99: #{discriminator_forward.11} parent=83 // pred_region
          %v1381 = vld [vmem:[#allocation2] sm:$0xff]
          %v1382 = vld [vmem:[#allocation2 + $0x8] sm:$0xff]
          %v1383 = vld [vmem:[#allocation2 + $0x10] sm:$0xff]
          %v1384 = vld [vmem:[#allocation2 + $0x18] sm:$0xff]
          %v1385 = vld [vmem:[#allocation2 + $0x20] sm:$0xff]
          %v1386 = vld [vmem:[#allocation2 + $0x28] sm:$0xff]
          %v1387 = vld [vmem:[#allocation2 + $0x30] sm:$0xff]
          %v1388 = vld [vmem:[#allocation2 + $0x38] sm:$0xff]
          %v1389 = vld [vmem:[#allocation2 + $0x40] sm:$0xff]
          %v1390 = vld [vmem:[#allocation2 + $0x48] sm:$0xff]
          %v1391 = vld [vmem:[#allocation2 + $0x50] sm:$0xff]
          %v1392 = vld [vmem:[#allocation2 + $0x58] sm:$0xff]
          %v1393 = vld [vmem:[#allocation2 + $0x60] sm:$0xff]
          %v1394 = vld [vmem:[#allocation2 + $0x68] sm:$0xff]
          %v1395 = vld [vmem:[#allocation2 + $0x70] sm:$0xff]
          %v1396 = vld [vmem:[#allocation2 + $0x78] sm:$0xff]
          %1397 = vst [vmem:[%s624] sm:$0xff] %v1381
          %1398 = vst [vmem:[%s624 + $0x8] sm:$0xff] %v1382
          %1399 = vst [vmem:[%s624 + $0x10] sm:$0xff] %v1383
          %1400 = vst [vmem:[%s624 + $0x18] sm:$0xff] %v1384
          %1401 = vst [vmem:[%s624 + $0x20] sm:$0xff] %v1385
          %1402 = vst [vmem:[%s624 + $0x28] sm:$0xff] %v1386
          %1403 = vst [vmem:[%s624 + $0x30] sm:$0xff] %v1387
          %1404 = vst [vmem:[%s624 + $0x38] sm:$0xff] %v1388
          %1405 = vst [vmem:[%s624 + $0x40] sm:$0xff] %v1389
          %1406 = vst [vmem:[%s624 + $0x48] sm:$0xff] %v1390
          %1407 = vst [vmem:[%s624 + $0x50] sm:$0xff] %v1391
          %1408 = vst [vmem:[%s624 + $0x58] sm:$0xff] %v1392
          %1409 = vst [vmem:[%s624 + $0x60] sm:$0xff] %v1393
          %1410 = vst [vmem:[%s624 + $0x68] sm:$0xff] %v1394
          %1411 = vst [vmem:[%s624 + $0x70] sm:$0xff] %v1395
          %1412 = vst [vmem:[%s624 + $0x78] sm:$0xff] %v1396
          %v1413 = vadd.f32 %v1381, %v1382
          %v1414 = vadd.f32 %v1413, %v1383
          %v1415 = vadd.f32 %v1414, %v1384
          %v1416 = vadd.f32 %v1415, %v1385
          %v1417 = vadd.f32 %v1416, %v1386
          %v1418 = vadd.f32 %v1417, %v1387
          %v1419 = vadd.f32 %v1418, %v1388
          %v1420 = vadd.f32 %v1419, %v1389
          %v1421 = vadd.f32 %v1420, %v1390
          %v1422 = vadd.f32 %v1421, %v1391
          %v1423 = vadd.f32 %v1422, %v1392
          %v1424 = vadd.f32 %v1423, %v1393
          %v1425 = vadd.f32 %v1424, %v1394
          %v1426 = vadd.f32 %v1425, %v1395
          %v1427 = vadd.f32 %v1426, %v1396
          %v1428 = vrot.slane %v1427, 4
          %v1429 = vadd.f32 %v1427, %v1428
          %v1430 = vrot.slane %v1429, 2
          %v1431 = vadd.f32 %v1429, %v1430
          %v1432 = vrot.slane %v1431, 1
          %v1433 = vadd.f32 %v1431, %v1432
          %v1434 = vmul.f32 %v1381, %v1381
          %v1435 = vmul.f32 %v1382, %v1382
          %v1436 = vmul.f32 %v1383, %v1383
          %v1437 = vmul.f32 %v1384, %v1384
          %v1438 = vmul.f32 %v1385, %v1385
          %v1439 = vmul.f32 %v1386, %v1386
          %v1440 = vmul.f32 %v1387, %v1387
          %v1441 = vmul.f32 %v1388, %v1388
          %v1442 = vmul.f32 %v1389, %v1389
          %v1443 = vmul.f32 %v1390, %v1390
          %v1444 = vmul.f32 %v1391, %v1391
          %v1445 = vmul.f32 %v1392, %v1392
          %v1446 = vmul.f32 %v1393, %v1393
          %v1447 = vmul.f32 %v1394, %v1394
          %v1448 = vmul.f32 %v1395, %v1395
          %v1449 = vmul.f32 %v1396, %v1396
          %v1450 = vadd.f32 %v1434, %v1435
          %v1451 = vadd.f32 %v1450, %v1436
          %v1452 = vadd.f32 %v1451, %v1437
          %v1453 = vadd.f32 %v1452, %v1438
          %v1454 = vadd.f32 %v1453, %v1439
          %v1455 = vadd.f32 %v1454, %v1440
          %v1456 = vadd.f32 %v1455, %v1441
          %v1457 = vadd.f32 %v1456, %v1442
          %v1458 = vadd.f32 %v1457, %v1443
          %v1459 = vadd.f32 %v1458, %v1444
          %v1460 = vadd.f32 %v1459, %v1445
          %v1461 = vadd.f32 %v1460, %v1446
          %v1462 = vadd.f32 %v1461, %v1447
          %v1463 = vadd.f32 %v1462, %v1448
          %v1464 = vadd.f32 %v1463, %v1449
          %v1465 = vrot.slane %v1464, 4
          %v1466 = vadd.f32 %v1464, %v1465
          %v1467 = vrot.slane %v1466, 2
          %v1468 = vadd.f32 %v1466, %v1467
          %v1469 = vrot.slane %v1468, 1
          %v1470 = vadd.f32 %v1468, %v1469
          %1471 = vst [vmem:[%s656] sm:$0xff] %v1433
          %1472 = vst [vmem:[%s664] sm:$0xff] %v1470
        $region100: #{discriminator_forward.11} parent=83 // pred_fallthru
          _
        %s1473 = sand.u32 %s101, 1
        %s1474 = sand.u32 %s101, 1
        %s1475 = smul.addr %s1474, 128
        %s1476 = scalar_lea.vmem [#allocation5], %s1475
        %p1477 = scmp.lt.s32.totalorder %s21, 0
        %s1478 = scalar_select %p1477, %s21, 0
        %p1479 = scmp.lt.s32.totalorder %s22, 1
        %s1480 = scalar_select %p1479, %s22, 1
        %s1481 = smul.addr %s1478, 2
        %s1482 = sadd.s32 %s1480, %s1481
        %s1483 = smul.addr %s1482, 8
        %s1484 = scalar_lea.vmem %s3, %s1483
        %p1485 = scmp.lt.s32.totalorder %s21, 0
        %s1486 = scalar_select %p1485, %s21, 0
        %p1487 = scmp.lt.s32.totalorder %s22, 1
        %s1488 = scalar_select %p1487, %s22, 1
        %s1489 = smul.addr %s1486, 2
        %s1490 = sadd.s32 %s1488, %s1489
        %s1491 = smul.addr %s1490, 8
        %s1492 = scalar_lea.vmem %s4, %s1491
        // Predicated region
        $region101: #{discriminator_forward.11} parent=83 // pred_check
          %p1493 = pneg %p111
        $region102: #{discriminator_forward.11} parent=83 // pred_check_branch
          %1495 = sbr.rel (%p1493) target = $region104
        $region103: #{discriminator_forward.11} parent=83 // pred_region
          %s1496 = smul.u32 16, %s21
          %s1497 = smul.addr %s1496, 2
          %s1498 = sadd.s32 %s22, %s1497
          %s1499 = smul.addr %s1498, 8
          %s1500 = scalar_lea.vmem %s2, %s1499
          // Predicated region
          $region105: #{discriminator_forward.11} parent=103 // pred_check
            _
          $region106: #{discriminator_forward.11} parent=103 // pred_check_branch
            %1502 = sbr.rel (0) target = $region108
          $region107: #{discriminator_forward.11} parent=103 // pred_region
            // Predicated region
            $region109: #{discriminator_forward.11} parent=107 // pred_check
              _
            $region110: #{discriminator_forward.11} parent=107 // pred_check_branch
              %1504 = sbr.rel (0) target = $region112
            $region111: #{discriminator_forward.11} parent=107 // pred_region
              // Predicated region
              $region124: #{discriminator_forward.11} parent=111 // pred_check
                _
              $region125: #{discriminator_forward.11} parent=111 // pred_check_branch
                %1550 = sbr.rel (0) target = $region127
              $region126: #{discriminator_forward.11} parent=111 // pred_region
                loop: start=0, step=1, limit=1
                $region128: #{discriminator_forward.11} parent=126 // loop_pre_header
                  _
                $region129: #{discriminator_forward.11} parent=126 // loop_header
                  %s1552 = sphi 0, %s1556
                  %p1553 = scmp.ge.s32.totalorder %s1552, 1
                  %s1557 = sphi %s1476, %s1476
                  %s1558 = sphi %s1500, %s1500
                $region130: #{discriminator_forward.11} parent=126 // loop_header_branch
                  %1555 = sbr.rel (%p1553) target = $region134
                $region131: #{discriminator_forward.11} parent=126 // loop_body
                  %v1559 = vld [vmem:[%s1557] sm:$0xff]
                  %1560 = vst [vmem:[%s1558] sm:$0xff] %v1559
                  %v1561 = vld [vmem:[%s1557 + $0x8] sm:$0xff]
                  %1562 = vst [vmem:[%s1558 + $0x10] sm:$0xff] %v1561
                  %v1563 = vld [vmem:[%s1557 + $0x10] sm:$0xff]
                  %1564 = vst [vmem:[%s1558 + $0x20] sm:$0xff] %v1563
                  %v1565 = vld [vmem:[%s1557 + $0x18] sm:$0xff]
                  %1566 = vst [vmem:[%s1558 + $0x30] sm:$0xff] %v1565
                  %v1567 = vld [vmem:[%s1557 + $0x20] sm:$0xff]
                  %1568 = vst [vmem:[%s1558 + $0x40] sm:$0xff] %v1567
                  %v1569 = vld [vmem:[%s1557 + $0x28] sm:$0xff]
                  %1570 = vst [vmem:[%s1558 + $0x50] sm:$0xff] %v1569
                  %v1571 = vld [vmem:[%s1557 + $0x30] sm:$0xff]
                  %1572 = vst [vmem:[%s1558 + $0x60] sm:$0xff] %v1571
                  %v1573 = vld [vmem:[%s1557 + $0x38] sm:$0xff]
                  %1574 = vst [vmem:[%s1558 + $0x70] sm:$0xff] %v1573
                  %v1575 = vld [vmem:[%s1557 + $0x40] sm:$0xff]
                  %1576 = vst [vmem:[%s1558 + $0x80] sm:$0xff] %v1575
                  %v1577 = vld [vmem:[%s1557 + $0x48] sm:$0xff]
                  %1578 = vst [vmem:[%s1558 + $0x90] sm:$0xff] %v1577
                  %v1579 = vld [vmem:[%s1557 + $0x50] sm:$0xff]
                  %1580 = vst [vmem:[%s1558 + $0xa0] sm:$0xff] %v1579
                  %v1581 = vld [vmem:[%s1557 + $0x58] sm:$0xff]
                  %1582 = vst [vmem:[%s1558 + $0xb0] sm:$0xff] %v1581
                  %v1583 = vld [vmem:[%s1557 + $0x60] sm:$0xff]
                  %1584 = vst [vmem:[%s1558 + $0xc0] sm:$0xff] %v1583
                  %v1585 = vld [vmem:[%s1557 + $0x68] sm:$0xff]
                  %1586 = vst [vmem:[%s1558 + $0xd0] sm:$0xff] %v1585
                  %v1587 = vld [vmem:[%s1557 + $0x70] sm:$0xff]
                  %1588 = vst [vmem:[%s1558 + $0xe0] sm:$0xff] %v1587
                  %v1589 = vld [vmem:[%s1557 + $0x78] sm:$0xff]
                  %1590 = vst [vmem:[%s1558 + $0xf0] sm:$0xff] %v1589
                $region132: #{discriminator_forward.11} parent=126 // loop_footer
                  %s1556 = sadd.s32 1, %s1552
                $region133: #{discriminator_forward.11} parent=126 // loop_footer_branch
                  %1551 = sbr.rel target = $region129
                $region134: #{discriminator_forward.11} parent=126 // loop_exit
                  _
              $region127: #{discriminator_forward.11} parent=111 // pred_fallthru
                _
              // Predicated region
              $region135: #{discriminator_forward.11} parent=111 // pred_check
                _
              $region136: #{discriminator_forward.11} parent=111 // pred_check_branch
                %1592 = sbr.rel target = $region138
              $region137: #{discriminator_forward.11} parent=111 // pred_region
                _
              $region138: #{discriminator_forward.11} parent=111 // pred_fallthru
                _
            $region112: #{discriminator_forward.11} parent=107 // pred_fallthru
              _
            // Predicated region
            $region113: #{discriminator_forward.11} parent=107 // pred_check
              _
            $region114: #{discriminator_forward.11} parent=107 // pred_check_branch
              %1506 = sbr.rel target = $region116
            $region115: #{discriminator_forward.11} parent=107 // pred_region
              %s1508 = ssub.s32 256, 1
              loop: start=0, step=1, limit=1
              $region117: #{discriminator_forward.11} parent=115 // loop_pre_header
                _
              $region118: #{discriminator_forward.11} parent=115 // loop_header
                %s1510 = sphi 0, %s1514
                %p1511 = scmp.ge.s32.totalorder %s1510, 1
                %s1515 = sphi %s1476, %s1476
                %s1516 = sphi %s1500, %s1500
              $region119: #{discriminator_forward.11} parent=115 // loop_header_branch
                %1513 = sbr.rel (%p1511) target = $region123
              $region120: #{discriminator_forward.11} parent=115 // loop_body
                %v1517 = vld [vmem:[%s1515] sm:%s1508]
                %1518 = vst [vmem:[%s1516] sm:%s1508] %v1517
                %v1519 = vld [vmem:[%s1515 + $0x8] sm:%s1508]
                %1520 = vst [vmem:[%s1516 + $0x10] sm:%s1508] %v1519
                %v1521 = vld [vmem:[%s1515 + $0x10] sm:%s1508]
                %1522 = vst [vmem:[%s1516 + $0x20] sm:%s1508] %v1521
                %v1523 = vld [vmem:[%s1515 + $0x18] sm:%s1508]
                %1524 = vst [vmem:[%s1516 + $0x30] sm:%s1508] %v1523
                %v1525 = vld [vmem:[%s1515 + $0x20] sm:%s1508]
                %1526 = vst [vmem:[%s1516 + $0x40] sm:%s1508] %v1525
                %v1527 = vld [vmem:[%s1515 + $0x28] sm:%s1508]
                %1528 = vst [vmem:[%s1516 + $0x50] sm:%s1508] %v1527
                %v1529 = vld [vmem:[%s1515 + $0x30] sm:%s1508]
                %1530 = vst [vmem:[%s1516 + $0x60] sm:%s1508] %v1529
                %v1531 = vld [vmem:[%s1515 + $0x38] sm:%s1508]
                %1532 = vst [vmem:[%s1516 + $0x70] sm:%s1508] %v1531
                %v1533 = vld [vmem:[%s1515 + $0x40] sm:%s1508]
                %1534 = vst [vmem:[%s1516 + $0x80] sm:%s1508] %v1533
                %v1535 = vld [vmem:[%s1515 + $0x48] sm:%s1508]
                %1536 = vst [vmem:[%s1516 + $0x90] sm:%s1508] %v1535
                %v1537 = vld [vmem:[%s1515 + $0x50] sm:%s1508]
                %1538 = vst [vmem:[%s1516 + $0xa0] sm:%s1508] %v1537
                %v1539 = vld [vmem:[%s1515 + $0x58] sm:%s1508]
                %1540 = vst [vmem:[%s1516 + $0xb0] sm:%s1508] %v1539
                %v1541 = vld [vmem:[%s1515 + $0x60] sm:%s1508]
                %1542 = vst [vmem:[%s1516 + $0xc0] sm:%s1508] %v1541
                %v1543 = vld [vmem:[%s1515 + $0x68] sm:%s1508]
                %1544 = vst [vmem:[%s1516 + $0xd0] sm:%s1508] %v1543
                %v1545 = vld [vmem:[%s1515 + $0x70] sm:%s1508]
                %1546 = vst [vmem:[%s1516 + $0xe0] sm:%s1508] %v1545
                %v1547 = vld [vmem:[%s1515 + $0x78] sm:%s1508]
                %1548 = vst [vmem:[%s1516 + $0xf0] sm:%s1508] %v1547
              $region121: #{discriminator_forward.11} parent=115 // loop_footer
                %s1514 = sadd.s32 1, %s1510
              $region122: #{discriminator_forward.11} parent=115 // loop_footer_branch
                %1509 = sbr.rel target = $region118
              $region123: #{discriminator_forward.11} parent=115 // loop_exit
                _
            $region116: #{discriminator_forward.11} parent=107 // pred_fallthru
              _
          $region108: #{discriminator_forward.11} parent=103 // pred_fallthru
            _
          %1593 = vnop
        $region104: #{discriminator_forward.11} parent=83 // pred_fallthru
          _
        // Predicated region
        $region139: #{discriminator_forward.11} parent=83 // pred_check
          %p1594 = pneg %p139
        $region140: #{discriminator_forward.11} parent=83 // pred_check_branch
          %1596 = sbr.rel (%p1594) target = $region142
        $region141: #{discriminator_forward.11} parent=83 // pred_region
          _
        $region142: #{discriminator_forward.11} parent=83 // pred_fallthru
          _
        // Predicated region
        $region143: #{discriminator_forward.11} parent=83 // pred_check
          %p1597 = pneg %p167
        $region144: #{discriminator_forward.11} parent=83 // pred_check_branch
          %1599 = sbr.rel (%p1597) target = $region146
        $region145: #{discriminator_forward.11} parent=83 // pred_region
          _
        $region146: #{discriminator_forward.11} parent=83 // pred_fallthru
          _
      $region84: #{discriminator_forward.11} parent=5 // pred_fallthru
        _
      %p1600 = scmp.le.s32.totalorder 2, %s11
      // Predicated region
      $region147: #{discriminator_forward.11} parent=5 // pred_check
        %p1601 = pneg %p1600
      $region148: #{discriminator_forward.11} parent=5 // pred_check_branch
        %1603 = sbr.rel (%p1601) target = $region150
      $region149: #{discriminator_forward.11} parent=5 // pred_region
        %s1604 = ssub.s32 %s11, 2
        // Predicated region
        $region151: #{discriminator_forward.11} parent=149 // pred_check
          %p1605 = pneg %p117
        $region152: #{discriminator_forward.11} parent=149 // pred_check_branch
          %1607 = sbr.rel (%p1605) target = $region154
        $region153: #{discriminator_forward.11} parent=149 // pred_region
          %s1608 = sand.u32 %s102, 1
          %s1609 = sand.u32 %s102, 1
          %s1610 = smul.addr %s1609, 128
          %s1611 = scalar_lea.vmem [#allocation5], %s1610
        $region154: #{discriminator_forward.11} parent=149 // pred_fallthru
          _
        // Predicated region
        $region155: #{discriminator_forward.11} parent=149 // pred_check
          %p1612 = pneg %p145
        $region156: #{discriminator_forward.11} parent=149 // pred_check_branch
          %1614 = sbr.rel (%p1612) target = $region158
        $region157: #{discriminator_forward.11} parent=149 // pred_region
          %p1615 = scmp.lt.s32.totalorder %s24, 0
          %s1616 = scalar_select %p1615, %s24, 0
          %p1617 = scmp.lt.s32.totalorder %s25, 1
          %s1618 = scalar_select %p1617, %s25, 1
          %s1619 = smul.addr %s1616, 2
          %s1620 = sadd.s32 %s1618, %s1619
          %s1621 = smul.addr %s1620, 8
          %s1622 = scalar_lea.vmem %s3, %s1621
        $region158: #{discriminator_forward.11} parent=149 // pred_fallthru
          _
        // Predicated region
        $region159: #{discriminator_forward.11} parent=149 // pred_check
          %p1623 = pneg %p173
        $region160: #{discriminator_forward.11} parent=149 // pred_check_branch
          %1625 = sbr.rel (%p1623) target = $region162
        $region161: #{discriminator_forward.11} parent=149 // pred_region
          %p1626 = scmp.lt.s32.totalorder %s24, 0
          %s1627 = scalar_select %p1626, %s24, 0
          %p1628 = scmp.lt.s32.totalorder %s25, 1
          %s1629 = scalar_select %p1628, %s25, 1
          %s1630 = smul.addr %s1627, 2
          %s1631 = sadd.s32 %s1629, %s1630
          %s1632 = smul.addr %s1631, 8
          %s1633 = scalar_lea.vmem %s4, %s1632
        $region162: #{discriminator_forward.11} parent=149 // pred_fallthru
          _
      $region150: #{discriminator_forward.11} parent=5 // pred_fallthru
        _
    $region6: #{discriminator_forward.11} parent=1 // loop_footer
      %s15 = sadd.s32 1, %s11
    $region7: #{discriminator_forward.11} parent=1 // loop_footer_branch
      %10 = sbr.rel target = $region3
    $region8: #{discriminator_forward.11} parent=1 // loop_exit
      _

// kernel: discriminator_forward.12
$region0: #{discriminator_forward.12}
  #allocation0 [shape = 'u32[]', space=smem, size = 0x4, offset = 0x4, fixed_abs, tag = 'smem constant byte address 0x4 - core index']
  #allocation1 [shape = 'u32[72,128]{1,0:T(1,128)}', space=vmem, size = 0x9000, scoped, tag = 'internal scratch']
  %s0 = inlined_call_operand.vmem [shape: f32[128,256], index: 0, kind: input, shape index: {}]
  %s1 = inlined_call_operand.vmem [shape: f32[1,256], index: 1, kind: input, shape index: {}]
  %s2 = inlined_call_operand.vmem [shape: f32[1,256], index: 2, kind: input, shape index: {}]
  %s3 = inlined_call_operand.vmem [shape: bf16[128,256], index: 3, kind: output, shape index: {}]
  %s4 = sld [smem:[#allocation0]]
  $region22: #{discriminator_forward.12} parent=0
    _
  %s6 = ssub.s32 1, %s4
  %s7 = scalar_select 0, %s6, %s4
  // Predicated region
  $region2: #{discriminator_forward.12} parent=0 // pred_check
    _
  $region3: #{discriminator_forward.12} parent=0 // pred_check_branch
    %9 = sbr.rel (0) target = $region5
  $region4: #{discriminator_forward.12} parent=0 // pred_region
    _
  $region5: #{discriminator_forward.12} parent=0 // pred_fallthru
    _
  // Predicated region
  $region6: #{discriminator_forward.12} parent=0 // pred_check
    _
  $region7: #{discriminator_forward.12} parent=0 // pred_check_branch
    %11 = sbr.rel (0) target = $region9
  $region8: #{discriminator_forward.12} parent=0 // pred_region
    _
  $region9: #{discriminator_forward.12} parent=0 // pred_fallthru
    _
  // Predicated region
  $region10: #{discriminator_forward.12} parent=0 // pred_check
    _
  $region11: #{discriminator_forward.12} parent=0 // pred_check_branch
    %13 = sbr.rel (0) target = $region13
  $region12: #{discriminator_forward.12} parent=0 // pred_region
    _
  $region13: #{discriminator_forward.12} parent=0 // pred_fallthru
    _
  %v14 = vld [vmem:[%s0] sm:$0xff]
  %v15 = vld [vmem:[%s0 + $0x8] sm:$0xff]
  %v16 = vld [vmem:[%s0 + $0x10] sm:$0xff]
  %v17 = vld [vmem:[%s0 + $0x18] sm:$0xff]
  %v18 = vld [vmem:[%s0 + $0x20] sm:$0xff]
  %v19 = vld [vmem:[%s0 + $0x28] sm:$0xff]
  %v20 = vld [vmem:[%s0 + $0x30] sm:$0xff]
  %v21 = vld [vmem:[%s0 + $0x38] sm:$0xff]
  %v22 = vld [vmem:[%s0 + $0x40] sm:$0xff]
  %v23 = vld [vmem:[%s0 + $0x48] sm:$0xff]
  %v24 = vld [vmem:[%s0 + $0x50] sm:$0xff]
  %v25 = vld [vmem:[%s0 + $0x58] sm:$0xff]
  %v26 = vld [vmem:[%s0 + $0x60] sm:$0xff]
  %v27 = vld [vmem:[%s0 + $0x68] sm:$0xff]
  %v28 = vld [vmem:[%s0 + $0x70] sm:$0xff]
  %v29 = vld [vmem:[%s0 + $0x78] sm:$0xff]
  %v30 = vld [vmem:[%s0 + $0x80] sm:$0xff]
  %v31 = vld [vmem:[%s0 + $0x88] sm:$0xff]
  %v32 = vld [vmem:[%s0 + $0x90] sm:$0xff]
  %v33 = vld [vmem:[%s0 + $0x98] sm:$0xff]
  %v34 = vld [vmem:[%s0 + $0xa0] sm:$0xff]
  %v35 = vld [vmem:[%s0 + $0xa8] sm:$0xff]
  %v36 = vld [vmem:[%s0 + $0xb0] sm:$0xff]
  %v37 = vld [vmem:[%s0 + $0xb8] sm:$0xff]
  %v38 = vld [vmem:[%s0 + $0xc0] sm:$0xff]
  %v39 = vld [vmem:[%s0 + $0xc8] sm:$0xff]
  %v40 = vld [vmem:[%s0 + $0xd0] sm:$0xff]
  %v41 = vld [vmem:[%s0 + $0xd8] sm:$0xff]
  %v42 = vld [vmem:[%s0 + $0xe0] sm:$0xff]
  %v43 = vld [vmem:[%s0 + $0xe8] sm:$0xff]
  %v44 = vld [vmem:[%s0 + $0xf0] sm:$0xff]
  %v45 = vld [vmem:[%s0 + $0xf8] sm:$0xff]
  %v46 = vld [vmem:[%s1] sm:$0x3]
  %v48 = vperm.slane %v46, 0
  %v49 = vperm.slane %v46, 1
  %v52 = vmul.f32 %v14, %v48
  %v53 = vmul.f32 %v15, %v49
  %v54 = vmul.f32 %v16, %v48
  %v55 = vmul.f32 %v17, %v49
  %v56 = vmul.f32 %v18, %v48
  %v57 = vmul.f32 %v19, %v49
  %v58 = vmul.f32 %v20, %v48
  %v59 = vmul.f32 %v21, %v49
  %v60 = vmul.f32 %v22, %v48
  %v61 = vmul.f32 %v23, %v49
  %v62 = vmul.f32 %v24, %v48
  %v63 = vmul.f32 %v25, %v49
  %v64 = vmul.f32 %v26, %v48
  %v65 = vmul.f32 %v27, %v49
  %v66 = vmul.f32 %v28, %v48
  %v67 = vmul.f32 %v29, %v49
  %v68 = vmul.f32 %v30, %v48
  %v69 = vmul.f32 %v31, %v49
  %v70 = vmul.f32 %v32, %v48
  %v71 = vmul.f32 %v33, %v49
  %v72 = vmul.f32 %v34, %v48
  %v73 = vmul.f32 %v35, %v49
  %v74 = vmul.f32 %v36, %v48
  %v75 = vmul.f32 %v37, %v49
  %v76 = vmul.f32 %v38, %v48
  %v77 = vmul.f32 %v39, %v49
  %v78 = vmul.f32 %v40, %v48
  %v79 = vmul.f32 %v41, %v49
  %v80 = vmul.f32 %v42, %v48
  %v81 = vmul.f32 %v43, %v49
  %v82 = vmul.f32 %v44, %v48
  %v83 = vmul.f32 %v45, %v49
  %v84 = vld [vmem:[%s2] sm:$0x3]
  %v86 = vperm.slane %v84, 0
  %v87 = vperm.slane %v84, 1
  %v90 = vadd.f32 %v52, %v86
  %v91 = vadd.f32 %v53, %v87
  %v92 = vadd.f32 %v54, %v86
  %v93 = vadd.f32 %v55, %v87
  %v94 = vadd.f32 %v56, %v86
  %v95 = vadd.f32 %v57, %v87
  %v96 = vadd.f32 %v58, %v86
  %v97 = vadd.f32 %v59, %v87
  %v98 = vadd.f32 %v60, %v86
  %v99 = vadd.f32 %v61, %v87
  %v100 = vadd.f32 %v62, %v86
  %v101 = vadd.f32 %v63, %v87
  %v102 = vadd.f32 %v64, %v86
  %v103 = vadd.f32 %v65, %v87
  %v104 = vadd.f32 %v66, %v86
  %v105 = vadd.f32 %v67, %v87
  %v106 = vadd.f32 %v68, %v86
  %v107 = vadd.f32 %v69, %v87
  %v108 = vadd.f32 %v70, %v86
  %v109 = vadd.f32 %v71, %v87
  %v110 = vadd.f32 %v72, %v86
  %v111 = vadd.f32 %v73, %v87
  %v112 = vadd.f32 %v74, %v86
  %v113 = vadd.f32 %v75, %v87
  %v114 = vadd.f32 %v76, %v86
  %v115 = vadd.f32 %v77, %v87
  %v116 = vadd.f32 %v78, %v86
  %v117 = vadd.f32 %v79, %v87
  %v118 = vadd.f32 %v80, %v86
  %v119 = vadd.f32 %v81, %v87
  %v120 = vadd.f32 %v82, %v86
  %v121 = vadd.f32 %v83, %v87
  %v122 = vmul.f32 %v90, 0.2
  %v123 = vmul.f32 %v91, 0.2
  %v124 = vmul.f32 %v92, 0.2
  %v125 = vmul.f32 %v93, 0.2
  %v126 = vmul.f32 %v94, 0.2
  %v127 = vmul.f32 %v95, 0.2
  %v128 = vmul.f32 %v96, 0.2
  %v129 = vmul.f32 %v97, 0.2
  %v130 = vmul.f32 %v98, 0.2
  %v131 = vmul.f32 %v99, 0.2
  %v132 = vmul.f32 %v100, 0.2
  %v133 = vmul.f32 %v101, 0.2
  %v134 = vmul.f32 %v102, 0.2
  %v135 = vmul.f32 %v103, 0.2
  %v136 = vmul.f32 %v104, 0.2
  %v137 = vmul.f32 %v105, 0.2
  %v138 = vmul.f32 %v106, 0.2
  %v139 = vmul.f32 %v107, 0.2
  %v140 = vmul.f32 %v108, 0.2
  %v141 = vmul.f32 %v109, 0.2
  %v142 = vmul.f32 %v110, 0.2
  %v143 = vmul.f32 %v111, 0.2
  %v144 = vmul.f32 %v112, 0.2
  %v145 = vmul.f32 %v113, 0.2
  %v146 = vmul.f32 %v114, 0.2
  %v147 = vmul.f32 %v115, 0.2
  %v148 = vmul.f32 %v116, 0.2
  %v149 = vmul.f32 %v117, 0.2
  %v150 = vmul.f32 %v118, 0.2
  %v151 = vmul.f32 %v119, 0.2
  %v152 = vmul.f32 %v120, 0.2
  %v153 = vmul.f32 %v121, 0.2
  %v154 = vmax.f32 %v90, %v122
  %v155 = vmax.f32 %v91, %v123
  %v156 = vmax.f32 %v92, %v124
  %v157 = vmax.f32 %v93, %v125
  %v158 = vmax.f32 %v94, %v126
  %v159 = vmax.f32 %v95, %v127
  %v160 = vmax.f32 %v96, %v128
  %v161 = vmax.f32 %v97, %v129
  %v162 = vmax.f32 %v98, %v130
  %v163 = vmax.f32 %v99, %v131
  %v164 = vmax.f32 %v100, %v132
  %v165 = vmax.f32 %v101, %v133
  %v166 = vmax.f32 %v102, %v134
  %v167 = vmax.f32 %v103, %v135
  %v168 = vmax.f32 %v104, %v136
  %v169 = vmax.f32 %v105, %v137
  %v170 = vmax.f32 %v106, %v138
  %v171 = vmax.f32 %v107, %v139
  %v172 = vmax.f32 %v108, %v140
  %v173 = vmax.f32 %v109, %v141
  %v174 = vmax.f32 %v110, %v142
  %v175 = vmax.f32 %v111, %v143
  %v176 = vmax.f32 %v112, %v144
  %v177 = vmax.f32 %v113, %v145
  %v178 = vmax.f32 %v114, %v146
  %v179 = vmax.f32 %v115, %v147
  %v180 = vmax.f32 %v116, %v148
  %v181 = vmax.f32 %v117, %v149
  %v182 = vmax.f32 %v118, %v150
  %v183 = vmax.f32 %v119, %v151
  %v184 = vmax.f32 %v120, %v152
  %v185 = vmax.f32 %v121, %v153
  %v186 = vpack.c.bf16 %v155, %v154
  %v187 = vpack.c.bf16 %v157, %v156
  %v188 = vpack.c.bf16 %v159, %v158
  %v189 = vpack.c.bf16 %v161, %v160
  %v190 = vpack.c.bf16 %v163, %v162
  %v191 = vpack.c.bf16 %v165, %v164
  %v192 = vpack.c.bf16 %v167, %v166
  %v193 = vpack.c.bf16 %v169, %v168
  %v194 = vpack.c.bf16 %v171, %v170
  %v195 = vpack.c.bf16 %v173, %v172
  %v196 = vpack.c.bf16 %v175, %v174
  %v197 = vpack.c.bf16 %v177, %v176
  %v198 = vpack.c.bf16 %v179, %v178
  %v199 = vpack.c.bf16 %v181, %v180
  %v200 = vpack.c.bf16 %v183, %v182
  %v201 = vpack.c.bf16 %v185, %v184
  %202 = vst [vmem:[%s3] sm:$0xff] %v186
  %203 = vst [vmem:[%s3 + $0x8] sm:$0xff] %v187
  %204 = vst [vmem:[%s3 + $0x10] sm:$0xff] %v188
  %205 = vst [vmem:[%s3 + $0x18] sm:$0xff] %v189
  %206 = vst [vmem:[%s3 + $0x20] sm:$0xff] %v190
  %207 = vst [vmem:[%s3 + $0x28] sm:$0xff] %v191
  %208 = vst [vmem:[%s3 + $0x30] sm:$0xff] %v192
  %209 = vst [vmem:[%s3 + $0x38] sm:$0xff] %v193
  %210 = vst [vmem:[%s3 + $0x40] sm:$0xff] %v194
  %211 = vst [vmem:[%s3 + $0x48] sm:$0xff] %v195
  %212 = vst [vmem:[%s3 + $0x50] sm:$0xff] %v196
  %213 = vst [vmem:[%s3 + $0x58] sm:$0xff] %v197
  %214 = vst [vmem:[%s3 + $0x60] sm:$0xff] %v198
  %215 = vst [vmem:[%s3 + $0x68] sm:$0xff] %v199
  %216 = vst [vmem:[%s3 + $0x70] sm:$0xff] %v200
  %217 = vst [vmem:[%s3 + $0x78] sm:$0xff] %v201
  // Predicated region
  $region14: #{discriminator_forward.12} parent=0 // pred_check
    _
  $region15: #{discriminator_forward.12} parent=0 // pred_check_branch
    %219 = sbr.rel (0) target = $region17
  $region16: #{discriminator_forward.12} parent=0 // pred_region
    _
  $region17: #{discriminator_forward.12} parent=0 // pred_fallthru
    _
  // Predicated region
  $region18: #{discriminator_forward.12} parent=0 // pred_check
    _
  $region19: #{discriminator_forward.12} parent=0 // pred_check_branch
    %221 = sbr.rel (0) target = $region21
  $region20: #{discriminator_forward.12} parent=0 // pred_region
    _
  $region21: #{discriminator_forward.12} parent=0 // pred_fallthru
    _

// kernel: discriminator_forward.13
$region0: #{discriminator_forward.13}
  #allocation0 [shape = 'u32[]', space=smem, size = 0x4, offset = 0x4, fixed_abs, tag = 'smem constant byte address 0x4 - core index']
  #allocation1 [shape = 'u32[72,128]{1,0:T(1,128)}', space=vmem, size = 0x9000, scoped, tag = 'internal scratch']
  #allocation2 [shape = 'f32[32,128]{1,0:T(8,128)}', space=vmem, size = 0x4000, scoped, tag = 'scratch operand']
  %s0 = inlined_call_operand.vmem [shape: bf16[32,4096], index: 0, kind: input, shape index: {}]
  %s1 = inlined_call_operand.vmem [shape: bf16[4096,512], index: 1, kind: input, shape index: {}]
  %s2 = inlined_call_operand.vmem [shape: f32[32,512], index: 2, kind: output, shape index: {0}]
  %s3 = inlined_call_operand.vmem [shape: f32[8,512], index: 3, kind: output, shape index: {1}]
  %s4 = inlined_call_operand.vmem [shape: f32[8,512], index: 4, kind: output, shape index: {2}]
  %5 = xla_tuple %s2, %s3, %s4
  %s6 = sld [smem:[#allocation0]]
  $region163: #{discriminator_forward.13} parent=0
    _
  %s8 = ssub.s32 1, %s6
  %s9 = scalar_select 0, %s8, %s6
  $region1: #{discriminator_forward.13} parent=0
    #allocation3 [shape = 'u8[65536]{0}', space=vmem, size = 0x10000, scoped, tag = 'input window, operand 0']
    #allocation4 [shape = 'u8[262144]{0}', space=vmem, size = 0x40000, scoped, tag = 'input window, operand 1']
    #allocation5 [shape = 'u8[32768]{0}', space=vmem, size = 0x8000, scoped, tag = 'output window, operand 0']
    loop: start=0, step=1, limit=34
    $region2: #{discriminator_forward.13} parent=1 // loop_pre_header
      _
    $region3: #{discriminator_forward.13} parent=1 // loop_header
      %s11 = sphi 0, %s15
      %p12 = scmp.ge.s32.totalorder %s11, 34
      %s18 = sphi 0, %s37
      %s19 = sphi 0, %s33
      %s20 = sphi 0, %s29
      %s21 = sphi 0, %s18
      %s22 = sphi 0, %s19
      %s23 = sphi 0, %s20
      %s24 = sphi 0, %s21
      %s25 = sphi 0, %s22
      %s26 = sphi 0, %s23
      %s42 = sphi 0, %s44
      %s45 = sphi 0, %s42
      %s46 = sphi 0, %s45
      %s62 = sphi 0, %s46
      %s70 = sphi 0, %s72
      %s73 = sphi 0, %s70
      %s74 = sphi 0, %s73
      %s90 = sphi 0, %s74
      %s98 = sphi 0, %s100
      %s101 = sphi 0, %s98
      %s102 = sphi 0, %s101
      %s118 = sphi 0, %s102
      %s126 = sphi 0, %s128
      %s129 = sphi 0, %s126
      %s130 = sphi 0, %s129
      %s146 = sphi 0, %s130
      %s154 = sphi 0, %s156
      %s157 = sphi 0, %s154
      %s158 = sphi 0, %s157
      %s174 = sphi 0, %s158
    $region4: #{discriminator_forward.13} parent=1 // loop_header_branch
      %14 = sbr.rel (%p12) target = $region8
    $region5: #{discriminator_forward.13} parent=1 // loop_body
      %s16 = ssub.s32 %s11, 1
      %s17 = ssub.s32 %s11, 2
      %s27 = sadd.s32 1, %s20
      %p28 = scmp.ge.s32.totalorder %s27, 8
      %s29 = scalar_select %p28, 0, %s27
      %s30 = sadd.s32 1, %s19
      %s31 = scalar_select %p28, %s30, %s19
      %p32 = scmp.ge.s32.totalorder %s31, 4
      %s33 = scalar_select %p32, 0, %s31
      %s34 = sadd.s32 1, %s18
      %s35 = scalar_select %p32, %s34, %s18
      %p36 = scmp.ge.s32.totalorder %s35, 1
      %s37 = scalar_select %p36, 0, %s35
      %s38 = ssub.s32 %s18, %s37
      %s39 = ssub.s32 %s20, %s29
      %s40 = sor.u32 %s38, %s39
      %p41 = scmp.eq.s32.totalorder %s40, 0
      %s43 = sadd.s32 %s42, 1
      %s44 = scalar_select %p41, %s42, %s43
      %p47 = pneg %p41
      %p48 = scmp.eq.s32.totalorder %s11, 31
      %p49 = por %p47, %p48
      %p50 = scmp.ne.s32.totalorder %s42, %s45
      %p51 = scmp.eq.s32.totalorder %s11, 0
      %p52 = por %p50, %p51
      %p53 = scmp.ne.s32.totalorder %s42, %s45
      %p54 = scmp.eq.s32.totalorder %s16, 31
      %p55 = por %p53, %p54
      %p56 = scmp.ne.s32.totalorder %s45, %s46
      %p57 = scmp.eq.s32.totalorder %s16, 0
      %p58 = por %p56, %p57
      %p59 = scmp.ne.s32.totalorder %s45, %s46
      %p60 = scmp.eq.s32.totalorder %s17, 31
      %p61 = por %p59, %p60
      %p63 = scmp.ne.s32.totalorder %s46, %s62
      %p64 = scmp.eq.s32.totalorder %s17, 0
      %p65 = por %p63, %p64
      %s66 = ssub.s32 %s20, %s29
      %s67 = ssub.s32 %s19, %s33
      %s68 = sor.u32 %s66, %s67
      %p69 = scmp.eq.s32.totalorder %s68, 0
      %s71 = sadd.s32 %s70, 1
      %s72 = scalar_select %p69, %s70, %s71
      %p75 = pneg %p69
      %p76 = scmp.eq.s32.totalorder %s11, 31
      %p77 = por %p75, %p76
      %p78 = scmp.ne.s32.totalorder %s70, %s73
      %p79 = scmp.eq.s32.totalorder %s11, 0
      %p80 = por %p78, %p79
      %p81 = scmp.ne.s32.totalorder %s70, %s73
      %p82 = scmp.eq.s32.totalorder %s16, 31
      %p83 = por %p81, %p82
      %p84 = scmp.ne.s32.totalorder %s73, %s74
      %p85 = scmp.eq.s32.totalorder %s16, 0
      %p86 = por %p84, %p85
      %p87 = scmp.ne.s32.totalorder %s73, %s74
      %p88 = scmp.eq.s32.totalorder %s17, 31
      %p89 = por %p87, %p88
      %p91 = scmp.ne.s32.totalorder %s74, %s90
      %p92 = scmp.eq.s32.totalorder %s17, 0
      %p93 = por %p91, %p92
      %s94 = ssub.s32 %s18, %s37
      %s95 = ssub.s32 %s19, %s33
      %s96 = sor.u32 %s94, %s95
      %p97 = scmp.eq.s32.totalorder %s96, 0
      %s99 = sadd.s32 %s98, 1
      %s100 = scalar_select %p97, %s98, %s99
      %p103 = pneg %p97
      %p104 = scmp.eq.s32.totalorder %s11, 31
      %p105 = por %p103, %p104
      %p106 = scmp.ne.s32.totalorder %s98, %s101
      %p107 = scmp.eq.s32.totalorder %s11, 0
      %p108 = por %p106, %p107
      %p109 = scmp.ne.s32.totalorder %s98, %s101
      %p110 = scmp.eq.s32.totalorder %s16, 31
      %p111 = por %p109, %p110
      %p112 = scmp.ne.s32.totalorder %s101, %s102
      %p113 = scmp.eq.s32.totalorder %s16, 0
      %p114 = por %p112, %p113
      %p115 = scmp.ne.s32.totalorder %s101, %s102
      %p116 = scmp.eq.s32.totalorder %s17, 31
      %p117 = por %p115, %p116
      %p119 = scmp.ne.s32.totalorder %s102, %s118
      %p120 = scmp.eq.s32.totalorder %s17, 0
      %p121 = por %p119, %p120
      %s122 = ssub.s32 %s18, %s37
      %s123 = ssub.s32 %s19, %s33
      %s124 = sor.u32 %s122, %s123
      %p125 = scmp.eq.s32.totalorder %s124, 0
      %s127 = sadd.s32 %s126, 1
      %s128 = scalar_select %p125, %s126, %s127
      %p131 = pneg %p125
      %p132 = scmp.eq.s32.totalorder %s11, 31
      %p133 = por %p131, %p132
      %p134 = scmp.ne.s32.totalorder %s126, %s129
      %p135 = scmp.eq.s32.totalorder %s11, 0
      %p136 = por %p134, %p135
      %p137 = scmp.ne.s32.totalorder %s126, %s129
      %p138 = scmp.eq.s32.totalorder %s16, 31
      %p139 = por %p137, %p138
      %p140 = scmp.ne.s32.totalorder %s129, %s130
      %p141 = scmp.eq.s32.totalorder %s16, 0
      %p142 = por %p140, %p141
      %p143 = scmp.ne.s32.totalorder %s129, %s130
      %p144 = scmp.eq.s32.totalorder %s17, 31
      %p145 = por %p143, %p144
      %p147 = scmp.ne.s32.totalorder %s130, %s146
      %p148 = scmp.eq.s32.totalorder %s17, 0
      %p149 = por %p147, %p148
      %s150 = ssub.s32 %s18, %s37
      %s151 = ssub.s32 %s19, %s33
      %s152 = sor.u32 %s150, %s151
      %p153 = scmp.eq.s32.totalorder %s152, 0
      %s155 = sadd.s32 %s154, 1
      %s156 = scalar_select %p153, %s154, %s155
      %p159 = pneg %p153
      %p160 = scmp.eq.s32.totalorder %s11, 31
      %p161 = por %p159, %p160
      %p162 = scmp.ne.s32.totalorder %s154, %s157
      %p163 = scmp.eq.s32.totalorder %s11, 0
      %p164 = por %p162, %p163
      %p165 = scmp.ne.s32.totalorder %s154, %s157
      %p166 = scmp.eq.s32.totalorder %s16, 31
      %p167 = por %p165, %p166
      %p168 = scmp.ne.s32.totalorder %s157, %s158
      %p169 = scmp.eq.s32.totalorder %s16, 0
      %p170 = por %p168, %p169
      %p171 = scmp.ne.s32.totalorder %s157, %s158
      %p172 = scmp.eq.s32.totalorder %s17, 31
      %p173 = por %p171, %p172
      %p175 = scmp.ne.s32.totalorder %s158, %s174
      %p176 = scmp.eq.s32.totalorder %s17, 0
      %p177 = por %p175, %p176
      %p178 = scmp.le.s32.totalorder 1, %s11
      %p179 = scmp.lt.s32.totalorder %s11, 33
      %p180 = pnand %p178, %p179
      %p181 = pneg %p180
      // Predicated region
      $region9: #{discriminator_forward.13} parent=5 // pred_check
        _
      $region10: #{discriminator_forward.13} parent=5 // pred_check_branch
        %183 = sbr.rel (%p180) target = $region12
      $region11: #{discriminator_forward.13} parent=5 // pred_region
        %s184 = ssub.s32 %s11, 1
      $region12: #{discriminator_forward.13} parent=5 // pred_fallthru
        _
      %p185 = scmp.lt.s32.totalorder %s11, 32
      // Predicated region
      $region13: #{discriminator_forward.13} parent=5 // pred_check
        %p186 = pneg %p185
      $region14: #{discriminator_forward.13} parent=5 // pred_check_branch
        %188 = sbr.rel (%p186) target = $region16
      $region15: #{discriminator_forward.13} parent=5 // pred_region
        // Predicated region
        $region17: #{discriminator_forward.13} parent=15 // pred_check
          %p189 = pneg %p52
        $region18: #{discriminator_forward.13} parent=15 // pred_check_branch
          %191 = sbr.rel (%p189) target = $region20
        $region19: #{discriminator_forward.13} parent=15 // pred_region
          %s192 = sand.u32 %s42, 1
          %s193 = sand.u32 %s42, 1
          %s194 = smul.addr %s193, 64
          %s195 = scalar_lea.vmem [#allocation3], %s194
          %s196 = smul.u32 4, %s18
          %s197 = smul.u32 4, %s20
          %s198 = smul.addr %s196, 32
          %s199 = sadd.s32 %s197, %s198
          %s200 = smul.addr %s199, 4
          %s201 = scalar_lea.vmem %s0, %s200
          // Predicated region
          $region21: #{discriminator_forward.13} parent=19 // pred_check
            _
          $region22: #{discriminator_forward.13} parent=19 // pred_check_branch
            %203 = sbr.rel (0) target = $region24
          $region23: #{discriminator_forward.13} parent=19 // pred_region
            // Predicated region
            $region25: #{discriminator_forward.13} parent=23 // pred_check
              _
            $region26: #{discriminator_forward.13} parent=23 // pred_check_branch
              %205 = sbr.rel (0) target = $region28
            $region27: #{discriminator_forward.13} parent=23 // pred_region
              loop: start=0, step=1, limit=1
              $region29: #{discriminator_forward.13} parent=27 // loop_pre_header
                _
              $region30: #{discriminator_forward.13} parent=27 // loop_header
                %s207 = sphi 0, %s211
                %p208 = scmp.ge.s32.totalorder %s207, 1
                %s212 = sphi %s201, %s201
                %s213 = sphi %s195, %s195
              $region31: #{discriminator_forward.13} parent=27 // loop_header_branch
                %210 = sbr.rel (%p208) target = $region35
              $region32: #{discriminator_forward.13} parent=27 // loop_body
                %v214 = vld [vmem:[%s212] sm:$0xff]
                %215 = vst [vmem:[%s213] sm:$0xff] %v214
                %v216 = vld [vmem:[%s212 + $0x8] sm:$0xff]
                %217 = vst [vmem:[%s213 + $0x8] sm:$0xff] %v216
                %v218 = vld [vmem:[%s212 + $0x80] sm:$0xff]
                %219 = vst [vmem:[%s213 + $0x10] sm:$0xff] %v218
                %v220 = vld [vmem:[%s212 + $0x88] sm:$0xff]
                %221 = vst [vmem:[%s213 + $0x18] sm:$0xff] %v220
                %v222 = vld [vmem:[%s212 + $0x100] sm:$0xff]
                %223 = vst [vmem:[%s213 + $0x20] sm:$0xff] %v222
                %v224 = vld [vmem:[%s212 + $0x108] sm:$0xff]
                %225 = vst [vmem:[%s213 + $0x28] sm:$0xff] %v224
                %v226 = vld [vmem:[%s212 + $0x180] sm:$0xff]
                %227 = vst [vmem:[%s213 + $0x30] sm:$0xff] %v226
                %v228 = vld [vmem:[%s212 + $0x188] sm:$0xff]
                %229 = vst [vmem:[%s213 + $0x38] sm:$0xff] %v228
              $region33: #{discriminator_forward.13} parent=27 // loop_footer
                %s211 = sadd.s32 1, %s207
              $region34: #{discriminator_forward.13} parent=27 // loop_footer_branch
                %206 = sbr.rel target = $region30
              $region35: #{discriminator_forward.13} parent=27 // loop_exit
                _
            $region28: #{discriminator_forward.13} parent=23 // pred_fallthru
              _
            // Predicated region
            $region36: #{discriminator_forward.13} parent=23 // pred_check
              _
            $region37: #{discriminator_forward.13} parent=23 // pred_check_branch
              %231 = sbr.rel target = $region39
            $region38: #{discriminator_forward.13} parent=23 // pred_region
              _
            $region39: #{discriminator_forward.13} parent=23 // pred_fallthru
              _
          $region24: #{discriminator_forward.13} parent=19 // pred_fallthru
            _
          %232 = vnop
        $region20: #{discriminator_forward.13} parent=15 // pred_fallthru
          _
        // Predicated region
        $region40: #{discriminator_forward.13} parent=15 // pred_check
          %p233 = pneg %p80
        $region41: #{discriminator_forward.13} parent=15 // pred_check_branch
          %235 = sbr.rel (%p233) target = $region43
        $region42: #{discriminator_forward.13} parent=15 // pred_region
          %s236 = sand.u32 %s70, 1
          %s237 = sand.u32 %s70, 1
          %s238 = smul.addr %s237, 256
          %s239 = scalar_lea.vmem [#allocation4], %s238
          %s240 = smul.u32 64, %s20
          %s241 = smul.addr %s240, 4
          %s242 = sadd.s32 %s19, %s241
          %s243 = smul.addr %s242, 4
          %s244 = scalar_lea.vmem %s1, %s243
          // Predicated region
          $region44: #{discriminator_forward.13} parent=42 // pred_check
            _
          $region45: #{discriminator_forward.13} parent=42 // pred_check_branch
            %246 = sbr.rel (0) target = $region47
          $region46: #{discriminator_forward.13} parent=42 // pred_region
            // Predicated region
            $region48: #{discriminator_forward.13} parent=46 // pred_check
              _
            $region49: #{discriminator_forward.13} parent=46 // pred_check_branch
              %248 = sbr.rel target = $region51
            $region50: #{discriminator_forward.13} parent=46 // pred_region
              // Predicated region
              $region63: #{discriminator_forward.13} parent=50 // pred_check
                _
              $region64: #{discriminator_forward.13} parent=50 // pred_check_branch
                %390 = sbr.rel (0) target = $region66
              $region65: #{discriminator_forward.13} parent=50 // pred_region
                loop: start=0, step=1, limit=1
                $region67: #{discriminator_forward.13} parent=65 // loop_pre_header
                  _
                $region68: #{discriminator_forward.13} parent=65 // loop_header
                  %s392 = sphi 0, %s396
                  %p393 = scmp.ge.s32.totalorder %s392, 1
                  %s397 = sphi %s244, %s244
                  %s398 = sphi %s239, %s239
                $region69: #{discriminator_forward.13} parent=65 // loop_header_branch
                  %395 = sbr.rel (%p393) target = $region73
                $region70: #{discriminator_forward.13} parent=65 // loop_body
                  _
                $region71: #{discriminator_forward.13} parent=65 // loop_footer
                  %s396 = sadd.s32 1, %s392
                $region72: #{discriminator_forward.13} parent=65 // loop_footer_branch
                  %391 = sbr.rel target = $region68
                $region73: #{discriminator_forward.13} parent=65 // loop_exit
                  _
                %s400 = ssub.s32 16, 1
                loop: start=0, step=1, limit=1
                $region74: #{discriminator_forward.13} parent=65 // loop_pre_header
                  _
                $region75: #{discriminator_forward.13} parent=65 // loop_header
                  %s402 = sphi 0, %s406
                  %p403 = scmp.ge.s32.totalorder %s402, 1
                  %s407 = sphi %s244, %s244
                  %s408 = sphi %s239, %s239
                $region76: #{discriminator_forward.13} parent=65 // loop_header_branch
                  %405 = sbr.rel (%p403) target = $region80
                $region77: #{discriminator_forward.13} parent=65 // loop_body
                  %v409 = vld [vmem:[%s407] sm:%s400]
                  %410 = vst [vmem:[%s408] sm:%s400] %v409
                  %v411 = vld [vmem:[%s407 + $0x10] sm:%s400]
                  %412 = vst [vmem:[%s408 + $0x4] sm:%s400] %v411
                  %v413 = vld [vmem:[%s407 + $0x20] sm:%s400]
                  %414 = vst [vmem:[%s408 + $0x8] sm:%s400] %v413
                  %v415 = vld [vmem:[%s407 + $0x30] sm:%s400]
                  %416 = vst [vmem:[%s408 + $0xc] sm:%s400] %v415
                  %v417 = vld [vmem:[%s407 + $0x40] sm:%s400]
                  %418 = vst [vmem:[%s408 + $0x10] sm:%s400] %v417
                  %v419 = vld [vmem:[%s407 + $0x50] sm:%s400]
                  %420 = vst [vmem:[%s408 + $0x14] sm:%s400] %v419
                  %v421 = vld [vmem:[%s407 + $0x60] sm:%s400]
                  %422 = vst [vmem:[%s408 + $0x18] sm:%s400] %v421
                  %v423 = vld [vmem:[%s407 + $0x70] sm:%s400]
                  %424 = vst [vmem:[%s408 + $0x1c] sm:%s400] %v423
                  %v425 = vld [vmem:[%s407 + $0x80] sm:%s400]
                  %426 = vst [vmem:[%s408 + $0x20] sm:%s400] %v425
                  %v427 = vld [vmem:[%s407 + $0x90] sm:%s400]
                  %428 = vst [vmem:[%s408 + $0x24] sm:%s400] %v427
                  %v429 = vld [vmem:[%s407 + $0xa0] sm:%s400]
                  %430 = vst [vmem:[%s408 + $0x28] sm:%s400] %v429
                  %v431 = vld [vmem:[%s407 + $0xb0] sm:%s400]
                  %432 = vst [vmem:[%s408 + $0x2c] sm:%s400] %v431
                  %v433 = vld [vmem:[%s407 + $0xc0] sm:%s400]
                  %434 = vst [vmem:[%s408 + $0x30] sm:%s400] %v433
                  %v435 = vld [vmem:[%s407 + $0xd0] sm:%s400]
                  %436 = vst [vmem:[%s408 + $0x34] sm:%s400] %v435
                  %v437 = vld [vmem:[%s407 + $0xe0] sm:%s400]
                  %438 = vst [vmem:[%s408 + $0x38] sm:%s400] %v437
                  %v439 = vld [vmem:[%s407 + $0xf0] sm:%s400]
                  %440 = vst [vmem:[%s408 + $0x3c] sm:%s400] %v439
                  %v441 = vld [vmem:[%s407 + $0x100] sm:%s400]
                  %442 = vst [vmem:[%s408 + $0x40] sm:%s400] %v441
                  %v443 = vld [vmem:[%s407 + $0x110] sm:%s400]
                  %444 = vst [vmem:[%s408 + $0x44] sm:%s400] %v443
                  %v445 = vld [vmem:[%s407 + $0x120] sm:%s400]
                  %446 = vst [vmem:[%s408 + $0x48] sm:%s400] %v445
                  %v447 = vld [vmem:[%s407 + $0x130] sm:%s400]
                  %448 = vst [vmem:[%s408 + $0x4c] sm:%s400] %v447
                  %v449 = vld [vmem:[%s407 + $0x140] sm:%s400]
                  %450 = vst [vmem:[%s408 + $0x50] sm:%s400] %v449
                  %v451 = vld [vmem:[%s407 + $0x150] sm:%s400]
                  %452 = vst [vmem:[%s408 + $0x54] sm:%s400] %v451
                  %v453 = vld [vmem:[%s407 + $0x160] sm:%s400]
                  %454 = vst [vmem:[%s408 + $0x58] sm:%s400] %v453
                  %v455 = vld [vmem:[%s407 + $0x170] sm:%s400]
                  %456 = vst [vmem:[%s408 + $0x5c] sm:%s400] %v455
                  %v457 = vld [vmem:[%s407 + $0x180] sm:%s400]
                  %458 = vst [vmem:[%s408 + $0x60] sm:%s400] %v457
                  %v459 = vld [vmem:[%s407 + $0x190] sm:%s400]
                  %460 = vst [vmem:[%s408 + $0x64] sm:%s400] %v459
                  %v461 = vld [vmem:[%s407 + $0x1a0] sm:%s400]
                  %462 = vst [vmem:[%s408 + $0x68] sm:%s400] %v461
                  %v463 = vld [vmem:[%s407 + $0x1b0] sm:%s400]
                  %464 = vst [vmem:[%s408 + $0x6c] sm:%s400] %v463
                  %v465 = vld [vmem:[%s407 + $0x1c0] sm:%s400]
                  %466 = vst [vmem:[%s408 + $0x70] sm:%s400] %v465
                  %v467 = vld [vmem:[%s407 + $0x1d0] sm:%s400]
                  %468 = vst [vmem:[%s408 + $0x74] sm:%s400] %v467
                  %v469 = vld [vmem:[%s407 + $0x1e0] sm:%s400]
                  %470 = vst [vmem:[%s408 + $0x78] sm:%s400] %v469
                  %v471 = vld [vmem:[%s407 + $0x1f0] sm:%s400]
                  %472 = vst [vmem:[%s408 + $0x7c] sm:%s400] %v471
                  %v473 = vld [vmem:[%s407 + $0x200] sm:%s400]
                  %474 = vst [vmem:[%s408 + $0x80] sm:%s400] %v473
                  %v475 = vld [vmem:[%s407 + $0x210] sm:%s400]
                  %476 = vst [vmem:[%s408 + $0x84] sm:%s400] %v475
                  %v477 = vld [vmem:[%s407 + $0x220] sm:%s400]
                  %478 = vst [vmem:[%s408 + $0x88] sm:%s400] %v477
                  %v479 = vld [vmem:[%s407 + $0x230] sm:%s400]
                  %480 = vst [vmem:[%s408 + $0x8c] sm:%s400] %v479
                  %v481 = vld [vmem:[%s407 + $0x240] sm:%s400]
                  %482 = vst [vmem:[%s408 + $0x90] sm:%s400] %v481
                  %v483 = vld [vmem:[%s407 + $0x250] sm:%s400]
                  %484 = vst [vmem:[%s408 + $0x94] sm:%s400] %v483
                  %v485 = vld [vmem:[%s407 + $0x260] sm:%s400]
                  %486 = vst [vmem:[%s408 + $0x98] sm:%s400] %v485
                  %v487 = vld [vmem:[%s407 + $0x270] sm:%s400]
                  %488 = vst [vmem:[%s408 + $0x9c] sm:%s400] %v487
                  %v489 = vld [vmem:[%s407 + $0x280] sm:%s400]
                  %490 = vst [vmem:[%s408 + $0xa0] sm:%s400] %v489
                  %v491 = vld [vmem:[%s407 + $0x290] sm:%s400]
                  %492 = vst [vmem:[%s408 + $0xa4] sm:%s400] %v491
                  %v493 = vld [vmem:[%s407 + $0x2a0] sm:%s400]
                  %494 = vst [vmem:[%s408 + $0xa8] sm:%s400] %v493
                  %v495 = vld [vmem:[%s407 + $0x2b0] sm:%s400]
                  %496 = vst [vmem:[%s408 + $0xac] sm:%s400] %v495
                  %v497 = vld [vmem:[%s407 + $0x2c0] sm:%s400]
                  %498 = vst [vmem:[%s408 + $0xb0] sm:%s400] %v497
                  %v499 = vld [vmem:[%s407 + $0x2d0] sm:%s400]
                  %500 = vst [vmem:[%s408 + $0xb4] sm:%s400] %v499
                  %v501 = vld [vmem:[%s407 + $0x2e0] sm:%s400]
                  %502 = vst [vmem:[%s408 + $0xb8] sm:%s400] %v501
                  %v503 = vld [vmem:[%s407 + $0x2f0] sm:%s400]
                  %504 = vst [vmem:[%s408 + $0xbc] sm:%s400] %v503
                  %v505 = vld [vmem:[%s407 + $0x300] sm:%s400]
                  %506 = vst [vmem:[%s408 + $0xc0] sm:%s400] %v505
                  %v507 = vld [vmem:[%s407 + $0x310] sm:%s400]
                  %508 = vst [vmem:[%s408 + $0xc4] sm:%s400] %v507
                  %v509 = vld [vmem:[%s407 + $0x320] sm:%s400]
                  %510 = vst [vmem:[%s408 + $0xc8] sm:%s400] %v509
                  %v511 = vld [vmem:[%s407 + $0x330] sm:%s400]
                  %512 = vst [vmem:[%s408 + $0xcc] sm:%s400] %v511
                  %v513 = vld [vmem:[%s407 + $0x340] sm:%s400]
                  %514 = vst [vmem:[%s408 + $0xd0] sm:%s400] %v513
                  %v515 = vld [vmem:[%s407 + $0x350] sm:%s400]
                  %516 = vst [vmem:[%s408 + $0xd4] sm:%s400] %v515
                  %v517 = vld [vmem:[%s407 + $0x360] sm:%s400]
                  %518 = vst [vmem:[%s408 + $0xd8] sm:%s400] %v517
                  %v519 = vld [vmem:[%s407 + $0x370] sm:%s400]
                  %520 = vst [vmem:[%s408 + $0xdc] sm:%s400] %v519
                  %v521 = vld [vmem:[%s407 + $0x380] sm:%s400]
                  %522 = vst [vmem:[%s408 + $0xe0] sm:%s400] %v521
                  %v523 = vld [vmem:[%s407 + $0x390] sm:%s400]
                  %524 = vst [vmem:[%s408 + $0xe4] sm:%s400] %v523
                  %v525 = vld [vmem:[%s407 + $0x3a0] sm:%s400]
                  %526 = vst [vmem:[%s408 + $0xe8] sm:%s400] %v525
                  %v527 = vld [vmem:[%s407 + $0x3b0] sm:%s400]
                  %528 = vst [vmem:[%s408 + $0xec] sm:%s400] %v527
                  %v529 = vld [vmem:[%s407 + $0x3c0] sm:%s400]
                  %530 = vst [vmem:[%s408 + $0xf0] sm:%s400] %v529
                  %v531 = vld [vmem:[%s407 + $0x3d0] sm:%s400]
                  %532 = vst [vmem:[%s408 + $0xf4] sm:%s400] %v531
                  %v533 = vld [vmem:[%s407 + $0x3e0] sm:%s400]
                  %534 = vst [vmem:[%s408 + $0xf8] sm:%s400] %v533
                  %v535 = vld [vmem:[%s407 + $0x3f0] sm:%s400]
                  %536 = vst [vmem:[%s408 + $0xfc] sm:%s400] %v535
                $region78: #{discriminator_forward.13} parent=65 // loop_footer
                  %s406 = sadd.s32 1, %s402
                $region79: #{discriminator_forward.13} parent=65 // loop_footer_branch
                  %401 = sbr.rel target = $region75
                $region80: #{discriminator_forward.13} parent=65 // loop_exit
                  _
              $region66: #{discriminator_forward.13} parent=50 // pred_fallthru
                _
            $region51: #{discriminator_forward.13} parent=46 // pred_fallthru
              _
            // Predicated region
            $region52: #{discriminator_forward.13} parent=46 // pred_check
              _
            $region53: #{discriminator_forward.13} parent=46 // pred_check_branch
              %250 = sbr.rel (0) target = $region55
            $region54: #{discriminator_forward.13} parent=46 // pred_region
              %s252 = ssub.s32 16, 1
              loop: start=0, step=1, limit=1
              $region56: #{discriminator_forward.13} parent=54 // loop_pre_header
                _
              $region57: #{discriminator_forward.13} parent=54 // loop_header
                %s254 = sphi 0, %s258
                %p255 = scmp.ge.s32.totalorder %s254, 1
                %s259 = sphi %s244, %s244
                %s260 = sphi %s239, %s239
              $region58: #{discriminator_forward.13} parent=54 // loop_header_branch
                %257 = sbr.rel (%p255) target = $region62
              $region59: #{discriminator_forward.13} parent=54 // loop_body
                %v261 = vld [vmem:[%s259] sm:%s252]
                %262 = vst [vmem:[%s260] sm:%s252] %v261
                %v263 = vld [vmem:[%s259 + $0x10] sm:%s252]
                %264 = vst [vmem:[%s260 + $0x4] sm:%s252] %v263
                %v265 = vld [vmem:[%s259 + $0x20] sm:%s252]
                %266 = vst [vmem:[%s260 + $0x8] sm:%s252] %v265
                %v267 = vld [vmem:[%s259 + $0x30] sm:%s252]
                %268 = vst [vmem:[%s260 + $0xc] sm:%s252] %v267
                %v269 = vld [vmem:[%s259 + $0x40] sm:%s252]
                %270 = vst [vmem:[%s260 + $0x10] sm:%s252] %v269
                %v271 = vld [vmem:[%s259 + $0x50] sm:%s252]
                %272 = vst [vmem:[%s260 + $0x14] sm:%s252] %v271
                %v273 = vld [vmem:[%s259 + $0x60] sm:%s252]
                %274 = vst [vmem:[%s260 + $0x18] sm:%s252] %v273
                %v275 = vld [vmem:[%s259 + $0x70] sm:%s252]
                %276 = vst [vmem:[%s260 + $0x1c] sm:%s252] %v275
                %v277 = vld [vmem:[%s259 + $0x80] sm:%s252]
                %278 = vst [vmem:[%s260 + $0x20] sm:%s252] %v277
                %v279 = vld [vmem:[%s259 + $0x90] sm:%s252]
                %280 = vst [vmem:[%s260 + $0x24] sm:%s252] %v279
                %v281 = vld [vmem:[%s259 + $0xa0] sm:%s252]
                %282 = vst [vmem:[%s260 + $0x28] sm:%s252] %v281
                %v283 = vld [vmem:[%s259 + $0xb0] sm:%s252]
                %284 = vst [vmem:[%s260 + $0x2c] sm:%s252] %v283
                %v285 = vld [vmem:[%s259 + $0xc0] sm:%s252]
                %286 = vst [vmem:[%s260 + $0x30] sm:%s252] %v285
                %v287 = vld [vmem:[%s259 + $0xd0] sm:%s252]
                %288 = vst [vmem:[%s260 + $0x34] sm:%s252] %v287
                %v289 = vld [vmem:[%s259 + $0xe0] sm:%s252]
                %290 = vst [vmem:[%s260 + $0x38] sm:%s252] %v289
                %v291 = vld [vmem:[%s259 + $0xf0] sm:%s252]
                %292 = vst [vmem:[%s260 + $0x3c] sm:%s252] %v291
                %v293 = vld [vmem:[%s259 + $0x100] sm:%s252]
                %294 = vst [vmem:[%s260 + $0x40] sm:%s252] %v293
                %v295 = vld [vmem:[%s259 + $0x110] sm:%s252]
                %296 = vst [vmem:[%s260 + $0x44] sm:%s252] %v295
                %v297 = vld [vmem:[%s259 + $0x120] sm:%s252]
                %298 = vst [vmem:[%s260 + $0x48] sm:%s252] %v297
                %v299 = vld [vmem:[%s259 + $0x130] sm:%s252]
                %300 = vst [vmem:[%s260 + $0x4c] sm:%s252] %v299
                %v301 = vld [vmem:[%s259 + $0x140] sm:%s252]
                %302 = vst [vmem:[%s260 + $0x50] sm:%s252] %v301
                %v303 = vld [vmem:[%s259 + $0x150] sm:%s252]
                %304 = vst [vmem:[%s260 + $0x54] sm:%s252] %v303
                %v305 = vld [vmem:[%s259 + $0x160] sm:%s252]
                %306 = vst [vmem:[%s260 + $0x58] sm:%s252] %v305
                %v307 = vld [vmem:[%s259 + $0x170] sm:%s252]
                %308 = vst [vmem:[%s260 + $0x5c] sm:%s252] %v307
                %v309 = vld [vmem:[%s259 + $0x180] sm:%s252]
                %310 = vst [vmem:[%s260 + $0x60] sm:%s252] %v309
                %v311 = vld [vmem:[%s259 + $0x190] sm:%s252]
                %312 = vst [vmem:[%s260 + $0x64] sm:%s252] %v311
                %v313 = vld [vmem:[%s259 + $0x1a0] sm:%s252]
                %314 = vst [vmem:[%s260 + $0x68] sm:%s252] %v313
                %v315 = vld [vmem:[%s259 + $0x1b0] sm:%s252]
                %316 = vst [vmem:[%s260 + $0x6c] sm:%s252] %v315
                %v317 = vld [vmem:[%s259 + $0x1c0] sm:%s252]
                %318 = vst [vmem:[%s260 + $0x70] sm:%s252] %v317
                %v319 = vld [vmem:[%s259 + $0x1d0] sm:%s252]
                %320 = vst [vmem:[%s260 + $0x74] sm:%s252] %v319
                %v321 = vld [vmem:[%s259 + $0x1e0] sm:%s252]
                %322 = vst [vmem:[%s260 + $0x78] sm:%s252] %v321
                %v323 = vld [vmem:[%s259 + $0x1f0] sm:%s252]
                %324 = vst [vmem:[%s260 + $0x7c] sm:%s252] %v323
                %v325 = vld [vmem:[%s259 + $0x200] sm:%s252]
                %326 = vst [vmem:[%s260 + $0x80] sm:%s252] %v325
                %v327 = vld [vmem:[%s259 + $0x210] sm:%s252]
                %328 = vst [vmem:[%s260 + $0x84] sm:%s252] %v327
                %v329 = vld [vmem:[%s259 + $0x220] sm:%s252]
                %330 = vst [vmem:[%s260 + $0x88] sm:%s252] %v329
                %v331 = vld [vmem:[%s259 + $0x230] sm:%s252]
                %332 = vst [vmem:[%s260 + $0x8c] sm:%s252] %v331
                %v333 = vld [vmem:[%s259 + $0x240] sm:%s252]
                %334 = vst [vmem:[%s260 + $0x90] sm:%s252] %v333
                %v335 = vld [vmem:[%s259 + $0x250] sm:%s252]
                %336 = vst [vmem:[%s260 + $0x94] sm:%s252] %v335
                %v337 = vld [vmem:[%s259 + $0x260] sm:%s252]
                %338 = vst [vmem:[%s260 + $0x98] sm:%s252] %v337
                %v339 = vld [vmem:[%s259 + $0x270] sm:%s252]
                %340 = vst [vmem:[%s260 + $0x9c] sm:%s252] %v339
                %v341 = vld [vmem:[%s259 + $0x280] sm:%s252]
                %342 = vst [vmem:[%s260 + $0xa0] sm:%s252] %v341
                %v343 = vld [vmem:[%s259 + $0x290] sm:%s252]
                %344 = vst [vmem:[%s260 + $0xa4] sm:%s252] %v343
                %v345 = vld [vmem:[%s259 + $0x2a0] sm:%s252]
                %346 = vst [vmem:[%s260 + $0xa8] sm:%s252] %v345
                %v347 = vld [vmem:[%s259 + $0x2b0] sm:%s252]
                %348 = vst [vmem:[%s260 + $0xac] sm:%s252] %v347
                %v349 = vld [vmem:[%s259 + $0x2c0] sm:%s252]
                %350 = vst [vmem:[%s260 + $0xb0] sm:%s252] %v349
                %v351 = vld [vmem:[%s259 + $0x2d0] sm:%s252]
                %352 = vst [vmem:[%s260 + $0xb4] sm:%s252] %v351
                %v353 = vld [vmem:[%s259 + $0x2e0] sm:%s252]
                %354 = vst [vmem:[%s260 + $0xb8] sm:%s252] %v353
                %v355 = vld [vmem:[%s259 + $0x2f0] sm:%s252]
                %356 = vst [vmem:[%s260 + $0xbc] sm:%s252] %v355
                %v357 = vld [vmem:[%s259 + $0x300] sm:%s252]
                %358 = vst [vmem:[%s260 + $0xc0] sm:%s252] %v357
                %v359 = vld [vmem:[%s259 + $0x310] sm:%s252]
                %360 = vst [vmem:[%s260 + $0xc4] sm:%s252] %v359
                %v361 = vld [vmem:[%s259 + $0x320] sm:%s252]
                %362 = vst [vmem:[%s260 + $0xc8] sm:%s252] %v361
                %v363 = vld [vmem:[%s259 + $0x330] sm:%s252]
                %364 = vst [vmem:[%s260 + $0xcc] sm:%s252] %v363
                %v365 = vld [vmem:[%s259 + $0x340] sm:%s252]
                %366 = vst [vmem:[%s260 + $0xd0] sm:%s252] %v365
                %v367 = vld [vmem:[%s259 + $0x350] sm:%s252]
                %368 = vst [vmem:[%s260 + $0xd4] sm:%s252] %v367
                %v369 = vld [vmem:[%s259 + $0x360] sm:%s252]
                %370 = vst [vmem:[%s260 + $0xd8] sm:%s252] %v369
                %v371 = vld [vmem:[%s259 + $0x370] sm:%s252]
                %372 = vst [vmem:[%s260 + $0xdc] sm:%s252] %v371
                %v373 = vld [vmem:[%s259 + $0x380] sm:%s252]
                %374 = vst [vmem:[%s260 + $0xe0] sm:%s252] %v373
                %v375 = vld [vmem:[%s259 + $0x390] sm:%s252]
                %376 = vst [vmem:[%s260 + $0xe4] sm:%s252] %v375
                %v377 = vld [vmem:[%s259 + $0x3a0] sm:%s252]
                %378 = vst [vmem:[%s260 + $0xe8] sm:%s252] %v377
                %v379 = vld [vmem:[%s259 + $0x3b0] sm:%s252]
                %380 = vst [vmem:[%s260 + $0xec] sm:%s252] %v379
                %v381 = vld [vmem:[%s259 + $0x3c0] sm:%s252]
                %382 = vst [vmem:[%s260 + $0xf0] sm:%s252] %v381
                %v383 = vld [vmem:[%s259 + $0x3d0] sm:%s252]
                %384 = vst [vmem:[%s260 + $0xf4] sm:%s252] %v383
                %v385 = vld [vmem:[%s259 + $0x3e0] sm:%s252]
                %386 = vst [vmem:[%s260 + $0xf8] sm:%s252] %v385
                %v387 = vld [vmem:[%s259 + $0x3f0] sm:%s252]
                %388 = vst [vmem:[%s260 + $0xfc] sm:%s252] %v387
              $region60: #{discriminator_forward.13} parent=54 // loop_footer
                %s258 = sadd.s32 1, %s254
              $region61: #{discriminator_forward.13} parent=54 // loop_footer_branch
                %253 = sbr.rel target = $region57
              $region62: #{discriminator_forward.13} parent=54 // loop_exit
                _
            $region55: #{discriminator_forward.13} parent=46 // pred_fallthru
              _
          $region47: #{discriminator_forward.13} parent=42 // pred_fallthru
            _
          %537 = vnop
        $region43: #{discriminator_forward.13} parent=15 // pred_fallthru
          _
      $region16: #{discriminator_forward.13} parent=5 // pred_fallthru
        _
      %p538 = scmp.le.s32.totalorder 1, %s11
      %p539 = scmp.lt.s32.totalorder %s11, 33
      %p540 = pnand %p538, %p539
      %p541 = pneg %p540
      // Predicated region
      $region81: #{discriminator_forward.13} parent=5 // pred_check
        _
      $region82: #{discriminator_forward.13} parent=5 // pred_check_branch
        %543 = sbr.rel (%p540) target = $region84
      $region83: #{discriminator_forward.13} parent=5 // pred_region
        %s544 = ssub.s32 %s11, 1
        %s545 = sand.u32 %s45, 1
        %s546 = sand.u32 %s45, 1
        %s547 = smul.addr %s546, 64
        %s548 = scalar_lea.vmem [#allocation3], %s547
        // Predicated region
        $region85: #{discriminator_forward.13} parent=83 // pred_check
          %p549 = pneg %p58
        $region86: #{discriminator_forward.13} parent=83 // pred_check_branch
          %551 = sbr.rel (%p549) target = $region88
        $region87: #{discriminator_forward.13} parent=83 // pred_region
          _
        $region88: #{discriminator_forward.13} parent=83 // pred_fallthru
          _
        %s552 = sand.u32 %s73, 1
        %s553 = sand.u32 %s73, 1
        %s554 = smul.addr %s553, 256
        %s555 = scalar_lea.vmem [#allocation4], %s554
        // Predicated region
        $region89: #{discriminator_forward.13} parent=83 // pred_check
          %p556 = pneg %p86
        $region90: #{discriminator_forward.13} parent=83 // pred_check_branch
          %558 = sbr.rel (%p556) target = $region92
        $region91: #{discriminator_forward.13} parent=83 // pred_region
          _
        $region92: #{discriminator_forward.13} parent=83 // pred_fallthru
          _
        %s559 = sand.u32 %s45, 1
        %s560 = sand.u32 %s45, 1
        %s561 = smul.addr %s560, 64
        %s562 = scalar_lea.vmem [#allocation3], %s561
        %p563 = pneg %p58
        %p564 = pneg %p55
        %s565 = sand.u32 %s73, 1
        %s566 = sand.u32 %s73, 1
        %s567 = smul.addr %s566, 256
        %s568 = scalar_lea.vmem [#allocation4], %s567
        %p569 = pneg %p86
        %p570 = pneg %p83
        %p571 = pneg %p114
        %p572 = pneg %p111
        %s573 = sand.u32 %s101, 1
        %s574 = sand.u32 %s101, 1
        %s575 = smul.addr %s574, 32
        %s576 = scalar_lea.vmem [#allocation5], %s575
        %p577 = pneg %p142
        %p578 = pneg %p139
        %p579 = scmp.lt.s32.totalorder %s21, 0
        %s580 = scalar_select %p579, %s21, 0
        %p581 = scmp.lt.s32.totalorder %s22, 3
        %s582 = scalar_select %p581, %s22, 3
        %s583 = smul.addr %s580, 4
        %s584 = sadd.s32 %s582, %s583
        %s585 = smul.addr %s584, 8
        %s586 = scalar_lea.vmem %s3, %s585
        %p587 = pneg %p170
        %p588 = pneg %p167
        %p589 = scmp.lt.s32.totalorder %s21, 0
        %s590 = scalar_select %p589, %s21, 0
        %p591 = scmp.lt.s32.totalorder %s22, 3
        %s592 = scalar_select %p591, %s22, 3
        %s593 = smul.addr %s590, 4
        %s594 = sadd.s32 %s592, %s593
        %s595 = smul.addr %s594, 8
        %s596 = scalar_lea.vmem %s4, %s595
        %s597 = smul.u32 4, %s21
        %s598 = smul.u32 4, %s23
        %s599 = smul.u32 64, %s23
        %s600 = smul.u32 4, %s21
        %p601 = scmp.lt.s32.totalorder %s21, 0
        %s602 = scalar_select %p601, %s21, 0
        %p603 = scmp.lt.s32.totalorder %s22, 3
        %s604 = scalar_select %p603, %s22, 3
        %s605 = smul.addr %s602, 4
        %s606 = sadd.s32 %s604, %s605
        %s607 = smul.addr %s606, 8
        %s608 = scalar_lea.vmem %s3, %s607
        %p609 = scmp.lt.s32.totalorder %s21, 0
        %s610 = scalar_select %p609, %s21, 0
        %p611 = scmp.lt.s32.totalorder %s22, 3
        %s612 = scalar_select %p611, %s22, 3
        %s613 = smul.addr %s610, 4
        %s614 = sadd.s32 %s612, %s613
        %s615 = smul.addr %s614, 8
        %s616 = scalar_lea.vmem %s4, %s615
        %p617 = scmp.eq.s32.totalorder %s23, 0
        // Predicated region
        $region93: #{discriminator_forward.13} parent=83 // pred_check
          %p618 = pneg %p617
        $region94: #{discriminator_forward.13} parent=83 // pred_check_branch
          %620 = sbr.rel (%p618) target = $region96
        $region95: #{discriminator_forward.13} parent=83 // pred_region
          %621 = vst [vmem:[#allocation2] sm:$0xff] 0.0
          %622 = vst [vmem:[#allocation2 + $0x8] sm:$0xff] 0.0
          %623 = vst [vmem:[#allocation2 + $0x10] sm:$0xff] 0.0
          %624 = vst [vmem:[#allocation2 + $0x18] sm:$0xff] 0.0
        $region96: #{discriminator_forward.13} parent=83 // pred_fallthru
          _
        %v625 = vld [vmem:[#allocation2] sm:$0xff]
        %v626 = vld [vmem:[#allocation2 + $0x8] sm:$0xff]
        %v627 = vld [vmem:[#allocation2 + $0x10] sm:$0xff]
        %v628 = vld [vmem:[#allocation2 + $0x18] sm:$0xff]
        %v629 = vld [vmem:[%s548] sm:$0xff]
        %v630 = vld [vmem:[%s548 + $0x8] sm:$0xff]
        %v631 = vld [vmem:[%s548 + $0x10] sm:$0xff]
        %v632 = vld [vmem:[%s548 + $0x18] sm:$0xff]
        %v633 = vld [vmem:[%s548 + $0x20] sm:$0xff]
        %v634 = vld [vmem:[%s548 + $0x28] sm:$0xff]
        %v635 = vld [vmem:[%s548 + $0x30] sm:$0xff]
        %v636 = vld [vmem:[%s548 + $0x38] sm:$0xff]
        %v637 = vld [vmem:[%s555] sm:$0xf]
        %v638 = vld [vmem:[%s555 + $0x4] sm:$0xf]
        %v639 = vld [vmem:[%s555 + $0x8] sm:$0xf]
        %v640 = vld [vmem:[%s555 + $0xc] sm:$0xf]
        %v641 = vld [vmem:[%s555 + $0x10] sm:$0xf]
        %v642 = vld [vmem:[%s555 + $0x14] sm:$0xf]
        %v643 = vld [vmem:[%s555 + $0x18] sm:$0xf]
        %v644 = vld [vmem:[%s555 + $0x1c] sm:$0xf]
        %v645 = vld [vmem:[%s555 + $0x20] sm:$0xf]
        %v646 = vld [vmem:[%s555 + $0x24] sm:$0xf]
        %v647 = vld [vmem:[%s555 + $0x28] sm:$0xf]
        %v648 = vld [vmem:[%s555 + $0x2c] sm:$0xf]
        %v649 = vld [vmem:[%s555 + $0x30] sm:$0xf]
        %v650 = vld [vmem:[%s555 + $0x34] sm:$0xf]
        %v651 = vld [vmem:[%s555 + $0x38] sm:$0xf]
        %v652 = vld [vmem:[%s555 + $0x3c] sm:$0xf]
        %v653 = vld [vmem:[%s555 + $0x40] sm:$0xf]
        %v654 = vld [vmem:[%s555 + $0x44] sm:$0xf]
        %v655 = vld [vmem:[%s555 + $0x48] sm:$0xf]
        %v656 = vld [vmem:[%s555 + $0x4c] sm:$0xf]
        %v657 = vld [vmem:[%s555 + $0x50] sm:$0xf]
        %v658 = vld [vmem:[%s555 + $0x54] sm:$0xf]
        %v659 = vld [vmem:[%s555 + $0x58] sm:$0xf]
        %v660 = vld [vmem:[%s555 + $0x5c] sm:$0xf]
        %v661 = vld [vmem:[%s555 + $0x60] sm:$0xf]
        %v662 = vld [vmem:[%s555 + $0x64] sm:$0xf]
        %v663 = vld [vmem:[%s555 + $0x68] sm:$0xf]
        %v664 = vld [vmem:[%s555 + $0x6c] sm:$0xf]
        %v665 = vld [vmem:[%s555 + $0x70] sm:$0xf]
        %v666 = vld [vmem:[%s555 + $0x74] sm:$0xf]
        %v667 = vld [vmem:[%s555 + $0x78] sm:$0xf]
        %v668 = vld [vmem:[%s555 + $0x7c] sm:$0xf]
        %v669 = vld [vmem:[%s555 + $0x80] sm:$0xf]
        %v670 = vld [vmem:[%s555 + $0x84] sm:$0xf]
        %v671 = vld [vmem:[%s555 + $0x88] sm:$0xf]
        %v672 = vld [vmem:[%s555 + $0x8c] sm:$0xf]
        %v673 = vld [vmem:[%s555 + $0x90] sm:$0xf]
        %v674 = vld [vmem:[%s555 + $0x94] sm:$0xf]
        %v675 = vld [vmem:[%s555 + $0x98] sm:$0xf]
        %v676 = vld [vmem:[%s555 + $0x9c] sm:$0xf]
        %v677 = vld [vmem:[%s555 + $0xa0] sm:$0xf]
        %v678 = vld [vmem:[%s555 + $0xa4] sm:$0xf]
        %v679 = vld [vmem:[%s555 + $0xa8] sm:$0xf]
        %v680 = vld [vmem:[%s555 + $0xac] sm:$0xf]
        %v681 = vld [vmem:[%s555 + $0xb0] sm:$0xf]
        %v682 = vld [vmem:[%s555 + $0xb4] sm:$0xf]
        %v683 = vld [vmem:[%s555 + $0xb8] sm:$0xf]
        %v684 = vld [vmem:[%s555 + $0xbc] sm:$0xf]
        %v685 = vld [vmem:[%s555 + $0xc0] sm:$0xf]
        %v686 = vld [vmem:[%s555 + $0xc4] sm:$0xf]
        %v687 = vld [vmem:[%s555 + $0xc8] sm:$0xf]
        %v688 = vld [vmem:[%s555 + $0xcc] sm:$0xf]
        %v689 = vld [vmem:[%s555 + $0xd0] sm:$0xf]
        %v690 = vld [vmem:[%s555 + $0xd4] sm:$0xf]
        %v691 = vld [vmem:[%s555 + $0xd8] sm:$0xf]
        %v692 = vld [vmem:[%s555 + $0xdc] sm:$0xf]
        %v693 = vld [vmem:[%s555 + $0xe0] sm:$0xf]
        %v694 = vld [vmem:[%s555 + $0xe4] sm:$0xf]
        %v695 = vld [vmem:[%s555 + $0xe8] sm:$0xf]
        %v696 = vld [vmem:[%s555 + $0xec] sm:$0xf]
        %v697 = vld [vmem:[%s555 + $0xf0] sm:$0xf]
        %v698 = vld [vmem:[%s555 + $0xf4] sm:$0xf]
        %v699 = vld [vmem:[%s555 + $0xf8] sm:$0xf]
        %v700 = vld [vmem:[%s555 + $0xfc] sm:$0xf]
        %v709 = vunpack.c.l.b16 %v629
        %v710 = vunpack.c.h.b16 %v629
        %v711 = vunpack.c.l.b16 %v630
        %v712 = vunpack.c.h.b16 %v630
        %v713 = vunpack.c.l.b16 %v631
        %v714 = vunpack.c.h.b16 %v631
        %v715 = vunpack.c.l.b16 %v632
        %v716 = vunpack.c.h.b16 %v632
        %v717 = vunpack.c.l.b16 %v633
        %v718 = vunpack.c.h.b16 %v633
        %v719 = vunpack.c.l.b16 %v634
        %v720 = vunpack.c.h.b16 %v634
        %v721 = vunpack.c.l.b16 %v635
        %v722 = vunpack.c.h.b16 %v635
        %v723 = vunpack.c.l.b16 %v636
        %v724 = vunpack.c.h.b16 %v636
        %v725 = vpack.c.b16 %v713, %v709
        %v726 = vpack.c.b16 %v714, %v710
        %v727 = vpack.c.b16 %v715, %v711
        %v728 = vpack.c.b16 %v716, %v712
        %v729 = vpack.c.b16 %v721, %v717
        %v730 = vpack.c.b16 %v722, %v718
        %v731 = vpack.c.b16 %v723, %v719
        %v732 = vpack.c.b16 %v724, %v720
        %v805 = vunpack.c.l.b16 %v637
        %v806 = vunpack.c.l.b16 %v638
        %v807 = vunpack.c.l.b16 %v639
        %v808 = vunpack.c.l.b16 %v640
        %v809 = vunpack.c.l.b16 %v641
        %v810 = vunpack.c.l.b16 %v642
        %v811 = vunpack.c.l.b16 %v643
        %v812 = vunpack.c.l.b16 %v644
        %v813 = vunpack.c.l.b16 %v645
        %v814 = vunpack.c.l.b16 %v646
        %v815 = vunpack.c.l.b16 %v647
        %v816 = vunpack.c.l.b16 %v648
        %v817 = vunpack.c.l.b16 %v649
        %v818 = vunpack.c.l.b16 %v650
        %v819 = vunpack.c.l.b16 %v651
        %v820 = vunpack.c.l.b16 %v652
        %v821 = vunpack.c.l.b16 %v653
        %v822 = vunpack.c.l.b16 %v654
        %v823 = vunpack.c.l.b16 %v655
        %v824 = vunpack.c.l.b16 %v656
        %v825 = vunpack.c.l.b16 %v657
        %v826 = vunpack.c.l.b16 %v658
        %v827 = vunpack.c.l.b16 %v659
        %v828 = vunpack.c.l.b16 %v660
        %v829 = vunpack.c.l.b16 %v661
        %v830 = vunpack.c.l.b16 %v662
        %v831 = vunpack.c.l.b16 %v663
        %v832 = vunpack.c.l.b16 %v664
        %v833 = vunpack.c.l.b16 %v665
        %v834 = vunpack.c.l.b16 %v666
        %v835 = vunpack.c.l.b16 %v667
        %v836 = vunpack.c.l.b16 %v668
        %v837 = vunpack.c.l.b16 %v669
        %v838 = vunpack.c.l.b16 %v670
        %v839 = vunpack.c.l.b16 %v671
        %v840 = vunpack.c.l.b16 %v672
        %v841 = vunpack.c.l.b16 %v673
        %v842 = vunpack.c.l.b16 %v674
        %v843 = vunpack.c.l.b16 %v675
        %v844 = vunpack.c.l.b16 %v676
        %v845 = vunpack.c.l.b16 %v677
        %v846 = vunpack.c.l.b16 %v678
        %v847 = vunpack.c.l.b16 %v679
        %v848 = vunpack.c.l.b16 %v680
        %v849 = vunpack.c.l.b16 %v681
        %v850 = vunpack.c.l.b16 %v682
        %v851 = vunpack.c.l.b16 %v683
        %v852 = vunpack.c.l.b16 %v684
        %v853 = vunpack.c.l.b16 %v685
        %v854 = vunpack.c.l.b16 %v686
        %v855 = vunpack.c.l.b16 %v687
        %v856 = vunpack.c.l.b16 %v688
        %v857 = vunpack.c.l.b16 %v689
        %v858 = vunpack.c.l.b16 %v690
        %v859 = vunpack.c.l.b16 %v691
        %v860 = vunpack.c.l.b16 %v692
        %v861 = vunpack.c.l.b16 %v693
        %v862 = vunpack.c.l.b16 %v694
        %v863 = vunpack.c.l.b16 %v695
        %v864 = vunpack.c.l.b16 %v696
        %v865 = vunpack.c.l.b16 %v697
        %v866 = vunpack.c.l.b16 %v698
        %v867 = vunpack.c.l.b16 %v699
        %v868 = vunpack.c.l.b16 %v700
        %v869 = vpack.c.b16 %v806, %v805
        %v870 = vpack.c.b16 %v808, %v807
        %v871 = vpack.c.b16 %v810, %v809
        %v872 = vpack.c.b16 %v812, %v811
        %v873 = vpack.c.b16 %v814, %v813
        %v874 = vpack.c.b16 %v816, %v815
        %v875 = vpack.c.b16 %v818, %v817
        %v876 = vpack.c.b16 %v820, %v819
        %v877 = vpack.c.b16 %v822, %v821
        %v878 = vpack.c.b16 %v824, %v823
        %v879 = vpack.c.b16 %v826, %v825
        %v880 = vpack.c.b16 %v828, %v827
        %v881 = vpack.c.b16 %v830, %v829
        %v882 = vpack.c.b16 %v832, %v831
        %v883 = vpack.c.b16 %v834, %v833
        %v884 = vpack.c.b16 %v836, %v835
        %v885 = vpack.c.b16 %v838, %v837
        %v886 = vpack.c.b16 %v840, %v839
        %v887 = vpack.c.b16 %v842, %v841
        %v888 = vpack.c.b16 %v844, %v843
        %v889 = vpack.c.b16 %v846, %v845
        %v890 = vpack.c.b16 %v848, %v847
        %v891 = vpack.c.b16 %v850, %v849
        %v892 = vpack.c.b16 %v852, %v851
        %v893 = vpack.c.b16 %v854, %v853
        %v894 = vpack.c.b16 %v856, %v855
        %v895 = vpack.c.b16 %v858, %v857
        %v896 = vpack.c.b16 %v860, %v859
        %v897 = vpack.c.b16 %v862, %v861
        %v898 = vpack.c.b16 %v864, %v863
        %v899 = vpack.c.b16 %v866, %v865
        %v900 = vpack.c.b16 %v868, %v867
        %933 = vmatpush.bf16.msra.mxu0 %v876
        %934 = vmatpush.bf16.msra.mxu0 %v875
        %935 = vmatpush.bf16.msra.mxu0 %v874
        %936 = vmatpush.bf16.msra.mxu0 %v873
        %937 = vmatpush.bf16.msra.mxu0 %v872
        %938 = vmatpush.bf16.msra.mxu0 %v871
        %939 = vmatpush.bf16.msra.mxu0 %v870
        %940 = vmatpush.bf16.msra.mxu0 %v869
        %941 = vmatmul.bf16.gmra.mxu0 %v725
        %v942 = vpop.f32.mrf.mxu0
        %v943 = vadd.f32 0.0, %v942
        %v944 = vpop.f32.mrf.mxu0
        %v945 = vadd.f32 0.0, %v944
        %946 = vmatmul.bf16.gmra.mxu0 %v729
        %v947 = vpop.f32.mrf.mxu0
        %v948 = vadd.f32 0.0, %v947
        %v949 = vpop.f32.mrf.mxu0
        %v950 = vadd.f32 0.0, %v949
        %951 = vdwg.mxu0
        %952 = vmatpush.bf16.msra.mxu0 %v884
        %953 = vmatpush.bf16.msra.mxu0 %v883
        %954 = vmatpush.bf16.msra.mxu0 %v882
        %955 = vmatpush.bf16.msra.mxu0 %v881
        %956 = vmatpush.bf16.msra.mxu0 %v880
        %957 = vmatpush.bf16.msra.mxu0 %v879
        %958 = vmatpush.bf16.msra.mxu0 %v878
        %959 = vmatpush.bf16.msra.mxu0 %v877
        %960 = vmatmul.bf16.gmra.mxu0 %v726
        %v961 = vpop.f32.mrf.mxu0
        %v962 = vadd.f32 %v943, %v961
        %v963 = vpop.f32.mrf.mxu0
        %v964 = vadd.f32 %v945, %v963
        %965 = vmatmul.bf16.gmra.mxu0 %v730
        %v966 = vpop.f32.mrf.mxu0
        %v967 = vadd.f32 %v948, %v966
        %v968 = vpop.f32.mrf.mxu0
        %v969 = vadd.f32 %v950, %v968
        %970 = vdwg.mxu0
        %971 = vmatpush.bf16.msra.mxu0 %v892
        %972 = vmatpush.bf16.msra.mxu0 %v891
        %973 = vmatpush.bf16.msra.mxu0 %v890
        %974 = vmatpush.bf16.msra.mxu0 %v889
        %975 = vmatpush.bf16.msra.mxu0 %v888
        %976 = vmatpush.bf16.msra.mxu0 %v887
        %977 = vmatpush.bf16.msra.mxu0 %v886
        %978 = vmatpush.bf16.msra.mxu0 %v885
        %979 = vmatmul.bf16.gmra.mxu0 %v727
        %v980 = vpop.f32.mrf.mxu0
        %v981 = vadd.f32 %v962, %v980
        %v982 = vpop.f32.mrf.mxu0
        %v983 = vadd.f32 %v964, %v982
        %984 = vmatmul.bf16.gmra.mxu0 %v731
        %v985 = vpop.f32.mrf.mxu0
        %v986 = vadd.f32 %v967, %v985
        %v987 = vpop.f32.mrf.mxu0
        %v988 = vadd.f32 %v969, %v987
        %989 = vdwg.mxu0
        %990 = vmatpush.bf16.msra.mxu0 %v900
        %991 = vmatpush.bf16.msra.mxu0 %v899
        %992 = vmatpush.bf16.msra.mxu0 %v898
        %993 = vmatpush.bf16.msra.mxu0 %v897
        %994 = vmatpush.bf16.msra.mxu0 %v896
        %995 = vmatpush.bf16.msra.mxu0 %v895
        %996 = vmatpush.bf16.msra.mxu0 %v894
        %997 = vmatpush.bf16.msra.mxu0 %v893
        %998 = vmatmul.bf16.gmra.mxu0 %v728
        %v999 = vpop.f32.mrf.mxu0
        %v1000 = vadd.f32 %v981, %v999
        %v1001 = vpop.f32.mrf.mxu0
        %v1002 = vadd.f32 %v983, %v1001
        %1003 = vmatmul.bf16.gmra.mxu0 %v732
        %v1004 = vpop.f32.mrf.mxu0
        %v1005 = vadd.f32 %v986, %v1004
        %v1006 = vpop.f32.mrf.mxu0
        %v1007 = vadd.f32 %v988, %v1006
        %1008 = vdwg.mxu0
        %v1009 = vadd.f32 %v625, %v1000
        %v1010 = vadd.f32 %v626, %v1002
        %v1011 = vadd.f32 %v627, %v1005
        %v1012 = vadd.f32 %v628, %v1007
        %1013 = vst [vmem:[#allocation2] sm:$0xff] %v1009
        %1014 = vst [vmem:[#allocation2 + $0x8] sm:$0xff] %v1010
        %1015 = vst [vmem:[#allocation2 + $0x10] sm:$0xff] %v1011
        %1016 = vst [vmem:[#allocation2 + $0x18] sm:$0xff] %v1012
        %p1017 = scmp.eq.s32.totalorder %s23, 7
        // Predicated region
        $region97: #{discriminator_forward.13} parent=83 // pred_check
          %p1018 = pneg %p1017
        $region98: #{discriminator_forward.13} parent=83 // pred_check_branch
          %1020 = sbr.rel (%p1018) target = $region100
        $region99: #{discriminator_forward.13} parent=83 // pred_region
          %v1021 = vld [vmem:[#allocation2] sm:$0xff]
          %v1022 = vld [vmem:[#allocation2 + $0x8] sm:$0xff]
          %v1023 = vld [vmem:[#allocation2 + $0x10] sm:$0xff]
          %v1024 = vld [vmem:[#allocation2 + $0x18] sm:$0xff]
          %1025 = vst [vmem:[%s576] sm:$0xff] %v1021
          %1026 = vst [vmem:[%s576 + $0x8] sm:$0xff] %v1022
          %1027 = vst [vmem:[%s576 + $0x10] sm:$0xff] %v1023
          %1028 = vst [vmem:[%s576 + $0x18] sm:$0xff] %v1024
          %v1029 = vadd.f32 %v1021, %v1022
          %v1030 = vadd.f32 %v1029, %v1023
          %v1031 = vadd.f32 %v1030, %v1024
          %v1032 = vrot.slane %v1031, 4
          %v1033 = vadd.f32 %v1031, %v1032
          %v1034 = vrot.slane %v1033, 2
          %v1035 = vadd.f32 %v1033, %v1034
          %v1036 = vrot.slane %v1035, 1
          %v1037 = vadd.f32 %v1035, %v1036
          %v1038 = vmul.f32 %v1021, %v1021
          %v1039 = vmul.f32 %v1022, %v1022
          %v1040 = vmul.f32 %v1023, %v1023
          %v1041 = vmul.f32 %v1024, %v1024
          %v1042 = vadd.f32 %v1038, %v1039
          %v1043 = vadd.f32 %v1042, %v1040
          %v1044 = vadd.f32 %v1043, %v1041
          %v1045 = vrot.slane %v1044, 4
          %v1046 = vadd.f32 %v1044, %v1045
          %v1047 = vrot.slane %v1046, 2
          %v1048 = vadd.f32 %v1046, %v1047
          %v1049 = vrot.slane %v1048, 1
          %v1050 = vadd.f32 %v1048, %v1049
          %1051 = vst [vmem:[%s608] sm:$0xff] %v1037
          %1052 = vst [vmem:[%s616] sm:$0xff] %v1050
        $region100: #{discriminator_forward.13} parent=83 // pred_fallthru
          _
        %s1053 = sand.u32 %s101, 1
        %s1054 = sand.u32 %s101, 1
        %s1055 = smul.addr %s1054, 32
        %s1056 = scalar_lea.vmem [#allocation5], %s1055
        %p1057 = scmp.lt.s32.totalorder %s21, 0
        %s1058 = scalar_select %p1057, %s21, 0
        %p1059 = scmp.lt.s32.totalorder %s22, 3
        %s1060 = scalar_select %p1059, %s22, 3
        %s1061 = smul.addr %s1058, 4
        %s1062 = sadd.s32 %s1060, %s1061
        %s1063 = smul.addr %s1062, 8
        %s1064 = scalar_lea.vmem %s3, %s1063
        %p1065 = scmp.lt.s32.totalorder %s21, 0
        %s1066 = scalar_select %p1065, %s21, 0
        %p1067 = scmp.lt.s32.totalorder %s22, 3
        %s1068 = scalar_select %p1067, %s22, 3
        %s1069 = smul.addr %s1066, 4
        %s1070 = sadd.s32 %s1068, %s1069
        %s1071 = smul.addr %s1070, 8
        %s1072 = scalar_lea.vmem %s4, %s1071
        // Predicated region
        $region101: #{discriminator_forward.13} parent=83 // pred_check
          %p1073 = pneg %p111
        $region102: #{discriminator_forward.13} parent=83 // pred_check_branch
          %1075 = sbr.rel (%p1073) target = $region104
        $region103: #{discriminator_forward.13} parent=83 // pred_region
          %s1076 = smul.u32 4, %s21
          %s1077 = smul.addr %s1076, 4
          %s1078 = sadd.s32 %s22, %s1077
          %s1079 = smul.addr %s1078, 8
          %s1080 = scalar_lea.vmem %s2, %s1079
          // Predicated region
          $region105: #{discriminator_forward.13} parent=103 // pred_check
            _
          $region106: #{discriminator_forward.13} parent=103 // pred_check_branch
            %1082 = sbr.rel (0) target = $region108
          $region107: #{discriminator_forward.13} parent=103 // pred_region
            // Predicated region
            $region109: #{discriminator_forward.13} parent=107 // pred_check
              _
            $region110: #{discriminator_forward.13} parent=107 // pred_check_branch
              %1084 = sbr.rel (0) target = $region112
            $region111: #{discriminator_forward.13} parent=107 // pred_region
              // Predicated region
              $region124: #{discriminator_forward.13} parent=111 // pred_check
                _
              $region125: #{discriminator_forward.13} parent=111 // pred_check_branch
                %1106 = sbr.rel (0) target = $region127
              $region126: #{discriminator_forward.13} parent=111 // pred_region
                loop: start=0, step=1, limit=1
                $region128: #{discriminator_forward.13} parent=126 // loop_pre_header
                  _
                $region129: #{discriminator_forward.13} parent=126 // loop_header
                  %s1108 = sphi 0, %s1112
                  %p1109 = scmp.ge.s32.totalorder %s1108, 1
                  %s1113 = sphi %s1056, %s1056
                  %s1114 = sphi %s1080, %s1080
                $region130: #{discriminator_forward.13} parent=126 // loop_header_branch
                  %1111 = sbr.rel (%p1109) target = $region134
                $region131: #{discriminator_forward.13} parent=126 // loop_body
                  %v1115 = vld [vmem:[%s1113] sm:$0xff]
                  %1116 = vst [vmem:[%s1114] sm:$0xff] %v1115
                  %v1117 = vld [vmem:[%s1113 + $0x8] sm:$0xff]
                  %1118 = vst [vmem:[%s1114 + $0x20] sm:$0xff] %v1117
                  %v1119 = vld [vmem:[%s1113 + $0x10] sm:$0xff]
                  %1120 = vst [vmem:[%s1114 + $0x40] sm:$0xff] %v1119
                  %v1121 = vld [vmem:[%s1113 + $0x18] sm:$0xff]
                  %1122 = vst [vmem:[%s1114 + $0x60] sm:$0xff] %v1121
                $region132: #{discriminator_forward.13} parent=126 // loop_footer
                  %s1112 = sadd.s32 1, %s1108
                $region133: #{discriminator_forward.13} parent=126 // loop_footer_branch
                  %1107 = sbr.rel target = $region129
                $region134: #{discriminator_forward.13} parent=126 // loop_exit
                  _
              $region127: #{discriminator_forward.13} parent=111 // pred_fallthru
                _
              // Predicated region
              $region135: #{discriminator_forward.13} parent=111 // pred_check
                _
              $region136: #{discriminator_forward.13} parent=111 // pred_check_branch
                %1124 = sbr.rel target = $region138
              $region137: #{discriminator_forward.13} parent=111 // pred_region
                _
              $region138: #{discriminator_forward.13} parent=111 // pred_fallthru
                _
            $region112: #{discriminator_forward.13} parent=107 // pred_fallthru
              _
            // Predicated region
            $region113: #{discriminator_forward.13} parent=107 // pred_check
              _
            $region114: #{discriminator_forward.13} parent=107 // pred_check_branch
              %1086 = sbr.rel target = $region116
            $region115: #{discriminator_forward.13} parent=107 // pred_region
              %s1088 = ssub.s32 256, 1
              loop: start=0, step=1, limit=1
              $region117: #{discriminator_forward.13} parent=115 // loop_pre_header
                _
              $region118: #{discriminator_forward.13} parent=115 // loop_header
                %s1090 = sphi 0, %s1094
                %p1091 = scmp.ge.s32.totalorder %s1090, 1
                %s1095 = sphi %s1056, %s1056
                %s1096 = sphi %s1080, %s1080
              $region119: #{discriminator_forward.13} parent=115 // loop_header_branch
                %1093 = sbr.rel (%p1091) target = $region123
              $region120: #{discriminator_forward.13} parent=115 // loop_body
                %v1097 = vld [vmem:[%s1095] sm:%s1088]
                %1098 = vst [vmem:[%s1096] sm:%s1088] %v1097
                %v1099 = vld [vmem:[%s1095 + $0x8] sm:%s1088]
                %1100 = vst [vmem:[%s1096 + $0x20] sm:%s1088] %v1099
                %v1101 = vld [vmem:[%s1095 + $0x10] sm:%s1088]
                %1102 = vst [vmem:[%s1096 + $0x40] sm:%s1088] %v1101
                %v1103 = vld [vmem:[%s1095 + $0x18] sm:%s1088]
                %1104 = vst [vmem:[%s1096 + $0x60] sm:%s1088] %v1103
              $region121: #{discriminator_forward.13} parent=115 // loop_footer
                %s1094 = sadd.s32 1, %s1090
              $region122: #{discriminator_forward.13} parent=115 // loop_footer_branch
                %1089 = sbr.rel target = $region118
              $region123: #{discriminator_forward.13} parent=115 // loop_exit
                _
            $region116: #{discriminator_forward.13} parent=107 // pred_fallthru
              _
          $region108: #{discriminator_forward.13} parent=103 // pred_fallthru
            _
          %1125 = vnop
        $region104: #{discriminator_forward.13} parent=83 // pred_fallthru
          _
        // Predicated region
        $region139: #{discriminator_forward.13} parent=83 // pred_check
          %p1126 = pneg %p139
        $region140: #{discriminator_forward.13} parent=83 // pred_check_branch
          %1128 = sbr.rel (%p1126) target = $region142
        $region141: #{discriminator_forward.13} parent=83 // pred_region
          _
        $region142: #{discriminator_forward.13} parent=83 // pred_fallthru
          _
        // Predicated region
        $region143: #{discriminator_forward.13} parent=83 // pred_check
          %p1129 = pneg %p167
        $region144: #{discriminator_forward.13} parent=83 // pred_check_branch
          %1131 = sbr.rel (%p1129) target = $region146
        $region145: #{discriminator_forward.13} parent=83 // pred_region
          _
        $region146: #{discriminator_forward.13} parent=83 // pred_fallthru
          _
      $region84: #{discriminator_forward.13} parent=5 // pred_fallthru
        _
      %p1132 = scmp.le.s32.totalorder 2, %s11
      // Predicated region
      $region147: #{discriminator_forward.13} parent=5 // pred_check
        %p1133 = pneg %p1132
      $region148: #{discriminator_forward.13} parent=5 // pred_check_branch
        %1135 = sbr.rel (%p1133) target = $region150
      $region149: #{discriminator_forward.13} parent=5 // pred_region
        %s1136 = ssub.s32 %s11, 2
        // Predicated region
        $region151: #{discriminator_forward.13} parent=149 // pred_check
          %p1137 = pneg %p117
        $region152: #{discriminator_forward.13} parent=149 // pred_check_branch
          %1139 = sbr.rel (%p1137) target = $region154
        $region153: #{discriminator_forward.13} parent=149 // pred_region
          %s1140 = sand.u32 %s102, 1
          %s1141 = sand.u32 %s102, 1
          %s1142 = smul.addr %s1141, 32
          %s1143 = scalar_lea.vmem [#allocation5], %s1142
        $region154: #{discriminator_forward.13} parent=149 // pred_fallthru
          _
        // Predicated region
        $region155: #{discriminator_forward.13} parent=149 // pred_check
          %p1144 = pneg %p145
        $region156: #{discriminator_forward.13} parent=149 // pred_check_branch
          %1146 = sbr.rel (%p1144) target = $region158
        $region157: #{discriminator_forward.13} parent=149 // pred_region
          %p1147 = scmp.lt.s32.totalorder %s24, 0
          %s1148 = scalar_select %p1147, %s24, 0
          %p1149 = scmp.lt.s32.totalorder %s25, 3
          %s1150 = scalar_select %p1149, %s25, 3
          %s1151 = smul.addr %s1148, 4
          %s1152 = sadd.s32 %s1150, %s1151
          %s1153 = smul.addr %s1152, 8
          %s1154 = scalar_lea.vmem %s3, %s1153
        $region158: #{discriminator_forward.13} parent=149 // pred_fallthru
          _
        // Predicated region
        $region159: #{discriminator_forward.13} parent=149 // pred_check
          %p1155 = pneg %p173
        $region160: #{discriminator_forward.13} parent=149 // pred_check_branch
          %1157 = sbr.rel (%p1155) target = $region162
        $region161: #{discriminator_forward.13} parent=149 // pred_region
          %p1158 = scmp.lt.s32.totalorder %s24, 0
          %s1159 = scalar_select %p1158, %s24, 0
          %p1160 = scmp.lt.s32.totalorder %s25, 3
          %s1161 = scalar_select %p1160, %s25, 3
          %s1162 = smul.addr %s1159, 4
          %s1163 = sadd.s32 %s1161, %s1162
          %s1164 = smul.addr %s1163, 8
          %s1165 = scalar_lea.vmem %s4, %s1164
        $region162: #{discriminator_forward.13} parent=149 // pred_fallthru
          _
      $region150: #{discriminator_forward.13} parent=5 // pred_fallthru
        _
    $region6: #{discriminator_forward.13} parent=1 // loop_footer
      %s15 = sadd.s32 1, %s11
    $region7: #{discriminator_forward.13} parent=1 // loop_footer_branch
      %10 = sbr.rel target = $region3
    $region8: #{discriminator_forward.13} parent=1 // loop_exit
      _

// kernel: discriminator_forward.14
$region0: #{discriminator_forward.14}
  #allocation0 [shape = 'u32[]', space=smem, size = 0x4, offset = 0x4, fixed_abs, tag = 'smem constant byte address 0x4 - core index']
  #allocation1 [shape = 'u32[72,128]{1,0:T(1,128)}', space=vmem, size = 0x9000, scoped, tag = 'internal scratch']
  %s0 = inlined_call_operand.vmem [shape: f32[32,512], index: 0, kind: input, shape index: {}]
  %s1 = inlined_call_operand.vmem [shape: f32[1,512], index: 1, kind: input, shape index: {}]
  %s2 = inlined_call_operand.vmem [shape: f32[1,512], index: 2, kind: input, shape index: {}]
  %s3 = inlined_call_operand.vmem [shape: bf16[32,512], index: 3, kind: output, shape index: {}]
  %s4 = sld [smem:[#allocation0]]
  $region22: #{discriminator_forward.14} parent=0
    _
  %s6 = ssub.s32 1, %s4
  %s7 = scalar_select 0, %s6, %s4
  // Predicated region
  $region2: #{discriminator_forward.14} parent=0 // pred_check
    _
  $region3: #{discriminator_forward.14} parent=0 // pred_check_branch
    %9 = sbr.rel (0) target = $region5
  $region4: #{discriminator_forward.14} parent=0 // pred_region
    _
  $region5: #{discriminator_forward.14} parent=0 // pred_fallthru
    _
  // Predicated region
  $region6: #{discriminator_forward.14} parent=0 // pred_check
    _
  $region7: #{discriminator_forward.14} parent=0 // pred_check_branch
    %11 = sbr.rel (0) target = $region9
  $region8: #{discriminator_forward.14} parent=0 // pred_region
    _
  $region9: #{discriminator_forward.14} parent=0 // pred_fallthru
    _
  // Predicated region
  $region10: #{discriminator_forward.14} parent=0 // pred_check
    _
  $region11: #{discriminator_forward.14} parent=0 // pred_check_branch
    %13 = sbr.rel (0) target = $region13
  $region12: #{discriminator_forward.14} parent=0 // pred_region
    _
  $region13: #{discriminator_forward.14} parent=0 // pred_fallthru
    _
  %v14 = vld [vmem:[%s0] sm:$0xff]
  %v15 = vld [vmem:[%s0 + $0x8] sm:$0xff]
  %v16 = vld [vmem:[%s0 + $0x10] sm:$0xff]
  %v17 = vld [vmem:[%s0 + $0x18] sm:$0xff]
  %v18 = vld [vmem:[%s0 + $0x20] sm:$0xff]
  %v19 = vld [vmem:[%s0 + $0x28] sm:$0xff]
  %v20 = vld [vmem:[%s0 + $0x30] sm:$0xff]
  %v21 = vld [vmem:[%s0 + $0x38] sm:$0xff]
  %v22 = vld [vmem:[%s0 + $0x40] sm:$0xff]
  %v23 = vld [vmem:[%s0 + $0x48] sm:$0xff]
  %v24 = vld [vmem:[%s0 + $0x50] sm:$0xff]
  %v25 = vld [vmem:[%s0 + $0x58] sm:$0xff]
  %v26 = vld [vmem:[%s0 + $0x60] sm:$0xff]
  %v27 = vld [vmem:[%s0 + $0x68] sm:$0xff]
  %v28 = vld [vmem:[%s0 + $0x70] sm:$0xff]
  %v29 = vld [vmem:[%s0 + $0x78] sm:$0xff]
  %v30 = vld [vmem:[%s1] sm:$0xf]
  %v32 = vperm.slane %v30, 0
  %v33 = vperm.slane %v30, 1
  %v34 = vperm.slane %v30, 2
  %v35 = vperm.slane %v30, 3
  %v40 = vmul.f32 %v14, %v32
  %v41 = vmul.f32 %v15, %v33
  %v42 = vmul.f32 %v16, %v34
  %v43 = vmul.f32 %v17, %v35
  %v44 = vmul.f32 %v18, %v32
  %v45 = vmul.f32 %v19, %v33
  %v46 = vmul.f32 %v20, %v34
  %v47 = vmul.f32 %v21, %v35
  %v48 = vmul.f32 %v22, %v32
  %v49 = vmul.f32 %v23, %v33
  %v50 = vmul.f32 %v24, %v34
  %v51 = vmul.f32 %v25, %v35
  %v52 = vmul.f32 %v26, %v32
  %v53 = vmul.f32 %v27, %v33
  %v54 = vmul.f32 %v28, %v34
  %v55 = vmul.f32 %v29, %v35
  %v56 = vld [vmem:[%s2] sm:$0xf]
  %v58 = vperm.slane %v56, 0
  %v59 = vperm.slane %v56, 1
  %v60 = vperm.slane %v56, 2
  %v61 = vperm.slane %v56, 3
  %v66 = vadd.f32 %v40, %v58
  %v67 = vadd.f32 %v41, %v59
  %v68 = vadd.f32 %v42, %v60
  %v69 = vadd.f32 %v43, %v61
  %v70 = vadd.f32 %v44, %v58
  %v71 = vadd.f32 %v45, %v59
  %v72 = vadd.f32 %v46, %v60
  %v73 = vadd.f32 %v47, %v61
  %v74 = vadd.f32 %v48, %v58
  %v75 = vadd.f32 %v49, %v59
  %v76 = vadd.f32 %v50, %v60
  %v77 = vadd.f32 %v51, %v61
  %v78 = vadd.f32 %v52, %v58
  %v79 = vadd.f32 %v53, %v59
  %v80 = vadd.f32 %v54, %v60
  %v81 = vadd.f32 %v55, %v61
  %v82 = vmul.f32 %v66, 0.2
  %v83 = vmul.f32 %v67, 0.2
  %v84 = vmul.f32 %v68, 0.2
  %v85 = vmul.f32 %v69, 0.2
  %v86 = vmul.f32 %v70, 0.2
  %v87 = vmul.f32 %v71, 0.2
  %v88 = vmul.f32 %v72, 0.2
  %v89 = vmul.f32 %v73, 0.2
  %v90 = vmul.f32 %v74, 0.2
  %v91 = vmul.f32 %v75, 0.2
  %v92 = vmul.f32 %v76, 0.2
  %v93 = vmul.f32 %v77, 0.2
  %v94 = vmul.f32 %v78, 0.2
  %v95 = vmul.f32 %v79, 0.2
  %v96 = vmul.f32 %v80, 0.2
  %v97 = vmul.f32 %v81, 0.2
  %v98 = vmax.f32 %v66, %v82
  %v99 = vmax.f32 %v67, %v83
  %v100 = vmax.f32 %v68, %v84
  %v101 = vmax.f32 %v69, %v85
  %v102 = vmax.f32 %v70, %v86
  %v103 = vmax.f32 %v71, %v87
  %v104 = vmax.f32 %v72, %v88
  %v105 = vmax.f32 %v73, %v89
  %v106 = vmax.f32 %v74, %v90
  %v107 = vmax.f32 %v75, %v91
  %v108 = vmax.f32 %v76, %v92
  %v109 = vmax.f32 %v77, %v93
  %v110 = vmax.f32 %v78, %v94
  %v111 = vmax.f32 %v79, %v95
  %v112 = vmax.f32 %v80, %v96
  %v113 = vmax.f32 %v81, %v97
  %v114 = vpack.c.bf16 %v99, %v98
  %v115 = vpack.c.bf16 %v101, %v100
  %v116 = vpack.c.bf16 %v103, %v102
  %v117 = vpack.c.bf16 %v105, %v104
  %v118 = vpack.c.bf16 %v107, %v106
  %v119 = vpack.c.bf16 %v109, %v108
  %v120 = vpack.c.bf16 %v111, %v110
  %v121 = vpack.c.bf16 %v113, %v112
  %122 = vst [vmem:[%s3] sm:$0xff] %v114
  %123 = vst [vmem:[%s3 + $0x8] sm:$0xff] %v115
  %124 = vst [vmem:[%s3 + $0x10] sm:$0xff] %v116
  %125 = vst [vmem:[%s3 + $0x18] sm:$0xff] %v117
  %126 = vst [vmem:[%s3 + $0x20] sm:$0xff] %v118
  %127 = vst [vmem:[%s3 + $0x28] sm:$0xff] %v119
  %128 = vst [vmem:[%s3 + $0x30] sm:$0xff] %v120
  %129 = vst [vmem:[%s3 + $0x38] sm:$0xff] %v121
  // Predicated region
  $region14: #{discriminator_forward.14} parent=0 // pred_check
    _
  $region15: #{discriminator_forward.14} parent=0 // pred_check_branch
    %131 = sbr.rel (0) target = $region17
  $region16: #{discriminator_forward.14} parent=0 // pred_region
    _
  $region17: #{discriminator_forward.14} parent=0 // pred_fallthru
    _
  // Predicated region
  $region18: #{discriminator_forward.14} parent=0 // pred_check
    _
  $region19: #{discriminator_forward.14} parent=0 // pred_check_branch
    %133 = sbr.rel (0) target = $region21
  $region20: #{discriminator_forward.14} parent=0 // pred_region
    _
  $region21: #{discriminator_forward.14} parent=0 // pred_fallthru
    _

// kernel: discriminator_forward.15
$region0: #{discriminator_forward.15}
  #allocation0 [shape = 'u32[]', space=smem, size = 0x4, offset = 0x4, fixed_abs, tag = 'smem constant byte address 0x4 - core index']
  #allocation1 [shape = 'u32[72,128]{1,0:T(1,128)}', space=vmem, size = 0x9000, scoped, tag = 'internal scratch']
  #allocation2 [shape = 'f32[8,128]{1,0:T(8,128)}', space=vmem, size = 0x1000, scoped, tag = 'scratch operand']
  %s0 = inlined_call_operand.vmem [shape: bf16[8,8192], index: 0, kind: input, shape index: {}]
  %s1 = inlined_call_operand.vmem [shape: bf16[8192,128], index: 1, kind: input, shape index: {}]
  %s2 = inlined_call_operand.vmem [shape: f32[8,128], index: 2, kind: output, shape index: {}]
  %s3 = sld [smem:[#allocation0]]
  $region49: #{discriminator_forward.15} parent=0
    _
  %s5 = ssub.s32 1, %s3
  %s6 = scalar_select 0, %s5, %s3
  loop: start=0, step=1, limit=18
  $region2: #{discriminator_forward.15} parent=0 // loop_pre_header
    _
  $region3: #{discriminator_forward.15} parent=0 // loop_header
    %s8 = sphi 0, %s12
    %p9 = scmp.ge.s32.totalorder %s8, 18
    %s15 = sphi 0, %s34
    %s16 = sphi 0, %s30
    %s17 = sphi 0, %s26
    %s18 = sphi 0, %s15
    %s19 = sphi 0, %s16
    %s20 = sphi 0, %s17
    %s21 = sphi 0, %s18
    %s22 = sphi 0, %s19
    %s23 = sphi 0, %s20
    %s39 = sphi 0, %s41
    %s42 = sphi 0, %s39
    %s43 = sphi 0, %s42
    %s59 = sphi 0, %s43
    %s67 = sphi 0, %s69
    %s70 = sphi 0, %s67
    %s71 = sphi 0, %s70
    %s87 = sphi 0, %s71
    %s95 = sphi 0, %s97
    %s98 = sphi 0, %s95
    %s99 = sphi 0, %s98
    %s115 = sphi 0, %s99
  $region4: #{discriminator_forward.15} parent=0 // loop_header_branch
    %11 = sbr.rel (%p9) target = $region8
  $region5: #{discriminator_forward.15} parent=0 // loop_body
    %s13 = ssub.s32 %s8, 1
    %s14 = ssub.s32 %s8, 2
    %s24 = sadd.s32 1, %s17
    %p25 = scmp.ge.s32.totalorder %s24, 16
    %s26 = scalar_select %p25, 0, %s24
    %s27 = sadd.s32 1, %s16
    %s28 = scalar_select %p25, %s27, %s16
    %p29 = scmp.ge.s32.totalorder %s28, 1
    %s30 = scalar_select %p29, 0, %s28
    %s31 = sadd.s32 1, %s15
    %s32 = scalar_select %p29, %s31, %s15
    %p33 = scmp.ge.s32.totalorder %s32, 1
    %s34 = scalar_select %p33, 0, %s32
    %s35 = ssub.s32 %s15, %s34
    %s36 = ssub.s32 %s17, %s26
    %s37 = sor.u32 %s35, %s36
    %p38 = scmp.eq.s32.totalorder %s37, 0
    %s40 = sadd.s32 %s39, 1
    %s41 = scalar_select %p38, %s39, %s40
    %p44 = pneg %p38
    %p45 = scmp.eq.s32.totalorder %s8, 15
    %p46 = por %p44, %p45
    %p47 = scmp.ne.s32.totalorder %s39, %s42
    %p48 = scmp.eq.s32.totalorder %s8, 0
    %p49 = por %p47, %p48
    %p50 = scmp.ne.s32.totalorder %s39, %s42
    %p51 = scmp.eq.s32.totalorder %s13, 15
    %p52 = por %p50, %p51
    %p53 = scmp.ne.s32.totalorder %s42, %s43
    %p54 = scmp.eq.s32.totalorder %s13, 0
    %p55 = por %p53, %p54
    %p56 = scmp.ne.s32.totalorder %s42, %s43
    %p57 = scmp.eq.s32.totalorder %s14, 15
    %p58 = por %p56, %p57
    %p60 = scmp.ne.s32.totalorder %s43, %s59
    %p61 = scmp.eq.s32.totalorder %s14, 0
    %p62 = por %p60, %p61
    %s63 = ssub.s32 %s17, %s26
    %s64 = ssub.s32 %s16, %s30
    %s65 = sor.u32 %s63, %s64
    %p66 = scmp.eq.s32.totalorder %s65, 0
    %s68 = sadd.s32 %s67, 1
    %s69 = scalar_select %p66, %s67, %s68
    %p72 = pneg %p66
    %p73 = scmp.eq.s32.totalorder %s8, 15
    %p74 = por %p72, %p73
    %p75 = scmp.ne.s32.totalorder %s67, %s70
    %p76 = scmp.eq.s32.totalorder %s8, 0
    %p77 = por %p75, %p76
    %p78 = scmp.ne.s32.totalorder %s67, %s70
    %p79 = scmp.eq.s32.totalorder %s13, 15
    %p80 = por %p78, %p79
    %p81 = scmp.ne.s32.totalorder %s70, %s71
    %p82 = scmp.eq.s32.totalorder %s13, 0
    %p83 = por %p81, %p82
    %p84 = scmp.ne.s32.totalorder %s70, %s71
    %p85 = scmp.eq.s32.totalorder %s14, 15
    %p86 = por %p84, %p85
    %p88 = scmp.ne.s32.totalorder %s71, %s87
    %p89 = scmp.eq.s32.totalorder %s14, 0
    %p90 = por %p88, %p89
    %s91 = ssub.s32 %s15, %s34
    %s92 = ssub.s32 %s16, %s30
    %s93 = sor.u32 %s91, %s92
    %p94 = scmp.eq.s32.totalorder %s93, 0
    %s96 = sadd.s32 %s95, 1
    %s97 = scalar_select %p94, %s95, %s96
    %p100 = pneg %p94
    %p101 = scmp.eq.s32.totalorder %s8, 15
    %p102 = por %p100, %p101
    %p103 = scmp.ne.s32.totalorder %s95, %s98
    %p104 = scmp.eq.s32.totalorder %s8, 0
    %p105 = por %p103, %p104
    %p106 = scmp.ne.s32.totalorder %s95, %s98
    %p107 = scmp.eq.s32.totalorder %s13, 15
    %p108 = por %p106, %p107
    %p109 = scmp.ne.s32.totalorder %s98, %s99
    %p110 = scmp.eq.s32.totalorder %s13, 0
    %p111 = por %p109, %p110
    %p112 = scmp.ne.s32.totalorder %s98, %s99
    %p113 = scmp.eq.s32.totalorder %s14, 15
    %p114 = por %p112, %p113
    %p116 = scmp.ne.s32.totalorder %s99, %s115
    %p117 = scmp.eq.s32.totalorder %s14, 0
    %p118 = por %p116, %p117
    %p119 = scmp.le.s32.totalorder 1, %s8
    %p120 = scmp.lt.s32.totalorder %s8, 17
    %p121 = pnand %p119, %p120
    %p122 = pneg %p121
    // Predicated region
    $region9: #{discriminator_forward.15} parent=5 // pred_check
      _
    $region10: #{discriminator_forward.15} parent=5 // pred_check_branch
      %124 = sbr.rel (%p121) target = $region12
    $region11: #{discriminator_forward.15} parent=5 // pred_region
      %s125 = ssub.s32 %s8, 1
    $region12: #{discriminator_forward.15} parent=5 // pred_fallthru
      _
    %p126 = scmp.lt.s32.totalorder %s8, 16
    // Predicated region
    $region13: #{discriminator_forward.15} parent=5 // pred_check
      %p127 = pneg %p126
    $region14: #{discriminator_forward.15} parent=5 // pred_check_branch
      %129 = sbr.rel (%p127) target = $region16
    $region15: #{discriminator_forward.15} parent=5 // pred_region
      // Predicated region
      $region17: #{discriminator_forward.15} parent=15 // pred_check
        %p130 = pneg %p49
      $region18: #{discriminator_forward.15} parent=15 // pred_check_branch
        %132 = sbr.rel (%p130) target = $region20
      $region19: #{discriminator_forward.15} parent=15 // pred_region
        %s133 = smul.u32 4, %s17
        %p134 = scmp.lt.s32.totalorder %s15, 0
        %s135 = scalar_select %p134, %s15, 0
        %p136 = scmp.lt.s32.totalorder %s133, 63
        %s137 = scalar_select %p136, %s133, 63
        %s138 = smul.addr %s135, 64
        %s139 = sadd.s32 %s137, %s138
        %s140 = smul.addr %s139, 4
        %s141 = scalar_lea.vmem %s0, %s140
        %s142 = smul.u32 4, %s17
      $region20: #{discriminator_forward.15} parent=15 // pred_fallthru
        _
      // Predicated region
      $region21: #{discriminator_forward.15} parent=15 // pred_check
        %p143 = pneg %p77
      $region22: #{discriminator_forward.15} parent=15 // pred_check_branch
        %145 = sbr.rel (%p143) target = $region24
      $region23: #{discriminator_forward.15} parent=15 // pred_region
        %s146 = smul.u32 64, %s17
        %p147 = scmp.lt.s32.totalorder %s146, 1023
        %s148 = scalar_select %p147, %s146, 1023
        %p149 = scmp.lt.s32.totalorder %s16, 0
        %s150 = scalar_select %p149, %s16, 0
        %s151 = sadd.s32 %s150, %s148
        %s152 = smul.addr %s151, 4
        %s153 = scalar_lea.vmem %s1, %s152
        %s154 = smul.u32 64, %s17
      $region24: #{discriminator_forward.15} parent=15 // pred_fallthru
        _
    $region16: #{discriminator_forward.15} parent=5 // pred_fallthru
      _
    %p155 = scmp.le.s32.totalorder 1, %s8
    %p156 = scmp.lt.s32.totalorder %s8, 17
    %p157 = pnand %p155, %p156
    %p158 = pneg %p157
    // Predicated region
    $region25: #{discriminator_forward.15} parent=5 // pred_check
      _
    $region26: #{discriminator_forward.15} parent=5 // pred_check_branch
      %160 = sbr.rel (%p157) target = $region28
    $region27: #{discriminator_forward.15} parent=5 // pred_region
      %s161 = ssub.s32 %s8, 1
      %s162 = smul.u32 4, %s20
      %p163 = scmp.lt.s32.totalorder %s18, 0
      %s164 = scalar_select %p163, %s18, 0
      %p165 = scmp.lt.s32.totalorder %s162, 63
      %s166 = scalar_select %p165, %s162, 63
      %s167 = smul.addr %s164, 64
      %s168 = sadd.s32 %s166, %s167
      %s169 = smul.addr %s168, 4
      %s170 = scalar_lea.vmem %s0, %s169
      %p171 = pneg %p55
      %p172 = pneg %p52
      %s173 = smul.u32 64, %s20
      %p174 = scmp.lt.s32.totalorder %s173, 1023
      %s175 = scalar_select %p174, %s173, 1023
      %p176 = scmp.lt.s32.totalorder %s19, 0
      %s177 = scalar_select %p176, %s19, 0
      %s178 = sadd.s32 %s177, %s175
      %s179 = smul.addr %s178, 4
      %s180 = scalar_lea.vmem %s1, %s179
      %p181 = pneg %p83
      %p182 = pneg %p80
      %p183 = pneg %p111
      %p184 = pneg %p108
      %p185 = scmp.lt.s32.totalorder %s18, 0
      %s186 = scalar_select %p185, %s18, 0
      %p187 = scmp.lt.s32.totalorder %s19, 0
      %s188 = scalar_select %p187, %s19, 0
      %s189 = sadd.s32 %s188, %s186
      %s190 = smul.addr %s189, 8
      %s191 = scalar_lea.vmem %s2, %s190
      %s192 = smul.u32 4, %s20
      %p193 = scmp.lt.s32.totalorder %s18, 0
      %s194 = scalar_select %p193, %s18, 0
      %p195 = scmp.lt.s32.totalorder %s192, 63
      %s196 = scalar_select %p195, %s192, 63
      %s197 = smul.addr %s194, 64
      %s198 = sadd.s32 %s196, %s197
      %s199 = smul.addr %s198, 4
      %s200 = scalar_lea.vmem %s0, %s199
      %s201 = smul.u32 4, %s20
      %s202 = smul.u32 64, %s20
      %p203 = scmp.lt.s32.totalorder %s202, 1023
      %s204 = scalar_select %p203, %s202, 1023
      %p205 = scmp.lt.s32.totalorder %s19, 0
      %s206 = scalar_select %p205, %s19, 0
      %s207 = sadd.s32 %s206, %s204
      %s208 = smul.addr %s207, 4
      %s209 = scalar_lea.vmem %s1, %s208
      %s210 = smul.u32 64, %s20
      %p211 = scmp.lt.s32.totalorder %s18, 0
      %s212 = scalar_select %p211, %s18, 0
      %p213 = scmp.lt.s32.totalorder %s19, 0
      %s214 = scalar_select %p213, %s19, 0
      %s215 = sadd.s32 %s214, %s212
      %s216 = smul.addr %s215, 8
      %s217 = scalar_lea.vmem %s2, %s216
      %p218 = scmp.eq.s32.totalorder %s20, 0
      // Predicated region
      $region29: #{discriminator_forward.15} parent=27 // pred_check
        %p219 = pneg %p218
      $region30: #{discriminator_forward.15} parent=27 // pred_check_branch
        %221 = sbr.rel (%p219) target = $region32
      $region31: #{discriminator_forward.15} parent=27 // pred_region
        %222 = vst [vmem:[#allocation2] sm:$0xff] 0.0
      $region32: #{discriminator_forward.15} parent=27 // pred_fallthru
        _
      %v223 = vld [vmem:[#allocation2] sm:$0xff]
      %v224 = vld [vmem:[%s200] sm:$0xff]
      %v225 = vld [vmem:[%s200 + $0x8] sm:$0xff]
      %v226 = vld [vmem:[%s209] sm:$0xf]
      %v227 = vld [vmem:[%s209 + $0x4] sm:$0xf]
      %v228 = vld [vmem:[%s209 + $0x8] sm:$0xf]
      %v229 = vld [vmem:[%s209 + $0xc] sm:$0xf]
      %v230 = vld [vmem:[%s209 + $0x10] sm:$0xf]
      %v231 = vld [vmem:[%s209 + $0x14] sm:$0xf]
      %v232 = vld [vmem:[%s209 + $0x18] sm:$0xf]
      %v233 = vld [vmem:[%s209 + $0x1c] sm:$0xf]
      %v234 = vld [vmem:[%s209 + $0x20] sm:$0xf]
      %v235 = vld [vmem:[%s209 + $0x24] sm:$0xf]
      %v236 = vld [vmem:[%s209 + $0x28] sm:$0xf]
      %v237 = vld [vmem:[%s209 + $0x2c] sm:$0xf]
      %v238 = vld [vmem:[%s209 + $0x30] sm:$0xf]
      %v239 = vld [vmem:[%s209 + $0x34] sm:$0xf]
      %v240 = vld [vmem:[%s209 + $0x38] sm:$0xf]
      %v241 = vld [vmem:[%s209 + $0x3c] sm:$0xf]
      %v242 = vld [vmem:[%s209 + $0x40] sm:$0xf]
      %v243 = vld [vmem:[%s209 + $0x44] sm:$0xf]
      %v244 = vld [vmem:[%s209 + $0x48] sm:$0xf]
      %v245 = vld [vmem:[%s209 + $0x4c] sm:$0xf]
      %v246 = vld [vmem:[%s209 + $0x50] sm:$0xf]
      %v247 = vld [vmem:[%s209 + $0x54] sm:$0xf]
      %v248 = vld [vmem:[%s209 + $0x58] sm:$0xf]
      %v249 = vld [vmem:[%s209 + $0x5c] sm:$0xf]
      %v250 = vld [vmem:[%s209 + $0x60] sm:$0xf]
      %v251 = vld [vmem:[%s209 + $0x64] sm:$0xf]
      %v252 = vld [vmem:[%s209 + $0x68] sm:$0xf]
      %v253 = vld [vmem:[%s209 + $0x6c] sm:$0xf]
      %v254 = vld [vmem:[%s209 + $0x70] sm:$0xf]
      %v255 = vld [vmem:[%s209 + $0x74] sm:$0xf]
      %v256 = vld [vmem:[%s209 + $0x78] sm:$0xf]
      %v257 = vld [vmem:[%s209 + $0x7c] sm:$0xf]
      %v258 = vld [vmem:[%s209 + $0x80] sm:$0xf]
      %v259 = vld [vmem:[%s209 + $0x84] sm:$0xf]
      %v260 = vld [vmem:[%s209 + $0x88] sm:$0xf]
      %v261 = vld [vmem:[%s209 + $0x8c] sm:$0xf]
      %v262 = vld [vmem:[%s209 + $0x90] sm:$0xf]
      %v263 = vld [vmem:[%s209 + $0x94] sm:$0xf]
      %v264 = vld [vmem:[%s209 + $0x98] sm:$0xf]
      %v265 = vld [vmem:[%s209 + $0x9c] sm:$0xf]
      %v266 = vld [vmem:[%s209 + $0xa0] sm:$0xf]
      %v267 = vld [vmem:[%s209 + $0xa4] sm:$0xf]
      %v268 = vld [vmem:[%s209 + $0xa8] sm:$0xf]
      %v269 = vld [vmem:[%s209 + $0xac] sm:$0xf]
      %v270 = vld [vmem:[%s209 + $0xb0] sm:$0xf]
      %v271 = vld [vmem:[%s209 + $0xb4] sm:$0xf]
      %v272 = vld [vmem:[%s209 + $0xb8] sm:$0xf]
      %v273 = vld [vmem:[%s209 + $0xbc] sm:$0xf]
      %v274 = vld [vmem:[%s209 + $0xc0] sm:$0xf]
      %v275 = vld [vmem:[%s209 + $0xc4] sm:$0xf]
      %v276 = vld [vmem:[%s209 + $0xc8] sm:$0xf]
      %v277 = vld [vmem:[%s209 + $0xcc] sm:$0xf]
      %v278 = vld [vmem:[%s209 + $0xd0] sm:$0xf]
      %v279 = vld [vmem:[%s209 + $0xd4] sm:$0xf]
      %v280 = vld [vmem:[%s209 + $0xd8] sm:$0xf]
      %v281 = vld [vmem:[%s209 + $0xdc] sm:$0xf]
      %v282 = vld [vmem:[%s209 + $0xe0] sm:$0xf]
      %v283 = vld [vmem:[%s209 + $0xe4] sm:$0xf]
      %v284 = vld [vmem:[%s209 + $0xe8] sm:$0xf]
      %v285 = vld [vmem:[%s209 + $0xec] sm:$0xf]
      %v286 = vld [vmem:[%s209 + $0xf0] sm:$0xf]
      %v287 = vld [vmem:[%s209 + $0xf4] sm:$0xf]
      %v288 = vld [vmem:[%s209 + $0xf8] sm:$0xf]
      %v289 = vld [vmem:[%s209 + $0xfc] sm:$0xf]
      %v292 = vunpack.c.l.b16 %v224
      %v293 = vunpack.c.h.b16 %v224
      %v294 = vunpack.c.l.b16 %v225
      %v295 = vunpack.c.h.b16 %v225
      %v296 = vpack.c.b16 %v292, %v292
      %v297 = vpack.c.b16 %v293, %v293
      %v298 = vpack.c.b16 %v294, %v294
      %v299 = vpack.c.b16 %v295, %v295
      %v368 = vunpack.c.l.b16 %v226
      %v369 = vunpack.c.l.b16 %v227
      %v370 = vunpack.c.l.b16 %v228
      %v371 = vunpack.c.l.b16 %v229
      %v372 = vunpack.c.l.b16 %v230
      %v373 = vunpack.c.l.b16 %v231
      %v374 = vunpack.c.l.b16 %v232
      %v375 = vunpack.c.l.b16 %v233
      %v376 = vunpack.c.l.b16 %v234
      %v377 = vunpack.c.l.b16 %v235
      %v378 = vunpack.c.l.b16 %v236
      %v379 = vunpack.c.l.b16 %v237
      %v380 = vunpack.c.l.b16 %v238
      %v381 = vunpack.c.l.b16 %v239
      %v382 = vunpack.c.l.b16 %v240
      %v383 = vunpack.c.l.b16 %v241
      %v384 = vunpack.c.l.b16 %v242
      %v385 = vunpack.c.l.b16 %v243
      %v386 = vunpack.c.l.b16 %v244
      %v387 = vunpack.c.l.b16 %v245
      %v388 = vunpack.c.l.b16 %v246
      %v389 = vunpack.c.l.b16 %v247
      %v390 = vunpack.c.l.b16 %v248
      %v391 = vunpack.c.l.b16 %v249
      %v392 = vunpack.c.l.b16 %v250
      %v393 = vunpack.c.l.b16 %v251
      %v394 = vunpack.c.l.b16 %v252
      %v395 = vunpack.c.l.b16 %v253
      %v396 = vunpack.c.l.b16 %v254
      %v397 = vunpack.c.l.b16 %v255
      %v398 = vunpack.c.l.b16 %v256
      %v399 = vunpack.c.l.b16 %v257
      %v400 = vunpack.c.l.b16 %v258
      %v401 = vunpack.c.l.b16 %v259
      %v402 = vunpack.c.l.b16 %v260
      %v403 = vunpack.c.l.b16 %v261
      %v404 = vunpack.c.l.b16 %v262
      %v405 = vunpack.c.l.b16 %v263
      %v406 = vunpack.c.l.b16 %v264
      %v407 = vunpack.c.l.b16 %v265
      %v408 = vunpack.c.l.b16 %v266
      %v409 = vunpack.c.l.b16 %v267
      %v410 = vunpack.c.l.b16 %v268
      %v411 = vunpack.c.l.b16 %v269
      %v412 = vunpack.c.l.b16 %v270
      %v413 = vunpack.c.l.b16 %v271
      %v414 = vunpack.c.l.b16 %v272
      %v415 = vunpack.c.l.b16 %v273
      %v416 = vunpack.c.l.b16 %v274
      %v417 = vunpack.c.l.b16 %v275
      %v418 = vunpack.c.l.b16 %v276
      %v419 = vunpack.c.l.b16 %v277
      %v420 = vunpack.c.l.b16 %v278
      %v421 = vunpack.c.l.b16 %v279
      %v422 = vunpack.c.l.b16 %v280
      %v423 = vunpack.c.l.b16 %v281
      %v424 = vunpack.c.l.b16 %v282
      %v425 = vunpack.c.l.b16 %v283
      %v426 = vunpack.c.l.b16 %v284
      %v427 = vunpack.c.l.b16 %v285
      %v428 = vunpack.c.l.b16 %v286
      %v429 = vunpack.c.l.b16 %v287
      %v430 = vunpack.c.l.b16 %v288
      %v431 = vunpack.c.l.b16 %v289
      %v432 = vpack.c.b16 %v369, %v368
      %v433 = vpack.c.b16 %v371, %v370
      %v434 = vpack.c.b16 %v373, %v372
      %v435 = vpack.c.b16 %v375, %v374
      %v436 = vpack.c.b16 %v377, %v376
      %v437 = vpack.c.b16 %v379, %v378
      %v438 = vpack.c.b16 %v381, %v380
      %v439 = vpack.c.b16 %v383, %v382
      %v440 = vpack.c.b16 %v385, %v384
      %v441 = vpack.c.b16 %v387, %v386
      %v442 = vpack.c.b16 %v389, %v388
      %v443 = vpack.c.b16 %v391, %v390
      %v444 = vpack.c.b16 %v393, %v392
      %v445 = vpack.c.b16 %v395, %v394
      %v446 = vpack.c.b16 %v397, %v396
      %v447 = vpack.c.b16 %v399, %v398
      %v448 = vpack.c.b16 %v401, %v400
      %v449 = vpack.c.b16 %v403, %v402
      %v450 = vpack.c.b16 %v405, %v404
      %v451 = vpack.c.b16 %v407, %v406
      %v452 = vpack.c.b16 %v409, %v408
      %v453 = vpack.c.b16 %v411, %v410
      %v454 = vpack.c.b16 %v413, %v412
      %v455 = vpack.c.b16 %v415, %v414
      %v456 = vpack.c.b16 %v417, %v416
      %v457 = vpack.c.b16 %v419, %v418
      %v458 = vpack.c.b16 %v421, %v420
      %v459 = vpack.c.b16 %v423, %v422
      %v460 = vpack.c.b16 %v425, %v424
      %v461 = vpack.c.b16 %v427, %v426
      %v462 = vpack.c.b16 %v429, %v428
      %v463 = vpack.c.b16 %v431, %v430
      %496 = vmatpush.bf16.msra.mxu0 %v439
      %497 = vmatpush.bf16.msra.mxu0 %v438
      %498 = vmatpush.bf16.msra.mxu0 %v437
      %499 = vmatpush.bf16.msra.mxu0 %v436
      %500 = vmatpush.bf16.msra.mxu0 %v435
      %501 = vmatpush.bf16.msra.mxu0 %v434
      %502 = vmatpush.bf16.msra.mxu0 %v433
      %503 = vmatpush.bf16.msra.mxu0 %v432
      %504 = vmatmul.bf16.gmra.mxu0 %v296
      %v505 = vpop.f32.mrf.mxu0
      %v506 = vadd.f32 0.0, %v505
      %v507 = vpop.f32.mrf.mxu0
      %508 = vdwg.mxu0
      %509 = vmatpush.bf16.msra.mxu0 %v447
      %510 = vmatpush.bf16.msra.mxu0 %v446
      %511 = vmatpush.bf16.msra.mxu0 %v445
      %512 = vmatpush.bf16.msra.mxu0 %v444
      %513 = vmatpush.bf16.msra.mxu0 %v443
      %514 = vmatpush.bf16.msra.mxu0 %v442
      %515 = vmatpush.bf16.msra.mxu0 %v441
      %516 = vmatpush.bf16.msra.mxu0 %v440
      %517 = vmatmul.bf16.gmra.mxu0 %v297
      %v518 = vpop.f32.mrf.mxu0
      %v519 = vadd.f32 %v506, %v518
      %v520 = vpop.f32.mrf.mxu0
      %521 = vdwg.mxu0
      %522 = vmatpush.bf16.msra.mxu0 %v455
      %523 = vmatpush.bf16.msra.mxu0 %v454
      %524 = vmatpush.bf16.msra.mxu0 %v453
      %525 = vmatpush.bf16.msra.mxu0 %v452
      %526 = vmatpush.bf16.msra.mxu0 %v451
      %527 = vmatpush.bf16.msra.mxu0 %v450
      %528 = vmatpush.bf16.msra.mxu0 %v449
      %529 = vmatpush.bf16.msra.mxu0 %v448
      %530 = vmatmul.bf16.gmra.mxu0 %v298
      %v531 = vpop.f32.mrf.mxu0
      %v532 = vadd.f32 %v519, %v531
      %v533 = vpop.f32.mrf.mxu0
      %534 = vdwg.mxu0
      %535 = vmatpush.bf16.msra.mxu0 %v463
      %536 = vmatpush.bf16.msra.mxu0 %v462
      %537 = vmatpush.bf16.msra.mxu0 %v461
      %538 = vmatpush.bf16.msra.mxu0 %v460
      %539 = vmatpush.bf16.msra.mxu0 %v459
      %540 = vmatpush.bf16.msra.mxu0 %v458
      %541 = vmatpush.bf16.msra.mxu0 %v457
      %542 = vmatpush.bf16.msra.mxu0 %v456
      %543 = vmatmul.bf16.gmra.mxu0 %v299
      %v544 = vpop.f32.mrf.mxu0
      %v545 = vadd.f32 %v532, %v544
      %v546 = vpop.f32.mrf.mxu0
      %547 = vdwg.mxu0
      %v548 = vadd.f32 %v223, %v545
      %549 = vst [vmem:[#allocation2] sm:$0xff] %v548
      %p550 = scmp.eq.s32.totalorder %s20, 15
      // Predicated region
      $region33: #{discriminator_forward.15} parent=27 // pred_check
        %p551 = pneg %p550
      $region34: #{discriminator_forward.15} parent=27 // pred_check_branch
        %553 = sbr.rel (%p551) target = $region36
      $region35: #{discriminator_forward.15} parent=27 // pred_region
        %v554 = vld [vmem:[#allocation2] sm:$0xff]
        %v555 = vsub.f32 0.0, %v554
        %v556 = vmul.f32 %v555, 1.442695
        %v557 = vpow.pop %v556
        %v558 = vadd.f32 %v557, 1.0
        %v559 = vrcp.pop %v558
        %v560 = vmul.f32 %v558, %v559
        %v561 = vsub.f32 1.0, %v560
        %v562 = vmul.f32 %v559, %v561
        %v563 = vadd.f32 %v559, %v562
        %vm564 = vweird.f32 %v558
        %vm565 = vweird.f32 %v559
        %vm566 = vmor %vm564, %vm565
        %v567 = vsel %vm566, %v559, %v563
        %v568 = vand.u32 2147483647, %v558
        %vm569 = vcmp.eq.f32.partialorder %v568, 8.507059e+37
        %v570 = vand.u32 %v558, 2147483648
        %v571 = vor.u32 1.1754944e-38, %v570
        %v572 = vsel %vm569, %v571, %v567
        %v573 = vmul.f32 1.0, %v572
        %574 = vst [vmem:[%s217] sm:$0xff] %v573
      $region36: #{discriminator_forward.15} parent=27 // pred_fallthru
        _
      %p575 = scmp.lt.s32.totalorder %s18, 0
      %s576 = scalar_select %p575, %s18, 0
      %p577 = scmp.lt.s32.totalorder %s19, 0
      %s578 = scalar_select %p577, %s19, 0
      %s579 = sadd.s32 %s578, %s576
      %s580 = smul.addr %s579, 8
      %s581 = scalar_lea.vmem %s2, %s580
      // Predicated region
      $region37: #{discriminator_forward.15} parent=27 // pred_check
        %p582 = pneg %p108
      $region38: #{discriminator_forward.15} parent=27 // pred_check_branch
        %584 = sbr.rel (%p582) target = $region40
      $region39: #{discriminator_forward.15} parent=27 // pred_region
        _
      $region40: #{discriminator_forward.15} parent=27 // pred_fallthru
        _
      // Predicated region
      $region41: #{discriminator_forward.15} parent=27 // pred_check
        %p585 = pneg %p108
      $region42: #{discriminator_forward.15} parent=27 // pred_check_branch
        %587 = sbr.rel (%p585) target = $region44
      $region43: #{discriminator_forward.15} parent=27 // pred_region
        %p588 = scmp.lt.s32.totalorder %s18, 0
        %s589 = scalar_select %p588, %s18, 0
        %p590 = scmp.lt.s32.totalorder %s19, 0
        %s591 = scalar_select %p590, %s19, 0
        %s592 = sadd.s32 %s591, %s589
        %s593 = smul.addr %s592, 8
        %s594 = scalar_lea.vmem %s2, %s593
      $region44: #{discriminator_forward.15} parent=27 // pred_fallthru
        _
    $region28: #{discriminator_forward.15} parent=5 // pred_fallthru
      _
    %p595 = scmp.le.s32.totalorder 2, %s8
    // Predicated region
    $region45: #{discriminator_forward.15} parent=5 // pred_check
      %p596 = pneg %p595
    $region46: #{discriminator_forward.15} parent=5 // pred_check_branch
      %598 = sbr.rel (%p596) target = $region48
    $region47: #{discriminator_forward.15} parent=5 // pred_region
      %s599 = ssub.s32 %s8, 2
    $region48: #{discriminator_forward.15} parent=5 // pred_fallthru
      _
  $region6: #{discriminator_forward.15} parent=0 // loop_footer
    %s12 = sadd.s32 1, %s8
  $region7: #{discriminator_forward.15} parent=0 // loop_footer_branch
    %7 = sbr.rel target = $region3
  $region8: #{discriminator_forward.15} parent=0 // loop_exit
    _

</llo_original>
